<compile_context>
chip_gen: v7x
topology: tpu7x:2x2x1
jax: 0.10.0
libtpu: 0.0.40
codegen_flags: <defaults>
</compile_context>

<pallas_src>
import numpy as np
import jax
import jax.numpy as jnp
from jax import lax
from jax.experimental import pallas as pl
from jax.experimental.pallas import tpu as pltpu

# ----------------------- small, forward-consistent hyper-params -----------------------
CHANS     = 1          # must be 1 (see note above)
CLASSES   = 4
FEAT_DIM  = 128        # feature_dim  (divisible by PK2)
TIME_PTS  = 8          # time_points  (spiking time window)
TEMP_K    = 8          # temp_kernel  (block1 temporal kernel width)
F1        = 8
D_MULT    = 2          # d
F2        = 8
PK2       = 16         # AvgPool3d((1,1,pk2))
K3        = 16         # block3 kernel width, hard-coded (1, 16) in the module
C2        = D_MULT * F1
FO        = FEAT_DIM // PK2
LINEAR    = FO * F2 * TIME_PTS            # linear_size
BATCH     = 2

DECAY     = 0.25
INIT_THRE = 1.0
NSPIKE_D  = 4                              # D thresholds of the MSF neuron
BN_EPS    = 1e-5

# PyTorch 'same' padding (asymmetric for even kernels): left = (k-1)//2
LP1, RP1 = (TEMP_K - 1) // 2, (TEMP_K - 1) - (TEMP_K - 1) // 2
LP3, RP3 = (K3 - 1) // 2, (K3 - 1) - (K3 - 1) // 2

# batch-on-lanes fusion: BPG batch items per grid step (256-lane operands for BPG=2).
# BPG=2 is best on single-TC v5e/v6e; set BPG=1 on v7x to shard batch across its 2 TCs.
BPG   = 2
assert BATCH % BPG == 0
GRID  = BATCH // BPG
SEGW  = BPG * FEAT_DIM                     # lane width of one time-step slab
CF    = CLASSES * F2                       # rows of the folded FC accumulator
KHALF = (K3 // 2) * C2                     # 128: K extent of one conv3 half

assert INIT_THRE == 1.0                    # msf_spike uses clip(floor(mem), 0, D)


# ----------------------------------- Pallas kernel ------------------------------------
def _spike_eegnet_kernel(xcol_ref, w1_ref, b1_ref, w2_ref, b2_ref, w3hl_ref, b3_ref,
                         wfc_ref, bfc_ref, out_ref, y1s_ref):
    f32 = jnp.float32
    bf16 = jnp.bfloat16

    def msf_spike(mem):
        # == sum_{k=0..3} (mem >= 1 + k)  (INIT_THRE == 1.0, consecutive integer thresholds)
        return jnp.clip(jnp.floor(mem), 0.0, float(NSPIKE_D))

    def gate(spk):
        # == 1 - (spk > 0); spk is integer-valued in {0..4}
        return 1.0 - jnp.minimum(spk, 1.0)

    # ---- block1 conv, hoisted out of the recurrence: ONE f32 MXU dot for all T steps ----
    y1s_ref[...] = (jnp.dot(w1_ref[...], xcol_ref[0], preferred_element_type=f32,
                            precision=lax.Precision.HIGHEST)
                    + b1_ref[...])

    w2, b2 = w2_ref[...], b2_ref[...]          # (C2,1) depthwise scale/bias (perm layout)
    b3  = b3_ref[...]                          # (F2,1)
    bfc = bfc_ref[...]                         # (CLASSES,1)
    # bf16 [hi ; lo] stacked conv3 weights, split on the K axis (taps 0..7 / 8..15)
    w3_a = w3hl_ref[:, :KHALF]                 # (2*F2, 128) bf16
    w3_b = w3hl_ref[:, KHALF:]                 # (2*F2, 128) bf16

    # lane-within-segment index, for the 'same'-padding halo masks (hoisted, reused 8x16x)
    lane = lax.broadcasted_iota(jnp.int32, (C2, FEAT_DIM), 1)

    mem1 = spk1 = mem2 = spk2 = mem3 = spk3 = None
    acc_fc = None
    for t in range(TIME_PTS):
        # ---------------- block1 MSF (conv already done) ----------------
        y1 = y1s_ref[:, t * SEGW:(t + 1) * SEGW]                 # (F1, SEGW) aligned slice
        m = y1 if t == 0 else mem1 * DECAY * gate(spk1) + y1
        spk1, mem1 = msf_spike(m), m

        # -------- block2: depthwise 1x1 conv == per-channel scale (VPU only) --------
        s1rep = jnp.concatenate([spk1, spk1], axis=0)            # (C2, SEGW), perm layout
        y2 = w2 * s1rep + b2
        m = y2 if t == 0 else mem2 * DECAY * gate(spk2) + y2
        spk2, mem2 = msf_spike(m), m
        # Dropout: identity at inference.

        # -------- block3: 'same' conv over features; shifted views built in-register --------
        # pltpu.roll follows jnp.roll semantics: out[j] = x[(j - shift) mod FEAT]; the
        # wrapped halo lanes are zeroed with the iota mask, per 128-lane batch segment.
        segs = [spk2[:, b * FEAT_DIM:(b + 1) * FEAT_DIM] for b in range(BPG)]
        views = []
        for k in range(K3):
            s = LP3 - k
            parts = []
            for seg in segs:
                if s == 0:
                    v = seg
                else:
                    v = pltpu.roll(seg, shift=s % FEAT_DIM, axis=1)
                    if s > 0:
                        v = jnp.where(lane >= s, v, 0.0)
                    else:
                        v = jnp.where(lane < FEAT_DIM + s, v, 0.0)
                parts.append(v)
            view = parts[0] if BPG == 1 else jnp.concatenate(parts, axis=1)
            views.append(view.astype(bf16))                      # spikes are exact in bf16

        # two K=128 halves (bounds vreg pressure); hi/lo weight parts stacked on M so each
        # half is ONE native bf16 MXU dot of (2*F2,128)@(128,SEGW)
        z_a = jnp.concatenate(views[:K3 // 2], axis=0)           # (KHALF, SEGW) bf16
        z_b = jnp.concatenate(views[K3 // 2:], axis=0)
        p_a = jnp.dot(w3_a, z_a, preferred_element_type=f32)     # (2*F2, SEGW)
        p_b = jnp.dot(w3_b, z_b, preferred_element_type=f32)
        y3 = p_a[:F2] + p_a[F2:] + p_b[:F2] + p_b[F2:] + b3      # hi+lo recombine
        m = y3 if t == 0 else mem3 * DECAY * gate(spk3) + y3
        spk3, mem3 = msf_spike(m), m

        # -------- AvgPool + FC folded into W_eff[t]; accumulate weighted spikes (VPU) --------
        s3rep = jnp.concatenate([spk3] * CLASSES, axis=0)        # (CF, SEGW)
        contrib = wfc_ref[t] * s3rep
        acc_fc = contrib if t == 0 else acc_fc + contrib

    # ---- epilogue: class-group sublane sums + per-batch-segment lane sums (no MXU) ----
    per_class = jnp.concatenate(
        [jnp.sum(acc_fc[c * F2:(c + 1) * F2, :], axis=0, keepdims=True)
         for c in range(CLASSES)], axis=0)                       # (CLASSES, SEGW)
    logits = jnp.concatenate(
        [jnp.sum(per_class[:, b * FEAT_DIM:(b + 1) * FEAT_DIM], axis=1, keepdims=True)
         for b in range(BPG)], axis=1) + bfc                     # (CLASSES, BPG)
    out_ref[...] = logits.reshape(1, CLASSES, BPG)


def _param_spec(shape):
    n = len(shape)
    return pl.BlockSpec(shape, lambda g, _n=n: (0,) * _n)


@jax.jit
def spike_eegnet_forward(x, kp):
    # glue: (B, T*F) -> 'same'-pre-padded im2col, batch fused onto lanes within each
    # time-step slab: xcol[g, k, (t*BPG + b)*F + j] = xpad[g*BPG + b, t, j + k]
    xr = x.reshape(BATCH, TIME_PTS, FEAT_DIM)
    xpad = jnp.pad(xr, ((0, 0), (0, 0), (LP1, RP1)))
    xcol = jnp.stack([xpad[:, :, k:k + FEAT_DIM] for k in range(TEMP_K)], axis=0)
    xcol = xcol.reshape(TEMP_K, GRID, BPG, TIME_PTS, FEAT_DIM)
    xcol = jnp.transpose(xcol, (1, 0, 3, 2, 4)).reshape(GRID, TEMP_K, TIME_PTS * SEGW)

    ins = (xcol, kp["w1"], kp["b1"], kp["w2"], kp["b2"], kp["w3hl"], kp["b3"],
           kp["wfc"], kp["bfc"])
    out = pl.pallas_call(
        _spike_eegnet_kernel,
        out_shape=jax.ShapeDtypeStruct((GRID, CLASSES, BPG), jnp.float32),
        grid=(GRID,),
        in_specs=[pl.BlockSpec((1, TEMP_K, TIME_PTS * SEGW), lambda g: (g, 0, 0))]
                 + [_param_spec(a.shape) for a in ins[1:]],
        out_specs=pl.BlockSpec((1, CLASSES, BPG), lambda g: (g, 0, 0)),
        scratch_shapes=[pltpu.VMEM((F1, TIME_PTS * SEGW), jnp.float32)],  # hoisted conv1 out
        compiler_params=pltpu.CompilerParams(dimension_semantics=("parallel",)),
    )(*ins)
    # out[g, c, b_local] -> logits[g*BPG + b_local, c]
    return jnp.transpose(out, (0, 2, 1)).reshape(BATCH, CLASSES)


# ------------------------------ parameters (deterministic) ----------------------------
def _renorm(w, maxnorm):                      # torch.renorm(p=2, dim=0, maxnorm)
    flat = w.reshape(w.shape[0], -1)
    n = jnp.sqrt(jnp.sum(flat * flat, axis=1, keepdims=True))
    scale = jnp.where(n > maxnorm, maxnorm / (n + 1e-7), 1.0)
    return (flat * scale).reshape(w.shape)


def init_params(key):
    ks = jax.random.split(key, 20)
    nrm = lambda k, s, sc: sc * jax.random.normal(k, s, jnp.float32)
    p = {
        "w1": nrm(ks[0], (F1, 1, 1, TEMP_K), 0.3),
        "g1": 1.0 + nrm(ks[1], (F1,), 0.1), "be1": nrm(ks[2], (F1,), 0.1),
        "m1": nrm(ks[3], (F1,), 0.1), "v1": 0.5 + jax.random.uniform(ks[4], (F1,), jnp.float32),
        "w2": _renorm(nrm(ks[5], (C2, 1, 1, 1), 1.0), 1.0),            # max_norm1 = 1
        "g2": 1.0 + nrm(ks[6], (C2,), 0.1), "be2": nrm(ks[7], (C2,), 0.1),
        "m2": nrm(ks[8], (C2,), 0.1), "v2": 0.5 + jax.random.uniform(ks[9], (C2,), jnp.float32),
        "w3": nrm(ks[10], (F2, C2, 1, K3), 1.0 / K3),
        "g3": 1.0 + nrm(ks[11], (F2,), 0.1), "be3": nrm(ks[12], (F2,), 0.1),
        "m3": nrm(ks[13], (F2,), 0.1), "v3": 0.5 + jax.random.uniform(ks[14], (F2,), jnp.float32),
        "wfc": _renorm(nrm(ks[15], (CLASSES, LINEAR), 0.1), 0.25),     # max_norm2 = 0.25
        "bfc": nrm(ks[16], (CLASSES,), 0.1),
    }
    return p


def fold_params_for_kernel(p):
    # fold eval-mode BatchNorm (gamma, beta, running mean/var) into conv weight + bias
    def ab(g, be, m, v):
        a = g / jnp.sqrt(v + BN_EPS)
        return a, be - m * a
    a1, c1 = ab(p["g1"], p["be1"], p["m1"], p["v1"])
    a2, c2 = ab(p["g2"], p["be2"], p["m2"], p["v2"])
    a3, c3 = ab(p["g3"], p["be3"], p["m3"], p["v3"])

    # channel permutation used by the kernel's block2/block3 layout:
    # spk2 row c' in the kernel holds original depthwise-output channel perm[c'],
    # so that "repeat input channels" is just concat([spk1, spk1]).
    perm = np.concatenate([np.arange(0, C2, 2), np.arange(1, C2, 2)])

    kp = {}
    kp["w1"] = a1[:, None] * p["w1"][:, 0, 0, :]                    # (F1, TEMP_K)
    kp["b1"] = c1[:, None]                                          # (F1, 1)

    w2s = a2 * p["w2"][:, 0, 0, 0]                                  # depthwise scalars (C2,)
    kp["w2"] = w2s[perm][:, None]                                   # (C2, 1) permuted
    kp["b2"] = c2[perm][:, None]

    w3 = a3[:, None, None] * p["w3"][:, :, 0, :]                    # (F2, C2, K3) BN-folded
    w3p = w3[:, perm, :]                                            # permuted input channels
    w3_full = jnp.transpose(w3p, (0, 2, 1)).reshape(F2, K3 * C2)    # column = k*C2 + c'
    # bf16 hi/lo split (stochastic-free, deterministic): the conv3 spike operand is exact in
    # bf16, so w3 ~= hi + lo gives ~2^-17 relative weight error with native bf16 MXU dots.
    w3_hi = w3_full.astype(jnp.bfloat16)
    w3_lo = (w3_full - w3_hi.astype(jnp.float32)).astype(jnp.bfloat16)
    kp["w3hl"] = jnp.concatenate([w3_hi, w3_lo], axis=0)            # (2*F2, K3*C2) bf16
    kp["b3"] = c3[:, None]                                          # (F2, 1)

    # fold AvgPool3d((1,1,PK2)) (block average) into the FC weight, per time step:
    # torch flatten order of (B, T, F2, 1, FO) is (t, c, fo).
    wfc4 = p["wfc"].reshape(CLASSES, TIME_PTS, F2, FO)
    w_eff = jnp.repeat(wfc4, PK2, axis=3) / PK2                     # (CLASSES, T, F2, FEAT)
    wfc_t = jnp.transpose(w_eff, (1, 0, 2, 3)).reshape(TIME_PTS, CF, FEAT_DIM)
    kp["wfc"] = jnp.tile(wfc_t, (1, 1, BPG))                        # (T, CF, SEGW) lane-fused
    kp["bfc"] = p["bfc"][:, None]
    return kp


# ------------------------- pure-JAX reference (mirrors PyTorch) ------------------------
def reference_forward(x, p):
    xs = x.reshape(BATCH, 1, 1, TIME_PTS, FEAT_DIM).transpose(3, 0, 1, 2, 4)  # (T,B,1,1,F)

    def seq_conv(h, w, pad_w, groups=1):
        T_, B_, C, H, W = h.shape
        y = lax.conv_general_dilated(
            h.reshape(T_ * B_, C, H, W), w, window_strides=(1, 1),
            padding=((0, 0), pad_w), feature_group_count=groups,
            dimension_numbers=("NCHW", "OIHW", "NCHW"),
            precision=lax.Precision.HIGHEST)
        return y.reshape(T_, B_, y.shape[1], y.shape[2], y.shape[3])

    def seq_bn(h, g, be, m, v):
        sh = (1, 1, -1, 1, 1)
        return (h - m.reshape(sh)) / jnp.sqrt(v.reshape(sh) + BN_EPS) * g.reshape(sh) + be.reshape(sh)

    def msf(h):                                   # mem_update_MSF, rectangular (forward)
        out, spike, mem_old = [], jnp.zeros_like(h[0]), jnp.zeros_like(h[0])
        for i in range(h.shape[0]):
            if i >= 1:
                mem = mem_old * DECAY * (1.0 - (spike > 0).astype(h.dtype)) + h[i]
            else:
                mem = h[i]
            spike = jnp.zeros_like(mem)
            for k in range(NSPIKE_D):
                spike = spike + (mem >= (INIT_THRE + k)).astype(h.dtype)
            mem_old = mem
            out.append(spike)
        return jnp.stack(out, 0)

    h = msf(seq_bn(seq_conv(xs, p["w1"], (LP1, RP1)), p["g1"], p["be1"], p["m1"], p["v1"]))
    h = msf(seq_bn(seq_conv(h, p["w2"], (0, 0), groups=F1), p["g2"], p["be2"], p["m2"], p["v2"]))
    h = msf(seq_bn(seq_conv(h, p["w3"], (LP3, RP3)), p["g3"], p["be3"], p["m3"], p["v3"]))
    T_, B_, C, H, W = h.shape
    h = h.reshape(T_, B_, C, H, W // PK2, PK2).mean(-1)           # AvgPool3d((1,1,PK2))
    h = h.transpose(1, 0, 2, 3, 4).reshape(B_, -1)                # permute + flatten
    return jnp.dot(h, p["wfc"].T, precision=lax.Precision.HIGHEST) + p["bfc"]


# ----------------------------------------- main ----------------------------------------
if __name__ == "__main__":
    key = jax.random.PRNGKey(0)
    kx, kparam = jax.random.split(key)
    x = jax.random.normal(kx, (BATCH, TIME_PTS * FEAT_DIM), jnp.float32)

    params = init_params(kparam)
    kparams = fold_params_for_kernel(params)

    out = spike_eegnet_forward(x, kparams)
    out = jax.block_until_ready(out)
    assert out.shape == (BATCH, CLASSES)

    ref = jax.jit(reference_forward)(x, params)
    ref = jax.block_until_ready(ref)
    # Tolerance accounts for the discrete MSF spike thresholds under the reduced-precision
    # bf16 hi/lo conv3 (a rare near-threshold flip costs ~3e-4 per logit); genuine layout /
    # parameter-fold bugs produce O(0.1)+ errors and are still caught.
    if not np.allclose(np.asarray(out), np.asarray(ref), rtol=1e-2, atol=1e-2):
        raise AssertionError(f"Pallas kernel mismatch:\nkernel={np.asarray(out)}\nref={np.asarray(ref)}")

    print("KERNEL_OK")
</pallas_src>

<mosaic_0001>
module attributes {stable_mosaic.version = 11 : i64} {
  func.func @_spike_eegnet_kernel(%arg0: i32, %arg1: memref<1x8x2048xf32, #tpu.memory_space<vmem>>, %arg2: memref<8x8xf32, #tpu.memory_space<vmem>>, %arg3: memref<8x1xf32, #tpu.memory_space<vmem>>, %arg4: memref<16x1xf32, #tpu.memory_space<vmem>>, %arg5: memref<16x1xf32, #tpu.memory_space<vmem>>, %arg6: memref<16x256xbf16, #tpu.memory_space<vmem>>, %arg7: memref<8x1xf32, #tpu.memory_space<vmem>>, %arg8: memref<8x32x256xf32, #tpu.memory_space<vmem>>, %arg9: memref<4x1xf32, #tpu.memory_space<vmem>>, %arg10: memref<1x4x2xf32, #tpu.memory_space<vmem>>, %arg11: memref<8x2048xf32, #tpu.memory_space<vmem>>) attributes {dimension_semantics = [#tpu.dimension_semantics<parallel>], iteration_bounds = array<i64: 1>, scalar_prefetch = 0 : i64, scratch_operands = 1 : i64, tpu.core_type = #tpu.core_type<tc>, window_params = [{transform_indices = @transform_0, window_bounds = array<i64: 1, 8, 2048>}, {pipeline_mode = #tpu.pipeline_mode<synchronous>, transform_indices = @transform_1, window_bounds = array<i64: 8, 8>}, {pipeline_mode = #tpu.pipeline_mode<synchronous>, transform_indices = @transform_2, window_bounds = array<i64: 8, 1>}, {pipeline_mode = #tpu.pipeline_mode<synchronous>, transform_indices = @transform_3, window_bounds = array<i64: 16, 1>}, {pipeline_mode = #tpu.pipeline_mode<synchronous>, transform_indices = @transform_4, window_bounds = array<i64: 16, 1>}, {pipeline_mode = #tpu.pipeline_mode<synchronous>, transform_indices = @transform_5, window_bounds = array<i64: 16, 256>}, {pipeline_mode = #tpu.pipeline_mode<synchronous>, transform_indices = @transform_6, window_bounds = array<i64: 8, 1>}, {pipeline_mode = #tpu.pipeline_mode<synchronous>, transform_indices = @transform_7, window_bounds = array<i64: 8, 32, 256>}, {pipeline_mode = #tpu.pipeline_mode<synchronous>, transform_indices = @transform_8, window_bounds = array<i64: 4, 1>}, {transform_indices = @transform_9, window_bounds = array<i64: 1, 4, 2>}]} {
    %c0 = arith.constant 0 : index
    %c0_0 = arith.constant 0 : index
    %0 = vector.load %arg2[%c0, %c0_0] : memref<8x8xf32, #tpu.memory_space<vmem>>, vector<8x8xf32>
    %c0_1 = arith.constant 0 : index
    %c0_2 = arith.constant 0 : index
    %c0_3 = arith.constant 0 : index
    %1 = vector.load %arg1[%c0_1, %c0_2, %c0_3] : memref<1x8x2048xf32, #tpu.memory_space<vmem>>, vector<1x8x2048xf32>
    %2 = vector.shape_cast %1 : vector<1x8x2048xf32> to vector<8x2048xf32>
    %cst = arith.constant dense<0.000000e+00> : vector<8x2048xf32>
    %3 = tpu.matmul %0, %2, %cst {dimension_numbers = #tpu.dot_dimension_numbers<[1], [0], [0], [1], [0, 0, 1, 1], [], []>, precision = #tpu.contract_precision<fp32>} : vector<8x8xf32>, vector<8x2048xf32>, vector<8x2048xf32> -> vector<8x2048xf32>
    %c0_4 = arith.constant 0 : index
    %c0_5 = arith.constant 0 : index
    %4 = vector.load %arg3[%c0_4, %c0_5] : memref<8x1xf32, #tpu.memory_space<vmem>>, vector<8x1xf32>
    %5 = vector.broadcast %4 : vector<8x1xf32> to vector<8x2048xf32>
    %6 = arith.addf %3, %5 : vector<8x2048xf32>
    %c0_6 = arith.constant 0 : index
    %c0_7 = arith.constant 0 : index
    %7 = vector.load %arg11[%c0_6, %c0_7] : memref<8x2048xf32, #tpu.memory_space<vmem>>, vector<8x2048xf32>
    tpu.vector_store %arg11[%c0_6, %c0_7], %6 {strides = array<i32>} : memref<8x2048xf32, #tpu.memory_space<vmem>>, vector<8x2048xf32>,
    %c0_8 = arith.constant 0 : index
    %c0_9 = arith.constant 0 : index
    %8 = vector.load %arg4[%c0_8, %c0_9] : memref<16x1xf32, #tpu.memory_space<vmem>>, vector<16x1xf32>
    %c0_10 = arith.constant 0 : index
    %c0_11 = arith.constant 0 : index
    %9 = vector.load %arg5[%c0_10, %c0_11] : memref<16x1xf32, #tpu.memory_space<vmem>>, vector<16x1xf32>
    %c0_12 = arith.constant 0 : index
    %c0_13 = arith.constant 0 : index
    %10 = vector.load %arg7[%c0_12, %c0_13] : memref<8x1xf32, #tpu.memory_space<vmem>>, vector<8x1xf32>
    %c0_14 = arith.constant 0 : index
    %c0_15 = arith.constant 0 : index
    %11 = vector.load %arg9[%c0_14, %c0_15] : memref<4x1xf32, #tpu.memory_space<vmem>>, vector<4x1xf32>
    %c0_16 = arith.constant 0 : index
    %c0_17 = arith.constant 0 : index
    %12 = vector.load %arg6[%c0_16, %c0_17] : memref<16x256xbf16, #tpu.memory_space<vmem>>, vector<16x128xbf16>
    %c0_18 = arith.constant 0 : index
    %c128 = arith.constant 128 : index
    %13 = vector.load %arg6[%c0_18, %c128] : memref<16x256xbf16, #tpu.memory_space<vmem>>, vector<16x128xbf16>
    %14 = tpu.iota {dimensions = array<i32: 1>} : vector<16x128xi32>
    %c0_19 = arith.constant 0 : index
    %c0_20 = arith.constant 0 : index
    %15 = vector.load %arg11[%c0_19, %c0_20] : memref<8x2048xf32, #tpu.memory_space<vmem>>, vector<8x256xf32>
    %16 = math.floor %15 : vector<8x256xf32>
    %cst_21 = arith.constant 0.000000e+00 : f32
    %cst_22 = arith.constant 4.000000e+00 : f32
    %17 = vector.broadcast %cst_21 : f32 to vector<8x256xf32>
    %18 = arith.maximumf %17, %16 : vector<8x256xf32>
    %19 = vector.broadcast %cst_22 : f32 to vector<8x256xf32>
    %20 = arith.minimumf %19, %18 : vector<8x256xf32>
    %21 = tpu.concatenate %20, %20 in 0 : vector<8x256xf32>, vector<8x256xf32> -> vector<16x256xf32>
    %22 = vector.broadcast %8 : vector<16x1xf32> to vector<16x256xf32>
    %23 = arith.mulf %22, %21 : vector<16x256xf32>
    %24 = vector.broadcast %9 : vector<16x1xf32> to vector<16x256xf32>
    %25 = arith.addf %23, %24 : vector<16x256xf32>
    %26 = math.floor %25 : vector<16x256xf32>
    %cst_23 = arith.constant 0.000000e+00 : f32
    %cst_24 = arith.constant 4.000000e+00 : f32
    %27 = vector.broadcast %cst_23 : f32 to vector<16x256xf32>
    %28 = arith.maximumf %27, %26 : vector<16x256xf32>
    %29 = vector.broadcast %cst_24 : f32 to vector<16x256xf32>
    %30 = arith.minimumf %29, %28 : vector<16x256xf32>
    %31 = vector.extract_strided_slice %30 {offsets = [0, 0], sizes = [16, 128], strides = [1, 1]} : vector<16x256xf32> to vector<16x128xf32>
    %32 = vector.extract_strided_slice %30 {offsets = [0, 128], sizes = [16, 128], strides = [1, 1]} : vector<16x256xf32> to vector<16x128xf32>
    %c7_i32 = arith.constant 7 : i32
    %33 = tpu.dynamic_rotate %31 by %c7_i32 dim 1 : vector<16x128xf32>, i32 -> vector<16x128xf32>
    %c7_i32_25 = arith.constant 7 : i32
    %34 = vector.broadcast %c7_i32_25 : i32 to vector<16x128xi32>
    %35 = arith.cmpi sge, %14, %34 : vector<16x128xi32>
    %cst_26 = arith.constant 0.000000e+00 : f32
    %36 = vector.broadcast %cst_26 : f32 to vector<16x128xf32>
    %37 = arith.select %35, %33, %36 : vector<16x128xi1>, vector<16x128xf32>
    %c7_i32_27 = arith.constant 7 : i32
    %38 = tpu.dynamic_rotate %32 by %c7_i32_27 dim 1 : vector<16x128xf32>, i32 -> vector<16x128xf32>
    %c7_i32_28 = arith.constant 7 : i32
    %39 = vector.broadcast %c7_i32_28 : i32 to vector<16x128xi32>
    %40 = arith.cmpi sge, %14, %39 : vector<16x128xi32>
    %cst_29 = arith.constant 0.000000e+00 : f32
    %41 = vector.broadcast %cst_29 : f32 to vector<16x128xf32>
    %42 = arith.select %40, %38, %41 : vector<16x128xi1>, vector<16x128xf32>
    %43 = tpu.concatenate %37, %42 in 1 : vector<16x128xf32>, vector<16x128xf32> -> vector<16x256xf32>
    %44 = arith.truncf %43 : vector<16x256xf32> to vector<16x256xbf16>
    %c6_i32 = arith.constant 6 : i32
    %45 = tpu.dynamic_rotate %31 by %c6_i32 dim 1 : vector<16x128xf32>, i32 -> vector<16x128xf32>
    %c6_i32_30 = arith.constant 6 : i32
    %46 = vector.broadcast %c6_i32_30 : i32 to vector<16x128xi32>
    %47 = arith.cmpi sge, %14, %46 : vector<16x128xi32>
    %cst_31 = arith.constant 0.000000e+00 : f32
    %48 = vector.broadcast %cst_31 : f32 to vector<16x128xf32>
    %49 = arith.select %47, %45, %48 : vector<16x128xi1>, vector<16x128xf32>
    %c6_i32_32 = arith.constant 6 : i32
    %50 = tpu.dynamic_rotate %32 by %c6_i32_32 dim 1 : vector<16x128xf32>, i32 -> vector<16x128xf32>
    %c6_i32_33 = arith.constant 6 : i32
    %51 = vector.broadcast %c6_i32_33 : i32 to vector<16x128xi32>
    %52 = arith.cmpi sge, %14, %51 : vector<16x128xi32>
    %cst_34 = arith.constant 0.000000e+00 : f32
    %53 = vector.broadcast %cst_34 : f32 to vector<16x128xf32>
    %54 = arith.select %52, %50, %53 : vector<16x128xi1>, vector<16x128xf32>
    %55 = tpu.concatenate %49, %54 in 1 : vector<16x128xf32>, vector<16x128xf32> -> vector<16x256xf32>
    %56 = arith.truncf %55 : vector<16x256xf32> to vector<16x256xbf16>
    %c5_i32 = arith.constant 5 : i32
    %57 = tpu.dynamic_rotate %31 by %c5_i32 dim 1 : vector<16x128xf32>, i32 -> vector<16x128xf32>
    %c5_i32_35 = arith.constant 5 : i32
    %58 = vector.broadcast %c5_i32_35 : i32 to vector<16x128xi32>
    %59 = arith.cmpi sge, %14, %58 : vector<16x128xi32>
    %cst_36 = arith.constant 0.000000e+00 : f32
    %60 = vector.broadcast %cst_36 : f32 to vector<16x128xf32>
    %61 = arith.select %59, %57, %60 : vector<16x128xi1>, vector<16x128xf32>
    %c5_i32_37 = arith.constant 5 : i32
    %62 = tpu.dynamic_rotate %32 by %c5_i32_37 dim 1 : vector<16x128xf32>, i32 -> vector<16x128xf32>
    %c5_i32_38 = arith.constant 5 : i32
    %63 = vector.broadcast %c5_i32_38 : i32 to vector<16x128xi32>
    %64 = arith.cmpi sge, %14, %63 : vector<16x128xi32>
    %cst_39 = arith.constant 0.000000e+00 : f32
    %65 = vector.broadcast %cst_39 : f32 to vector<16x128xf32>
    %66 = arith.select %64, %62, %65 : vector<16x128xi1>, vector<16x128xf32>
    %67 = tpu.concatenate %61, %66 in 1 : vector<16x128xf32>, vector<16x128xf32> -> vector<16x256xf32>
    %68 = arith.truncf %67 : vector<16x256xf32> to vector<16x256xbf16>
    %c4_i32 = arith.constant 4 : i32
    %69 = tpu.dynamic_rotate %31 by %c4_i32 dim 1 : vector<16x128xf32>, i32 -> vector<16x128xf32>
    %c4_i32_40 = arith.constant 4 : i32
    %70 = vector.broadcast %c4_i32_40 : i32 to vector<16x128xi32>
    %71 = arith.cmpi sge, %14, %70 : vector<16x128xi32>
    %cst_41 = arith.constant 0.000000e+00 : f32
    %72 = vector.broadcast %cst_41 : f32 to vector<16x128xf32>
    %73 = arith.select %71, %69, %72 : vector<16x128xi1>, vector<16x128xf32>
    %c4_i32_42 = arith.constant 4 : i32
    %74 = tpu.dynamic_rotate %32 by %c4_i32_42 dim 1 : vector<16x128xf32>, i32 -> vector<16x128xf32>
    %c4_i32_43 = arith.constant 4 : i32
    %75 = vector.broadcast %c4_i32_43 : i32 to vector<16x128xi32>
    %76 = arith.cmpi sge, %14, %75 : vector<16x128xi32>
    %cst_44 = arith.constant 0.000000e+00 : f32
    %77 = vector.broadcast %cst_44 : f32 to vector<16x128xf32>
    %78 = arith.select %76, %74, %77 : vector<16x128xi1>, vector<16x128xf32>
    %79 = tpu.concatenate %73, %78 in 1 : vector<16x128xf32>, vector<16x128xf32> -> vector<16x256xf32>
    %80 = arith.truncf %79 : vector<16x256xf32> to vector<16x256xbf16>
    %c3_i32 = arith.constant 3 : i32
    %81 = tpu.dynamic_rotate %31 by %c3_i32 dim 1 : vector<16x128xf32>, i32 -> vector<16x128xf32>
    %c3_i32_45 = arith.constant 3 : i32
    %82 = vector.broadcast %c3_i32_45 : i32 to vector<16x128xi32>
    %83 = arith.cmpi sge, %14, %82 : vector<16x128xi32>
    %cst_46 = arith.constant 0.000000e+00 : f32
    %84 = vector.broadcast %cst_46 : f32 to vector<16x128xf32>
    %85 = arith.select %83, %81, %84 : vector<16x128xi1>, vector<16x128xf32>
    %c3_i32_47 = arith.constant 3 : i32
    %86 = tpu.dynamic_rotate %32 by %c3_i32_47 dim 1 : vector<16x128xf32>, i32 -> vector<16x128xf32>
    %c3_i32_48 = arith.constant 3 : i32
    %87 = vector.broadcast %c3_i32_48 : i32 to vector<16x128xi32>
    %88 = arith.cmpi sge, %14, %87 : vector<16x128xi32>
    %cst_49 = arith.constant 0.000000e+00 : f32
    %89 = vector.broadcast %cst_49 : f32 to vector<16x128xf32>
    %90 = arith.select %88, %86, %89 : vector<16x128xi1>, vector<16x128xf32>
    %91 = tpu.concatenate %85, %90 in 1 : vector<16x128xf32>, vector<16x128xf32> -> vector<16x256xf32>
    %92 = arith.truncf %91 : vector<16x256xf32> to vector<16x256xbf16>
    %c2_i32 = arith.constant 2 : i32
    %93 = tpu.dynamic_rotate %31 by %c2_i32 dim 1 : vector<16x128xf32>, i32 -> vector<16x128xf32>
    %c2_i32_50 = arith.constant 2 : i32
    %94 = vector.broadcast %c2_i32_50 : i32 to vector<16x128xi32>
    %95 = arith.cmpi sge, %14, %94 : vector<16x128xi32>
    %cst_51 = arith.constant 0.000000e+00 : f32
    %96 = vector.broadcast %cst_51 : f32 to vector<16x128xf32>
    %97 = arith.select %95, %93, %96 : vector<16x128xi1>, vector<16x128xf32>
    %c2_i32_52 = arith.constant 2 : i32
    %98 = tpu.dynamic_rotate %32 by %c2_i32_52 dim 1 : vector<16x128xf32>, i32 -> vector<16x128xf32>
    %c2_i32_53 = arith.constant 2 : i32
    %99 = vector.broadcast %c2_i32_53 : i32 to vector<16x128xi32>
    %100 = arith.cmpi sge, %14, %99 : vector<16x128xi32>
    %cst_54 = arith.constant 0.000000e+00 : f32
    %101 = vector.broadcast %cst_54 : f32 to vector<16x128xf32>
    %102 = arith.select %100, %98, %101 : vector<16x128xi1>, vector<16x128xf32>
    %103 = tpu.concatenate %97, %102 in 1 : vector<16x128xf32>, vector<16x128xf32> -> vector<16x256xf32>
    %104 = arith.truncf %103 : vector<16x256xf32> to vector<16x256xbf16>
    %c1_i32 = arith.constant 1 : i32
    %105 = tpu.dynamic_rotate %31 by %c1_i32 dim 1 : vector<16x128xf32>, i32 -> vector<16x128xf32>
    %c1_i32_55 = arith.constant 1 : i32
    %106 = vector.broadcast %c1_i32_55 : i32 to vector<16x128xi32>
    %107 = arith.cmpi sge, %14, %106 : vector<16x128xi32>
    %cst_56 = arith.constant 0.000000e+00 : f32
    %108 = vector.broadcast %cst_56 : f32 to vector<16x128xf32>
    %109 = arith.select %107, %105, %108 : vector<16x128xi1>, vector<16x128xf32>
    %c1_i32_57 = arith.constant 1 : i32
    %110 = tpu.dynamic_rotate %32 by %c1_i32_57 dim 1 : vector<16x128xf32>, i32 -> vector<16x128xf32>
    %c1_i32_58 = arith.constant 1 : i32
    %111 = vector.broadcast %c1_i32_58 : i32 to vector<16x128xi32>
    %112 = arith.cmpi sge, %14, %111 : vector<16x128xi32>
    %cst_59 = arith.constant 0.000000e+00 : f32
    %113 = vector.broadcast %cst_59 : f32 to vector<16x128xf32>
    %114 = arith.select %112, %110, %113 : vector<16x128xi1>, vector<16x128xf32>
    %115 = tpu.concatenate %109, %114 in 1 : vector<16x128xf32>, vector<16x128xf32> -> vector<16x256xf32>
    %116 = arith.truncf %115 : vector<16x256xf32> to vector<16x256xbf16>
    %117 = tpu.concatenate %31, %32 in 1 : vector<16x128xf32>, vector<16x128xf32> -> vector<16x256xf32>
    %118 = arith.truncf %117 : vector<16x256xf32> to vector<16x256xbf16>
    %c127_i32 = arith.constant 127 : i32
    %119 = tpu.dynamic_rotate %31 by %c127_i32 dim 1 : vector<16x128xf32>, i32 -> vector<16x128xf32>
    %c127_i32_60 = arith.constant 127 : i32
    %120 = vector.broadcast %c127_i32_60 : i32 to vector<16x128xi32>
    %121 = arith.cmpi slt, %14, %120 : vector<16x128xi32>
    %cst_61 = arith.constant 0.000000e+00 : f32
    %122 = vector.broadcast %cst_61 : f32 to vector<16x128xf32>
    %123 = arith.select %121, %119, %122 : vector<16x128xi1>, vector<16x128xf32>
    %c127_i32_62 = arith.constant 127 : i32
    %124 = tpu.dynamic_rotate %32 by %c127_i32_62 dim 1 : vector<16x128xf32>, i32 -> vector<16x128xf32>
    %c127_i32_63 = arith.constant 127 : i32
    %125 = vector.broadcast %c127_i32_63 : i32 to vector<16x128xi32>
    %126 = arith.cmpi slt, %14, %125 : vector<16x128xi32>
    %cst_64 = arith.constant 0.000000e+00 : f32
    %127 = vector.broadcast %cst_64 : f32 to vector<16x128xf32>
    %128 = arith.select %126, %124, %127 : vector<16x128xi1>, vector<16x128xf32>
    %129 = tpu.concatenate %123, %128 in 1 : vector<16x128xf32>, vector<16x128xf32> -> vector<16x256xf32>
    %130 = arith.truncf %129 : vector<16x256xf32> to vector<16x256xbf16>
    %c126_i32 = arith.constant 126 : i32
    %131 = tpu.dynamic_rotate %31 by %c126_i32 dim 1 : vector<16x128xf32>, i32 -> vector<16x128xf32>
    %c126_i32_65 = arith.constant 126 : i32
    %132 = vector.broadcast %c126_i32_65 : i32 to vector<16x128xi32>
    %133 = arith.cmpi slt, %14, %132 : vector<16x128xi32>
    %cst_66 = arith.constant 0.000000e+00 : f32
    %134 = vector.broadcast %cst_66 : f32 to vector<16x128xf32>
    %135 = arith.select %133, %131, %134 : vector<16x128xi1>, vector<16x128xf32>
    %c126_i32_67 = arith.constant 126 : i32
    %136 = tpu.dynamic_rotate %32 by %c126_i32_67 dim 1 : vector<16x128xf32>, i32 -> vector<16x128xf32>
    %c126_i32_68 = arith.constant 126 : i32
    %137 = vector.broadcast %c126_i32_68 : i32 to vector<16x128xi32>
    %138 = arith.cmpi slt, %14, %137 : vector<16x128xi32>
    %cst_69 = arith.constant 0.000000e+00 : f32
    %139 = vector.broadcast %cst_69 : f32 to vector<16x128xf32>
    %140 = arith.select %138, %136, %139 : vector<16x128xi1>, vector<16x128xf32>
    %141 = tpu.concatenate %135, %140 in 1 : vector<16x128xf32>, vector<16x128xf32> -> vector<16x256xf32>
    %142 = arith.truncf %141 : vector<16x256xf32> to vector<16x256xbf16>
    %c125_i32 = arith.constant 125 : i32
    %143 = tpu.dynamic_rotate %31 by %c125_i32 dim 1 : vector<16x128xf32>, i32 -> vector<16x128xf32>
    %c125_i32_70 = arith.constant 125 : i32
    %144 = vector.broadcast %c125_i32_70 : i32 to vector<16x128xi32>
    %145 = arith.cmpi slt, %14, %144 : vector<16x128xi32>
    %cst_71 = arith.constant 0.000000e+00 : f32
    %146 = vector.broadcast %cst_71 : f32 to vector<16x128xf32>
    %147 = arith.select %145, %143, %146 : vector<16x128xi1>, vector<16x128xf32>
    %c125_i32_72 = arith.constant 125 : i32
    %148 = tpu.dynamic_rotate %32 by %c125_i32_72 dim 1 : vector<16x128xf32>, i32 -> vector<16x128xf32>
    %c125_i32_73 = arith.constant 125 : i32
    %149 = vector.broadcast %c125_i32_73 : i32 to vector<16x128xi32>
    %150 = arith.cmpi slt, %14, %149 : vector<16x128xi32>
    %cst_74 = arith.constant 0.000000e+00 : f32
    %151 = vector.broadcast %cst_74 : f32 to vector<16x128xf32>
    %152 = arith.select %150, %148, %151 : vector<16x128xi1>, vector<16x128xf32>
    %153 = tpu.concatenate %147, %152 in 1 : vector<16x128xf32>, vector<16x128xf32> -> vector<16x256xf32>
    %154 = arith.truncf %153 : vector<16x256xf32> to vector<16x256xbf16>
    %c124_i32 = arith.constant 124 : i32
    %155 = tpu.dynamic_rotate %31 by %c124_i32 dim 1 : vector<16x128xf32>, i32 -> vector<16x128xf32>
    %c124_i32_75 = arith.constant 124 : i32
    %156 = vector.broadcast %c124_i32_75 : i32 to vector<16x128xi32>
    %157 = arith.cmpi slt, %14, %156 : vector<16x128xi32>
    %cst_76 = arith.constant 0.000000e+00 : f32
    %158 = vector.broadcast %cst_76 : f32 to vector<16x128xf32>
    %159 = arith.select %157, %155, %158 : vector<16x128xi1>, vector<16x128xf32>
    %c124_i32_77 = arith.constant 124 : i32
    %160 = tpu.dynamic_rotate %32 by %c124_i32_77 dim 1 : vector<16x128xf32>, i32 -> vector<16x128xf32>
    %c124_i32_78 = arith.constant 124 : i32
    %161 = vector.broadcast %c124_i32_78 : i32 to vector<16x128xi32>
    %162 = arith.cmpi slt, %14, %161 : vector<16x128xi32>
    %cst_79 = arith.constant 0.000000e+00 : f32
    %163 = vector.broadcast %cst_79 : f32 to vector<16x128xf32>
    %164 = arith.select %162, %160, %163 : vector<16x128xi1>, vector<16x128xf32>
    %165 = tpu.concatenate %159, %164 in 1 : vector<16x128xf32>, vector<16x128xf32> -> vector<16x256xf32>
    %166 = arith.truncf %165 : vector<16x256xf32> to vector<16x256xbf16>
    %c123_i32 = arith.constant 123 : i32
    %167 = tpu.dynamic_rotate %31 by %c123_i32 dim 1 : vector<16x128xf32>, i32 -> vector<16x128xf32>
    %c123_i32_80 = arith.constant 123 : i32
    %168 = vector.broadcast %c123_i32_80 : i32 to vector<16x128xi32>
    %169 = arith.cmpi slt, %14, %168 : vector<16x128xi32>
    %cst_81 = arith.constant 0.000000e+00 : f32
    %170 = vector.broadcast %cst_81 : f32 to vector<16x128xf32>
    %171 = arith.select %169, %167, %170 : vector<16x128xi1>, vector<16x128xf32>
    %c123_i32_82 = arith.constant 123 : i32
    %172 = tpu.dynamic_rotate %32 by %c123_i32_82 dim 1 : vector<16x128xf32>, i32 -> vector<16x128xf32>
    %c123_i32_83 = arith.constant 123 : i32
    %173 = vector.broadcast %c123_i32_83 : i32 to vector<16x128xi32>
    %174 = arith.cmpi slt, %14, %173 : vector<16x128xi32>
    %cst_84 = arith.constant 0.000000e+00 : f32
    %175 = vector.broadcast %cst_84 : f32 to vector<16x128xf32>
    %176 = arith.select %174, %172, %175 : vector<16x128xi1>, vector<16x128xf32>
    %177 = tpu.concatenate %171, %176 in 1 : vector<16x128xf32>, vector<16x128xf32> -> vector<16x256xf32>
    %178 = arith.truncf %177 : vector<16x256xf32> to vector<16x256xbf16>
    %c122_i32 = arith.constant 122 : i32
    %179 = tpu.dynamic_rotate %31 by %c122_i32 dim 1 : vector<16x128xf32>, i32 -> vector<16x128xf32>
    %c122_i32_85 = arith.constant 122 : i32
    %180 = vector.broadcast %c122_i32_85 : i32 to vector<16x128xi32>
    %181 = arith.cmpi slt, %14, %180 : vector<16x128xi32>
    %cst_86 = arith.constant 0.000000e+00 : f32
    %182 = vector.broadcast %cst_86 : f32 to vector<16x128xf32>
    %183 = arith.select %181, %179, %182 : vector<16x128xi1>, vector<16x128xf32>
    %c122_i32_87 = arith.constant 122 : i32
    %184 = tpu.dynamic_rotate %32 by %c122_i32_87 dim 1 : vector<16x128xf32>, i32 -> vector<16x128xf32>
    %c122_i32_88 = arith.constant 122 : i32
    %185 = vector.broadcast %c122_i32_88 : i32 to vector<16x128xi32>
    %186 = arith.cmpi slt, %14, %185 : vector<16x128xi32>
    %cst_89 = arith.constant 0.000000e+00 : f32
    %187 = vector.broadcast %cst_89 : f32 to vector<16x128xf32>
    %188 = arith.select %186, %184, %187 : vector<16x128xi1>, vector<16x128xf32>
    %189 = tpu.concatenate %183, %188 in 1 : vector<16x128xf32>, vector<16x128xf32> -> vector<16x256xf32>
    %190 = arith.truncf %189 : vector<16x256xf32> to vector<16x256xbf16>
    %c121_i32 = arith.constant 121 : i32
    %191 = tpu.dynamic_rotate %31 by %c121_i32 dim 1 : vector<16x128xf32>, i32 -> vector<16x128xf32>
    %c121_i32_90 = arith.constant 121 : i32
    %192 = vector.broadcast %c121_i32_90 : i32 to vector<16x128xi32>
    %193 = arith.cmpi slt, %14, %192 : vector<16x128xi32>
    %cst_91 = arith.constant 0.000000e+00 : f32
    %194 = vector.broadcast %cst_91 : f32 to vector<16x128xf32>
    %195 = arith.select %193, %191, %194 : vector<16x128xi1>, vector<16x128xf32>
    %c121_i32_92 = arith.constant 121 : i32
    %196 = tpu.dynamic_rotate %32 by %c121_i32_92 dim 1 : vector<16x128xf32>, i32 -> vector<16x128xf32>
    %c121_i32_93 = arith.constant 121 : i32
    %197 = vector.broadcast %c121_i32_93 : i32 to vector<16x128xi32>
    %198 = arith.cmpi slt, %14, %197 : vector<16x128xi32>
    %cst_94 = arith.constant 0.000000e+00 : f32
    %199 = vector.broadcast %cst_94 : f32 to vector<16x128xf32>
    %200 = arith.select %198, %196, %199 : vector<16x128xi1>, vector<16x128xf32>
    %201 = tpu.concatenate %195, %200 in 1 : vector<16x128xf32>, vector<16x128xf32> -> vector<16x256xf32>
    %202 = arith.truncf %201 : vector<16x256xf32> to vector<16x256xbf16>
    %c120_i32 = arith.constant 120 : i32
    %203 = tpu.dynamic_rotate %31 by %c120_i32 dim 1 : vector<16x128xf32>, i32 -> vector<16x128xf32>
    %c120_i32_95 = arith.constant 120 : i32
    %204 = vector.broadcast %c120_i32_95 : i32 to vector<16x128xi32>
    %205 = arith.cmpi slt, %14, %204 : vector<16x128xi32>
    %cst_96 = arith.constant 0.000000e+00 : f32
    %206 = vector.broadcast %cst_96 : f32 to vector<16x128xf32>
    %207 = arith.select %205, %203, %206 : vector<16x128xi1>, vector<16x128xf32>
    %c120_i32_97 = arith.constant 120 : i32
    %208 = tpu.dynamic_rotate %32 by %c120_i32_97 dim 1 : vector<16x128xf32>, i32 -> vector<16x128xf32>
    %c120_i32_98 = arith.constant 120 : i32
    %209 = vector.broadcast %c120_i32_98 : i32 to vector<16x128xi32>
    %210 = arith.cmpi slt, %14, %209 : vector<16x128xi32>
    %cst_99 = arith.constant 0.000000e+00 : f32
    %211 = vector.broadcast %cst_99 : f32 to vector<16x128xf32>
    %212 = arith.select %210, %208, %211 : vector<16x128xi1>, vector<16x128xf32>
    %213 = tpu.concatenate %207, %212 in 1 : vector<16x128xf32>, vector<16x128xf32> -> vector<16x256xf32>
    %214 = arith.truncf %213 : vector<16x256xf32> to vector<16x256xbf16>
    %215 = tpu.concatenate %44, %56, %68, %80, %92, %104, %116, %118 in 0 : vector<16x256xbf16>, vector<16x256xbf16>, vector<16x256xbf16>, vector<16x256xbf16>, vector<16x256xbf16>, vector<16x256xbf16>, vector<16x256xbf16>, vector<16x256xbf16> -> vector<128x256xbf16>
    %216 = tpu.concatenate %130, %142, %154, %166, %178, %190, %202, %214 in 0 : vector<16x256xbf16>, vector<16x256xbf16>, vector<16x256xbf16>, vector<16x256xbf16>, vector<16x256xbf16>, vector<16x256xbf16>, vector<16x256xbf16>, vector<16x256xbf16> -> vector<128x256xbf16>
    %cst_100 = arith.constant dense<0.000000e+00> : vector<16x256xf32>
    %217 = tpu.matmul %12, %215, %cst_100 {dimension_numbers = #tpu.dot_dimension_numbers<[1], [0], [0], [1], [0, 0, 1, 1], [], []>} : vector<16x128xbf16>, vector<128x256xbf16>, vector<16x256xf32> -> vector<16x256xf32>
    %cst_101 = arith.constant dense<0.000000e+00> : vector<16x256xf32>
    %218 = tpu.matmul %13, %216, %cst_101 {dimension_numbers = #tpu.dot_dimension_numbers<[1], [0], [0], [1], [0, 0, 1, 1], [], []>} : vector<16x128xbf16>, vector<128x256xbf16>, vector<16x256xf32> -> vector<16x256xf32>
    %219 = vector.extract_strided_slice %217 {offsets = [0, 0], sizes = [8, 256], strides = [1, 1]} : vector<16x256xf32> to vector<8x256xf32>
    %220 = vector.extract_strided_slice %217 {offsets = [8, 0], sizes = [8, 256], strides = [1, 1]} : vector<16x256xf32> to vector<8x256xf32>
    %221 = arith.addf %219, %220 : vector<8x256xf32>
    %222 = vector.extract_strided_slice %218 {offsets = [0, 0], sizes = [8, 256], strides = [1, 1]} : vector<16x256xf32> to vector<8x256xf32>
    %223 = arith.addf %221, %222 : vector<8x256xf32>
    %224 = vector.extract_strided_slice %218 {offsets = [8, 0], sizes = [8, 256], strides = [1, 1]} : vector<16x256xf32> to vector<8x256xf32>
    %225 = arith.addf %223, %224 : vector<8x256xf32>
    %226 = vector.broadcast %10 : vector<8x1xf32> to vector<8x256xf32>
    %227 = arith.addf %225, %226 : vector<8x256xf32>
    %228 = math.floor %227 : vector<8x256xf32>
    %cst_102 = arith.constant 0.000000e+00 : f32
    %cst_103 = arith.constant 4.000000e+00 : f32
    %229 = vector.broadcast %cst_102 : f32 to vector<8x256xf32>
    %230 = arith.maximumf %229, %228 : vector<8x256xf32>
    %231 = vector.broadcast %cst_103 : f32 to vector<8x256xf32>
    %232 = arith.minimumf %231, %230 : vector<8x256xf32>
    %233 = tpu.concatenate %232, %232, %232, %232 in 0 : vector<8x256xf32>, vector<8x256xf32>, vector<8x256xf32>, vector<8x256xf32> -> vector<32x256xf32>
    %c0_104 = arith.constant 0 : index
    %c0_105 = arith.constant 0 : index
    %c0_106 = arith.constant 0 : index
    %234 = vector.load %arg8[%c0_104, %c0_105, %c0_106] : memref<8x32x256xf32, #tpu.memory_space<vmem>>, vector<1x32x256xf32>
    %235 = vector.shape_cast %234 : vector<1x32x256xf32> to vector<32x256xf32>
    %236 = arith.mulf %235, %233 : vector<32x256xf32>
    %c0_107 = arith.constant 0 : index
    %c256 = arith.constant 256 : index
    %237 = vector.load %arg11[%c0_107, %c256] : memref<8x2048xf32, #tpu.memory_space<vmem>>, vector<8x256xf32>
    %cst_108 = arith.constant 2.500000e-01 : f32
    %238 = vector.broadcast %cst_108 : f32 to vector<8x256xf32>
    %239 = arith.mulf %15, %238 : vector<8x256xf32>
    %cst_109 = arith.constant 1.000000e+00 : f32
    %240 = vector.broadcast %cst_109 : f32 to vector<8x256xf32>
    %241 = arith.minimumf %20, %240 : vector<8x256xf32>
    %cst_110 = arith.constant 1.000000e+00 : f32
    %242 = vector.broadcast %cst_110 : f32 to vector<8x256xf32>
    %243 = arith.subf %242, %241 : vector<8x256xf32>
    %244 = arith.mulf %239, %243 : vector<8x256xf32>
    %245 = arith.addf %244, %237 : vector<8x256xf32>
    %246 = math.floor %245 : vector<8x256xf32>
    %cst_111 = arith.constant 0.000000e+00 : f32
    %cst_112 = arith.constant 4.000000e+00 : f32
    %247 = vector.broadcast %cst_111 : f32 to vector<8x256xf32>
    %248 = arith.maximumf %247, %246 : vector<8x256xf32>
    %249 = vector.broadcast %cst_112 : f32 to vector<8x256xf32>
    %250 = arith.minimumf %249, %248 : vector<8x256xf32>
    %251 = tpu.concatenate %250, %250 in 0 : vector<8x256xf32>, vector<8x256xf32> -> vector<16x256xf32>
    %252 = vector.broadcast %8 : vector<16x1xf32> to vector<16x256xf32>
    %253 = arith.mulf %252, %251 : vector<16x256xf32>
    %254 = vector.broadcast %9 : vector<16x1xf32> to vector<16x256xf32>
    %255 = arith.addf %253, %254 : vector<16x256xf32>
    %cst_113 = arith.constant 2.500000e-01 : f32
    %256 = vector.broadcast %cst_113 : f32 to vector<16x256xf32>
    %257 = arith.mulf %25, %256 : vector<16x256xf32>
    %cst_114 = arith.constant 1.000000e+00 : f32
    %258 = vector.broadcast %cst_114 : f32 to vector<16x256xf32>
    %259 = arith.minimumf %30, %258 : vector<16x256xf32>
    %cst_115 = arith.constant 1.000000e+00 : f32
    %260 = vector.broadcast %cst_115 : f32 to vector<16x256xf32>
    %261 = arith.subf %260, %259 : vector<16x256xf32>
    %262 = arith.mulf %257, %261 : vector<16x256xf32>
    %263 = arith.addf %262, %255 : vector<16x256xf32>
    %264 = math.floor %263 : vector<16x256xf32>
    %cst_116 = arith.constant 0.000000e+00 : f32
    %cst_117 = arith.constant 4.000000e+00 : f32
    %265 = vector.broadcast %cst_116 : f32 to vector<16x256xf32>
    %266 = arith.maximumf %265, %264 : vector<16x256xf32>
    %267 = vector.broadcast %cst_117 : f32 to vector<16x256xf32>
    %268 = arith.minimumf %267, %266 : vector<16x256xf32>
    %269 = vector.extract_strided_slice %268 {offsets = [0, 0], sizes = [16, 128], strides = [1, 1]} : vector<16x256xf32> to vector<16x128xf32>
    %270 = vector.extract_strided_slice %268 {offsets = [0, 128], sizes = [16, 128], strides = [1, 1]} : vector<16x256xf32> to vector<16x128xf32>
    %c7_i32_118 = arith.constant 7 : i32
    %271 = tpu.dynamic_rotate %269 by %c7_i32_118 dim 1 : vector<16x128xf32>, i32 -> vector<16x128xf32>
    %c7_i32_119 = arith.constant 7 : i32
    %272 = vector.broadcast %c7_i32_119 : i32 to vector<16x128xi32>
    %273 = arith.cmpi sge, %14, %272 : vector<16x128xi32>
    %cst_120 = arith.constant 0.000000e+00 : f32
    %274 = vector.broadcast %cst_120 : f32 to vector<16x128xf32>
    %275 = arith.select %273, %271, %274 : vector<16x128xi1>, vector<16x128xf32>
    %c7_i32_121 = arith.constant 7 : i32
    %276 = tpu.dynamic_rotate %270 by %c7_i32_121 dim 1 : vector<16x128xf32>, i32 -> vector<16x128xf32>
    %c7_i32_122 = arith.constant 7 : i32
    %277 = vector.broadcast %c7_i32_122 : i32 to vector<16x128xi32>
    %278 = arith.cmpi sge, %14, %277 : vector<16x128xi32>
    %cst_123 = arith.constant 0.000000e+00 : f32
    %279 = vector.broadcast %cst_123 : f32 to vector<16x128xf32>
    %280 = arith.select %278, %276, %279 : vector<16x128xi1>, vector<16x128xf32>
    %281 = tpu.concatenate %275, %280 in 1 : vector<16x128xf32>, vector<16x128xf32> -> vector<16x256xf32>
    %282 = arith.truncf %281 : vector<16x256xf32> to vector<16x256xbf16>
    %c6_i32_124 = arith.constant 6 : i32
    %283 = tpu.dynamic_rotate %269 by %c6_i32_124 dim 1 : vector<16x128xf32>, i32 -> vector<16x128xf32>
    %c6_i32_125 = arith.constant 6 : i32
    %284 = vector.broadcast %c6_i32_125 : i32 to vector<16x128xi32>
    %285 = arith.cmpi sge, %14, %284 : vector<16x128xi32>
    %cst_126 = arith.constant 0.000000e+00 : f32
    %286 = vector.broadcast %cst_126 : f32 to vector<16x128xf32>
    %287 = arith.select %285, %283, %286 : vector<16x128xi1>, vector<16x128xf32>
    %c6_i32_127 = arith.constant 6 : i32
    %288 = tpu.dynamic_rotate %270 by %c6_i32_127 dim 1 : vector<16x128xf32>, i32 -> vector<16x128xf32>
    %c6_i32_128 = arith.constant 6 : i32
    %289 = vector.broadcast %c6_i32_128 : i32 to vector<16x128xi32>
    %290 = arith.cmpi sge, %14, %289 : vector<16x128xi32>
    %cst_129 = arith.constant 0.000000e+00 : f32
    %291 = vector.broadcast %cst_129 : f32 to vector<16x128xf32>
    %292 = arith.select %290, %288, %291 : vector<16x128xi1>, vector<16x128xf32>
    %293 = tpu.concatenate %287, %292 in 1 : vector<16x128xf32>, vector<16x128xf32> -> vector<16x256xf32>
    %294 = arith.truncf %293 : vector<16x256xf32> to vector<16x256xbf16>
    %c5_i32_130 = arith.constant 5 : i32
    %295 = tpu.dynamic_rotate %269 by %c5_i32_130 dim 1 : vector<16x128xf32>, i32 -> vector<16x128xf32>
    %c5_i32_131 = arith.constant 5 : i32
    %296 = vector.broadcast %c5_i32_131 : i32 to vector<16x128xi32>
    %297 = arith.cmpi sge, %14, %296 : vector<16x128xi32>
    %cst_132 = arith.constant 0.000000e+00 : f32
    %298 = vector.broadcast %cst_132 : f32 to vector<16x128xf32>
    %299 = arith.select %297, %295, %298 : vector<16x128xi1>, vector<16x128xf32>
    %c5_i32_133 = arith.constant 5 : i32
    %300 = tpu.dynamic_rotate %270 by %c5_i32_133 dim 1 : vector<16x128xf32>, i32 -> vector<16x128xf32>
    %c5_i32_134 = arith.constant 5 : i32
    %301 = vector.broadcast %c5_i32_134 : i32 to vector<16x128xi32>
    %302 = arith.cmpi sge, %14, %301 : vector<16x128xi32>
    %cst_135 = arith.constant 0.000000e+00 : f32
    %303 = vector.broadcast %cst_135 : f32 to vector<16x128xf32>
    %304 = arith.select %302, %300, %303 : vector<16x128xi1>, vector<16x128xf32>
    %305 = tpu.concatenate %299, %304 in 1 : vector<16x128xf32>, vector<16x128xf32> -> vector<16x256xf32>
    %306 = arith.truncf %305 : vector<16x256xf32> to vector<16x256xbf16>
    %c4_i32_136 = arith.constant 4 : i32
    %307 = tpu.dynamic_rotate %269 by %c4_i32_136 dim 1 : vector<16x128xf32>, i32 -> vector<16x128xf32>
    %c4_i32_137 = arith.constant 4 : i32
    %308 = vector.broadcast %c4_i32_137 : i32 to vector<16x128xi32>
    %309 = arith.cmpi sge, %14, %308 : vector<16x128xi32>
    %cst_138 = arith.constant 0.000000e+00 : f32
    %310 = vector.broadcast %cst_138 : f32 to vector<16x128xf32>
    %311 = arith.select %309, %307, %310 : vector<16x128xi1>, vector<16x128xf32>
    %c4_i32_139 = arith.constant 4 : i32
    %312 = tpu.dynamic_rotate %270 by %c4_i32_139 dim 1 : vector<16x128xf32>, i32 -> vector<16x128xf32>
    %c4_i32_140 = arith.constant 4 : i32
    %313 = vector.broadcast %c4_i32_140 : i32 to vector<16x128xi32>
    %314 = arith.cmpi sge, %14, %313 : vector<16x128xi32>
    %cst_141 = arith.constant 0.000000e+00 : f32
    %315 = vector.broadcast %cst_141 : f32 to vector<16x128xf32>
    %316 = arith.select %314, %312, %315 : vector<16x128xi1>, vector<16x128xf32>
    %317 = tpu.concatenate %311, %316 in 1 : vector<16x128xf32>, vector<16x128xf32> -> vector<16x256xf32>
    %318 = arith.truncf %317 : vector<16x256xf32> to vector<16x256xbf16>
    %c3_i32_142 = arith.constant 3 : i32
    %319 = tpu.dynamic_rotate %269 by %c3_i32_142 dim 1 : vector<16x128xf32>, i32 -> vector<16x128xf32>
    %c3_i32_143 = arith.constant 3 : i32
    %320 = vector.broadcast %c3_i32_143 : i32 to vector<16x128xi32>
    %321 = arith.cmpi sge, %14, %320 : vector<16x128xi32>
    %cst_144 = arith.constant 0.000000e+00 : f32
    %322 = vector.broadcast %cst_144 : f32 to vector<16x128xf32>
    %323 = arith.select %321, %319, %322 : vector<16x128xi1>, vector<16x128xf32>
    %c3_i32_145 = arith.constant 3 : i32
    %324 = tpu.dynamic_rotate %270 by %c3_i32_145 dim 1 : vector<16x128xf32>, i32 -> vector<16x128xf32>
    %c3_i32_146 = arith.constant 3 : i32
    %325 = vector.broadcast %c3_i32_146 : i32 to vector<16x128xi32>
    %326 = arith.cmpi sge, %14, %325 : vector<16x128xi32>
    %cst_147 = arith.constant 0.000000e+00 : f32
    %327 = vector.broadcast %cst_147 : f32 to vector<16x128xf32>
    %328 = arith.select %326, %324, %327 : vector<16x128xi1>, vector<16x128xf32>
    %329 = tpu.concatenate %323, %328 in 1 : vector<16x128xf32>, vector<16x128xf32> -> vector<16x256xf32>
    %330 = arith.truncf %329 : vector<16x256xf32> to vector<16x256xbf16>
    %c2_i32_148 = arith.constant 2 : i32
    %331 = tpu.dynamic_rotate %269 by %c2_i32_148 dim 1 : vector<16x128xf32>, i32 -> vector<16x128xf32>
    %c2_i32_149 = arith.constant 2 : i32
    %332 = vector.broadcast %c2_i32_149 : i32 to vector<16x128xi32>
    %333 = arith.cmpi sge, %14, %332 : vector<16x128xi32>
    %cst_150 = arith.constant 0.000000e+00 : f32
    %334 = vector.broadcast %cst_150 : f32 to vector<16x128xf32>
    %335 = arith.select %333, %331, %334 : vector<16x128xi1>, vector<16x128xf32>
    %c2_i32_151 = arith.constant 2 : i32
    %336 = tpu.dynamic_rotate %270 by %c2_i32_151 dim 1 : vector<16x128xf32>, i32 -> vector<16x128xf32>
    %c2_i32_152 = arith.constant 2 : i32
    %337 = vector.broadcast %c2_i32_152 : i32 to vector<16x128xi32>
    %338 = arith.cmpi sge, %14, %337 : vector<16x128xi32>
    %cst_153 = arith.constant 0.000000e+00 : f32
    %339 = vector.broadcast %cst_153 : f32 to vector<16x128xf32>
    %340 = arith.select %338, %336, %339 : vector<16x128xi1>, vector<16x128xf32>
    %341 = tpu.concatenate %335, %340 in 1 : vector<16x128xf32>, vector<16x128xf32> -> vector<16x256xf32>
    %342 = arith.truncf %341 : vector<16x256xf32> to vector<16x256xbf16>
    %c1_i32_154 = arith.constant 1 : i32
    %343 = tpu.dynamic_rotate %269 by %c1_i32_154 dim 1 : vector<16x128xf32>, i32 -> vector<16x128xf32>
    %c1_i32_155 = arith.constant 1 : i32
    %344 = vector.broadcast %c1_i32_155 : i32 to vector<16x128xi32>
    %345 = arith.cmpi sge, %14, %344 : vector<16x128xi32>
    %cst_156 = arith.constant 0.000000e+00 : f32
    %346 = vector.broadcast %cst_156 : f32 to vector<16x128xf32>
    %347 = arith.select %345, %343, %346 : vector<16x128xi1>, vector<16x128xf32>
    %c1_i32_157 = arith.constant 1 : i32
    %348 = tpu.dynamic_rotate %270 by %c1_i32_157 dim 1 : vector<16x128xf32>, i32 -> vector<16x128xf32>
    %c1_i32_158 = arith.constant 1 : i32
    %349 = vector.broadcast %c1_i32_158 : i32 to vector<16x128xi32>
    %350 = arith.cmpi sge, %14, %349 : vector<16x128xi32>
    %cst_159 = arith.constant 0.000000e+00 : f32
    %351 = vector.broadcast %cst_159 : f32 to vector<16x128xf32>
    %352 = arith.select %350, %348, %351 : vector<16x128xi1>, vector<16x128xf32>
    %353 = tpu.concatenate %347, %352 in 1 : vector<16x128xf32>, vector<16x128xf32> -> vector<16x256xf32>
    %354 = arith.truncf %353 : vector<16x256xf32> to vector<16x256xbf16>
    %355 = tpu.concatenate %269, %270 in 1 : vector<16x128xf32>, vector<16x128xf32> -> vector<16x256xf32>
    %356 = arith.truncf %355 : vector<16x256xf32> to vector<16x256xbf16>
    %c127_i32_160 = arith.constant 127 : i32
    %357 = tpu.dynamic_rotate %269 by %c127_i32_160 dim 1 : vector<16x128xf32>, i32 -> vector<16x128xf32>
    %c127_i32_161 = arith.constant 127 : i32
    %358 = vector.broadcast %c127_i32_161 : i32 to vector<16x128xi32>
    %359 = arith.cmpi slt, %14, %358 : vector<16x128xi32>
    %cst_162 = arith.constant 0.000000e+00 : f32
    %360 = vector.broadcast %cst_162 : f32 to vector<16x128xf32>
    %361 = arith.select %359, %357, %360 : vector<16x128xi1>, vector<16x128xf32>
    %c127_i32_163 = arith.constant 127 : i32
    %362 = tpu.dynamic_rotate %270 by %c127_i32_163 dim 1 : vector<16x128xf32>, i32 -> vector<16x128xf32>
    %c127_i32_164 = arith.constant 127 : i32
    %363 = vector.broadcast %c127_i32_164 : i32 to vector<16x128xi32>
    %364 = arith.cmpi slt, %14, %363 : vector<16x128xi32>
    %cst_165 = arith.constant 0.000000e+00 : f32
    %365 = vector.broadcast %cst_165 : f32 to vector<16x128xf32>
    %366 = arith.select %364, %362, %365 : vector<16x128xi1>, vector<16x128xf32>
    %367 = tpu.concatenate %361, %366 in 1 : vector<16x128xf32>, vector<16x128xf32> -> vector<16x256xf32>
    %368 = arith.truncf %367 : vector<16x256xf32> to vector<16x256xbf16>
    %c126_i32_166 = arith.constant 126 : i32
    %369 = tpu.dynamic_rotate %269 by %c126_i32_166 dim 1 : vector<16x128xf32>, i32 -> vector<16x128xf32>
    %c126_i32_167 = arith.constant 126 : i32
    %370 = vector.broadcast %c126_i32_167 : i32 to vector<16x128xi32>
    %371 = arith.cmpi slt, %14, %370 : vector<16x128xi32>
    %cst_168 = arith.constant 0.000000e+00 : f32
    %372 = vector.broadcast %cst_168 : f32 to vector<16x128xf32>
    %373 = arith.select %371, %369, %372 : vector<16x128xi1>, vector<16x128xf32>
    %c126_i32_169 = arith.constant 126 : i32
    %374 = tpu.dynamic_rotate %270 by %c126_i32_169 dim 1 : vector<16x128xf32>, i32 -> vector<16x128xf32>
    %c126_i32_170 = arith.constant 126 : i32
    %375 = vector.broadcast %c126_i32_170 : i32 to vector<16x128xi32>
    %376 = arith.cmpi slt, %14, %375 : vector<16x128xi32>
    %cst_171 = arith.constant 0.000000e+00 : f32
    %377 = vector.broadcast %cst_171 : f32 to vector<16x128xf32>
    %378 = arith.select %376, %374, %377 : vector<16x128xi1>, vector<16x128xf32>
    %379 = tpu.concatenate %373, %378 in 1 : vector<16x128xf32>, vector<16x128xf32> -> vector<16x256xf32>
    %380 = arith.truncf %379 : vector<16x256xf32> to vector<16x256xbf16>
    %c125_i32_172 = arith.constant 125 : i32
    %381 = tpu.dynamic_rotate %269 by %c125_i32_172 dim 1 : vector<16x128xf32>, i32 -> vector<16x128xf32>
    %c125_i32_173 = arith.constant 125 : i32
    %382 = vector.broadcast %c125_i32_173 : i32 to vector<16x128xi32>
    %383 = arith.cmpi slt, %14, %382 : vector<16x128xi32>
    %cst_174 = arith.constant 0.000000e+00 : f32
    %384 = vector.broadcast %cst_174 : f32 to vector<16x128xf32>
    %385 = arith.select %383, %381, %384 : vector<16x128xi1>, vector<16x128xf32>
    %c125_i32_175 = arith.constant 125 : i32
    %386 = tpu.dynamic_rotate %270 by %c125_i32_175 dim 1 : vector<16x128xf32>, i32 -> vector<16x128xf32>
    %c125_i32_176 = arith.constant 125 : i32
    %387 = vector.broadcast %c125_i32_176 : i32 to vector<16x128xi32>
    %388 = arith.cmpi slt, %14, %387 : vector<16x128xi32>
    %cst_177 = arith.constant 0.000000e+00 : f32
    %389 = vector.broadcast %cst_177 : f32 to vector<16x128xf32>
    %390 = arith.select %388, %386, %389 : vector<16x128xi1>, vector<16x128xf32>
    %391 = tpu.concatenate %385, %390 in 1 : vector<16x128xf32>, vector<16x128xf32> -> vector<16x256xf32>
    %392 = arith.truncf %391 : vector<16x256xf32> to vector<16x256xbf16>
    %c124_i32_178 = arith.constant 124 : i32
    %393 = tpu.dynamic_rotate %269 by %c124_i32_178 dim 1 : vector<16x128xf32>, i32 -> vector<16x128xf32>
    %c124_i32_179 = arith.constant 124 : i32
    %394 = vector.broadcast %c124_i32_179 : i32 to vector<16x128xi32>
    %395 = arith.cmpi slt, %14, %394 : vector<16x128xi32>
    %cst_180 = arith.constant 0.000000e+00 : f32
    %396 = vector.broadcast %cst_180 : f32 to vector<16x128xf32>
    %397 = arith.select %395, %393, %396 : vector<16x128xi1>, vector<16x128xf32>
    %c124_i32_181 = arith.constant 124 : i32
    %398 = tpu.dynamic_rotate %270 by %c124_i32_181 dim 1 : vector<16x128xf32>, i32 -> vector<16x128xf32>
    %c124_i32_182 = arith.constant 124 : i32
    %399 = vector.broadcast %c124_i32_182 : i32 to vector<16x128xi32>
    %400 = arith.cmpi slt, %14, %399 : vector<16x128xi32>
    %cst_183 = arith.constant 0.000000e+00 : f32
    %401 = vector.broadcast %cst_183 : f32 to vector<16x128xf32>
    %402 = arith.select %400, %398, %401 : vector<16x128xi1>, vector<16x128xf32>
    %403 = tpu.concatenate %397, %402 in 1 : vector<16x128xf32>, vector<16x128xf32> -> vector<16x256xf32>
    %404 = arith.truncf %403 : vector<16x256xf32> to vector<16x256xbf16>
    %c123_i32_184 = arith.constant 123 : i32
    %405 = tpu.dynamic_rotate %269 by %c123_i32_184 dim 1 : vector<16x128xf32>, i32 -> vector<16x128xf32>
    %c123_i32_185 = arith.constant 123 : i32
    %406 = vector.broadcast %c123_i32_185 : i32 to vector<16x128xi32>
    %407 = arith.cmpi slt, %14, %406 : vector<16x128xi32>
    %cst_186 = arith.constant 0.000000e+00 : f32
    %408 = vector.broadcast %cst_186 : f32 to vector<16x128xf32>
    %409 = arith.select %407, %405, %408 : vector<16x128xi1>, vector<16x128xf32>
    %c123_i32_187 = arith.constant 123 : i32
    %410 = tpu.dynamic_rotate %270 by %c123_i32_187 dim 1 : vector<16x128xf32>, i32 -> vector<16x128xf32>
    %c123_i32_188 = arith.constant 123 : i32
    %411 = vector.broadcast %c123_i32_188 : i32 to vector<16x128xi32>
    %412 = arith.cmpi slt, %14, %411 : vector<16x128xi32>
    %cst_189 = arith.constant 0.000000e+00 : f32
    %413 = vector.broadcast %cst_189 : f32 to vector<16x128xf32>
    %414 = arith.select %412, %410, %413 : vector<16x128xi1>, vector<16x128xf32>
    %415 = tpu.concatenate %409, %414 in 1 : vector<16x128xf32>, vector<16x128xf32> -> vector<16x256xf32>
    %416 = arith.truncf %415 : vector<16x256xf32> to vector<16x256xbf16>
    %c122_i32_190 = arith.constant 122 : i32
    %417 = tpu.dynamic_rotate %269 by %c122_i32_190 dim 1 : vector<16x128xf32>, i32 -> vector<16x128xf32>
    %c122_i32_191 = arith.constant 122 : i32
    %418 = vector.broadcast %c122_i32_191 : i32 to vector<16x128xi32>
    %419 = arith.cmpi slt, %14, %418 : vector<16x128xi32>
    %cst_192 = arith.constant 0.000000e+00 : f32
    %420 = vector.broadcast %cst_192 : f32 to vector<16x128xf32>
    %421 = arith.select %419, %417, %420 : vector<16x128xi1>, vector<16x128xf32>
    %c122_i32_193 = arith.constant 122 : i32
    %422 = tpu.dynamic_rotate %270 by %c122_i32_193 dim 1 : vector<16x128xf32>, i32 -> vector<16x128xf32>
    %c122_i32_194 = arith.constant 122 : i32
    %423 = vector.broadcast %c122_i32_194 : i32 to vector<16x128xi32>
    %424 = arith.cmpi slt, %14, %423 : vector<16x128xi32>
    %cst_195 = arith.constant 0.000000e+00 : f32
    %425 = vector.broadcast %cst_195 : f32 to vector<16x128xf32>
    %426 = arith.select %424, %422, %425 : vector<16x128xi1>, vector<16x128xf32>
    %427 = tpu.concatenate %421, %426 in 1 : vector<16x128xf32>, vector<16x128xf32> -> vector<16x256xf32>
    %428 = arith.truncf %427 : vector<16x256xf32> to vector<16x256xbf16>
    %c121_i32_196 = arith.constant 121 : i32
    %429 = tpu.dynamic_rotate %269 by %c121_i32_196 dim 1 : vector<16x128xf32>, i32 -> vector<16x128xf32>
    %c121_i32_197 = arith.constant 121 : i32
    %430 = vector.broadcast %c121_i32_197 : i32 to vector<16x128xi32>
    %431 = arith.cmpi slt, %14, %430 : vector<16x128xi32>
    %cst_198 = arith.constant 0.000000e+00 : f32
    %432 = vector.broadcast %cst_198 : f32 to vector<16x128xf32>
    %433 = arith.select %431, %429, %432 : vector<16x128xi1>, vector<16x128xf32>
    %c121_i32_199 = arith.constant 121 : i32
    %434 = tpu.dynamic_rotate %270 by %c121_i32_199 dim 1 : vector<16x128xf32>, i32 -> vector<16x128xf32>
    %c121_i32_200 = arith.constant 121 : i32
    %435 = vector.broadcast %c121_i32_200 : i32 to vector<16x128xi32>
    %436 = arith.cmpi slt, %14, %435 : vector<16x128xi32>
    %cst_201 = arith.constant 0.000000e+00 : f32
    %437 = vector.broadcast %cst_201 : f32 to vector<16x128xf32>
    %438 = arith.select %436, %434, %437 : vector<16x128xi1>, vector<16x128xf32>
    %439 = tpu.concatenate %433, %438 in 1 : vector<16x128xf32>, vector<16x128xf32> -> vector<16x256xf32>
    %440 = arith.truncf %439 : vector<16x256xf32> to vector<16x256xbf16>
    %c120_i32_202 = arith.constant 120 : i32
    %441 = tpu.dynamic_rotate %269 by %c120_i32_202 dim 1 : vector<16x128xf32>, i32 -> vector<16x128xf32>
    %c120_i32_203 = arith.constant 120 : i32
    %442 = vector.broadcast %c120_i32_203 : i32 to vector<16x128xi32>
    %443 = arith.cmpi slt, %14, %442 : vector<16x128xi32>
    %cst_204 = arith.constant 0.000000e+00 : f32
    %444 = vector.broadcast %cst_204 : f32 to vector<16x128xf32>
    %445 = arith.select %443, %441, %444 : vector<16x128xi1>, vector<16x128xf32>
    %c120_i32_205 = arith.constant 120 : i32
    %446 = tpu.dynamic_rotate %270 by %c120_i32_205 dim 1 : vector<16x128xf32>, i32 -> vector<16x128xf32>
    %c120_i32_206 = arith.constant 120 : i32
    %447 = vector.broadcast %c120_i32_206 : i32 to vector<16x128xi32>
    %448 = arith.cmpi slt, %14, %447 : vector<16x128xi32>
    %cst_207 = arith.constant 0.000000e+00 : f32
    %449 = vector.broadcast %cst_207 : f32 to vector<16x128xf32>
    %450 = arith.select %448, %446, %449 : vector<16x128xi1>, vector<16x128xf32>
    %451 = tpu.concatenate %445, %450 in 1 : vector<16x128xf32>, vector<16x128xf32> -> vector<16x256xf32>
    %452 = arith.truncf %451 : vector<16x256xf32> to vector<16x256xbf16>
    %453 = tpu.concatenate %282, %294, %306, %318, %330, %342, %354, %356 in 0 : vector<16x256xbf16>, vector<16x256xbf16>, vector<16x256xbf16>, vector<16x256xbf16>, vector<16x256xbf16>, vector<16x256xbf16>, vector<16x256xbf16>, vector<16x256xbf16> -> vector<128x256xbf16>
    %454 = tpu.concatenate %368, %380, %392, %404, %416, %428, %440, %452 in 0 : vector<16x256xbf16>, vector<16x256xbf16>, vector<16x256xbf16>, vector<16x256xbf16>, vector<16x256xbf16>, vector<16x256xbf16>, vector<16x256xbf16>, vector<16x256xbf16> -> vector<128x256xbf16>
    %cst_208 = arith.constant dense<0.000000e+00> : vector<16x256xf32>
    %455 = tpu.matmul %12, %453, %cst_208 {dimension_numbers = #tpu.dot_dimension_numbers<[1], [0], [0], [1], [0, 0, 1, 1], [], []>} : vector<16x128xbf16>, vector<128x256xbf16>, vector<16x256xf32> -> vector<16x256xf32>
    %cst_209 = arith.constant dense<0.000000e+00> : vector<16x256xf32>
    %456 = tpu.matmul %13, %454, %cst_209 {dimension_numbers = #tpu.dot_dimension_numbers<[1], [0], [0], [1], [0, 0, 1, 1], [], []>} : vector<16x128xbf16>, vector<128x256xbf16>, vector<16x256xf32> -> vector<16x256xf32>
    %457 = vector.extract_strided_slice %455 {offsets = [0, 0], sizes = [8, 256], strides = [1, 1]} : vector<16x256xf32> to vector<8x256xf32>
    %458 = vector.extract_strided_slice %455 {offsets = [8, 0], sizes = [8, 256], strides = [1, 1]} : vector<16x256xf32> to vector<8x256xf32>
    %459 = arith.addf %457, %458 : vector<8x256xf32>
    %460 = vector.extract_strided_slice %456 {offsets = [0, 0], sizes = [8, 256], strides = [1, 1]} : vector<16x256xf32> to vector<8x256xf32>
    %461 = arith.addf %459, %460 : vector<8x256xf32>
    %462 = vector.extract_strided_slice %456 {offsets = [8, 0], sizes = [8, 256], strides = [1, 1]} : vector<16x256xf32> to vector<8x256xf32>
    %463 = arith.addf %461, %462 : vector<8x256xf32>
    %464 = vector.broadcast %10 : vector<8x1xf32> to vector<8x256xf32>
    %465 = arith.addf %463, %464 : vector<8x256xf32>
    %cst_210 = arith.constant 2.500000e-01 : f32
    %466 = vector.broadcast %cst_210 : f32 to vector<8x256xf32>
    %467 = arith.mulf %227, %466 : vector<8x256xf32>
    %cst_211 = arith.constant 1.000000e+00 : f32
    %468 = vector.broadcast %cst_211 : f32 to vector<8x256xf32>
    %469 = arith.minimumf %232, %468 : vector<8x256xf32>
    %cst_212 = arith.constant 1.000000e+00 : f32
    %470 = vector.broadcast %cst_212 : f32 to vector<8x256xf32>
    %471 = arith.subf %470, %469 : vector<8x256xf32>
    %472 = arith.mulf %467, %471 : vector<8x256xf32>
    %473 = arith.addf %472, %465 : vector<8x256xf32>
    %474 = math.floor %473 : vector<8x256xf32>
    %cst_213 = arith.constant 0.000000e+00 : f32
    %cst_214 = arith.constant 4.000000e+00 : f32
    %475 = vector.broadcast %cst_213 : f32 to vector<8x256xf32>
    %476 = arith.maximumf %475, %474 : vector<8x256xf32>
    %477 = vector.broadcast %cst_214 : f32 to vector<8x256xf32>
    %478 = arith.minimumf %477, %476 : vector<8x256xf32>
    %479 = tpu.concatenate %478, %478, %478, %478 in 0 : vector<8x256xf32>, vector<8x256xf32>, vector<8x256xf32>, vector<8x256xf32> -> vector<32x256xf32>
    %c1 = arith.constant 1 : index
    %c0_215 = arith.constant 0 : index
    %c0_216 = arith.constant 0 : index
    %480 = vector.load %arg8[%c1, %c0_215, %c0_216] : memref<8x32x256xf32, #tpu.memory_space<vmem>>, vector<1x32x256xf32>
    %481 = vector.shape_cast %480 : vector<1x32x256xf32> to vector<32x256xf32>
    %482 = arith.mulf %481, %479 : vector<32x256xf32>
    %483 = arith.addf %236, %482 : vector<32x256xf32>
    %c0_217 = arith.constant 0 : index
    %c512 = arith.constant 512 : index
    %484 = vector.load %arg11[%c0_217, %c512] : memref<8x2048xf32, #tpu.memory_space<vmem>>, vector<8x256xf32>
    %cst_218 = arith.constant 2.500000e-01 : f32
    %485 = vector.broadcast %cst_218 : f32 to vector<8x256xf32>
    %486 = arith.mulf %245, %485 : vector<8x256xf32>
    %cst_219 = arith.constant 1.000000e+00 : f32
    %487 = vector.broadcast %cst_219 : f32 to vector<8x256xf32>
    %488 = arith.minimumf %250, %487 : vector<8x256xf32>
    %cst_220 = arith.constant 1.000000e+00 : f32
    %489 = vector.broadcast %cst_220 : f32 to vector<8x256xf32>
    %490 = arith.subf %489, %488 : vector<8x256xf32>
    %491 = arith.mulf %486, %490 : vector<8x256xf32>
    %492 = arith.addf %491, %484 : vector<8x256xf32>
    %493 = math.floor %492 : vector<8x256xf32>
    %cst_221 = arith.constant 0.000000e+00 : f32
    %cst_222 = arith.constant 4.000000e+00 : f32
    %494 = vector.broadcast %cst_221 : f32 to vector<8x256xf32>
    %495 = arith.maximumf %494, %493 : vector<8x256xf32>
    %496 = vector.broadcast %cst_222 : f32 to vector<8x256xf32>
    %497 = arith.minimumf %496, %495 : vector<8x256xf32>
    %498 = tpu.concatenate %497, %497 in 0 : vector<8x256xf32>, vector<8x256xf32> -> vector<16x256xf32>
    %499 = vector.broadcast %8 : vector<16x1xf32> to vector<16x256xf32>
    %500 = arith.mulf %499, %498 : vector<16x256xf32>
    %501 = vector.broadcast %9 : vector<16x1xf32> to vector<16x256xf32>
    %502 = arith.addf %500, %501 : vector<16x256xf32>
    %cst_223 = arith.constant 2.500000e-01 : f32
    %503 = vector.broadcast %cst_223 : f32 to vector<16x256xf32>
    %504 = arith.mulf %263, %503 : vector<16x256xf32>
    %cst_224 = arith.constant 1.000000e+00 : f32
    %505 = vector.broadcast %cst_224 : f32 to vector<16x256xf32>
    %506 = arith.minimumf %268, %505 : vector<16x256xf32>
    %cst_225 = arith.constant 1.000000e+00 : f32
    %507 = vector.broadcast %cst_225 : f32 to vector<16x256xf32>
    %508 = arith.subf %507, %506 : vector<16x256xf32>
    %509 = arith.mulf %504, %508 : vector<16x256xf32>
    %510 = arith.addf %509, %502 : vector<16x256xf32>
    %511 = math.floor %510 : vector<16x256xf32>
    %cst_226 = arith.constant 0.000000e+00 : f32
    %cst_227 = arith.constant 4.000000e+00 : f32
    %512 = vector.broadcast %cst_226 : f32 to vector<16x256xf32>
    %513 = arith.maximumf %512, %511 : vector<16x256xf32>
    %514 = vector.broadcast %cst_227 : f32 to vector<16x256xf32>
    %515 = arith.minimumf %514, %513 : vector<16x256xf32>
    %516 = vector.extract_strided_slice %515 {offsets = [0, 0], sizes = [16, 128], strides = [1, 1]} : vector<16x256xf32> to vector<16x128xf32>
    %517 = vector.extract_strided_slice %515 {offsets = [0, 128], sizes = [16, 128], strides = [1, 1]} : vector<16x256xf32> to vector<16x128xf32>
    %c7_i32_228 = arith.constant 7 : i32
    %518 = tpu.dynamic_rotate %516 by %c7_i32_228 dim 1 : vector<16x128xf32>, i32 -> vector<16x128xf32>
    %c7_i32_229 = arith.constant 7 : i32
    %519 = vector.broadcast %c7_i32_229 : i32 to vector<16x128xi32>
    %520 = arith.cmpi sge, %14, %519 : vector<16x128xi32>
    %cst_230 = arith.constant 0.000000e+00 : f32
    %521 = vector.broadcast %cst_230 : f32 to vector<16x128xf32>
    %522 = arith.select %520, %518, %521 : vector<16x128xi1>, vector<16x128xf32>
    %c7_i32_231 = arith.constant 7 : i32
    %523 = tpu.dynamic_rotate %517 by %c7_i32_231 dim 1 : vector<16x128xf32>, i32 -> vector<16x128xf32>
    %c7_i32_232 = arith.constant 7 : i32
    %524 = vector.broadcast %c7_i32_232 : i32 to vector<16x128xi32>
    %525 = arith.cmpi sge, %14, %524 : vector<16x128xi32>
    %cst_233 = arith.constant 0.000000e+00 : f32
    %526 = vector.broadcast %cst_233 : f32 to vector<16x128xf32>
    %527 = arith.select %525, %523, %526 : vector<16x128xi1>, vector<16x128xf32>
    %528 = tpu.concatenate %522, %527 in 1 : vector<16x128xf32>, vector<16x128xf32> -> vector<16x256xf32>
    %529 = arith.truncf %528 : vector<16x256xf32> to vector<16x256xbf16>
    %c6_i32_234 = arith.constant 6 : i32
    %530 = tpu.dynamic_rotate %516 by %c6_i32_234 dim 1 : vector<16x128xf32>, i32 -> vector<16x128xf32>
    %c6_i32_235 = arith.constant 6 : i32
    %531 = vector.broadcast %c6_i32_235 : i32 to vector<16x128xi32>
    %532 = arith.cmpi sge, %14, %531 : vector<16x128xi32>
    %cst_236 = arith.constant 0.000000e+00 : f32
    %533 = vector.broadcast %cst_236 : f32 to vector<16x128xf32>
    %534 = arith.select %532, %530, %533 : vector<16x128xi1>, vector<16x128xf32>
    %c6_i32_237 = arith.constant 6 : i32
    %535 = tpu.dynamic_rotate %517 by %c6_i32_237 dim 1 : vector<16x128xf32>, i32 -> vector<16x128xf32>
    %c6_i32_238 = arith.constant 6 : i32
    %536 = vector.broadcast %c6_i32_238 : i32 to vector<16x128xi32>
    %537 = arith.cmpi sge, %14, %536 : vector<16x128xi32>
    %cst_239 = arith.constant 0.000000e+00 : f32
    %538 = vector.broadcast %cst_239 : f32 to vector<16x128xf32>
    %539 = arith.select %537, %535, %538 : vector<16x128xi1>, vector<16x128xf32>
    %540 = tpu.concatenate %534, %539 in 1 : vector<16x128xf32>, vector<16x128xf32> -> vector<16x256xf32>
    %541 = arith.truncf %540 : vector<16x256xf32> to vector<16x256xbf16>
    %c5_i32_240 = arith.constant 5 : i32
    %542 = tpu.dynamic_rotate %516 by %c5_i32_240 dim 1 : vector<16x128xf32>, i32 -> vector<16x128xf32>
    %c5_i32_241 = arith.constant 5 : i32
    %543 = vector.broadcast %c5_i32_241 : i32 to vector<16x128xi32>
    %544 = arith.cmpi sge, %14, %543 : vector<16x128xi32>
    %cst_242 = arith.constant 0.000000e+00 : f32
    %545 = vector.broadcast %cst_242 : f32 to vector<16x128xf32>
    %546 = arith.select %544, %542, %545 : vector<16x128xi1>, vector<16x128xf32>
    %c5_i32_243 = arith.constant 5 : i32
    %547 = tpu.dynamic_rotate %517 by %c5_i32_243 dim 1 : vector<16x128xf32>, i32 -> vector<16x128xf32>
    %c5_i32_244 = arith.constant 5 : i32
    %548 = vector.broadcast %c5_i32_244 : i32 to vector<16x128xi32>
    %549 = arith.cmpi sge, %14, %548 : vector<16x128xi32>
    %cst_245 = arith.constant 0.000000e+00 : f32
    %550 = vector.broadcast %cst_245 : f32 to vector<16x128xf32>
    %551 = arith.select %549, %547, %550 : vector<16x128xi1>, vector<16x128xf32>
    %552 = tpu.concatenate %546, %551 in 1 : vector<16x128xf32>, vector<16x128xf32> -> vector<16x256xf32>
    %553 = arith.truncf %552 : vector<16x256xf32> to vector<16x256xbf16>
    %c4_i32_246 = arith.constant 4 : i32
    %554 = tpu.dynamic_rotate %516 by %c4_i32_246 dim 1 : vector<16x128xf32>, i32 -> vector<16x128xf32>
    %c4_i32_247 = arith.constant 4 : i32
    %555 = vector.broadcast %c4_i32_247 : i32 to vector<16x128xi32>
    %556 = arith.cmpi sge, %14, %555 : vector<16x128xi32>
    %cst_248 = arith.constant 0.000000e+00 : f32
    %557 = vector.broadcast %cst_248 : f32 to vector<16x128xf32>
    %558 = arith.select %556, %554, %557 : vector<16x128xi1>, vector<16x128xf32>
    %c4_i32_249 = arith.constant 4 : i32
    %559 = tpu.dynamic_rotate %517 by %c4_i32_249 dim 1 : vector<16x128xf32>, i32 -> vector<16x128xf32>
    %c4_i32_250 = arith.constant 4 : i32
    %560 = vector.broadcast %c4_i32_250 : i32 to vector<16x128xi32>
    %561 = arith.cmpi sge, %14, %560 : vector<16x128xi32>
    %cst_251 = arith.constant 0.000000e+00 : f32
    %562 = vector.broadcast %cst_251 : f32 to vector<16x128xf32>
    %563 = arith.select %561, %559, %562 : vector<16x128xi1>, vector<16x128xf32>
    %564 = tpu.concatenate %558, %563 in 1 : vector<16x128xf32>, vector<16x128xf32> -> vector<16x256xf32>
    %565 = arith.truncf %564 : vector<16x256xf32> to vector<16x256xbf16>
    %c3_i32_252 = arith.constant 3 : i32
    %566 = tpu.dynamic_rotate %516 by %c3_i32_252 dim 1 : vector<16x128xf32>, i32 -> vector<16x128xf32>
    %c3_i32_253 = arith.constant 3 : i32
    %567 = vector.broadcast %c3_i32_253 : i32 to vector<16x128xi32>
    %568 = arith.cmpi sge, %14, %567 : vector<16x128xi32>
    %cst_254 = arith.constant 0.000000e+00 : f32
    %569 = vector.broadcast %cst_254 : f32 to vector<16x128xf32>
    %570 = arith.select %568, %566, %569 : vector<16x128xi1>, vector<16x128xf32>
    %c3_i32_255 = arith.constant 3 : i32
    %571 = tpu.dynamic_rotate %517 by %c3_i32_255 dim 1 : vector<16x128xf32>, i32 -> vector<16x128xf32>
    %c3_i32_256 = arith.constant 3 : i32
    %572 = vector.broadcast %c3_i32_256 : i32 to vector<16x128xi32>
    %573 = arith.cmpi sge, %14, %572 : vector<16x128xi32>
    %cst_257 = arith.constant 0.000000e+00 : f32
    %574 = vector.broadcast %cst_257 : f32 to vector<16x128xf32>
    %575 = arith.select %573, %571, %574 : vector<16x128xi1>, vector<16x128xf32>
    %576 = tpu.concatenate %570, %575 in 1 : vector<16x128xf32>, vector<16x128xf32> -> vector<16x256xf32>
    %577 = arith.truncf %576 : vector<16x256xf32> to vector<16x256xbf16>
    %c2_i32_258 = arith.constant 2 : i32
    %578 = tpu.dynamic_rotate %516 by %c2_i32_258 dim 1 : vector<16x128xf32>, i32 -> vector<16x128xf32>
    %c2_i32_259 = arith.constant 2 : i32
    %579 = vector.broadcast %c2_i32_259 : i32 to vector<16x128xi32>
    %580 = arith.cmpi sge, %14, %579 : vector<16x128xi32>
    %cst_260 = arith.constant 0.000000e+00 : f32
    %581 = vector.broadcast %cst_260 : f32 to vector<16x128xf32>
    %582 = arith.select %580, %578, %581 : vector<16x128xi1>, vector<16x128xf32>
    %c2_i32_261 = arith.constant 2 : i32
    %583 = tpu.dynamic_rotate %517 by %c2_i32_261 dim 1 : vector<16x128xf32>, i32 -> vector<16x128xf32>
    %c2_i32_262 = arith.constant 2 : i32
    %584 = vector.broadcast %c2_i32_262 : i32 to vector<16x128xi32>
    %585 = arith.cmpi sge, %14, %584 : vector<16x128xi32>
    %cst_263 = arith.constant 0.000000e+00 : f32
    %586 = vector.broadcast %cst_263 : f32 to vector<16x128xf32>
    %587 = arith.select %585, %583, %586 : vector<16x128xi1>, vector<16x128xf32>
    %588 = tpu.concatenate %582, %587 in 1 : vector<16x128xf32>, vector<16x128xf32> -> vector<16x256xf32>
    %589 = arith.truncf %588 : vector<16x256xf32> to vector<16x256xbf16>
    %c1_i32_264 = arith.constant 1 : i32
    %590 = tpu.dynamic_rotate %516 by %c1_i32_264 dim 1 : vector<16x128xf32>, i32 -> vector<16x128xf32>
    %c1_i32_265 = arith.constant 1 : i32
    %591 = vector.broadcast %c1_i32_265 : i32 to vector<16x128xi32>
    %592 = arith.cmpi sge, %14, %591 : vector<16x128xi32>
    %cst_266 = arith.constant 0.000000e+00 : f32
    %593 = vector.broadcast %cst_266 : f32 to vector<16x128xf32>
    %594 = arith.select %592, %590, %593 : vector<16x128xi1>, vector<16x128xf32>
    %c1_i32_267 = arith.constant 1 : i32
    %595 = tpu.dynamic_rotate %517 by %c1_i32_267 dim 1 : vector<16x128xf32>, i32 -> vector<16x128xf32>
    %c1_i32_268 = arith.constant 1 : i32
    %596 = vector.broadcast %c1_i32_268 : i32 to vector<16x128xi32>
    %597 = arith.cmpi sge, %14, %596 : vector<16x128xi32>
    %cst_269 = arith.constant 0.000000e+00 : f32
    %598 = vector.broadcast %cst_269 : f32 to vector<16x128xf32>
    %599 = arith.select %597, %595, %598 : vector<16x128xi1>, vector<16x128xf32>
    %600 = tpu.concatenate %594, %599 in 1 : vector<16x128xf32>, vector<16x128xf32> -> vector<16x256xf32>
    %601 = arith.truncf %600 : vector<16x256xf32> to vector<16x256xbf16>
    %602 = tpu.concatenate %516, %517 in 1 : vector<16x128xf32>, vector<16x128xf32> -> vector<16x256xf32>
    %603 = arith.truncf %602 : vector<16x256xf32> to vector<16x256xbf16>
    %c127_i32_270 = arith.constant 127 : i32
    %604 = tpu.dynamic_rotate %516 by %c127_i32_270 dim 1 : vector<16x128xf32>, i32 -> vector<16x128xf32>
    %c127_i32_271 = arith.constant 127 : i32
    %605 = vector.broadcast %c127_i32_271 : i32 to vector<16x128xi32>
    %606 = arith.cmpi slt, %14, %605 : vector<16x128xi32>
    %cst_272 = arith.constant 0.000000e+00 : f32
    %607 = vector.broadcast %cst_272 : f32 to vector<16x128xf32>
    %608 = arith.select %606, %604, %607 : vector<16x128xi1>, vector<16x128xf32>
    %c127_i32_273 = arith.constant 127 : i32
    %609 = tpu.dynamic_rotate %517 by %c127_i32_273 dim 1 : vector<16x128xf32>, i32 -> vector<16x128xf32>
    %c127_i32_274 = arith.constant 127 : i32
    %610 = vector.broadcast %c127_i32_274 : i32 to vector<16x128xi32>
    %611 = arith.cmpi slt, %14, %610 : vector<16x128xi32>
    %cst_275 = arith.constant 0.000000e+00 : f32
    %612 = vector.broadcast %cst_275 : f32 to vector<16x128xf32>
    %613 = arith.select %611, %609, %612 : vector<16x128xi1>, vector<16x128xf32>
    %614 = tpu.concatenate %608, %613 in 1 : vector<16x128xf32>, vector<16x128xf32> -> vector<16x256xf32>
    %615 = arith.truncf %614 : vector<16x256xf32> to vector<16x256xbf16>
    %c126_i32_276 = arith.constant 126 : i32
    %616 = tpu.dynamic_rotate %516 by %c126_i32_276 dim 1 : vector<16x128xf32>, i32 -> vector<16x128xf32>
    %c126_i32_277 = arith.constant 126 : i32
    %617 = vector.broadcast %c126_i32_277 : i32 to vector<16x128xi32>
    %618 = arith.cmpi slt, %14, %617 : vector<16x128xi32>
    %cst_278 = arith.constant 0.000000e+00 : f32
    %619 = vector.broadcast %cst_278 : f32 to vector<16x128xf32>
    %620 = arith.select %618, %616, %619 : vector<16x128xi1>, vector<16x128xf32>
    %c126_i32_279 = arith.constant 126 : i32
    %621 = tpu.dynamic_rotate %517 by %c126_i32_279 dim 1 : vector<16x128xf32>, i32 -> vector<16x128xf32>
    %c126_i32_280 = arith.constant 126 : i32
    %622 = vector.broadcast %c126_i32_280 : i32 to vector<16x128xi32>
    %623 = arith.cmpi slt, %14, %622 : vector<16x128xi32>
    %cst_281 = arith.constant 0.000000e+00 : f32
    %624 = vector.broadcast %cst_281 : f32 to vector<16x128xf32>
    %625 = arith.select %623, %621, %624 : vector<16x128xi1>, vector<16x128xf32>
    %626 = tpu.concatenate %620, %625 in 1 : vector<16x128xf32>, vector<16x128xf32> -> vector<16x256xf32>
    %627 = arith.truncf %626 : vector<16x256xf32> to vector<16x256xbf16>
    %c125_i32_282 = arith.constant 125 : i32
    %628 = tpu.dynamic_rotate %516 by %c125_i32_282 dim 1 : vector<16x128xf32>, i32 -> vector<16x128xf32>
    %c125_i32_283 = arith.constant 125 : i32
    %629 = vector.broadcast %c125_i32_283 : i32 to vector<16x128xi32>
    %630 = arith.cmpi slt, %14, %629 : vector<16x128xi32>
    %cst_284 = arith.constant 0.000000e+00 : f32
    %631 = vector.broadcast %cst_284 : f32 to vector<16x128xf32>
    %632 = arith.select %630, %628, %631 : vector<16x128xi1>, vector<16x128xf32>
    %c125_i32_285 = arith.constant 125 : i32
    %633 = tpu.dynamic_rotate %517 by %c125_i32_285 dim 1 : vector<16x128xf32>, i32 -> vector<16x128xf32>
    %c125_i32_286 = arith.constant 125 : i32
    %634 = vector.broadcast %c125_i32_286 : i32 to vector<16x128xi32>
    %635 = arith.cmpi slt, %14, %634 : vector<16x128xi32>
    %cst_287 = arith.constant 0.000000e+00 : f32
    %636 = vector.broadcast %cst_287 : f32 to vector<16x128xf32>
    %637 = arith.select %635, %633, %636 : vector<16x128xi1>, vector<16x128xf32>
    %638 = tpu.concatenate %632, %637 in 1 : vector<16x128xf32>, vector<16x128xf32> -> vector<16x256xf32>
    %639 = arith.truncf %638 : vector<16x256xf32> to vector<16x256xbf16>
    %c124_i32_288 = arith.constant 124 : i32
    %640 = tpu.dynamic_rotate %516 by %c124_i32_288 dim 1 : vector<16x128xf32>, i32 -> vector<16x128xf32>
    %c124_i32_289 = arith.constant 124 : i32
    %641 = vector.broadcast %c124_i32_289 : i32 to vector<16x128xi32>
    %642 = arith.cmpi slt, %14, %641 : vector<16x128xi32>
    %cst_290 = arith.constant 0.000000e+00 : f32
    %643 = vector.broadcast %cst_290 : f32 to vector<16x128xf32>
    %644 = arith.select %642, %640, %643 : vector<16x128xi1>, vector<16x128xf32>
    %c124_i32_291 = arith.constant 124 : i32
    %645 = tpu.dynamic_rotate %517 by %c124_i32_291 dim 1 : vector<16x128xf32>, i32 -> vector<16x128xf32>
    %c124_i32_292 = arith.constant 124 : i32
    %646 = vector.broadcast %c124_i32_292 : i32 to vector<16x128xi32>
    %647 = arith.cmpi slt, %14, %646 : vector<16x128xi32>
    %cst_293 = arith.constant 0.000000e+00 : f32
    %648 = vector.broadcast %cst_293 : f32 to vector<16x128xf32>
    %649 = arith.select %647, %645, %648 : vector<16x128xi1>, vector<16x128xf32>
    %650 = tpu.concatenate %644, %649 in 1 : vector<16x128xf32>, vector<16x128xf32> -> vector<16x256xf32>
    %651 = arith.truncf %650 : vector<16x256xf32> to vector<16x256xbf16>
    %c123_i32_294 = arith.constant 123 : i32
    %652 = tpu.dynamic_rotate %516 by %c123_i32_294 dim 1 : vector<16x128xf32>, i32 -> vector<16x128xf32>
    %c123_i32_295 = arith.constant 123 : i32
    %653 = vector.broadcast %c123_i32_295 : i32 to vector<16x128xi32>
    %654 = arith.cmpi slt, %14, %653 : vector<16x128xi32>
    %cst_296 = arith.constant 0.000000e+00 : f32
    %655 = vector.broadcast %cst_296 : f32 to vector<16x128xf32>
    %656 = arith.select %654, %652, %655 : vector<16x128xi1>, vector<16x128xf32>
    %c123_i32_297 = arith.constant 123 : i32
    %657 = tpu.dynamic_rotate %517 by %c123_i32_297 dim 1 : vector<16x128xf32>, i32 -> vector<16x128xf32>
    %c123_i32_298 = arith.constant 123 : i32
    %658 = vector.broadcast %c123_i32_298 : i32 to vector<16x128xi32>
    %659 = arith.cmpi slt, %14, %658 : vector<16x128xi32>
    %cst_299 = arith.constant 0.000000e+00 : f32
    %660 = vector.broadcast %cst_299 : f32 to vector<16x128xf32>
    %661 = arith.select %659, %657, %660 : vector<16x128xi1>, vector<16x128xf32>
    %662 = tpu.concatenate %656, %661 in 1 : vector<16x128xf32>, vector<16x128xf32> -> vector<16x256xf32>
    %663 = arith.truncf %662 : vector<16x256xf32> to vector<16x256xbf16>
    %c122_i32_300 = arith.constant 122 : i32
    %664 = tpu.dynamic_rotate %516 by %c122_i32_300 dim 1 : vector<16x128xf32>, i32 -> vector<16x128xf32>
    %c122_i32_301 = arith.constant 122 : i32
    %665 = vector.broadcast %c122_i32_301 : i32 to vector<16x128xi32>
    %666 = arith.cmpi slt, %14, %665 : vector<16x128xi32>
    %cst_302 = arith.constant 0.000000e+00 : f32
    %667 = vector.broadcast %cst_302 : f32 to vector<16x128xf32>
    %668 = arith.select %666, %664, %667 : vector<16x128xi1>, vector<16x128xf32>
    %c122_i32_303 = arith.constant 122 : i32
    %669 = tpu.dynamic_rotate %517 by %c122_i32_303 dim 1 : vector<16x128xf32>, i32 -> vector<16x128xf32>
    %c122_i32_304 = arith.constant 122 : i32
    %670 = vector.broadcast %c122_i32_304 : i32 to vector<16x128xi32>
    %671 = arith.cmpi slt, %14, %670 : vector<16x128xi32>
    %cst_305 = arith.constant 0.000000e+00 : f32
    %672 = vector.broadcast %cst_305 : f32 to vector<16x128xf32>
    %673 = arith.select %671, %669, %672 : vector<16x128xi1>, vector<16x128xf32>
    %674 = tpu.concatenate %668, %673 in 1 : vector<16x128xf32>, vector<16x128xf32> -> vector<16x256xf32>
    %675 = arith.truncf %674 : vector<16x256xf32> to vector<16x256xbf16>
    %c121_i32_306 = arith.constant 121 : i32
    %676 = tpu.dynamic_rotate %516 by %c121_i32_306 dim 1 : vector<16x128xf32>, i32 -> vector<16x128xf32>
    %c121_i32_307 = arith.constant 121 : i32
    %677 = vector.broadcast %c121_i32_307 : i32 to vector<16x128xi32>
    %678 = arith.cmpi slt, %14, %677 : vector<16x128xi32>
    %cst_308 = arith.constant 0.000000e+00 : f32
    %679 = vector.broadcast %cst_308 : f32 to vector<16x128xf32>
    %680 = arith.select %678, %676, %679 : vector<16x128xi1>, vector<16x128xf32>
    %c121_i32_309 = arith.constant 121 : i32
    %681 = tpu.dynamic_rotate %517 by %c121_i32_309 dim 1 : vector<16x128xf32>, i32 -> vector<16x128xf32>
    %c121_i32_310 = arith.constant 121 : i32
    %682 = vector.broadcast %c121_i32_310 : i32 to vector<16x128xi32>
    %683 = arith.cmpi slt, %14, %682 : vector<16x128xi32>
    %cst_311 = arith.constant 0.000000e+00 : f32
    %684 = vector.broadcast %cst_311 : f32 to vector<16x128xf32>
    %685 = arith.select %683, %681, %684 : vector<16x128xi1>, vector<16x128xf32>
    %686 = tpu.concatenate %680, %685 in 1 : vector<16x128xf32>, vector<16x128xf32> -> vector<16x256xf32>
    %687 = arith.truncf %686 : vector<16x256xf32> to vector<16x256xbf16>
    %c120_i32_312 = arith.constant 120 : i32
    %688 = tpu.dynamic_rotate %516 by %c120_i32_312 dim 1 : vector<16x128xf32>, i32 -> vector<16x128xf32>
    %c120_i32_313 = arith.constant 120 : i32
    %689 = vector.broadcast %c120_i32_313 : i32 to vector<16x128xi32>
    %690 = arith.cmpi slt, %14, %689 : vector<16x128xi32>
    %cst_314 = arith.constant 0.000000e+00 : f32
    %691 = vector.broadcast %cst_314 : f32 to vector<16x128xf32>
    %692 = arith.select %690, %688, %691 : vector<16x128xi1>, vector<16x128xf32>
    %c120_i32_315 = arith.constant 120 : i32
    %693 = tpu.dynamic_rotate %517 by %c120_i32_315 dim 1 : vector<16x128xf32>, i32 -> vector<16x128xf32>
    %c120_i32_316 = arith.constant 120 : i32
    %694 = vector.broadcast %c120_i32_316 : i32 to vector<16x128xi32>
    %695 = arith.cmpi slt, %14, %694 : vector<16x128xi32>
    %cst_317 = arith.constant 0.000000e+00 : f32
    %696 = vector.broadcast %cst_317 : f32 to vector<16x128xf32>
    %697 = arith.select %695, %693, %696 : vector<16x128xi1>, vector<16x128xf32>
    %698 = tpu.concatenate %692, %697 in 1 : vector<16x128xf32>, vector<16x128xf32> -> vector<16x256xf32>
    %699 = arith.truncf %698 : vector<16x256xf32> to vector<16x256xbf16>
    %700 = tpu.concatenate %529, %541, %553, %565, %577, %589, %601, %603 in 0 : vector<16x256xbf16>, vector<16x256xbf16>, vector<16x256xbf16>, vector<16x256xbf16>, vector<16x256xbf16>, vector<16x256xbf16>, vector<16x256xbf16>, vector<16x256xbf16> -> vector<128x256xbf16>
    %701 = tpu.concatenate %615, %627, %639, %651, %663, %675, %687, %699 in 0 : vector<16x256xbf16>, vector<16x256xbf16>, vector<16x256xbf16>, vector<16x256xbf16>, vector<16x256xbf16>, vector<16x256xbf16>, vector<16x256xbf16>, vector<16x256xbf16> -> vector<128x256xbf16>
    %cst_318 = arith.constant dense<0.000000e+00> : vector<16x256xf32>
    %702 = tpu.matmul %12, %700, %cst_318 {dimension_numbers = #tpu.dot_dimension_numbers<[1], [0], [0], [1], [0, 0, 1, 1], [], []>} : vector<16x128xbf16>, vector<128x256xbf16>, vector<16x256xf32> -> vector<16x256xf32>
    %cst_319 = arith.constant dense<0.000000e+00> : vector<16x256xf32>
    %703 = tpu.matmul %13, %701, %cst_319 {dimension_numbers = #tpu.dot_dimension_numbers<[1], [0], [0], [1], [0, 0, 1, 1], [], []>} : vector<16x128xbf16>, vector<128x256xbf16>, vector<16x256xf32> -> vector<16x256xf32>
    %704 = vector.extract_strided_slice %702 {offsets = [0, 0], sizes = [8, 256], strides = [1, 1]} : vector<16x256xf32> to vector<8x256xf32>
    %705 = vector.extract_strided_slice %702 {offsets = [8, 0], sizes = [8, 256], strides = [1, 1]} : vector<16x256xf32> to vector<8x256xf32>
    %706 = arith.addf %704, %705 : vector<8x256xf32>
    %707 = vector.extract_strided_slice %703 {offsets = [0, 0], sizes = [8, 256], strides = [1, 1]} : vector<16x256xf32> to vector<8x256xf32>
    %708 = arith.addf %706, %707 : vector<8x256xf32>
    %709 = vector.extract_strided_slice %703 {offsets = [8, 0], sizes = [8, 256], strides = [1, 1]} : vector<16x256xf32> to vector<8x256xf32>
    %710 = arith.addf %708, %709 : vector<8x256xf32>
    %711 = vector.broadcast %10 : vector<8x1xf32> to vector<8x256xf32>
    %712 = arith.addf %710, %711 : vector<8x256xf32>
    %cst_320 = arith.constant 2.500000e-01 : f32
    %713 = vector.broadcast %cst_320 : f32 to vector<8x256xf32>
    %714 = arith.mulf %473, %713 : vector<8x256xf32>
    %cst_321 = arith.constant 1.000000e+00 : f32
    %715 = vector.broadcast %cst_321 : f32 to vector<8x256xf32>
    %716 = arith.minimumf %478, %715 : vector<8x256xf32>
    %cst_322 = arith.constant 1.000000e+00 : f32
    %717 = vector.broadcast %cst_322 : f32 to vector<8x256xf32>
    %718 = arith.subf %717, %716 : vector<8x256xf32>
    %719 = arith.mulf %714, %718 : vector<8x256xf32>
    %720 = arith.addf %719, %712 : vector<8x256xf32>
    %721 = math.floor %720 : vector<8x256xf32>
    %cst_323 = arith.constant 0.000000e+00 : f32
    %cst_324 = arith.constant 4.000000e+00 : f32
    %722 = vector.broadcast %cst_323 : f32 to vector<8x256xf32>
    %723 = arith.maximumf %722, %721 : vector<8x256xf32>
    %724 = vector.broadcast %cst_324 : f32 to vector<8x256xf32>
    %725 = arith.minimumf %724, %723 : vector<8x256xf32>
    %726 = tpu.concatenate %725, %725, %725, %725 in 0 : vector<8x256xf32>, vector<8x256xf32>, vector<8x256xf32>, vector<8x256xf32> -> vector<32x256xf32>
    %c2 = arith.constant 2 : index
    %c0_325 = arith.constant 0 : index
    %c0_326 = arith.constant 0 : index
    %727 = vector.load %arg8[%c2, %c0_325, %c0_326] : memref<8x32x256xf32, #tpu.memory_space<vmem>>, vector<1x32x256xf32>
    %728 = vector.shape_cast %727 : vector<1x32x256xf32> to vector<32x256xf32>
    %729 = arith.mulf %728, %726 : vector<32x256xf32>
    %730 = arith.addf %483, %729 : vector<32x256xf32>
    %c0_327 = arith.constant 0 : index
    %c768 = arith.constant 768 : index
    %731 = vector.load %arg11[%c0_327, %c768] : memref<8x2048xf32, #tpu.memory_space<vmem>>, vector<8x256xf32>
    %cst_328 = arith.constant 2.500000e-01 : f32
    %732 = vector.broadcast %cst_328 : f32 to vector<8x256xf32>
    %733 = arith.mulf %492, %732 : vector<8x256xf32>
    %cst_329 = arith.constant 1.000000e+00 : f32
    %734 = vector.broadcast %cst_329 : f32 to vector<8x256xf32>
    %735 = arith.minimumf %497, %734 : vector<8x256xf32>
    %cst_330 = arith.constant 1.000000e+00 : f32
    %736 = vector.broadcast %cst_330 : f32 to vector<8x256xf32>
    %737 = arith.subf %736, %735 : vector<8x256xf32>
    %738 = arith.mulf %733, %737 : vector<8x256xf32>
    %739 = arith.addf %738, %731 : vector<8x256xf32>
    %740 = math.floor %739 : vector<8x256xf32>
    %cst_331 = arith.constant 0.000000e+00 : f32
    %cst_332 = arith.constant 4.000000e+00 : f32
    %741 = vector.broadcast %cst_331 : f32 to vector<8x256xf32>
    %742 = arith.maximumf %741, %740 : vector<8x256xf32>
    %743 = vector.broadcast %cst_332 : f32 to vector<8x256xf32>
    %744 = arith.minimumf %743, %742 : vector<8x256xf32>
    %745 = tpu.concatenate %744, %744 in 0 : vector<8x256xf32>, vector<8x256xf32> -> vector<16x256xf32>
    %746 = vector.broadcast %8 : vector<16x1xf32> to vector<16x256xf32>
    %747 = arith.mulf %746, %745 : vector<16x256xf32>
    %748 = vector.broadcast %9 : vector<16x1xf32> to vector<16x256xf32>
    %749 = arith.addf %747, %748 : vector<16x256xf32>
    %cst_333 = arith.constant 2.500000e-01 : f32
    %750 = vector.broadcast %cst_333 : f32 to vector<16x256xf32>
    %751 = arith.mulf %510, %750 : vector<16x256xf32>
    %cst_334 = arith.constant 1.000000e+00 : f32
    %752 = vector.broadcast %cst_334 : f32 to vector<16x256xf32>
    %753 = arith.minimumf %515, %752 : vector<16x256xf32>
    %cst_335 = arith.constant 1.000000e+00 : f32
    %754 = vector.broadcast %cst_335 : f32 to vector<16x256xf32>
    %755 = arith.subf %754, %753 : vector<16x256xf32>
    %756 = arith.mulf %751, %755 : vector<16x256xf32>
    %757 = arith.addf %756, %749 : vector<16x256xf32>
    %758 = math.floor %757 : vector<16x256xf32>
    %cst_336 = arith.constant 0.000000e+00 : f32
    %cst_337 = arith.constant 4.000000e+00 : f32
    %759 = vector.broadcast %cst_336 : f32 to vector<16x256xf32>
    %760 = arith.maximumf %759, %758 : vector<16x256xf32>
    %761 = vector.broadcast %cst_337 : f32 to vector<16x256xf32>
    %762 = arith.minimumf %761, %760 : vector<16x256xf32>
    %763 = vector.extract_strided_slice %762 {offsets = [0, 0], sizes = [16, 128], strides = [1, 1]} : vector<16x256xf32> to vector<16x128xf32>
    %764 = vector.extract_strided_slice %762 {offsets = [0, 128], sizes = [16, 128], strides = [1, 1]} : vector<16x256xf32> to vector<16x128xf32>
    %c7_i32_338 = arith.constant 7 : i32
    %765 = tpu.dynamic_rotate %763 by %c7_i32_338 dim 1 : vector<16x128xf32>, i32 -> vector<16x128xf32>
    %c7_i32_339 = arith.constant 7 : i32
    %766 = vector.broadcast %c7_i32_339 : i32 to vector<16x128xi32>
    %767 = arith.cmpi sge, %14, %766 : vector<16x128xi32>
    %cst_340 = arith.constant 0.000000e+00 : f32
    %768 = vector.broadcast %cst_340 : f32 to vector<16x128xf32>
    %769 = arith.select %767, %765, %768 : vector<16x128xi1>, vector<16x128xf32>
    %c7_i32_341 = arith.constant 7 : i32
    %770 = tpu.dynamic_rotate %764 by %c7_i32_341 dim 1 : vector<16x128xf32>, i32 -> vector<16x128xf32>
    %c7_i32_342 = arith.constant 7 : i32
    %771 = vector.broadcast %c7_i32_342 : i32 to vector<16x128xi32>
    %772 = arith.cmpi sge, %14, %771 : vector<16x128xi32>
    %cst_343 = arith.constant 0.000000e+00 : f32
    %773 = vector.broadcast %cst_343 : f32 to vector<16x128xf32>
    %774 = arith.select %772, %770, %773 : vector<16x128xi1>, vector<16x128xf32>
    %775 = tpu.concatenate %769, %774 in 1 : vector<16x128xf32>, vector<16x128xf32> -> vector<16x256xf32>
    %776 = arith.truncf %775 : vector<16x256xf32> to vector<16x256xbf16>
    %c6_i32_344 = arith.constant 6 : i32
    %777 = tpu.dynamic_rotate %763 by %c6_i32_344 dim 1 : vector<16x128xf32>, i32 -> vector<16x128xf32>
    %c6_i32_345 = arith.constant 6 : i32
    %778 = vector.broadcast %c6_i32_345 : i32 to vector<16x128xi32>
    %779 = arith.cmpi sge, %14, %778 : vector<16x128xi32>
    %cst_346 = arith.constant 0.000000e+00 : f32
    %780 = vector.broadcast %cst_346 : f32 to vector<16x128xf32>
    %781 = arith.select %779, %777, %780 : vector<16x128xi1>, vector<16x128xf32>
    %c6_i32_347 = arith.constant 6 : i32
    %782 = tpu.dynamic_rotate %764 by %c6_i32_347 dim 1 : vector<16x128xf32>, i32 -> vector<16x128xf32>
    %c6_i32_348 = arith.constant 6 : i32
    %783 = vector.broadcast %c6_i32_348 : i32 to vector<16x128xi32>
    %784 = arith.cmpi sge, %14, %783 : vector<16x128xi32>
    %cst_349 = arith.constant 0.000000e+00 : f32
    %785 = vector.broadcast %cst_349 : f32 to vector<16x128xf32>
    %786 = arith.select %784, %782, %785 : vector<16x128xi1>, vector<16x128xf32>
    %787 = tpu.concatenate %781, %786 in 1 : vector<16x128xf32>, vector<16x128xf32> -> vector<16x256xf32>
    %788 = arith.truncf %787 : vector<16x256xf32> to vector<16x256xbf16>
    %c5_i32_350 = arith.constant 5 : i32
    %789 = tpu.dynamic_rotate %763 by %c5_i32_350 dim 1 : vector<16x128xf32>, i32 -> vector<16x128xf32>
    %c5_i32_351 = arith.constant 5 : i32
    %790 = vector.broadcast %c5_i32_351 : i32 to vector<16x128xi32>
    %791 = arith.cmpi sge, %14, %790 : vector<16x128xi32>
    %cst_352 = arith.constant 0.000000e+00 : f32
    %792 = vector.broadcast %cst_352 : f32 to vector<16x128xf32>
    %793 = arith.select %791, %789, %792 : vector<16x128xi1>, vector<16x128xf32>
    %c5_i32_353 = arith.constant 5 : i32
    %794 = tpu.dynamic_rotate %764 by %c5_i32_353 dim 1 : vector<16x128xf32>, i32 -> vector<16x128xf32>
    %c5_i32_354 = arith.constant 5 : i32
    %795 = vector.broadcast %c5_i32_354 : i32 to vector<16x128xi32>
    %796 = arith.cmpi sge, %14, %795 : vector<16x128xi32>
    %cst_355 = arith.constant 0.000000e+00 : f32
    %797 = vector.broadcast %cst_355 : f32 to vector<16x128xf32>
    %798 = arith.select %796, %794, %797 : vector<16x128xi1>, vector<16x128xf32>
    %799 = tpu.concatenate %793, %798 in 1 : vector<16x128xf32>, vector<16x128xf32> -> vector<16x256xf32>
    %800 = arith.truncf %799 : vector<16x256xf32> to vector<16x256xbf16>
    %c4_i32_356 = arith.constant 4 : i32
    %801 = tpu.dynamic_rotate %763 by %c4_i32_356 dim 1 : vector<16x128xf32>, i32 -> vector<16x128xf32>
    %c4_i32_357 = arith.constant 4 : i32
    %802 = vector.broadcast %c4_i32_357 : i32 to vector<16x128xi32>
    %803 = arith.cmpi sge, %14, %802 : vector<16x128xi32>
    %cst_358 = arith.constant 0.000000e+00 : f32
    %804 = vector.broadcast %cst_358 : f32 to vector<16x128xf32>
    %805 = arith.select %803, %801, %804 : vector<16x128xi1>, vector<16x128xf32>
    %c4_i32_359 = arith.constant 4 : i32
    %806 = tpu.dynamic_rotate %764 by %c4_i32_359 dim 1 : vector<16x128xf32>, i32 -> vector<16x128xf32>
    %c4_i32_360 = arith.constant 4 : i32
    %807 = vector.broadcast %c4_i32_360 : i32 to vector<16x128xi32>
    %808 = arith.cmpi sge, %14, %807 : vector<16x128xi32>
    %cst_361 = arith.constant 0.000000e+00 : f32
    %809 = vector.broadcast %cst_361 : f32 to vector<16x128xf32>
    %810 = arith.select %808, %806, %809 : vector<16x128xi1>, vector<16x128xf32>
    %811 = tpu.concatenate %805, %810 in 1 : vector<16x128xf32>, vector<16x128xf32> -> vector<16x256xf32>
    %812 = arith.truncf %811 : vector<16x256xf32> to vector<16x256xbf16>
    %c3_i32_362 = arith.constant 3 : i32
    %813 = tpu.dynamic_rotate %763 by %c3_i32_362 dim 1 : vector<16x128xf32>, i32 -> vector<16x128xf32>
    %c3_i32_363 = arith.constant 3 : i32
    %814 = vector.broadcast %c3_i32_363 : i32 to vector<16x128xi32>
    %815 = arith.cmpi sge, %14, %814 : vector<16x128xi32>
    %cst_364 = arith.constant 0.000000e+00 : f32
    %816 = vector.broadcast %cst_364 : f32 to vector<16x128xf32>
    %817 = arith.select %815, %813, %816 : vector<16x128xi1>, vector<16x128xf32>
    %c3_i32_365 = arith.constant 3 : i32
    %818 = tpu.dynamic_rotate %764 by %c3_i32_365 dim 1 : vector<16x128xf32>, i32 -> vector<16x128xf32>
    %c3_i32_366 = arith.constant 3 : i32
    %819 = vector.broadcast %c3_i32_366 : i32 to vector<16x128xi32>
    %820 = arith.cmpi sge, %14, %819 : vector<16x128xi32>
    %cst_367 = arith.constant 0.000000e+00 : f32
    %821 = vector.broadcast %cst_367 : f32 to vector<16x128xf32>
    %822 = arith.select %820, %818, %821 : vector<16x128xi1>, vector<16x128xf32>
    %823 = tpu.concatenate %817, %822 in 1 : vector<16x128xf32>, vector<16x128xf32> -> vector<16x256xf32>
    %824 = arith.truncf %823 : vector<16x256xf32> to vector<16x256xbf16>
    %c2_i32_368 = arith.constant 2 : i32
    %825 = tpu.dynamic_rotate %763 by %c2_i32_368 dim 1 : vector<16x128xf32>, i32 -> vector<16x128xf32>
    %c2_i32_369 = arith.constant 2 : i32
    %826 = vector.broadcast %c2_i32_369 : i32 to vector<16x128xi32>
    %827 = arith.cmpi sge, %14, %826 : vector<16x128xi32>
    %cst_370 = arith.constant 0.000000e+00 : f32
    %828 = vector.broadcast %cst_370 : f32 to vector<16x128xf32>
    %829 = arith.select %827, %825, %828 : vector<16x128xi1>, vector<16x128xf32>
    %c2_i32_371 = arith.constant 2 : i32
    %830 = tpu.dynamic_rotate %764 by %c2_i32_371 dim 1 : vector<16x128xf32>, i32 -> vector<16x128xf32>
    %c2_i32_372 = arith.constant 2 : i32
    %831 = vector.broadcast %c2_i32_372 : i32 to vector<16x128xi32>
    %832 = arith.cmpi sge, %14, %831 : vector<16x128xi32>
    %cst_373 = arith.constant 0.000000e+00 : f32
    %833 = vector.broadcast %cst_373 : f32 to vector<16x128xf32>
    %834 = arith.select %832, %830, %833 : vector<16x128xi1>, vector<16x128xf32>
    %835 = tpu.concatenate %829, %834 in 1 : vector<16x128xf32>, vector<16x128xf32> -> vector<16x256xf32>
    %836 = arith.truncf %835 : vector<16x256xf32> to vector<16x256xbf16>
    %c1_i32_374 = arith.constant 1 : i32
    %837 = tpu.dynamic_rotate %763 by %c1_i32_374 dim 1 : vector<16x128xf32>, i32 -> vector<16x128xf32>
    %c1_i32_375 = arith.constant 1 : i32
    %838 = vector.broadcast %c1_i32_375 : i32 to vector<16x128xi32>
    %839 = arith.cmpi sge, %14, %838 : vector<16x128xi32>
    %cst_376 = arith.constant 0.000000e+00 : f32
    %840 = vector.broadcast %cst_376 : f32 to vector<16x128xf32>
    %841 = arith.select %839, %837, %840 : vector<16x128xi1>, vector<16x128xf32>
    %c1_i32_377 = arith.constant 1 : i32
    %842 = tpu.dynamic_rotate %764 by %c1_i32_377 dim 1 : vector<16x128xf32>, i32 -> vector<16x128xf32>
    %c1_i32_378 = arith.constant 1 : i32
    %843 = vector.broadcast %c1_i32_378 : i32 to vector<16x128xi32>
    %844 = arith.cmpi sge, %14, %843 : vector<16x128xi32>
    %cst_379 = arith.constant 0.000000e+00 : f32
    %845 = vector.broadcast %cst_379 : f32 to vector<16x128xf32>
    %846 = arith.select %844, %842, %845 : vector<16x128xi1>, vector<16x128xf32>
    %847 = tpu.concatenate %841, %846 in 1 : vector<16x128xf32>, vector<16x128xf32> -> vector<16x256xf32>
    %848 = arith.truncf %847 : vector<16x256xf32> to vector<16x256xbf16>
    %849 = tpu.concatenate %763, %764 in 1 : vector<16x128xf32>, vector<16x128xf32> -> vector<16x256xf32>
    %850 = arith.truncf %849 : vector<16x256xf32> to vector<16x256xbf16>
    %c127_i32_380 = arith.constant 127 : i32
    %851 = tpu.dynamic_rotate %763 by %c127_i32_380 dim 1 : vector<16x128xf32>, i32 -> vector<16x128xf32>
    %c127_i32_381 = arith.constant 127 : i32
    %852 = vector.broadcast %c127_i32_381 : i32 to vector<16x128xi32>
    %853 = arith.cmpi slt, %14, %852 : vector<16x128xi32>
    %cst_382 = arith.constant 0.000000e+00 : f32
    %854 = vector.broadcast %cst_382 : f32 to vector<16x128xf32>
    %855 = arith.select %853, %851, %854 : vector<16x128xi1>, vector<16x128xf32>
    %c127_i32_383 = arith.constant 127 : i32
    %856 = tpu.dynamic_rotate %764 by %c127_i32_383 dim 1 : vector<16x128xf32>, i32 -> vector<16x128xf32>
    %c127_i32_384 = arith.constant 127 : i32
    %857 = vector.broadcast %c127_i32_384 : i32 to vector<16x128xi32>
    %858 = arith.cmpi slt, %14, %857 : vector<16x128xi32>
    %cst_385 = arith.constant 0.000000e+00 : f32
    %859 = vector.broadcast %cst_385 : f32 to vector<16x128xf32>
    %860 = arith.select %858, %856, %859 : vector<16x128xi1>, vector<16x128xf32>
    %861 = tpu.concatenate %855, %860 in 1 : vector<16x128xf32>, vector<16x128xf32> -> vector<16x256xf32>
    %862 = arith.truncf %861 : vector<16x256xf32> to vector<16x256xbf16>
    %c126_i32_386 = arith.constant 126 : i32
    %863 = tpu.dynamic_rotate %763 by %c126_i32_386 dim 1 : vector<16x128xf32>, i32 -> vector<16x128xf32>
    %c126_i32_387 = arith.constant 126 : i32
    %864 = vector.broadcast %c126_i32_387 : i32 to vector<16x128xi32>
    %865 = arith.cmpi slt, %14, %864 : vector<16x128xi32>
    %cst_388 = arith.constant 0.000000e+00 : f32
    %866 = vector.broadcast %cst_388 : f32 to vector<16x128xf32>
    %867 = arith.select %865, %863, %866 : vector<16x128xi1>, vector<16x128xf32>
    %c126_i32_389 = arith.constant 126 : i32
    %868 = tpu.dynamic_rotate %764 by %c126_i32_389 dim 1 : vector<16x128xf32>, i32 -> vector<16x128xf32>
    %c126_i32_390 = arith.constant 126 : i32
    %869 = vector.broadcast %c126_i32_390 : i32 to vector<16x128xi32>
    %870 = arith.cmpi slt, %14, %869 : vector<16x128xi32>
    %cst_391 = arith.constant 0.000000e+00 : f32
    %871 = vector.broadcast %cst_391 : f32 to vector<16x128xf32>
    %872 = arith.select %870, %868, %871 : vector<16x128xi1>, vector<16x128xf32>
    %873 = tpu.concatenate %867, %872 in 1 : vector<16x128xf32>, vector<16x128xf32> -> vector<16x256xf32>
    %874 = arith.truncf %873 : vector<16x256xf32> to vector<16x256xbf16>
    %c125_i32_392 = arith.constant 125 : i32
    %875 = tpu.dynamic_rotate %763 by %c125_i32_392 dim 1 : vector<16x128xf32>, i32 -> vector<16x128xf32>
    %c125_i32_393 = arith.constant 125 : i32
    %876 = vector.broadcast %c125_i32_393 : i32 to vector<16x128xi32>
    %877 = arith.cmpi slt, %14, %876 : vector<16x128xi32>
    %cst_394 = arith.constant 0.000000e+00 : f32
    %878 = vector.broadcast %cst_394 : f32 to vector<16x128xf32>
    %879 = arith.select %877, %875, %878 : vector<16x128xi1>, vector<16x128xf32>
    %c125_i32_395 = arith.constant 125 : i32
    %880 = tpu.dynamic_rotate %764 by %c125_i32_395 dim 1 : vector<16x128xf32>, i32 -> vector<16x128xf32>
    %c125_i32_396 = arith.constant 125 : i32
    %881 = vector.broadcast %c125_i32_396 : i32 to vector<16x128xi32>
    %882 = arith.cmpi slt, %14, %881 : vector<16x128xi32>
    %cst_397 = arith.constant 0.000000e+00 : f32
    %883 = vector.broadcast %cst_397 : f32 to vector<16x128xf32>
    %884 = arith.select %882, %880, %883 : vector<16x128xi1>, vector<16x128xf32>
    %885 = tpu.concatenate %879, %884 in 1 : vector<16x128xf32>, vector<16x128xf32> -> vector<16x256xf32>
    %886 = arith.truncf %885 : vector<16x256xf32> to vector<16x256xbf16>
    %c124_i32_398 = arith.constant 124 : i32
    %887 = tpu.dynamic_rotate %763 by %c124_i32_398 dim 1 : vector<16x128xf32>, i32 -> vector<16x128xf32>
    %c124_i32_399 = arith.constant 124 : i32
    %888 = vector.broadcast %c124_i32_399 : i32 to vector<16x128xi32>
    %889 = arith.cmpi slt, %14, %888 : vector<16x128xi32>
    %cst_400 = arith.constant 0.000000e+00 : f32
    %890 = vector.broadcast %cst_400 : f32 to vector<16x128xf32>
    %891 = arith.select %889, %887, %890 : vector<16x128xi1>, vector<16x128xf32>
    %c124_i32_401 = arith.constant 124 : i32
    %892 = tpu.dynamic_rotate %764 by %c124_i32_401 dim 1 : vector<16x128xf32>, i32 -> vector<16x128xf32>
    %c124_i32_402 = arith.constant 124 : i32
    %893 = vector.broadcast %c124_i32_402 : i32 to vector<16x128xi32>
    %894 = arith.cmpi slt, %14, %893 : vector<16x128xi32>
    %cst_403 = arith.constant 0.000000e+00 : f32
    %895 = vector.broadcast %cst_403 : f32 to vector<16x128xf32>
    %896 = arith.select %894, %892, %895 : vector<16x128xi1>, vector<16x128xf32>
    %897 = tpu.concatenate %891, %896 in 1 : vector<16x128xf32>, vector<16x128xf32> -> vector<16x256xf32>
    %898 = arith.truncf %897 : vector<16x256xf32> to vector<16x256xbf16>
    %c123_i32_404 = arith.constant 123 : i32
    %899 = tpu.dynamic_rotate %763 by %c123_i32_404 dim 1 : vector<16x128xf32>, i32 -> vector<16x128xf32>
    %c123_i32_405 = arith.constant 123 : i32
    %900 = vector.broadcast %c123_i32_405 : i32 to vector<16x128xi32>
    %901 = arith.cmpi slt, %14, %900 : vector<16x128xi32>
    %cst_406 = arith.constant 0.000000e+00 : f32
    %902 = vector.broadcast %cst_406 : f32 to vector<16x128xf32>
    %903 = arith.select %901, %899, %902 : vector<16x128xi1>, vector<16x128xf32>
    %c123_i32_407 = arith.constant 123 : i32
    %904 = tpu.dynamic_rotate %764 by %c123_i32_407 dim 1 : vector<16x128xf32>, i32 -> vector<16x128xf32>
    %c123_i32_408 = arith.constant 123 : i32
    %905 = vector.broadcast %c123_i32_408 : i32 to vector<16x128xi32>
    %906 = arith.cmpi slt, %14, %905 : vector<16x128xi32>
    %cst_409 = arith.constant 0.000000e+00 : f32
    %907 = vector.broadcast %cst_409 : f32 to vector<16x128xf32>
    %908 = arith.select %906, %904, %907 : vector<16x128xi1>, vector<16x128xf32>
    %909 = tpu.concatenate %903, %908 in 1 : vector<16x128xf32>, vector<16x128xf32> -> vector<16x256xf32>
    %910 = arith.truncf %909 : vector<16x256xf32> to vector<16x256xbf16>
    %c122_i32_410 = arith.constant 122 : i32
    %911 = tpu.dynamic_rotate %763 by %c122_i32_410 dim 1 : vector<16x128xf32>, i32 -> vector<16x128xf32>
    %c122_i32_411 = arith.constant 122 : i32
    %912 = vector.broadcast %c122_i32_411 : i32 to vector<16x128xi32>
    %913 = arith.cmpi slt, %14, %912 : vector<16x128xi32>
    %cst_412 = arith.constant 0.000000e+00 : f32
    %914 = vector.broadcast %cst_412 : f32 to vector<16x128xf32>
    %915 = arith.select %913, %911, %914 : vector<16x128xi1>, vector<16x128xf32>
    %c122_i32_413 = arith.constant 122 : i32
    %916 = tpu.dynamic_rotate %764 by %c122_i32_413 dim 1 : vector<16x128xf32>, i32 -> vector<16x128xf32>
    %c122_i32_414 = arith.constant 122 : i32
    %917 = vector.broadcast %c122_i32_414 : i32 to vector<16x128xi32>
    %918 = arith.cmpi slt, %14, %917 : vector<16x128xi32>
    %cst_415 = arith.constant 0.000000e+00 : f32
    %919 = vector.broadcast %cst_415 : f32 to vector<16x128xf32>
    %920 = arith.select %918, %916, %919 : vector<16x128xi1>, vector<16x128xf32>
    %921 = tpu.concatenate %915, %920 in 1 : vector<16x128xf32>, vector<16x128xf32> -> vector<16x256xf32>
    %922 = arith.truncf %921 : vector<16x256xf32> to vector<16x256xbf16>
    %c121_i32_416 = arith.constant 121 : i32
    %923 = tpu.dynamic_rotate %763 by %c121_i32_416 dim 1 : vector<16x128xf32>, i32 -> vector<16x128xf32>
    %c121_i32_417 = arith.constant 121 : i32
    %924 = vector.broadcast %c121_i32_417 : i32 to vector<16x128xi32>
    %925 = arith.cmpi slt, %14, %924 : vector<16x128xi32>
    %cst_418 = arith.constant 0.000000e+00 : f32
    %926 = vector.broadcast %cst_418 : f32 to vector<16x128xf32>
    %927 = arith.select %925, %923, %926 : vector<16x128xi1>, vector<16x128xf32>
    %c121_i32_419 = arith.constant 121 : i32
    %928 = tpu.dynamic_rotate %764 by %c121_i32_419 dim 1 : vector<16x128xf32>, i32 -> vector<16x128xf32>
    %c121_i32_420 = arith.constant 121 : i32
    %929 = vector.broadcast %c121_i32_420 : i32 to vector<16x128xi32>
    %930 = arith.cmpi slt, %14, %929 : vector<16x128xi32>
    %cst_421 = arith.constant 0.000000e+00 : f32
    %931 = vector.broadcast %cst_421 : f32 to vector<16x128xf32>
    %932 = arith.select %930, %928, %931 : vector<16x128xi1>, vector<16x128xf32>
    %933 = tpu.concatenate %927, %932 in 1 : vector<16x128xf32>, vector<16x128xf32> -> vector<16x256xf32>
    %934 = arith.truncf %933 : vector<16x256xf32> to vector<16x256xbf16>
    %c120_i32_422 = arith.constant 120 : i32
    %935 = tpu.dynamic_rotate %763 by %c120_i32_422 dim 1 : vector<16x128xf32>, i32 -> vector<16x128xf32>
    %c120_i32_423 = arith.constant 120 : i32
    %936 = vector.broadcast %c120_i32_423 : i32 to vector<16x128xi32>
    %937 = arith.cmpi slt, %14, %936 : vector<16x128xi32>
    %cst_424 = arith.constant 0.000000e+00 : f32
    %938 = vector.broadcast %cst_424 : f32 to vector<16x128xf32>
    %939 = arith.select %937, %935, %938 : vector<16x128xi1>, vector<16x128xf32>
    %c120_i32_425 = arith.constant 120 : i32
    %940 = tpu.dynamic_rotate %764 by %c120_i32_425 dim 1 : vector<16x128xf32>, i32 -> vector<16x128xf32>
    %c120_i32_426 = arith.constant 120 : i32
    %941 = vector.broadcast %c120_i32_426 : i32 to vector<16x128xi32>
    %942 = arith.cmpi slt, %14, %941 : vector<16x128xi32>
    %cst_427 = arith.constant 0.000000e+00 : f32
    %943 = vector.broadcast %cst_427 : f32 to vector<16x128xf32>
    %944 = arith.select %942, %940, %943 : vector<16x128xi1>, vector<16x128xf32>
    %945 = tpu.concatenate %939, %944 in 1 : vector<16x128xf32>, vector<16x128xf32> -> vector<16x256xf32>
    %946 = arith.truncf %945 : vector<16x256xf32> to vector<16x256xbf16>
    %947 = tpu.concatenate %776, %788, %800, %812, %824, %836, %848, %850 in 0 : vector<16x256xbf16>, vector<16x256xbf16>, vector<16x256xbf16>, vector<16x256xbf16>, vector<16x256xbf16>, vector<16x256xbf16>, vector<16x256xbf16>, vector<16x256xbf16> -> vector<128x256xbf16>
    %948 = tpu.concatenate %862, %874, %886, %898, %910, %922, %934, %946 in 0 : vector<16x256xbf16>, vector<16x256xbf16>, vector<16x256xbf16>, vector<16x256xbf16>, vector<16x256xbf16>, vector<16x256xbf16>, vector<16x256xbf16>, vector<16x256xbf16> -> vector<128x256xbf16>
    %cst_428 = arith.constant dense<0.000000e+00> : vector<16x256xf32>
    %949 = tpu.matmul %12, %947, %cst_428 {dimension_numbers = #tpu.dot_dimension_numbers<[1], [0], [0], [1], [0, 0, 1, 1], [], []>} : vector<16x128xbf16>, vector<128x256xbf16>, vector<16x256xf32> -> vector<16x256xf32>
    %cst_429 = arith.constant dense<0.000000e+00> : vector<16x256xf32>
    %950 = tpu.matmul %13, %948, %cst_429 {dimension_numbers = #tpu.dot_dimension_numbers<[1], [0], [0], [1], [0, 0, 1, 1], [], []>} : vector<16x128xbf16>, vector<128x256xbf16>, vector<16x256xf32> -> vector<16x256xf32>
    %951 = vector.extract_strided_slice %949 {offsets = [0, 0], sizes = [8, 256], strides = [1, 1]} : vector<16x256xf32> to vector<8x256xf32>
    %952 = vector.extract_strided_slice %949 {offsets = [8, 0], sizes = [8, 256], strides = [1, 1]} : vector<16x256xf32> to vector<8x256xf32>
    %953 = arith.addf %951, %952 : vector<8x256xf32>
    %954 = vector.extract_strided_slice %950 {offsets = [0, 0], sizes = [8, 256], strides = [1, 1]} : vector<16x256xf32> to vector<8x256xf32>
    %955 = arith.addf %953, %954 : vector<8x256xf32>
    %956 = vector.extract_strided_slice %950 {offsets = [8, 0], sizes = [8, 256], strides = [1, 1]} : vector<16x256xf32> to vector<8x256xf32>
    %957 = arith.addf %955, %956 : vector<8x256xf32>
    %958 = vector.broadcast %10 : vector<8x1xf32> to vector<8x256xf32>
    %959 = arith.addf %957, %958 : vector<8x256xf32>
    %cst_430 = arith.constant 2.500000e-01 : f32
    %960 = vector.broadcast %cst_430 : f32 to vector<8x256xf32>
    %961 = arith.mulf %720, %960 : vector<8x256xf32>
    %cst_431 = arith.constant 1.000000e+00 : f32
    %962 = vector.broadcast %cst_431 : f32 to vector<8x256xf32>
    %963 = arith.minimumf %725, %962 : vector<8x256xf32>
    %cst_432 = arith.constant 1.000000e+00 : f32
    %964 = vector.broadcast %cst_432 : f32 to vector<8x256xf32>
    %965 = arith.subf %964, %963 : vector<8x256xf32>
    %966 = arith.mulf %961, %965 : vector<8x256xf32>
    %967 = arith.addf %966, %959 : vector<8x256xf32>
    %968 = math.floor %967 : vector<8x256xf32>
    %cst_433 = arith.constant 0.000000e+00 : f32
    %cst_434 = arith.constant 4.000000e+00 : f32
    %969 = vector.broadcast %cst_433 : f32 to vector<8x256xf32>
    %970 = arith.maximumf %969, %968 : vector<8x256xf32>
    %971 = vector.broadcast %cst_434 : f32 to vector<8x256xf32>
    %972 = arith.minimumf %971, %970 : vector<8x256xf32>
    %973 = tpu.concatenate %972, %972, %972, %972 in 0 : vector<8x256xf32>, vector<8x256xf32>, vector<8x256xf32>, vector<8x256xf32> -> vector<32x256xf32>
    %c3 = arith.constant 3 : index
    %c0_435 = arith.constant 0 : index
    %c0_436 = arith.constant 0 : index
    %974 = vector.load %arg8[%c3, %c0_435, %c0_436] : memref<8x32x256xf32, #tpu.memory_space<vmem>>, vector<1x32x256xf32>
    %975 = vector.shape_cast %974 : vector<1x32x256xf32> to vector<32x256xf32>
    %976 = arith.mulf %975, %973 : vector<32x256xf32>
    %977 = arith.addf %730, %976 : vector<32x256xf32>
    %c0_437 = arith.constant 0 : index
    %c1024 = arith.constant 1024 : index
    %978 = vector.load %arg11[%c0_437, %c1024] : memref<8x2048xf32, #tpu.memory_space<vmem>>, vector<8x256xf32>
    %cst_438 = arith.constant 2.500000e-01 : f32
    %979 = vector.broadcast %cst_438 : f32 to vector<8x256xf32>
    %980 = arith.mulf %739, %979 : vector<8x256xf32>
    %cst_439 = arith.constant 1.000000e+00 : f32
    %981 = vector.broadcast %cst_439 : f32 to vector<8x256xf32>
    %982 = arith.minimumf %744, %981 : vector<8x256xf32>
    %cst_440 = arith.constant 1.000000e+00 : f32
    %983 = vector.broadcast %cst_440 : f32 to vector<8x256xf32>
    %984 = arith.subf %983, %982 : vector<8x256xf32>
    %985 = arith.mulf %980, %984 : vector<8x256xf32>
    %986 = arith.addf %985, %978 : vector<8x256xf32>
    %987 = math.floor %986 : vector<8x256xf32>
    %cst_441 = arith.constant 0.000000e+00 : f32
    %cst_442 = arith.constant 4.000000e+00 : f32
    %988 = vector.broadcast %cst_441 : f32 to vector<8x256xf32>
    %989 = arith.maximumf %988, %987 : vector<8x256xf32>
    %990 = vector.broadcast %cst_442 : f32 to vector<8x256xf32>
    %991 = arith.minimumf %990, %989 : vector<8x256xf32>
    %992 = tpu.concatenate %991, %991 in 0 : vector<8x256xf32>, vector<8x256xf32> -> vector<16x256xf32>
    %993 = vector.broadcast %8 : vector<16x1xf32> to vector<16x256xf32>
    %994 = arith.mulf %993, %992 : vector<16x256xf32>
    %995 = vector.broadcast %9 : vector<16x1xf32> to vector<16x256xf32>
    %996 = arith.addf %994, %995 : vector<16x256xf32>
    %cst_443 = arith.constant 2.500000e-01 : f32
    %997 = vector.broadcast %cst_443 : f32 to vector<16x256xf32>
    %998 = arith.mulf %757, %997 : vector<16x256xf32>
    %cst_444 = arith.constant 1.000000e+00 : f32
    %999 = vector.broadcast %cst_444 : f32 to vector<16x256xf32>
    %1000 = arith.minimumf %762, %999 : vector<16x256xf32>
    %cst_445 = arith.constant 1.000000e+00 : f32
    %1001 = vector.broadcast %cst_445 : f32 to vector<16x256xf32>
    %1002 = arith.subf %1001, %1000 : vector<16x256xf32>
    %1003 = arith.mulf %998, %1002 : vector<16x256xf32>
    %1004 = arith.addf %1003, %996 : vector<16x256xf32>
    %1005 = math.floor %1004 : vector<16x256xf32>
    %cst_446 = arith.constant 0.000000e+00 : f32
    %cst_447 = arith.constant 4.000000e+00 : f32
    %1006 = vector.broadcast %cst_446 : f32 to vector<16x256xf32>
    %1007 = arith.maximumf %1006, %1005 : vector<16x256xf32>
    %1008 = vector.broadcast %cst_447 : f32 to vector<16x256xf32>
    %1009 = arith.minimumf %1008, %1007 : vector<16x256xf32>
    %1010 = vector.extract_strided_slice %1009 {offsets = [0, 0], sizes = [16, 128], strides = [1, 1]} : vector<16x256xf32> to vector<16x128xf32>
    %1011 = vector.extract_strided_slice %1009 {offsets = [0, 128], sizes = [16, 128], strides = [1, 1]} : vector<16x256xf32> to vector<16x128xf32>
    %c7_i32_448 = arith.constant 7 : i32
    %1012 = tpu.dynamic_rotate %1010 by %c7_i32_448 dim 1 : vector<16x128xf32>, i32 -> vector<16x128xf32>
    %c7_i32_449 = arith.constant 7 : i32
    %1013 = vector.broadcast %c7_i32_449 : i32 to vector<16x128xi32>
    %1014 = arith.cmpi sge, %14, %1013 : vector<16x128xi32>
    %cst_450 = arith.constant 0.000000e+00 : f32
    %1015 = vector.broadcast %cst_450 : f32 to vector<16x128xf32>
    %1016 = arith.select %1014, %1012, %1015 : vector<16x128xi1>, vector<16x128xf32>
    %c7_i32_451 = arith.constant 7 : i32
    %1017 = tpu.dynamic_rotate %1011 by %c7_i32_451 dim 1 : vector<16x128xf32>, i32 -> vector<16x128xf32>
    %c7_i32_452 = arith.constant 7 : i32
    %1018 = vector.broadcast %c7_i32_452 : i32 to vector<16x128xi32>
    %1019 = arith.cmpi sge, %14, %1018 : vector<16x128xi32>
    %cst_453 = arith.constant 0.000000e+00 : f32
    %1020 = vector.broadcast %cst_453 : f32 to vector<16x128xf32>
    %1021 = arith.select %1019, %1017, %1020 : vector<16x128xi1>, vector<16x128xf32>
    %1022 = tpu.concatenate %1016, %1021 in 1 : vector<16x128xf32>, vector<16x128xf32> -> vector<16x256xf32>
    %1023 = arith.truncf %1022 : vector<16x256xf32> to vector<16x256xbf16>
    %c6_i32_454 = arith.constant 6 : i32
    %1024 = tpu.dynamic_rotate %1010 by %c6_i32_454 dim 1 : vector<16x128xf32>, i32 -> vector<16x128xf32>
    %c6_i32_455 = arith.constant 6 : i32
    %1025 = vector.broadcast %c6_i32_455 : i32 to vector<16x128xi32>
    %1026 = arith.cmpi sge, %14, %1025 : vector<16x128xi32>
    %cst_456 = arith.constant 0.000000e+00 : f32
    %1027 = vector.broadcast %cst_456 : f32 to vector<16x128xf32>
    %1028 = arith.select %1026, %1024, %1027 : vector<16x128xi1>, vector<16x128xf32>
    %c6_i32_457 = arith.constant 6 : i32
    %1029 = tpu.dynamic_rotate %1011 by %c6_i32_457 dim 1 : vector<16x128xf32>, i32 -> vector<16x128xf32>
    %c6_i32_458 = arith.constant 6 : i32
    %1030 = vector.broadcast %c6_i32_458 : i32 to vector<16x128xi32>
    %1031 = arith.cmpi sge, %14, %1030 : vector<16x128xi32>
    %cst_459 = arith.constant 0.000000e+00 : f32
    %1032 = vector.broadcast %cst_459 : f32 to vector<16x128xf32>
    %1033 = arith.select %1031, %1029, %1032 : vector<16x128xi1>, vector<16x128xf32>
    %1034 = tpu.concatenate %1028, %1033 in 1 : vector<16x128xf32>, vector<16x128xf32> -> vector<16x256xf32>
    %1035 = arith.truncf %1034 : vector<16x256xf32> to vector<16x256xbf16>
    %c5_i32_460 = arith.constant 5 : i32
    %1036 = tpu.dynamic_rotate %1010 by %c5_i32_460 dim 1 : vector<16x128xf32>, i32 -> vector<16x128xf32>
    %c5_i32_461 = arith.constant 5 : i32
    %1037 = vector.broadcast %c5_i32_461 : i32 to vector<16x128xi32>
    %1038 = arith.cmpi sge, %14, %1037 : vector<16x128xi32>
    %cst_462 = arith.constant 0.000000e+00 : f32
    %1039 = vector.broadcast %cst_462 : f32 to vector<16x128xf32>
    %1040 = arith.select %1038, %1036, %1039 : vector<16x128xi1>, vector<16x128xf32>
    %c5_i32_463 = arith.constant 5 : i32
    %1041 = tpu.dynamic_rotate %1011 by %c5_i32_463 dim 1 : vector<16x128xf32>, i32 -> vector<16x128xf32>
    %c5_i32_464 = arith.constant 5 : i32
    %1042 = vector.broadcast %c5_i32_464 : i32 to vector<16x128xi32>
    %1043 = arith.cmpi sge, %14, %1042 : vector<16x128xi32>
    %cst_465 = arith.constant 0.000000e+00 : f32
    %1044 = vector.broadcast %cst_465 : f32 to vector<16x128xf32>
    %1045 = arith.select %1043, %1041, %1044 : vector<16x128xi1>, vector<16x128xf32>
    %1046 = tpu.concatenate %1040, %1045 in 1 : vector<16x128xf32>, vector<16x128xf32> -> vector<16x256xf32>
    %1047 = arith.truncf %1046 : vector<16x256xf32> to vector<16x256xbf16>
    %c4_i32_466 = arith.constant 4 : i32
    %1048 = tpu.dynamic_rotate %1010 by %c4_i32_466 dim 1 : vector<16x128xf32>, i32 -> vector<16x128xf32>
    %c4_i32_467 = arith.constant 4 : i32
    %1049 = vector.broadcast %c4_i32_467 : i32 to vector<16x128xi32>
    %1050 = arith.cmpi sge, %14, %1049 : vector<16x128xi32>
    %cst_468 = arith.constant 0.000000e+00 : f32
    %1051 = vector.broadcast %cst_468 : f32 to vector<16x128xf32>
    %1052 = arith.select %1050, %1048, %1051 : vector<16x128xi1>, vector<16x128xf32>
    %c4_i32_469 = arith.constant 4 : i32
    %1053 = tpu.dynamic_rotate %1011 by %c4_i32_469 dim 1 : vector<16x128xf32>, i32 -> vector<16x128xf32>
    %c4_i32_470 = arith.constant 4 : i32
    %1054 = vector.broadcast %c4_i32_470 : i32 to vector<16x128xi32>
    %1055 = arith.cmpi sge, %14, %1054 : vector<16x128xi32>
    %cst_471 = arith.constant 0.000000e+00 : f32
    %1056 = vector.broadcast %cst_471 : f32 to vector<16x128xf32>
    %1057 = arith.select %1055, %1053, %1056 : vector<16x128xi1>, vector<16x128xf32>
    %1058 = tpu.concatenate %1052, %1057 in 1 : vector<16x128xf32>, vector<16x128xf32> -> vector<16x256xf32>
    %1059 = arith.truncf %1058 : vector<16x256xf32> to vector<16x256xbf16>
    %c3_i32_472 = arith.constant 3 : i32
    %1060 = tpu.dynamic_rotate %1010 by %c3_i32_472 dim 1 : vector<16x128xf32>, i32 -> vector<16x128xf32>
    %c3_i32_473 = arith.constant 3 : i32
    %1061 = vector.broadcast %c3_i32_473 : i32 to vector<16x128xi32>
    %1062 = arith.cmpi sge, %14, %1061 : vector<16x128xi32>
    %cst_474 = arith.constant 0.000000e+00 : f32
    %1063 = vector.broadcast %cst_474 : f32 to vector<16x128xf32>
    %1064 = arith.select %1062, %1060, %1063 : vector<16x128xi1>, vector<16x128xf32>
    %c3_i32_475 = arith.constant 3 : i32
    %1065 = tpu.dynamic_rotate %1011 by %c3_i32_475 dim 1 : vector<16x128xf32>, i32 -> vector<16x128xf32>
    %c3_i32_476 = arith.constant 3 : i32
    %1066 = vector.broadcast %c3_i32_476 : i32 to vector<16x128xi32>
    %1067 = arith.cmpi sge, %14, %1066 : vector<16x128xi32>
    %cst_477 = arith.constant 0.000000e+00 : f32
    %1068 = vector.broadcast %cst_477 : f32 to vector<16x128xf32>
    %1069 = arith.select %1067, %1065, %1068 : vector<16x128xi1>, vector<16x128xf32>
    %1070 = tpu.concatenate %1064, %1069 in 1 : vector<16x128xf32>, vector<16x128xf32> -> vector<16x256xf32>
    %1071 = arith.truncf %1070 : vector<16x256xf32> to vector<16x256xbf16>
    %c2_i32_478 = arith.constant 2 : i32
    %1072 = tpu.dynamic_rotate %1010 by %c2_i32_478 dim 1 : vector<16x128xf32>, i32 -> vector<16x128xf32>
    %c2_i32_479 = arith.constant 2 : i32
    %1073 = vector.broadcast %c2_i32_479 : i32 to vector<16x128xi32>
    %1074 = arith.cmpi sge, %14, %1073 : vector<16x128xi32>
    %cst_480 = arith.constant 0.000000e+00 : f32
    %1075 = vector.broadcast %cst_480 : f32 to vector<16x128xf32>
    %1076 = arith.select %1074, %1072, %1075 : vector<16x128xi1>, vector<16x128xf32>
    %c2_i32_481 = arith.constant 2 : i32
    %1077 = tpu.dynamic_rotate %1011 by %c2_i32_481 dim 1 : vector<16x128xf32>, i32 -> vector<16x128xf32>
    %c2_i32_482 = arith.constant 2 : i32
    %1078 = vector.broadcast %c2_i32_482 : i32 to vector<16x128xi32>
    %1079 = arith.cmpi sge, %14, %1078 : vector<16x128xi32>
    %cst_483 = arith.constant 0.000000e+00 : f32
    %1080 = vector.broadcast %cst_483 : f32 to vector<16x128xf32>
    %1081 = arith.select %1079, %1077, %1080 : vector<16x128xi1>, vector<16x128xf32>
    %1082 = tpu.concatenate %1076, %1081 in 1 : vector<16x128xf32>, vector<16x128xf32> -> vector<16x256xf32>
    %1083 = arith.truncf %1082 : vector<16x256xf32> to vector<16x256xbf16>
    %c1_i32_484 = arith.constant 1 : i32
    %1084 = tpu.dynamic_rotate %1010 by %c1_i32_484 dim 1 : vector<16x128xf32>, i32 -> vector<16x128xf32>
    %c1_i32_485 = arith.constant 1 : i32
    %1085 = vector.broadcast %c1_i32_485 : i32 to vector<16x128xi32>
    %1086 = arith.cmpi sge, %14, %1085 : vector<16x128xi32>
    %cst_486 = arith.constant 0.000000e+00 : f32
    %1087 = vector.broadcast %cst_486 : f32 to vector<16x128xf32>
    %1088 = arith.select %1086, %1084, %1087 : vector<16x128xi1>, vector<16x128xf32>
    %c1_i32_487 = arith.constant 1 : i32
    %1089 = tpu.dynamic_rotate %1011 by %c1_i32_487 dim 1 : vector<16x128xf32>, i32 -> vector<16x128xf32>
    %c1_i32_488 = arith.constant 1 : i32
    %1090 = vector.broadcast %c1_i32_488 : i32 to vector<16x128xi32>
    %1091 = arith.cmpi sge, %14, %1090 : vector<16x128xi32>
    %cst_489 = arith.constant 0.000000e+00 : f32
    %1092 = vector.broadcast %cst_489 : f32 to vector<16x128xf32>
    %1093 = arith.select %1091, %1089, %1092 : vector<16x128xi1>, vector<16x128xf32>
    %1094 = tpu.concatenate %1088, %1093 in 1 : vector<16x128xf32>, vector<16x128xf32> -> vector<16x256xf32>
    %1095 = arith.truncf %1094 : vector<16x256xf32> to vector<16x256xbf16>
    %1096 = tpu.concatenate %1010, %1011 in 1 : vector<16x128xf32>, vector<16x128xf32> -> vector<16x256xf32>
    %1097 = arith.truncf %1096 : vector<16x256xf32> to vector<16x256xbf16>
    %c127_i32_490 = arith.constant 127 : i32
    %1098 = tpu.dynamic_rotate %1010 by %c127_i32_490 dim 1 : vector<16x128xf32>, i32 -> vector<16x128xf32>
    %c127_i32_491 = arith.constant 127 : i32
    %1099 = vector.broadcast %c127_i32_491 : i32 to vector<16x128xi32>
    %1100 = arith.cmpi slt, %14, %1099 : vector<16x128xi32>
    %cst_492 = arith.constant 0.000000e+00 : f32
    %1101 = vector.broadcast %cst_492 : f32 to vector<16x128xf32>
    %1102 = arith.select %1100, %1098, %1101 : vector<16x128xi1>, vector<16x128xf32>
    %c127_i32_493 = arith.constant 127 : i32
    %1103 = tpu.dynamic_rotate %1011 by %c127_i32_493 dim 1 : vector<16x128xf32>, i32 -> vector<16x128xf32>
    %c127_i32_494 = arith.constant 127 : i32
    %1104 = vector.broadcast %c127_i32_494 : i32 to vector<16x128xi32>
    %1105 = arith.cmpi slt, %14, %1104 : vector<16x128xi32>
    %cst_495 = arith.constant 0.000000e+00 : f32
    %1106 = vector.broadcast %cst_495 : f32 to vector<16x128xf32>
    %1107 = arith.select %1105, %1103, %1106 : vector<16x128xi1>, vector<16x128xf32>
    %1108 = tpu.concatenate %1102, %1107 in 1 : vector<16x128xf32>, vector<16x128xf32> -> vector<16x256xf32>
    %1109 = arith.truncf %1108 : vector<16x256xf32> to vector<16x256xbf16>
    %c126_i32_496 = arith.constant 126 : i32
    %1110 = tpu.dynamic_rotate %1010 by %c126_i32_496 dim 1 : vector<16x128xf32>, i32 -> vector<16x128xf32>
    %c126_i32_497 = arith.constant 126 : i32
    %1111 = vector.broadcast %c126_i32_497 : i32 to vector<16x128xi32>
    %1112 = arith.cmpi slt, %14, %1111 : vector<16x128xi32>
    %cst_498 = arith.constant 0.000000e+00 : f32
    %1113 = vector.broadcast %cst_498 : f32 to vector<16x128xf32>
    %1114 = arith.select %1112, %1110, %1113 : vector<16x128xi1>, vector<16x128xf32>
    %c126_i32_499 = arith.constant 126 : i32
    %1115 = tpu.dynamic_rotate %1011 by %c126_i32_499 dim 1 : vector<16x128xf32>, i32 -> vector<16x128xf32>
    %c126_i32_500 = arith.constant 126 : i32
    %1116 = vector.broadcast %c126_i32_500 : i32 to vector<16x128xi32>
    %1117 = arith.cmpi slt, %14, %1116 : vector<16x128xi32>
    %cst_501 = arith.constant 0.000000e+00 : f32
    %1118 = vector.broadcast %cst_501 : f32 to vector<16x128xf32>
    %1119 = arith.select %1117, %1115, %1118 : vector<16x128xi1>, vector<16x128xf32>
    %1120 = tpu.concatenate %1114, %1119 in 1 : vector<16x128xf32>, vector<16x128xf32> -> vector<16x256xf32>
    %1121 = arith.truncf %1120 : vector<16x256xf32> to vector<16x256xbf16>
    %c125_i32_502 = arith.constant 125 : i32
    %1122 = tpu.dynamic_rotate %1010 by %c125_i32_502 dim 1 : vector<16x128xf32>, i32 -> vector<16x128xf32>
    %c125_i32_503 = arith.constant 125 : i32
    %1123 = vector.broadcast %c125_i32_503 : i32 to vector<16x128xi32>
    %1124 = arith.cmpi slt, %14, %1123 : vector<16x128xi32>
    %cst_504 = arith.constant 0.000000e+00 : f32
    %1125 = vector.broadcast %cst_504 : f32 to vector<16x128xf32>
    %1126 = arith.select %1124, %1122, %1125 : vector<16x128xi1>, vector<16x128xf32>
    %c125_i32_505 = arith.constant 125 : i32
    %1127 = tpu.dynamic_rotate %1011 by %c125_i32_505 dim 1 : vector<16x128xf32>, i32 -> vector<16x128xf32>
    %c125_i32_506 = arith.constant 125 : i32
    %1128 = vector.broadcast %c125_i32_506 : i32 to vector<16x128xi32>
    %1129 = arith.cmpi slt, %14, %1128 : vector<16x128xi32>
    %cst_507 = arith.constant 0.000000e+00 : f32
    %1130 = vector.broadcast %cst_507 : f32 to vector<16x128xf32>
    %1131 = arith.select %1129, %1127, %1130 : vector<16x128xi1>, vector<16x128xf32>
    %1132 = tpu.concatenate %1126, %1131 in 1 : vector<16x128xf32>, vector<16x128xf32> -> vector<16x256xf32>
    %1133 = arith.truncf %1132 : vector<16x256xf32> to vector<16x256xbf16>
    %c124_i32_508 = arith.constant 124 : i32
    %1134 = tpu.dynamic_rotate %1010 by %c124_i32_508 dim 1 : vector<16x128xf32>, i32 -> vector<16x128xf32>
    %c124_i32_509 = arith.constant 124 : i32
    %1135 = vector.broadcast %c124_i32_509 : i32 to vector<16x128xi32>
    %1136 = arith.cmpi slt, %14, %1135 : vector<16x128xi32>
    %cst_510 = arith.constant 0.000000e+00 : f32
    %1137 = vector.broadcast %cst_510 : f32 to vector<16x128xf32>
    %1138 = arith.select %1136, %1134, %1137 : vector<16x128xi1>, vector<16x128xf32>
    %c124_i32_511 = arith.constant 124 : i32
    %1139 = tpu.dynamic_rotate %1011 by %c124_i32_511 dim 1 : vector<16x128xf32>, i32 -> vector<16x128xf32>
    %c124_i32_512 = arith.constant 124 : i32
    %1140 = vector.broadcast %c124_i32_512 : i32 to vector<16x128xi32>
    %1141 = arith.cmpi slt, %14, %1140 : vector<16x128xi32>
    %cst_513 = arith.constant 0.000000e+00 : f32
    %1142 = vector.broadcast %cst_513 : f32 to vector<16x128xf32>
    %1143 = arith.select %1141, %1139, %1142 : vector<16x128xi1>, vector<16x128xf32>
    %1144 = tpu.concatenate %1138, %1143 in 1 : vector<16x128xf32>, vector<16x128xf32> -> vector<16x256xf32>
    %1145 = arith.truncf %1144 : vector<16x256xf32> to vector<16x256xbf16>
    %c123_i32_514 = arith.constant 123 : i32
    %1146 = tpu.dynamic_rotate %1010 by %c123_i32_514 dim 1 : vector<16x128xf32>, i32 -> vector<16x128xf32>
    %c123_i32_515 = arith.constant 123 : i32
    %1147 = vector.broadcast %c123_i32_515 : i32 to vector<16x128xi32>
    %1148 = arith.cmpi slt, %14, %1147 : vector<16x128xi32>
    %cst_516 = arith.constant 0.000000e+00 : f32
    %1149 = vector.broadcast %cst_516 : f32 to vector<16x128xf32>
    %1150 = arith.select %1148, %1146, %1149 : vector<16x128xi1>, vector<16x128xf32>
    %c123_i32_517 = arith.constant 123 : i32
    %1151 = tpu.dynamic_rotate %1011 by %c123_i32_517 dim 1 : vector<16x128xf32>, i32 -> vector<16x128xf32>
    %c123_i32_518 = arith.constant 123 : i32
    %1152 = vector.broadcast %c123_i32_518 : i32 to vector<16x128xi32>
    %1153 = arith.cmpi slt, %14, %1152 : vector<16x128xi32>
    %cst_519 = arith.constant 0.000000e+00 : f32
    %1154 = vector.broadcast %cst_519 : f32 to vector<16x128xf32>
    %1155 = arith.select %1153, %1151, %1154 : vector<16x128xi1>, vector<16x128xf32>
    %1156 = tpu.concatenate %1150, %1155 in 1 : vector<16x128xf32>, vector<16x128xf32> -> vector<16x256xf32>
    %1157 = arith.truncf %1156 : vector<16x256xf32> to vector<16x256xbf16>
    %c122_i32_520 = arith.constant 122 : i32
    %1158 = tpu.dynamic_rotate %1010 by %c122_i32_520 dim 1 : vector<16x128xf32>, i32 -> vector<16x128xf32>
    %c122_i32_521 = arith.constant 122 : i32
    %1159 = vector.broadcast %c122_i32_521 : i32 to vector<16x128xi32>
    %1160 = arith.cmpi slt, %14, %1159 : vector<16x128xi32>
    %cst_522 = arith.constant 0.000000e+00 : f32
    %1161 = vector.broadcast %cst_522 : f32 to vector<16x128xf32>
    %1162 = arith.select %1160, %1158, %1161 : vector<16x128xi1>, vector<16x128xf32>
    %c122_i32_523 = arith.constant 122 : i32
    %1163 = tpu.dynamic_rotate %1011 by %c122_i32_523 dim 1 : vector<16x128xf32>, i32 -> vector<16x128xf32>
    %c122_i32_524 = arith.constant 122 : i32
    %1164 = vector.broadcast %c122_i32_524 : i32 to vector<16x128xi32>
    %1165 = arith.cmpi slt, %14, %1164 : vector<16x128xi32>
    %cst_525 = arith.constant 0.000000e+00 : f32
    %1166 = vector.broadcast %cst_525 : f32 to vector<16x128xf32>
    %1167 = arith.select %1165, %1163, %1166 : vector<16x128xi1>, vector<16x128xf32>
    %1168 = tpu.concatenate %1162, %1167 in 1 : vector<16x128xf32>, vector<16x128xf32> -> vector<16x256xf32>
    %1169 = arith.truncf %1168 : vector<16x256xf32> to vector<16x256xbf16>
    %c121_i32_526 = arith.constant 121 : i32
    %1170 = tpu.dynamic_rotate %1010 by %c121_i32_526 dim 1 : vector<16x128xf32>, i32 -> vector<16x128xf32>
    %c121_i32_527 = arith.constant 121 : i32
    %1171 = vector.broadcast %c121_i32_527 : i32 to vector<16x128xi32>
    %1172 = arith.cmpi slt, %14, %1171 : vector<16x128xi32>
    %cst_528 = arith.constant 0.000000e+00 : f32
    %1173 = vector.broadcast %cst_528 : f32 to vector<16x128xf32>
    %1174 = arith.select %1172, %1170, %1173 : vector<16x128xi1>, vector<16x128xf32>
    %c121_i32_529 = arith.constant 121 : i32
    %1175 = tpu.dynamic_rotate %1011 by %c121_i32_529 dim 1 : vector<16x128xf32>, i32 -> vector<16x128xf32>
    %c121_i32_530 = arith.constant 121 : i32
    %1176 = vector.broadcast %c121_i32_530 : i32 to vector<16x128xi32>
    %1177 = arith.cmpi slt, %14, %1176 : vector<16x128xi32>
    %cst_531 = arith.constant 0.000000e+00 : f32
    %1178 = vector.broadcast %cst_531 : f32 to vector<16x128xf32>
    %1179 = arith.select %1177, %1175, %1178 : vector<16x128xi1>, vector<16x128xf32>
    %1180 = tpu.concatenate %1174, %1179 in 1 : vector<16x128xf32>, vector<16x128xf32> -> vector<16x256xf32>
    %1181 = arith.truncf %1180 : vector<16x256xf32> to vector<16x256xbf16>
    %c120_i32_532 = arith.constant 120 : i32
    %1182 = tpu.dynamic_rotate %1010 by %c120_i32_532 dim 1 : vector<16x128xf32>, i32 -> vector<16x128xf32>
    %c120_i32_533 = arith.constant 120 : i32
    %1183 = vector.broadcast %c120_i32_533 : i32 to vector<16x128xi32>
    %1184 = arith.cmpi slt, %14, %1183 : vector<16x128xi32>
    %cst_534 = arith.constant 0.000000e+00 : f32
    %1185 = vector.broadcast %cst_534 : f32 to vector<16x128xf32>
    %1186 = arith.select %1184, %1182, %1185 : vector<16x128xi1>, vector<16x128xf32>
    %c120_i32_535 = arith.constant 120 : i32
    %1187 = tpu.dynamic_rotate %1011 by %c120_i32_535 dim 1 : vector<16x128xf32>, i32 -> vector<16x128xf32>
    %c120_i32_536 = arith.constant 120 : i32
    %1188 = vector.broadcast %c120_i32_536 : i32 to vector<16x128xi32>
    %1189 = arith.cmpi slt, %14, %1188 : vector<16x128xi32>
    %cst_537 = arith.constant 0.000000e+00 : f32
    %1190 = vector.broadcast %cst_537 : f32 to vector<16x128xf32>
    %1191 = arith.select %1189, %1187, %1190 : vector<16x128xi1>, vector<16x128xf32>
    %1192 = tpu.concatenate %1186, %1191 in 1 : vector<16x128xf32>, vector<16x128xf32> -> vector<16x256xf32>
    %1193 = arith.truncf %1192 : vector<16x256xf32> to vector<16x256xbf16>
    %1194 = tpu.concatenate %1023, %1035, %1047, %1059, %1071, %1083, %1095, %1097 in 0 : vector<16x256xbf16>, vector<16x256xbf16>, vector<16x256xbf16>, vector<16x256xbf16>, vector<16x256xbf16>, vector<16x256xbf16>, vector<16x256xbf16>, vector<16x256xbf16> -> vector<128x256xbf16>
    %1195 = tpu.concatenate %1109, %1121, %1133, %1145, %1157, %1169, %1181, %1193 in 0 : vector<16x256xbf16>, vector<16x256xbf16>, vector<16x256xbf16>, vector<16x256xbf16>, vector<16x256xbf16>, vector<16x256xbf16>, vector<16x256xbf16>, vector<16x256xbf16> -> vector<128x256xbf16>
    %cst_538 = arith.constant dense<0.000000e+00> : vector<16x256xf32>
    %1196 = tpu.matmul %12, %1194, %cst_538 {dimension_numbers = #tpu.dot_dimension_numbers<[1], [0], [0], [1], [0, 0, 1, 1], [], []>} : vector<16x128xbf16>, vector<128x256xbf16>, vector<16x256xf32> -> vector<16x256xf32>
    %cst_539 = arith.constant dense<0.000000e+00> : vector<16x256xf32>
    %1197 = tpu.matmul %13, %1195, %cst_539 {dimension_numbers = #tpu.dot_dimension_numbers<[1], [0], [0], [1], [0, 0, 1, 1], [], []>} : vector<16x128xbf16>, vector<128x256xbf16>, vector<16x256xf32> -> vector<16x256xf32>
    %1198 = vector.extract_strided_slice %1196 {offsets = [0, 0], sizes = [8, 256], strides = [1, 1]} : vector<16x256xf32> to vector<8x256xf32>
    %1199 = vector.extract_strided_slice %1196 {offsets = [8, 0], sizes = [8, 256], strides = [1, 1]} : vector<16x256xf32> to vector<8x256xf32>
    %1200 = arith.addf %1198, %1199 : vector<8x256xf32>
    %1201 = vector.extract_strided_slice %1197 {offsets = [0, 0], sizes = [8, 256], strides = [1, 1]} : vector<16x256xf32> to vector<8x256xf32>
    %1202 = arith.addf %1200, %1201 : vector<8x256xf32>
    %1203 = vector.extract_strided_slice %1197 {offsets = [8, 0], sizes = [8, 256], strides = [1, 1]} : vector<16x256xf32> to vector<8x256xf32>
    %1204 = arith.addf %1202, %1203 : vector<8x256xf32>
    %1205 = vector.broadcast %10 : vector<8x1xf32> to vector<8x256xf32>
    %1206 = arith.addf %1204, %1205 : vector<8x256xf32>
    %cst_540 = arith.constant 2.500000e-01 : f32
    %1207 = vector.broadcast %cst_540 : f32 to vector<8x256xf32>
    %1208 = arith.mulf %967, %1207 : vector<8x256xf32>
    %cst_541 = arith.constant 1.000000e+00 : f32
    %1209 = vector.broadcast %cst_541 : f32 to vector<8x256xf32>
    %1210 = arith.minimumf %972, %1209 : vector<8x256xf32>
    %cst_542 = arith.constant 1.000000e+00 : f32
    %1211 = vector.broadcast %cst_542 : f32 to vector<8x256xf32>
    %1212 = arith.subf %1211, %1210 : vector<8x256xf32>
    %1213 = arith.mulf %1208, %1212 : vector<8x256xf32>
    %1214 = arith.addf %1213, %1206 : vector<8x256xf32>
    %1215 = math.floor %1214 : vector<8x256xf32>
    %cst_543 = arith.constant 0.000000e+00 : f32
    %cst_544 = arith.constant 4.000000e+00 : f32
    %1216 = vector.broadcast %cst_543 : f32 to vector<8x256xf32>
    %1217 = arith.maximumf %1216, %1215 : vector<8x256xf32>
    %1218 = vector.broadcast %cst_544 : f32 to vector<8x256xf32>
    %1219 = arith.minimumf %1218, %1217 : vector<8x256xf32>
    %1220 = tpu.concatenate %1219, %1219, %1219, %1219 in 0 : vector<8x256xf32>, vector<8x256xf32>, vector<8x256xf32>, vector<8x256xf32> -> vector<32x256xf32>
    %c4 = arith.constant 4 : index
    %c0_545 = arith.constant 0 : index
    %c0_546 = arith.constant 0 : index
    %1221 = vector.load %arg8[%c4, %c0_545, %c0_546] : memref<8x32x256xf32, #tpu.memory_space<vmem>>, vector<1x32x256xf32>
    %1222 = vector.shape_cast %1221 : vector<1x32x256xf32> to vector<32x256xf32>
    %1223 = arith.mulf %1222, %1220 : vector<32x256xf32>
    %1224 = arith.addf %977, %1223 : vector<32x256xf32>
    %c0_547 = arith.constant 0 : index
    %c1280 = arith.constant 1280 : index
    %1225 = vector.load %arg11[%c0_547, %c1280] : memref<8x2048xf32, #tpu.memory_space<vmem>>, vector<8x256xf32>
    %cst_548 = arith.constant 2.500000e-01 : f32
    %1226 = vector.broadcast %cst_548 : f32 to vector<8x256xf32>
    %1227 = arith.mulf %986, %1226 : vector<8x256xf32>
    %cst_549 = arith.constant 1.000000e+00 : f32
    %1228 = vector.broadcast %cst_549 : f32 to vector<8x256xf32>
    %1229 = arith.minimumf %991, %1228 : vector<8x256xf32>
    %cst_550 = arith.constant 1.000000e+00 : f32
    %1230 = vector.broadcast %cst_550 : f32 to vector<8x256xf32>
    %1231 = arith.subf %1230, %1229 : vector<8x256xf32>
    %1232 = arith.mulf %1227, %1231 : vector<8x256xf32>
    %1233 = arith.addf %1232, %1225 : vector<8x256xf32>
    %1234 = math.floor %1233 : vector<8x256xf32>
    %cst_551 = arith.constant 0.000000e+00 : f32
    %cst_552 = arith.constant 4.000000e+00 : f32
    %1235 = vector.broadcast %cst_551 : f32 to vector<8x256xf32>
    %1236 = arith.maximumf %1235, %1234 : vector<8x256xf32>
    %1237 = vector.broadcast %cst_552 : f32 to vector<8x256xf32>
    %1238 = arith.minimumf %1237, %1236 : vector<8x256xf32>
    %1239 = tpu.concatenate %1238, %1238 in 0 : vector<8x256xf32>, vector<8x256xf32> -> vector<16x256xf32>
    %1240 = vector.broadcast %8 : vector<16x1xf32> to vector<16x256xf32>
    %1241 = arith.mulf %1240, %1239 : vector<16x256xf32>
    %1242 = vector.broadcast %9 : vector<16x1xf32> to vector<16x256xf32>
    %1243 = arith.addf %1241, %1242 : vector<16x256xf32>
    %cst_553 = arith.constant 2.500000e-01 : f32
    %1244 = vector.broadcast %cst_553 : f32 to vector<16x256xf32>
    %1245 = arith.mulf %1004, %1244 : vector<16x256xf32>
    %cst_554 = arith.constant 1.000000e+00 : f32
    %1246 = vector.broadcast %cst_554 : f32 to vector<16x256xf32>
    %1247 = arith.minimumf %1009, %1246 : vector<16x256xf32>
    %cst_555 = arith.constant 1.000000e+00 : f32
    %1248 = vector.broadcast %cst_555 : f32 to vector<16x256xf32>
    %1249 = arith.subf %1248, %1247 : vector<16x256xf32>
    %1250 = arith.mulf %1245, %1249 : vector<16x256xf32>
    %1251 = arith.addf %1250, %1243 : vector<16x256xf32>
    %1252 = math.floor %1251 : vector<16x256xf32>
    %cst_556 = arith.constant 0.000000e+00 : f32
    %cst_557 = arith.constant 4.000000e+00 : f32
    %1253 = vector.broadcast %cst_556 : f32 to vector<16x256xf32>
    %1254 = arith.maximumf %1253, %1252 : vector<16x256xf32>
    %1255 = vector.broadcast %cst_557 : f32 to vector<16x256xf32>
    %1256 = arith.minimumf %1255, %1254 : vector<16x256xf32>
    %1257 = vector.extract_strided_slice %1256 {offsets = [0, 0], sizes = [16, 128], strides = [1, 1]} : vector<16x256xf32> to vector<16x128xf32>
    %1258 = vector.extract_strided_slice %1256 {offsets = [0, 128], sizes = [16, 128], strides = [1, 1]} : vector<16x256xf32> to vector<16x128xf32>
    %c7_i32_558 = arith.constant 7 : i32
    %1259 = tpu.dynamic_rotate %1257 by %c7_i32_558 dim 1 : vector<16x128xf32>, i32 -> vector<16x128xf32>
    %c7_i32_559 = arith.constant 7 : i32
    %1260 = vector.broadcast %c7_i32_559 : i32 to vector<16x128xi32>
    %1261 = arith.cmpi sge, %14, %1260 : vector<16x128xi32>
    %cst_560 = arith.constant 0.000000e+00 : f32
    %1262 = vector.broadcast %cst_560 : f32 to vector<16x128xf32>
    %1263 = arith.select %1261, %1259, %1262 : vector<16x128xi1>, vector<16x128xf32>
    %c7_i32_561 = arith.constant 7 : i32
    %1264 = tpu.dynamic_rotate %1258 by %c7_i32_561 dim 1 : vector<16x128xf32>, i32 -> vector<16x128xf32>
    %c7_i32_562 = arith.constant 7 : i32
    %1265 = vector.broadcast %c7_i32_562 : i32 to vector<16x128xi32>
    %1266 = arith.cmpi sge, %14, %1265 : vector<16x128xi32>
    %cst_563 = arith.constant 0.000000e+00 : f32
    %1267 = vector.broadcast %cst_563 : f32 to vector<16x128xf32>
    %1268 = arith.select %1266, %1264, %1267 : vector<16x128xi1>, vector<16x128xf32>
    %1269 = tpu.concatenate %1263, %1268 in 1 : vector<16x128xf32>, vector<16x128xf32> -> vector<16x256xf32>
    %1270 = arith.truncf %1269 : vector<16x256xf32> to vector<16x256xbf16>
    %c6_i32_564 = arith.constant 6 : i32
    %1271 = tpu.dynamic_rotate %1257 by %c6_i32_564 dim 1 : vector<16x128xf32>, i32 -> vector<16x128xf32>
    %c6_i32_565 = arith.constant 6 : i32
    %1272 = vector.broadcast %c6_i32_565 : i32 to vector<16x128xi32>
    %1273 = arith.cmpi sge, %14, %1272 : vector<16x128xi32>
    %cst_566 = arith.constant 0.000000e+00 : f32
    %1274 = vector.broadcast %cst_566 : f32 to vector<16x128xf32>
    %1275 = arith.select %1273, %1271, %1274 : vector<16x128xi1>, vector<16x128xf32>
    %c6_i32_567 = arith.constant 6 : i32
    %1276 = tpu.dynamic_rotate %1258 by %c6_i32_567 dim 1 : vector<16x128xf32>, i32 -> vector<16x128xf32>
    %c6_i32_568 = arith.constant 6 : i32
    %1277 = vector.broadcast %c6_i32_568 : i32 to vector<16x128xi32>
    %1278 = arith.cmpi sge, %14, %1277 : vector<16x128xi32>
    %cst_569 = arith.constant 0.000000e+00 : f32
    %1279 = vector.broadcast %cst_569 : f32 to vector<16x128xf32>
    %1280 = arith.select %1278, %1276, %1279 : vector<16x128xi1>, vector<16x128xf32>
    %1281 = tpu.concatenate %1275, %1280 in 1 : vector<16x128xf32>, vector<16x128xf32> -> vector<16x256xf32>
    %1282 = arith.truncf %1281 : vector<16x256xf32> to vector<16x256xbf16>
    %c5_i32_570 = arith.constant 5 : i32
    %1283 = tpu.dynamic_rotate %1257 by %c5_i32_570 dim 1 : vector<16x128xf32>, i32 -> vector<16x128xf32>
    %c5_i32_571 = arith.constant 5 : i32
    %1284 = vector.broadcast %c5_i32_571 : i32 to vector<16x128xi32>
    %1285 = arith.cmpi sge, %14, %1284 : vector<16x128xi32>
    %cst_572 = arith.constant 0.000000e+00 : f32
    %1286 = vector.broadcast %cst_572 : f32 to vector<16x128xf32>
    %1287 = arith.select %1285, %1283, %1286 : vector<16x128xi1>, vector<16x128xf32>
    %c5_i32_573 = arith.constant 5 : i32
    %1288 = tpu.dynamic_rotate %1258 by %c5_i32_573 dim 1 : vector<16x128xf32>, i32 -> vector<16x128xf32>
    %c5_i32_574 = arith.constant 5 : i32
    %1289 = vector.broadcast %c5_i32_574 : i32 to vector<16x128xi32>
    %1290 = arith.cmpi sge, %14, %1289 : vector<16x128xi32>
    %cst_575 = arith.constant 0.000000e+00 : f32
    %1291 = vector.broadcast %cst_575 : f32 to vector<16x128xf32>
    %1292 = arith.select %1290, %1288, %1291 : vector<16x128xi1>, vector<16x128xf32>
    %1293 = tpu.concatenate %1287, %1292 in 1 : vector<16x128xf32>, vector<16x128xf32> -> vector<16x256xf32>
    %1294 = arith.truncf %1293 : vector<16x256xf32> to vector<16x256xbf16>
    %c4_i32_576 = arith.constant 4 : i32
    %1295 = tpu.dynamic_rotate %1257 by %c4_i32_576 dim 1 : vector<16x128xf32>, i32 -> vector<16x128xf32>
    %c4_i32_577 = arith.constant 4 : i32
    %1296 = vector.broadcast %c4_i32_577 : i32 to vector<16x128xi32>
    %1297 = arith.cmpi sge, %14, %1296 : vector<16x128xi32>
    %cst_578 = arith.constant 0.000000e+00 : f32
    %1298 = vector.broadcast %cst_578 : f32 to vector<16x128xf32>
    %1299 = arith.select %1297, %1295, %1298 : vector<16x128xi1>, vector<16x128xf32>
    %c4_i32_579 = arith.constant 4 : i32
    %1300 = tpu.dynamic_rotate %1258 by %c4_i32_579 dim 1 : vector<16x128xf32>, i32 -> vector<16x128xf32>
    %c4_i32_580 = arith.constant 4 : i32
    %1301 = vector.broadcast %c4_i32_580 : i32 to vector<16x128xi32>
    %1302 = arith.cmpi sge, %14, %1301 : vector<16x128xi32>
    %cst_581 = arith.constant 0.000000e+00 : f32
    %1303 = vector.broadcast %cst_581 : f32 to vector<16x128xf32>
    %1304 = arith.select %1302, %1300, %1303 : vector<16x128xi1>, vector<16x128xf32>
    %1305 = tpu.concatenate %1299, %1304 in 1 : vector<16x128xf32>, vector<16x128xf32> -> vector<16x256xf32>
    %1306 = arith.truncf %1305 : vector<16x256xf32> to vector<16x256xbf16>
    %c3_i32_582 = arith.constant 3 : i32
    %1307 = tpu.dynamic_rotate %1257 by %c3_i32_582 dim 1 : vector<16x128xf32>, i32 -> vector<16x128xf32>
    %c3_i32_583 = arith.constant 3 : i32
    %1308 = vector.broadcast %c3_i32_583 : i32 to vector<16x128xi32>
    %1309 = arith.cmpi sge, %14, %1308 : vector<16x128xi32>
    %cst_584 = arith.constant 0.000000e+00 : f32
    %1310 = vector.broadcast %cst_584 : f32 to vector<16x128xf32>
    %1311 = arith.select %1309, %1307, %1310 : vector<16x128xi1>, vector<16x128xf32>
    %c3_i32_585 = arith.constant 3 : i32
    %1312 = tpu.dynamic_rotate %1258 by %c3_i32_585 dim 1 : vector<16x128xf32>, i32 -> vector<16x128xf32>
    %c3_i32_586 = arith.constant 3 : i32
    %1313 = vector.broadcast %c3_i32_586 : i32 to vector<16x128xi32>
    %1314 = arith.cmpi sge, %14, %1313 : vector<16x128xi32>
    %cst_587 = arith.constant 0.000000e+00 : f32
    %1315 = vector.broadcast %cst_587 : f32 to vector<16x128xf32>
    %1316 = arith.select %1314, %1312, %1315 : vector<16x128xi1>, vector<16x128xf32>
    %1317 = tpu.concatenate %1311, %1316 in 1 : vector<16x128xf32>, vector<16x128xf32> -> vector<16x256xf32>
    %1318 = arith.truncf %1317 : vector<16x256xf32> to vector<16x256xbf16>
    %c2_i32_588 = arith.constant 2 : i32
    %1319 = tpu.dynamic_rotate %1257 by %c2_i32_588 dim 1 : vector<16x128xf32>, i32 -> vector<16x128xf32>
    %c2_i32_589 = arith.constant 2 : i32
    %1320 = vector.broadcast %c2_i32_589 : i32 to vector<16x128xi32>
    %1321 = arith.cmpi sge, %14, %1320 : vector<16x128xi32>
    %cst_590 = arith.constant 0.000000e+00 : f32
    %1322 = vector.broadcast %cst_590 : f32 to vector<16x128xf32>
    %1323 = arith.select %1321, %1319, %1322 : vector<16x128xi1>, vector<16x128xf32>
    %c2_i32_591 = arith.constant 2 : i32
    %1324 = tpu.dynamic_rotate %1258 by %c2_i32_591 dim 1 : vector<16x128xf32>, i32 -> vector<16x128xf32>
    %c2_i32_592 = arith.constant 2 : i32
    %1325 = vector.broadcast %c2_i32_592 : i32 to vector<16x128xi32>
    %1326 = arith.cmpi sge, %14, %1325 : vector<16x128xi32>
    %cst_593 = arith.constant 0.000000e+00 : f32
    %1327 = vector.broadcast %cst_593 : f32 to vector<16x128xf32>
    %1328 = arith.select %1326, %1324, %1327 : vector<16x128xi1>, vector<16x128xf32>
    %1329 = tpu.concatenate %1323, %1328 in 1 : vector<16x128xf32>, vector<16x128xf32> -> vector<16x256xf32>
    %1330 = arith.truncf %1329 : vector<16x256xf32> to vector<16x256xbf16>
    %c1_i32_594 = arith.constant 1 : i32
    %1331 = tpu.dynamic_rotate %1257 by %c1_i32_594 dim 1 : vector<16x128xf32>, i32 -> vector<16x128xf32>
    %c1_i32_595 = arith.constant 1 : i32
    %1332 = vector.broadcast %c1_i32_595 : i32 to vector<16x128xi32>
    %1333 = arith.cmpi sge, %14, %1332 : vector<16x128xi32>
    %cst_596 = arith.constant 0.000000e+00 : f32
    %1334 = vector.broadcast %cst_596 : f32 to vector<16x128xf32>
    %1335 = arith.select %1333, %1331, %1334 : vector<16x128xi1>, vector<16x128xf32>
    %c1_i32_597 = arith.constant 1 : i32
    %1336 = tpu.dynamic_rotate %1258 by %c1_i32_597 dim 1 : vector<16x128xf32>, i32 -> vector<16x128xf32>
    %c1_i32_598 = arith.constant 1 : i32
    %1337 = vector.broadcast %c1_i32_598 : i32 to vector<16x128xi32>
    %1338 = arith.cmpi sge, %14, %1337 : vector<16x128xi32>
    %cst_599 = arith.constant 0.000000e+00 : f32
    %1339 = vector.broadcast %cst_599 : f32 to vector<16x128xf32>
    %1340 = arith.select %1338, %1336, %1339 : vector<16x128xi1>, vector<16x128xf32>
    %1341 = tpu.concatenate %1335, %1340 in 1 : vector<16x128xf32>, vector<16x128xf32> -> vector<16x256xf32>
    %1342 = arith.truncf %1341 : vector<16x256xf32> to vector<16x256xbf16>
    %1343 = tpu.concatenate %1257, %1258 in 1 : vector<16x128xf32>, vector<16x128xf32> -> vector<16x256xf32>
    %1344 = arith.truncf %1343 : vector<16x256xf32> to vector<16x256xbf16>
    %c127_i32_600 = arith.constant 127 : i32
    %1345 = tpu.dynamic_rotate %1257 by %c127_i32_600 dim 1 : vector<16x128xf32>, i32 -> vector<16x128xf32>
    %c127_i32_601 = arith.constant 127 : i32
    %1346 = vector.broadcast %c127_i32_601 : i32 to vector<16x128xi32>
    %1347 = arith.cmpi slt, %14, %1346 : vector<16x128xi32>
    %cst_602 = arith.constant 0.000000e+00 : f32
    %1348 = vector.broadcast %cst_602 : f32 to vector<16x128xf32>
    %1349 = arith.select %1347, %1345, %1348 : vector<16x128xi1>, vector<16x128xf32>
    %c127_i32_603 = arith.constant 127 : i32
    %1350 = tpu.dynamic_rotate %1258 by %c127_i32_603 dim 1 : vector<16x128xf32>, i32 -> vector<16x128xf32>
    %c127_i32_604 = arith.constant 127 : i32
    %1351 = vector.broadcast %c127_i32_604 : i32 to vector<16x128xi32>
    %1352 = arith.cmpi slt, %14, %1351 : vector<16x128xi32>
    %cst_605 = arith.constant 0.000000e+00 : f32
    %1353 = vector.broadcast %cst_605 : f32 to vector<16x128xf32>
    %1354 = arith.select %1352, %1350, %1353 : vector<16x128xi1>, vector<16x128xf32>
    %1355 = tpu.concatenate %1349, %1354 in 1 : vector<16x128xf32>, vector<16x128xf32> -> vector<16x256xf32>
    %1356 = arith.truncf %1355 : vector<16x256xf32> to vector<16x256xbf16>
    %c126_i32_606 = arith.constant 126 : i32
    %1357 = tpu.dynamic_rotate %1257 by %c126_i32_606 dim 1 : vector<16x128xf32>, i32 -> vector<16x128xf32>
    %c126_i32_607 = arith.constant 126 : i32
    %1358 = vector.broadcast %c126_i32_607 : i32 to vector<16x128xi32>
    %1359 = arith.cmpi slt, %14, %1358 : vector<16x128xi32>
    %cst_608 = arith.constant 0.000000e+00 : f32
    %1360 = vector.broadcast %cst_608 : f32 to vector<16x128xf32>
    %1361 = arith.select %1359, %1357, %1360 : vector<16x128xi1>, vector<16x128xf32>
    %c126_i32_609 = arith.constant 126 : i32
    %1362 = tpu.dynamic_rotate %1258 by %c126_i32_609 dim 1 : vector<16x128xf32>, i32 -> vector<16x128xf32>
    %c126_i32_610 = arith.constant 126 : i32
    %1363 = vector.broadcast %c126_i32_610 : i32 to vector<16x128xi32>
    %1364 = arith.cmpi slt, %14, %1363 : vector<16x128xi32>
    %cst_611 = arith.constant 0.000000e+00 : f32
    %1365 = vector.broadcast %cst_611 : f32 to vector<16x128xf32>
    %1366 = arith.select %1364, %1362, %1365 : vector<16x128xi1>, vector<16x128xf32>
    %1367 = tpu.concatenate %1361, %1366 in 1 : vector<16x128xf32>, vector<16x128xf32> -> vector<16x256xf32>
    %1368 = arith.truncf %1367 : vector<16x256xf32> to vector<16x256xbf16>
    %c125_i32_612 = arith.constant 125 : i32
    %1369 = tpu.dynamic_rotate %1257 by %c125_i32_612 dim 1 : vector<16x128xf32>, i32 -> vector<16x128xf32>
    %c125_i32_613 = arith.constant 125 : i32
    %1370 = vector.broadcast %c125_i32_613 : i32 to vector<16x128xi32>
    %1371 = arith.cmpi slt, %14, %1370 : vector<16x128xi32>
    %cst_614 = arith.constant 0.000000e+00 : f32
    %1372 = vector.broadcast %cst_614 : f32 to vector<16x128xf32>
    %1373 = arith.select %1371, %1369, %1372 : vector<16x128xi1>, vector<16x128xf32>
    %c125_i32_615 = arith.constant 125 : i32
    %1374 = tpu.dynamic_rotate %1258 by %c125_i32_615 dim 1 : vector<16x128xf32>, i32 -> vector<16x128xf32>
    %c125_i32_616 = arith.constant 125 : i32
    %1375 = vector.broadcast %c125_i32_616 : i32 to vector<16x128xi32>
    %1376 = arith.cmpi slt, %14, %1375 : vector<16x128xi32>
    %cst_617 = arith.constant 0.000000e+00 : f32
    %1377 = vector.broadcast %cst_617 : f32 to vector<16x128xf32>
    %1378 = arith.select %1376, %1374, %1377 : vector<16x128xi1>, vector<16x128xf32>
    %1379 = tpu.concatenate %1373, %1378 in 1 : vector<16x128xf32>, vector<16x128xf32> -> vector<16x256xf32>
    %1380 = arith.truncf %1379 : vector<16x256xf32> to vector<16x256xbf16>
    %c124_i32_618 = arith.constant 124 : i32
    %1381 = tpu.dynamic_rotate %1257 by %c124_i32_618 dim 1 : vector<16x128xf32>, i32 -> vector<16x128xf32>
    %c124_i32_619 = arith.constant 124 : i32
    %1382 = vector.broadcast %c124_i32_619 : i32 to vector<16x128xi32>
    %1383 = arith.cmpi slt, %14, %1382 : vector<16x128xi32>
    %cst_620 = arith.constant 0.000000e+00 : f32
    %1384 = vector.broadcast %cst_620 : f32 to vector<16x128xf32>
    %1385 = arith.select %1383, %1381, %1384 : vector<16x128xi1>, vector<16x128xf32>
    %c124_i32_621 = arith.constant 124 : i32
    %1386 = tpu.dynamic_rotate %1258 by %c124_i32_621 dim 1 : vector<16x128xf32>, i32 -> vector<16x128xf32>
    %c124_i32_622 = arith.constant 124 : i32
    %1387 = vector.broadcast %c124_i32_622 : i32 to vector<16x128xi32>
    %1388 = arith.cmpi slt, %14, %1387 : vector<16x128xi32>
    %cst_623 = arith.constant 0.000000e+00 : f32
    %1389 = vector.broadcast %cst_623 : f32 to vector<16x128xf32>
    %1390 = arith.select %1388, %1386, %1389 : vector<16x128xi1>, vector<16x128xf32>
    %1391 = tpu.concatenate %1385, %1390 in 1 : vector<16x128xf32>, vector<16x128xf32> -> vector<16x256xf32>
    %1392 = arith.truncf %1391 : vector<16x256xf32> to vector<16x256xbf16>
    %c123_i32_624 = arith.constant 123 : i32
    %1393 = tpu.dynamic_rotate %1257 by %c123_i32_624 dim 1 : vector<16x128xf32>, i32 -> vector<16x128xf32>
    %c123_i32_625 = arith.constant 123 : i32
    %1394 = vector.broadcast %c123_i32_625 : i32 to vector<16x128xi32>
    %1395 = arith.cmpi slt, %14, %1394 : vector<16x128xi32>
    %cst_626 = arith.constant 0.000000e+00 : f32
    %1396 = vector.broadcast %cst_626 : f32 to vector<16x128xf32>
    %1397 = arith.select %1395, %1393, %1396 : vector<16x128xi1>, vector<16x128xf32>
    %c123_i32_627 = arith.constant 123 : i32
    %1398 = tpu.dynamic_rotate %1258 by %c123_i32_627 dim 1 : vector<16x128xf32>, i32 -> vector<16x128xf32>
    %c123_i32_628 = arith.constant 123 : i32
    %1399 = vector.broadcast %c123_i32_628 : i32 to vector<16x128xi32>
    %1400 = arith.cmpi slt, %14, %1399 : vector<16x128xi32>
    %cst_629 = arith.constant 0.000000e+00 : f32
    %1401 = vector.broadcast %cst_629 : f32 to vector<16x128xf32>
    %1402 = arith.select %1400, %1398, %1401 : vector<16x128xi1>, vector<16x128xf32>
    %1403 = tpu.concatenate %1397, %1402 in 1 : vector<16x128xf32>, vector<16x128xf32> -> vector<16x256xf32>
    %1404 = arith.truncf %1403 : vector<16x256xf32> to vector<16x256xbf16>
    %c122_i32_630 = arith.constant 122 : i32
    %1405 = tpu.dynamic_rotate %1257 by %c122_i32_630 dim 1 : vector<16x128xf32>, i32 -> vector<16x128xf32>
    %c122_i32_631 = arith.constant 122 : i32
    %1406 = vector.broadcast %c122_i32_631 : i32 to vector<16x128xi32>
    %1407 = arith.cmpi slt, %14, %1406 : vector<16x128xi32>
    %cst_632 = arith.constant 0.000000e+00 : f32
    %1408 = vector.broadcast %cst_632 : f32 to vector<16x128xf32>
    %1409 = arith.select %1407, %1405, %1408 : vector<16x128xi1>, vector<16x128xf32>
    %c122_i32_633 = arith.constant 122 : i32
    %1410 = tpu.dynamic_rotate %1258 by %c122_i32_633 dim 1 : vector<16x128xf32>, i32 -> vector<16x128xf32>
    %c122_i32_634 = arith.constant 122 : i32
    %1411 = vector.broadcast %c122_i32_634 : i32 to vector<16x128xi32>
    %1412 = arith.cmpi slt, %14, %1411 : vector<16x128xi32>
    %cst_635 = arith.constant 0.000000e+00 : f32
    %1413 = vector.broadcast %cst_635 : f32 to vector<16x128xf32>
    %1414 = arith.select %1412, %1410, %1413 : vector<16x128xi1>, vector<16x128xf32>
    %1415 = tpu.concatenate %1409, %1414 in 1 : vector<16x128xf32>, vector<16x128xf32> -> vector<16x256xf32>
    %1416 = arith.truncf %1415 : vector<16x256xf32> to vector<16x256xbf16>
    %c121_i32_636 = arith.constant 121 : i32
    %1417 = tpu.dynamic_rotate %1257 by %c121_i32_636 dim 1 : vector<16x128xf32>, i32 -> vector<16x128xf32>
    %c121_i32_637 = arith.constant 121 : i32
    %1418 = vector.broadcast %c121_i32_637 : i32 to vector<16x128xi32>
    %1419 = arith.cmpi slt, %14, %1418 : vector<16x128xi32>
    %cst_638 = arith.constant 0.000000e+00 : f32
    %1420 = vector.broadcast %cst_638 : f32 to vector<16x128xf32>
    %1421 = arith.select %1419, %1417, %1420 : vector<16x128xi1>, vector<16x128xf32>
    %c121_i32_639 = arith.constant 121 : i32
    %1422 = tpu.dynamic_rotate %1258 by %c121_i32_639 dim 1 : vector<16x128xf32>, i32 -> vector<16x128xf32>
    %c121_i32_640 = arith.constant 121 : i32
    %1423 = vector.broadcast %c121_i32_640 : i32 to vector<16x128xi32>
    %1424 = arith.cmpi slt, %14, %1423 : vector<16x128xi32>
    %cst_641 = arith.constant 0.000000e+00 : f32
    %1425 = vector.broadcast %cst_641 : f32 to vector<16x128xf32>
    %1426 = arith.select %1424, %1422, %1425 : vector<16x128xi1>, vector<16x128xf32>
    %1427 = tpu.concatenate %1421, %1426 in 1 : vector<16x128xf32>, vector<16x128xf32> -> vector<16x256xf32>
    %1428 = arith.truncf %1427 : vector<16x256xf32> to vector<16x256xbf16>
    %c120_i32_642 = arith.constant 120 : i32
    %1429 = tpu.dynamic_rotate %1257 by %c120_i32_642 dim 1 : vector<16x128xf32>, i32 -> vector<16x128xf32>
    %c120_i32_643 = arith.constant 120 : i32
    %1430 = vector.broadcast %c120_i32_643 : i32 to vector<16x128xi32>
    %1431 = arith.cmpi slt, %14, %1430 : vector<16x128xi32>
    %cst_644 = arith.constant 0.000000e+00 : f32
    %1432 = vector.broadcast %cst_644 : f32 to vector<16x128xf32>
    %1433 = arith.select %1431, %1429, %1432 : vector<16x128xi1>, vector<16x128xf32>
    %c120_i32_645 = arith.constant 120 : i32
    %1434 = tpu.dynamic_rotate %1258 by %c120_i32_645 dim 1 : vector<16x128xf32>, i32 -> vector<16x128xf32>
    %c120_i32_646 = arith.constant 120 : i32
    %1435 = vector.broadcast %c120_i32_646 : i32 to vector<16x128xi32>
    %1436 = arith.cmpi slt, %14, %1435 : vector<16x128xi32>
    %cst_647 = arith.constant 0.000000e+00 : f32
    %1437 = vector.broadcast %cst_647 : f32 to vector<16x128xf32>
    %1438 = arith.select %1436, %1434, %1437 : vector<16x128xi1>, vector<16x128xf32>
    %1439 = tpu.concatenate %1433, %1438 in 1 : vector<16x128xf32>, vector<16x128xf32> -> vector<16x256xf32>
    %1440 = arith.truncf %1439 : vector<16x256xf32> to vector<16x256xbf16>
    %1441 = tpu.concatenate %1270, %1282, %1294, %1306, %1318, %1330, %1342, %1344 in 0 : vector<16x256xbf16>, vector<16x256xbf16>, vector<16x256xbf16>, vector<16x256xbf16>, vector<16x256xbf16>, vector<16x256xbf16>, vector<16x256xbf16>, vector<16x256xbf16> -> vector<128x256xbf16>
    %1442 = tpu.concatenate %1356, %1368, %1380, %1392, %1404, %1416, %1428, %1440 in 0 : vector<16x256xbf16>, vector<16x256xbf16>, vector<16x256xbf16>, vector<16x256xbf16>, vector<16x256xbf16>, vector<16x256xbf16>, vector<16x256xbf16>, vector<16x256xbf16> -> vector<128x256xbf16>
    %cst_648 = arith.constant dense<0.000000e+00> : vector<16x256xf32>
    %1443 = tpu.matmul %12, %1441, %cst_648 {dimension_numbers = #tpu.dot_dimension_numbers<[1], [0], [0], [1], [0, 0, 1, 1], [], []>} : vector<16x128xbf16>, vector<128x256xbf16>, vector<16x256xf32> -> vector<16x256xf32>
    %cst_649 = arith.constant dense<0.000000e+00> : vector<16x256xf32>
    %1444 = tpu.matmul %13, %1442, %cst_649 {dimension_numbers = #tpu.dot_dimension_numbers<[1], [0], [0], [1], [0, 0, 1, 1], [], []>} : vector<16x128xbf16>, vector<128x256xbf16>, vector<16x256xf32> -> vector<16x256xf32>
    %1445 = vector.extract_strided_slice %1443 {offsets = [0, 0], sizes = [8, 256], strides = [1, 1]} : vector<16x256xf32> to vector<8x256xf32>
    %1446 = vector.extract_strided_slice %1443 {offsets = [8, 0], sizes = [8, 256], strides = [1, 1]} : vector<16x256xf32> to vector<8x256xf32>
    %1447 = arith.addf %1445, %1446 : vector<8x256xf32>
    %1448 = vector.extract_strided_slice %1444 {offsets = [0, 0], sizes = [8, 256], strides = [1, 1]} : vector<16x256xf32> to vector<8x256xf32>
    %1449 = arith.addf %1447, %1448 : vector<8x256xf32>
    %1450 = vector.extract_strided_slice %1444 {offsets = [8, 0], sizes = [8, 256], strides = [1, 1]} : vector<16x256xf32> to vector<8x256xf32>
    %1451 = arith.addf %1449, %1450 : vector<8x256xf32>
    %1452 = vector.broadcast %10 : vector<8x1xf32> to vector<8x256xf32>
    %1453 = arith.addf %1451, %1452 : vector<8x256xf32>
    %cst_650 = arith.constant 2.500000e-01 : f32
    %1454 = vector.broadcast %cst_650 : f32 to vector<8x256xf32>
    %1455 = arith.mulf %1214, %1454 : vector<8x256xf32>
    %cst_651 = arith.constant 1.000000e+00 : f32
    %1456 = vector.broadcast %cst_651 : f32 to vector<8x256xf32>
    %1457 = arith.minimumf %1219, %1456 : vector<8x256xf32>
    %cst_652 = arith.constant 1.000000e+00 : f32
    %1458 = vector.broadcast %cst_652 : f32 to vector<8x256xf32>
    %1459 = arith.subf %1458, %1457 : vector<8x256xf32>
    %1460 = arith.mulf %1455, %1459 : vector<8x256xf32>
    %1461 = arith.addf %1460, %1453 : vector<8x256xf32>
    %1462 = math.floor %1461 : vector<8x256xf32>
    %cst_653 = arith.constant 0.000000e+00 : f32
    %cst_654 = arith.constant 4.000000e+00 : f32
    %1463 = vector.broadcast %cst_653 : f32 to vector<8x256xf32>
    %1464 = arith.maximumf %1463, %1462 : vector<8x256xf32>
    %1465 = vector.broadcast %cst_654 : f32 to vector<8x256xf32>
    %1466 = arith.minimumf %1465, %1464 : vector<8x256xf32>
    %1467 = tpu.concatenate %1466, %1466, %1466, %1466 in 0 : vector<8x256xf32>, vector<8x256xf32>, vector<8x256xf32>, vector<8x256xf32> -> vector<32x256xf32>
    %c5 = arith.constant 5 : index
    %c0_655 = arith.constant 0 : index
    %c0_656 = arith.constant 0 : index
    %1468 = vector.load %arg8[%c5, %c0_655, %c0_656] : memref<8x32x256xf32, #tpu.memory_space<vmem>>, vector<1x32x256xf32>
    %1469 = vector.shape_cast %1468 : vector<1x32x256xf32> to vector<32x256xf32>
    %1470 = arith.mulf %1469, %1467 : vector<32x256xf32>
    %1471 = arith.addf %1224, %1470 : vector<32x256xf32>
    %c0_657 = arith.constant 0 : index
    %c1536 = arith.constant 1536 : index
    %1472 = vector.load %arg11[%c0_657, %c1536] : memref<8x2048xf32, #tpu.memory_space<vmem>>, vector<8x256xf32>
    %cst_658 = arith.constant 2.500000e-01 : f32
    %1473 = vector.broadcast %cst_658 : f32 to vector<8x256xf32>
    %1474 = arith.mulf %1233, %1473 : vector<8x256xf32>
    %cst_659 = arith.constant 1.000000e+00 : f32
    %1475 = vector.broadcast %cst_659 : f32 to vector<8x256xf32>
    %1476 = arith.minimumf %1238, %1475 : vector<8x256xf32>
    %cst_660 = arith.constant 1.000000e+00 : f32
    %1477 = vector.broadcast %cst_660 : f32 to vector<8x256xf32>
    %1478 = arith.subf %1477, %1476 : vector<8x256xf32>
    %1479 = arith.mulf %1474, %1478 : vector<8x256xf32>
    %1480 = arith.addf %1479, %1472 : vector<8x256xf32>
    %1481 = math.floor %1480 : vector<8x256xf32>
    %cst_661 = arith.constant 0.000000e+00 : f32
    %cst_662 = arith.constant 4.000000e+00 : f32
    %1482 = vector.broadcast %cst_661 : f32 to vector<8x256xf32>
    %1483 = arith.maximumf %1482, %1481 : vector<8x256xf32>
    %1484 = vector.broadcast %cst_662 : f32 to vector<8x256xf32>
    %1485 = arith.minimumf %1484, %1483 : vector<8x256xf32>
    %1486 = tpu.concatenate %1485, %1485 in 0 : vector<8x256xf32>, vector<8x256xf32> -> vector<16x256xf32>
    %1487 = vector.broadcast %8 : vector<16x1xf32> to vector<16x256xf32>
    %1488 = arith.mulf %1487, %1486 : vector<16x256xf32>
    %1489 = vector.broadcast %9 : vector<16x1xf32> to vector<16x256xf32>
    %1490 = arith.addf %1488, %1489 : vector<16x256xf32>
    %cst_663 = arith.constant 2.500000e-01 : f32
    %1491 = vector.broadcast %cst_663 : f32 to vector<16x256xf32>
    %1492 = arith.mulf %1251, %1491 : vector<16x256xf32>
    %cst_664 = arith.constant 1.000000e+00 : f32
    %1493 = vector.broadcast %cst_664 : f32 to vector<16x256xf32>
    %1494 = arith.minimumf %1256, %1493 : vector<16x256xf32>
    %cst_665 = arith.constant 1.000000e+00 : f32
    %1495 = vector.broadcast %cst_665 : f32 to vector<16x256xf32>
    %1496 = arith.subf %1495, %1494 : vector<16x256xf32>
    %1497 = arith.mulf %1492, %1496 : vector<16x256xf32>
    %1498 = arith.addf %1497, %1490 : vector<16x256xf32>
    %1499 = math.floor %1498 : vector<16x256xf32>
    %cst_666 = arith.constant 0.000000e+00 : f32
    %cst_667 = arith.constant 4.000000e+00 : f32
    %1500 = vector.broadcast %cst_666 : f32 to vector<16x256xf32>
    %1501 = arith.maximumf %1500, %1499 : vector<16x256xf32>
    %1502 = vector.broadcast %cst_667 : f32 to vector<16x256xf32>
    %1503 = arith.minimumf %1502, %1501 : vector<16x256xf32>
    %1504 = vector.extract_strided_slice %1503 {offsets = [0, 0], sizes = [16, 128], strides = [1, 1]} : vector<16x256xf32> to vector<16x128xf32>
    %1505 = vector.extract_strided_slice %1503 {offsets = [0, 128], sizes = [16, 128], strides = [1, 1]} : vector<16x256xf32> to vector<16x128xf32>
    %c7_i32_668 = arith.constant 7 : i32
    %1506 = tpu.dynamic_rotate %1504 by %c7_i32_668 dim 1 : vector<16x128xf32>, i32 -> vector<16x128xf32>
    %c7_i32_669 = arith.constant 7 : i32
    %1507 = vector.broadcast %c7_i32_669 : i32 to vector<16x128xi32>
    %1508 = arith.cmpi sge, %14, %1507 : vector<16x128xi32>
    %cst_670 = arith.constant 0.000000e+00 : f32
    %1509 = vector.broadcast %cst_670 : f32 to vector<16x128xf32>
    %1510 = arith.select %1508, %1506, %1509 : vector<16x128xi1>, vector<16x128xf32>
    %c7_i32_671 = arith.constant 7 : i32
    %1511 = tpu.dynamic_rotate %1505 by %c7_i32_671 dim 1 : vector<16x128xf32>, i32 -> vector<16x128xf32>
    %c7_i32_672 = arith.constant 7 : i32
    %1512 = vector.broadcast %c7_i32_672 : i32 to vector<16x128xi32>
    %1513 = arith.cmpi sge, %14, %1512 : vector<16x128xi32>
    %cst_673 = arith.constant 0.000000e+00 : f32
    %1514 = vector.broadcast %cst_673 : f32 to vector<16x128xf32>
    %1515 = arith.select %1513, %1511, %1514 : vector<16x128xi1>, vector<16x128xf32>
    %1516 = tpu.concatenate %1510, %1515 in 1 : vector<16x128xf32>, vector<16x128xf32> -> vector<16x256xf32>
    %1517 = arith.truncf %1516 : vector<16x256xf32> to vector<16x256xbf16>
    %c6_i32_674 = arith.constant 6 : i32
    %1518 = tpu.dynamic_rotate %1504 by %c6_i32_674 dim 1 : vector<16x128xf32>, i32 -> vector<16x128xf32>
    %c6_i32_675 = arith.constant 6 : i32
    %1519 = vector.broadcast %c6_i32_675 : i32 to vector<16x128xi32>
    %1520 = arith.cmpi sge, %14, %1519 : vector<16x128xi32>
    %cst_676 = arith.constant 0.000000e+00 : f32
    %1521 = vector.broadcast %cst_676 : f32 to vector<16x128xf32>
    %1522 = arith.select %1520, %1518, %1521 : vector<16x128xi1>, vector<16x128xf32>
    %c6_i32_677 = arith.constant 6 : i32
    %1523 = tpu.dynamic_rotate %1505 by %c6_i32_677 dim 1 : vector<16x128xf32>, i32 -> vector<16x128xf32>
    %c6_i32_678 = arith.constant 6 : i32
    %1524 = vector.broadcast %c6_i32_678 : i32 to vector<16x128xi32>
    %1525 = arith.cmpi sge, %14, %1524 : vector<16x128xi32>
    %cst_679 = arith.constant 0.000000e+00 : f32
    %1526 = vector.broadcast %cst_679 : f32 to vector<16x128xf32>
    %1527 = arith.select %1525, %1523, %1526 : vector<16x128xi1>, vector<16x128xf32>
    %1528 = tpu.concatenate %1522, %1527 in 1 : vector<16x128xf32>, vector<16x128xf32> -> vector<16x256xf32>
    %1529 = arith.truncf %1528 : vector<16x256xf32> to vector<16x256xbf16>
    %c5_i32_680 = arith.constant 5 : i32
    %1530 = tpu.dynamic_rotate %1504 by %c5_i32_680 dim 1 : vector<16x128xf32>, i32 -> vector<16x128xf32>
    %c5_i32_681 = arith.constant 5 : i32
    %1531 = vector.broadcast %c5_i32_681 : i32 to vector<16x128xi32>
    %1532 = arith.cmpi sge, %14, %1531 : vector<16x128xi32>
    %cst_682 = arith.constant 0.000000e+00 : f32
    %1533 = vector.broadcast %cst_682 : f32 to vector<16x128xf32>
    %1534 = arith.select %1532, %1530, %1533 : vector<16x128xi1>, vector<16x128xf32>
    %c5_i32_683 = arith.constant 5 : i32
    %1535 = tpu.dynamic_rotate %1505 by %c5_i32_683 dim 1 : vector<16x128xf32>, i32 -> vector<16x128xf32>
    %c5_i32_684 = arith.constant 5 : i32
    %1536 = vector.broadcast %c5_i32_684 : i32 to vector<16x128xi32>
    %1537 = arith.cmpi sge, %14, %1536 : vector<16x128xi32>
    %cst_685 = arith.constant 0.000000e+00 : f32
    %1538 = vector.broadcast %cst_685 : f32 to vector<16x128xf32>
    %1539 = arith.select %1537, %1535, %1538 : vector<16x128xi1>, vector<16x128xf32>
    %1540 = tpu.concatenate %1534, %1539 in 1 : vector<16x128xf32>, vector<16x128xf32> -> vector<16x256xf32>
    %1541 = arith.truncf %1540 : vector<16x256xf32> to vector<16x256xbf16>
    %c4_i32_686 = arith.constant 4 : i32
    %1542 = tpu.dynamic_rotate %1504 by %c4_i32_686 dim 1 : vector<16x128xf32>, i32 -> vector<16x128xf32>
    %c4_i32_687 = arith.constant 4 : i32
    %1543 = vector.broadcast %c4_i32_687 : i32 to vector<16x128xi32>
    %1544 = arith.cmpi sge, %14, %1543 : vector<16x128xi32>
    %cst_688 = arith.constant 0.000000e+00 : f32
    %1545 = vector.broadcast %cst_688 : f32 to vector<16x128xf32>
    %1546 = arith.select %1544, %1542, %1545 : vector<16x128xi1>, vector<16x128xf32>
    %c4_i32_689 = arith.constant 4 : i32
    %1547 = tpu.dynamic_rotate %1505 by %c4_i32_689 dim 1 : vector<16x128xf32>, i32 -> vector<16x128xf32>
    %c4_i32_690 = arith.constant 4 : i32
    %1548 = vector.broadcast %c4_i32_690 : i32 to vector<16x128xi32>
    %1549 = arith.cmpi sge, %14, %1548 : vector<16x128xi32>
    %cst_691 = arith.constant 0.000000e+00 : f32
    %1550 = vector.broadcast %cst_691 : f32 to vector<16x128xf32>
    %1551 = arith.select %1549, %1547, %1550 : vector<16x128xi1>, vector<16x128xf32>
    %1552 = tpu.concatenate %1546, %1551 in 1 : vector<16x128xf32>, vector<16x128xf32> -> vector<16x256xf32>
    %1553 = arith.truncf %1552 : vector<16x256xf32> to vector<16x256xbf16>
    %c3_i32_692 = arith.constant 3 : i32
    %1554 = tpu.dynamic_rotate %1504 by %c3_i32_692 dim 1 : vector<16x128xf32>, i32 -> vector<16x128xf32>
    %c3_i32_693 = arith.constant 3 : i32
    %1555 = vector.broadcast %c3_i32_693 : i32 to vector<16x128xi32>
    %1556 = arith.cmpi sge, %14, %1555 : vector<16x128xi32>
    %cst_694 = arith.constant 0.000000e+00 : f32
    %1557 = vector.broadcast %cst_694 : f32 to vector<16x128xf32>
    %1558 = arith.select %1556, %1554, %1557 : vector<16x128xi1>, vector<16x128xf32>
    %c3_i32_695 = arith.constant 3 : i32
    %1559 = tpu.dynamic_rotate %1505 by %c3_i32_695 dim 1 : vector<16x128xf32>, i32 -> vector<16x128xf32>
    %c3_i32_696 = arith.constant 3 : i32
    %1560 = vector.broadcast %c3_i32_696 : i32 to vector<16x128xi32>
    %1561 = arith.cmpi sge, %14, %1560 : vector<16x128xi32>
    %cst_697 = arith.constant 0.000000e+00 : f32
    %1562 = vector.broadcast %cst_697 : f32 to vector<16x128xf32>
    %1563 = arith.select %1561, %1559, %1562 : vector<16x128xi1>, vector<16x128xf32>
    %1564 = tpu.concatenate %1558, %1563 in 1 : vector<16x128xf32>, vector<16x128xf32> -> vector<16x256xf32>
    %1565 = arith.truncf %1564 : vector<16x256xf32> to vector<16x256xbf16>
    %c2_i32_698 = arith.constant 2 : i32
    %1566 = tpu.dynamic_rotate %1504 by %c2_i32_698 dim 1 : vector<16x128xf32>, i32 -> vector<16x128xf32>
    %c2_i32_699 = arith.constant 2 : i32
    %1567 = vector.broadcast %c2_i32_699 : i32 to vector<16x128xi32>
    %1568 = arith.cmpi sge, %14, %1567 : vector<16x128xi32>
    %cst_700 = arith.constant 0.000000e+00 : f32
    %1569 = vector.broadcast %cst_700 : f32 to vector<16x128xf32>
    %1570 = arith.select %1568, %1566, %1569 : vector<16x128xi1>, vector<16x128xf32>
    %c2_i32_701 = arith.constant 2 : i32
    %1571 = tpu.dynamic_rotate %1505 by %c2_i32_701 dim 1 : vector<16x128xf32>, i32 -> vector<16x128xf32>
    %c2_i32_702 = arith.constant 2 : i32
    %1572 = vector.broadcast %c2_i32_702 : i32 to vector<16x128xi32>
    %1573 = arith.cmpi sge, %14, %1572 : vector<16x128xi32>
    %cst_703 = arith.constant 0.000000e+00 : f32
    %1574 = vector.broadcast %cst_703 : f32 to vector<16x128xf32>
    %1575 = arith.select %1573, %1571, %1574 : vector<16x128xi1>, vector<16x128xf32>
    %1576 = tpu.concatenate %1570, %1575 in 1 : vector<16x128xf32>, vector<16x128xf32> -> vector<16x256xf32>
    %1577 = arith.truncf %1576 : vector<16x256xf32> to vector<16x256xbf16>
    %c1_i32_704 = arith.constant 1 : i32
    %1578 = tpu.dynamic_rotate %1504 by %c1_i32_704 dim 1 : vector<16x128xf32>, i32 -> vector<16x128xf32>
    %c1_i32_705 = arith.constant 1 : i32
    %1579 = vector.broadcast %c1_i32_705 : i32 to vector<16x128xi32>
    %1580 = arith.cmpi sge, %14, %1579 : vector<16x128xi32>
    %cst_706 = arith.constant 0.000000e+00 : f32
    %1581 = vector.broadcast %cst_706 : f32 to vector<16x128xf32>
    %1582 = arith.select %1580, %1578, %1581 : vector<16x128xi1>, vector<16x128xf32>
    %c1_i32_707 = arith.constant 1 : i32
    %1583 = tpu.dynamic_rotate %1505 by %c1_i32_707 dim 1 : vector<16x128xf32>, i32 -> vector<16x128xf32>
    %c1_i32_708 = arith.constant 1 : i32
    %1584 = vector.broadcast %c1_i32_708 : i32 to vector<16x128xi32>
    %1585 = arith.cmpi sge, %14, %1584 : vector<16x128xi32>
    %cst_709 = arith.constant 0.000000e+00 : f32
    %1586 = vector.broadcast %cst_709 : f32 to vector<16x128xf32>
    %1587 = arith.select %1585, %1583, %1586 : vector<16x128xi1>, vector<16x128xf32>
    %1588 = tpu.concatenate %1582, %1587 in 1 : vector<16x128xf32>, vector<16x128xf32> -> vector<16x256xf32>
    %1589 = arith.truncf %1588 : vector<16x256xf32> to vector<16x256xbf16>
    %1590 = tpu.concatenate %1504, %1505 in 1 : vector<16x128xf32>, vector<16x128xf32> -> vector<16x256xf32>
    %1591 = arith.truncf %1590 : vector<16x256xf32> to vector<16x256xbf16>
    %c127_i32_710 = arith.constant 127 : i32
    %1592 = tpu.dynamic_rotate %1504 by %c127_i32_710 dim 1 : vector<16x128xf32>, i32 -> vector<16x128xf32>
    %c127_i32_711 = arith.constant 127 : i32
    %1593 = vector.broadcast %c127_i32_711 : i32 to vector<16x128xi32>
    %1594 = arith.cmpi slt, %14, %1593 : vector<16x128xi32>
    %cst_712 = arith.constant 0.000000e+00 : f32
    %1595 = vector.broadcast %cst_712 : f32 to vector<16x128xf32>
    %1596 = arith.select %1594, %1592, %1595 : vector<16x128xi1>, vector<16x128xf32>
    %c127_i32_713 = arith.constant 127 : i32
    %1597 = tpu.dynamic_rotate %1505 by %c127_i32_713 dim 1 : vector<16x128xf32>, i32 -> vector<16x128xf32>
    %c127_i32_714 = arith.constant 127 : i32
    %1598 = vector.broadcast %c127_i32_714 : i32 to vector<16x128xi32>
    %1599 = arith.cmpi slt, %14, %1598 : vector<16x128xi32>
    %cst_715 = arith.constant 0.000000e+00 : f32
    %1600 = vector.broadcast %cst_715 : f32 to vector<16x128xf32>
    %1601 = arith.select %1599, %1597, %1600 : vector<16x128xi1>, vector<16x128xf32>
    %1602 = tpu.concatenate %1596, %1601 in 1 : vector<16x128xf32>, vector<16x128xf32> -> vector<16x256xf32>
    %1603 = arith.truncf %1602 : vector<16x256xf32> to vector<16x256xbf16>
    %c126_i32_716 = arith.constant 126 : i32
    %1604 = tpu.dynamic_rotate %1504 by %c126_i32_716 dim 1 : vector<16x128xf32>, i32 -> vector<16x128xf32>
    %c126_i32_717 = arith.constant 126 : i32
    %1605 = vector.broadcast %c126_i32_717 : i32 to vector<16x128xi32>
    %1606 = arith.cmpi slt, %14, %1605 : vector<16x128xi32>
    %cst_718 = arith.constant 0.000000e+00 : f32
    %1607 = vector.broadcast %cst_718 : f32 to vector<16x128xf32>
    %1608 = arith.select %1606, %1604, %1607 : vector<16x128xi1>, vector<16x128xf32>
    %c126_i32_719 = arith.constant 126 : i32
    %1609 = tpu.dynamic_rotate %1505 by %c126_i32_719 dim 1 : vector<16x128xf32>, i32 -> vector<16x128xf32>
    %c126_i32_720 = arith.constant 126 : i32
    %1610 = vector.broadcast %c126_i32_720 : i32 to vector<16x128xi32>
    %1611 = arith.cmpi slt, %14, %1610 : vector<16x128xi32>
    %cst_721 = arith.constant 0.000000e+00 : f32
    %1612 = vector.broadcast %cst_721 : f32 to vector<16x128xf32>
    %1613 = arith.select %1611, %1609, %1612 : vector<16x128xi1>, vector<16x128xf32>
    %1614 = tpu.concatenate %1608, %1613 in 1 : vector<16x128xf32>, vector<16x128xf32> -> vector<16x256xf32>
    %1615 = arith.truncf %1614 : vector<16x256xf32> to vector<16x256xbf16>
    %c125_i32_722 = arith.constant 125 : i32
    %1616 = tpu.dynamic_rotate %1504 by %c125_i32_722 dim 1 : vector<16x128xf32>, i32 -> vector<16x128xf32>
    %c125_i32_723 = arith.constant 125 : i32
    %1617 = vector.broadcast %c125_i32_723 : i32 to vector<16x128xi32>
    %1618 = arith.cmpi slt, %14, %1617 : vector<16x128xi32>
    %cst_724 = arith.constant 0.000000e+00 : f32
    %1619 = vector.broadcast %cst_724 : f32 to vector<16x128xf32>
    %1620 = arith.select %1618, %1616, %1619 : vector<16x128xi1>, vector<16x128xf32>
    %c125_i32_725 = arith.constant 125 : i32
    %1621 = tpu.dynamic_rotate %1505 by %c125_i32_725 dim 1 : vector<16x128xf32>, i32 -> vector<16x128xf32>
    %c125_i32_726 = arith.constant 125 : i32
    %1622 = vector.broadcast %c125_i32_726 : i32 to vector<16x128xi32>
    %1623 = arith.cmpi slt, %14, %1622 : vector<16x128xi32>
    %cst_727 = arith.constant 0.000000e+00 : f32
    %1624 = vector.broadcast %cst_727 : f32 to vector<16x128xf32>
    %1625 = arith.select %1623, %1621, %1624 : vector<16x128xi1>, vector<16x128xf32>
    %1626 = tpu.concatenate %1620, %1625 in 1 : vector<16x128xf32>, vector<16x128xf32> -> vector<16x256xf32>
    %1627 = arith.truncf %1626 : vector<16x256xf32> to vector<16x256xbf16>
    %c124_i32_728 = arith.constant 124 : i32
    %1628 = tpu.dynamic_rotate %1504 by %c124_i32_728 dim 1 : vector<16x128xf32>, i32 -> vector<16x128xf32>
    %c124_i32_729 = arith.constant 124 : i32
    %1629 = vector.broadcast %c124_i32_729 : i32 to vector<16x128xi32>
    %1630 = arith.cmpi slt, %14, %1629 : vector<16x128xi32>
    %cst_730 = arith.constant 0.000000e+00 : f32
    %1631 = vector.broadcast %cst_730 : f32 to vector<16x128xf32>
    %1632 = arith.select %1630, %1628, %1631 : vector<16x128xi1>, vector<16x128xf32>
    %c124_i32_731 = arith.constant 124 : i32
    %1633 = tpu.dynamic_rotate %1505 by %c124_i32_731 dim 1 : vector<16x128xf32>, i32 -> vector<16x128xf32>
    %c124_i32_732 = arith.constant 124 : i32
    %1634 = vector.broadcast %c124_i32_732 : i32 to vector<16x128xi32>
    %1635 = arith.cmpi slt, %14, %1634 : vector<16x128xi32>
    %cst_733 = arith.constant 0.000000e+00 : f32
    %1636 = vector.broadcast %cst_733 : f32 to vector<16x128xf32>
    %1637 = arith.select %1635, %1633, %1636 : vector<16x128xi1>, vector<16x128xf32>
    %1638 = tpu.concatenate %1632, %1637 in 1 : vector<16x128xf32>, vector<16x128xf32> -> vector<16x256xf32>
    %1639 = arith.truncf %1638 : vector<16x256xf32> to vector<16x256xbf16>
    %c123_i32_734 = arith.constant 123 : i32
    %1640 = tpu.dynamic_rotate %1504 by %c123_i32_734 dim 1 : vector<16x128xf32>, i32 -> vector<16x128xf32>
    %c123_i32_735 = arith.constant 123 : i32
    %1641 = vector.broadcast %c123_i32_735 : i32 to vector<16x128xi32>
    %1642 = arith.cmpi slt, %14, %1641 : vector<16x128xi32>
    %cst_736 = arith.constant 0.000000e+00 : f32
    %1643 = vector.broadcast %cst_736 : f32 to vector<16x128xf32>
    %1644 = arith.select %1642, %1640, %1643 : vector<16x128xi1>, vector<16x128xf32>
    %c123_i32_737 = arith.constant 123 : i32
    %1645 = tpu.dynamic_rotate %1505 by %c123_i32_737 dim 1 : vector<16x128xf32>, i32 -> vector<16x128xf32>
    %c123_i32_738 = arith.constant 123 : i32
    %1646 = vector.broadcast %c123_i32_738 : i32 to vector<16x128xi32>
    %1647 = arith.cmpi slt, %14, %1646 : vector<16x128xi32>
    %cst_739 = arith.constant 0.000000e+00 : f32
    %1648 = vector.broadcast %cst_739 : f32 to vector<16x128xf32>
    %1649 = arith.select %1647, %1645, %1648 : vector<16x128xi1>, vector<16x128xf32>
    %1650 = tpu.concatenate %1644, %1649 in 1 : vector<16x128xf32>, vector<16x128xf32> -> vector<16x256xf32>
    %1651 = arith.truncf %1650 : vector<16x256xf32> to vector<16x256xbf16>
    %c122_i32_740 = arith.constant 122 : i32
    %1652 = tpu.dynamic_rotate %1504 by %c122_i32_740 dim 1 : vector<16x128xf32>, i32 -> vector<16x128xf32>
    %c122_i32_741 = arith.constant 122 : i32
    %1653 = vector.broadcast %c122_i32_741 : i32 to vector<16x128xi32>
    %1654 = arith.cmpi slt, %14, %1653 : vector<16x128xi32>
    %cst_742 = arith.constant 0.000000e+00 : f32
    %1655 = vector.broadcast %cst_742 : f32 to vector<16x128xf32>
    %1656 = arith.select %1654, %1652, %1655 : vector<16x128xi1>, vector<16x128xf32>
    %c122_i32_743 = arith.constant 122 : i32
    %1657 = tpu.dynamic_rotate %1505 by %c122_i32_743 dim 1 : vector<16x128xf32>, i32 -> vector<16x128xf32>
    %c122_i32_744 = arith.constant 122 : i32
    %1658 = vector.broadcast %c122_i32_744 : i32 to vector<16x128xi32>
    %1659 = arith.cmpi slt, %14, %1658 : vector<16x128xi32>
    %cst_745 = arith.constant 0.000000e+00 : f32
    %1660 = vector.broadcast %cst_745 : f32 to vector<16x128xf32>
    %1661 = arith.select %1659, %1657, %1660 : vector<16x128xi1>, vector<16x128xf32>
    %1662 = tpu.concatenate %1656, %1661 in 1 : vector<16x128xf32>, vector<16x128xf32> -> vector<16x256xf32>
    %1663 = arith.truncf %1662 : vector<16x256xf32> to vector<16x256xbf16>
    %c121_i32_746 = arith.constant 121 : i32
    %1664 = tpu.dynamic_rotate %1504 by %c121_i32_746 dim 1 : vector<16x128xf32>, i32 -> vector<16x128xf32>
    %c121_i32_747 = arith.constant 121 : i32
    %1665 = vector.broadcast %c121_i32_747 : i32 to vector<16x128xi32>
    %1666 = arith.cmpi slt, %14, %1665 : vector<16x128xi32>
    %cst_748 = arith.constant 0.000000e+00 : f32
    %1667 = vector.broadcast %cst_748 : f32 to vector<16x128xf32>
    %1668 = arith.select %1666, %1664, %1667 : vector<16x128xi1>, vector<16x128xf32>
    %c121_i32_749 = arith.constant 121 : i32
    %1669 = tpu.dynamic_rotate %1505 by %c121_i32_749 dim 1 : vector<16x128xf32>, i32 -> vector<16x128xf32>
    %c121_i32_750 = arith.constant 121 : i32
    %1670 = vector.broadcast %c121_i32_750 : i32 to vector<16x128xi32>
    %1671 = arith.cmpi slt, %14, %1670 : vector<16x128xi32>
    %cst_751 = arith.constant 0.000000e+00 : f32
    %1672 = vector.broadcast %cst_751 : f32 to vector<16x128xf32>
    %1673 = arith.select %1671, %1669, %1672 : vector<16x128xi1>, vector<16x128xf32>
    %1674 = tpu.concatenate %1668, %1673 in 1 : vector<16x128xf32>, vector<16x128xf32> -> vector<16x256xf32>
    %1675 = arith.truncf %1674 : vector<16x256xf32> to vector<16x256xbf16>
    %c120_i32_752 = arith.constant 120 : i32
    %1676 = tpu.dynamic_rotate %1504 by %c120_i32_752 dim 1 : vector<16x128xf32>, i32 -> vector<16x128xf32>
    %c120_i32_753 = arith.constant 120 : i32
    %1677 = vector.broadcast %c120_i32_753 : i32 to vector<16x128xi32>
    %1678 = arith.cmpi slt, %14, %1677 : vector<16x128xi32>
    %cst_754 = arith.constant 0.000000e+00 : f32
    %1679 = vector.broadcast %cst_754 : f32 to vector<16x128xf32>
    %1680 = arith.select %1678, %1676, %1679 : vector<16x128xi1>, vector<16x128xf32>
    %c120_i32_755 = arith.constant 120 : i32
    %1681 = tpu.dynamic_rotate %1505 by %c120_i32_755 dim 1 : vector<16x128xf32>, i32 -> vector<16x128xf32>
    %c120_i32_756 = arith.constant 120 : i32
    %1682 = vector.broadcast %c120_i32_756 : i32 to vector<16x128xi32>
    %1683 = arith.cmpi slt, %14, %1682 : vector<16x128xi32>
    %cst_757 = arith.constant 0.000000e+00 : f32
    %1684 = vector.broadcast %cst_757 : f32 to vector<16x128xf32>
    %1685 = arith.select %1683, %1681, %1684 : vector<16x128xi1>, vector<16x128xf32>
    %1686 = tpu.concatenate %1680, %1685 in 1 : vector<16x128xf32>, vector<16x128xf32> -> vector<16x256xf32>
    %1687 = arith.truncf %1686 : vector<16x256xf32> to vector<16x256xbf16>
    %1688 = tpu.concatenate %1517, %1529, %1541, %1553, %1565, %1577, %1589, %1591 in 0 : vector<16x256xbf16>, vector<16x256xbf16>, vector<16x256xbf16>, vector<16x256xbf16>, vector<16x256xbf16>, vector<16x256xbf16>, vector<16x256xbf16>, vector<16x256xbf16> -> vector<128x256xbf16>
    %1689 = tpu.concatenate %1603, %1615, %1627, %1639, %1651, %1663, %1675, %1687 in 0 : vector<16x256xbf16>, vector<16x256xbf16>, vector<16x256xbf16>, vector<16x256xbf16>, vector<16x256xbf16>, vector<16x256xbf16>, vector<16x256xbf16>, vector<16x256xbf16> -> vector<128x256xbf16>
    %cst_758 = arith.constant dense<0.000000e+00> : vector<16x256xf32>
    %1690 = tpu.matmul %12, %1688, %cst_758 {dimension_numbers = #tpu.dot_dimension_numbers<[1], [0], [0], [1], [0, 0, 1, 1], [], []>} : vector<16x128xbf16>, vector<128x256xbf16>, vector<16x256xf32> -> vector<16x256xf32>
    %cst_759 = arith.constant dense<0.000000e+00> : vector<16x256xf32>
    %1691 = tpu.matmul %13, %1689, %cst_759 {dimension_numbers = #tpu.dot_dimension_numbers<[1], [0], [0], [1], [0, 0, 1, 1], [], []>} : vector<16x128xbf16>, vector<128x256xbf16>, vector<16x256xf32> -> vector<16x256xf32>
    %1692 = vector.extract_strided_slice %1690 {offsets = [0, 0], sizes = [8, 256], strides = [1, 1]} : vector<16x256xf32> to vector<8x256xf32>
    %1693 = vector.extract_strided_slice %1690 {offsets = [8, 0], sizes = [8, 256], strides = [1, 1]} : vector<16x256xf32> to vector<8x256xf32>
    %1694 = arith.addf %1692, %1693 : vector<8x256xf32>
    %1695 = vector.extract_strided_slice %1691 {offsets = [0, 0], sizes = [8, 256], strides = [1, 1]} : vector<16x256xf32> to vector<8x256xf32>
    %1696 = arith.addf %1694, %1695 : vector<8x256xf32>
    %1697 = vector.extract_strided_slice %1691 {offsets = [8, 0], sizes = [8, 256], strides = [1, 1]} : vector<16x256xf32> to vector<8x256xf32>
    %1698 = arith.addf %1696, %1697 : vector<8x256xf32>
    %1699 = vector.broadcast %10 : vector<8x1xf32> to vector<8x256xf32>
    %1700 = arith.addf %1698, %1699 : vector<8x256xf32>
    %cst_760 = arith.constant 2.500000e-01 : f32
    %1701 = vector.broadcast %cst_760 : f32 to vector<8x256xf32>
    %1702 = arith.mulf %1461, %1701 : vector<8x256xf32>
    %cst_761 = arith.constant 1.000000e+00 : f32
    %1703 = vector.broadcast %cst_761 : f32 to vector<8x256xf32>
    %1704 = arith.minimumf %1466, %1703 : vector<8x256xf32>
    %cst_762 = arith.constant 1.000000e+00 : f32
    %1705 = vector.broadcast %cst_762 : f32 to vector<8x256xf32>
    %1706 = arith.subf %1705, %1704 : vector<8x256xf32>
    %1707 = arith.mulf %1702, %1706 : vector<8x256xf32>
    %1708 = arith.addf %1707, %1700 : vector<8x256xf32>
    %1709 = math.floor %1708 : vector<8x256xf32>
    %cst_763 = arith.constant 0.000000e+00 : f32
    %cst_764 = arith.constant 4.000000e+00 : f32
    %1710 = vector.broadcast %cst_763 : f32 to vector<8x256xf32>
    %1711 = arith.maximumf %1710, %1709 : vector<8x256xf32>
    %1712 = vector.broadcast %cst_764 : f32 to vector<8x256xf32>
    %1713 = arith.minimumf %1712, %1711 : vector<8x256xf32>
    %1714 = tpu.concatenate %1713, %1713, %1713, %1713 in 0 : vector<8x256xf32>, vector<8x256xf32>, vector<8x256xf32>, vector<8x256xf32> -> vector<32x256xf32>
    %c6 = arith.constant 6 : index
    %c0_765 = arith.constant 0 : index
    %c0_766 = arith.constant 0 : index
    %1715 = vector.load %arg8[%c6, %c0_765, %c0_766] : memref<8x32x256xf32, #tpu.memory_space<vmem>>, vector<1x32x256xf32>
    %1716 = vector.shape_cast %1715 : vector<1x32x256xf32> to vector<32x256xf32>
    %1717 = arith.mulf %1716, %1714 : vector<32x256xf32>
    %1718 = arith.addf %1471, %1717 : vector<32x256xf32>
    %c0_767 = arith.constant 0 : index
    %c1792 = arith.constant 1792 : index
    %1719 = vector.load %arg11[%c0_767, %c1792] : memref<8x2048xf32, #tpu.memory_space<vmem>>, vector<8x256xf32>
    %cst_768 = arith.constant 2.500000e-01 : f32
    %1720 = vector.broadcast %cst_768 : f32 to vector<8x256xf32>
    %1721 = arith.mulf %1480, %1720 : vector<8x256xf32>
    %cst_769 = arith.constant 1.000000e+00 : f32
    %1722 = vector.broadcast %cst_769 : f32 to vector<8x256xf32>
    %1723 = arith.minimumf %1485, %1722 : vector<8x256xf32>
    %cst_770 = arith.constant 1.000000e+00 : f32
    %1724 = vector.broadcast %cst_770 : f32 to vector<8x256xf32>
    %1725 = arith.subf %1724, %1723 : vector<8x256xf32>
    %1726 = arith.mulf %1721, %1725 : vector<8x256xf32>
    %1727 = arith.addf %1726, %1719 : vector<8x256xf32>
    %1728 = math.floor %1727 : vector<8x256xf32>
    %cst_771 = arith.constant 0.000000e+00 : f32
    %cst_772 = arith.constant 4.000000e+00 : f32
    %1729 = vector.broadcast %cst_771 : f32 to vector<8x256xf32>
    %1730 = arith.maximumf %1729, %1728 : vector<8x256xf32>
    %1731 = vector.broadcast %cst_772 : f32 to vector<8x256xf32>
    %1732 = arith.minimumf %1731, %1730 : vector<8x256xf32>
    %1733 = tpu.concatenate %1732, %1732 in 0 : vector<8x256xf32>, vector<8x256xf32> -> vector<16x256xf32>
    %1734 = vector.broadcast %8 : vector<16x1xf32> to vector<16x256xf32>
    %1735 = arith.mulf %1734, %1733 : vector<16x256xf32>
    %1736 = vector.broadcast %9 : vector<16x1xf32> to vector<16x256xf32>
    %1737 = arith.addf %1735, %1736 : vector<16x256xf32>
    %cst_773 = arith.constant 2.500000e-01 : f32
    %1738 = vector.broadcast %cst_773 : f32 to vector<16x256xf32>
    %1739 = arith.mulf %1498, %1738 : vector<16x256xf32>
    %cst_774 = arith.constant 1.000000e+00 : f32
    %1740 = vector.broadcast %cst_774 : f32 to vector<16x256xf32>
    %1741 = arith.minimumf %1503, %1740 : vector<16x256xf32>
    %cst_775 = arith.constant 1.000000e+00 : f32
    %1742 = vector.broadcast %cst_775 : f32 to vector<16x256xf32>
    %1743 = arith.subf %1742, %1741 : vector<16x256xf32>
    %1744 = arith.mulf %1739, %1743 : vector<16x256xf32>
    %1745 = arith.addf %1744, %1737 : vector<16x256xf32>
    %1746 = math.floor %1745 : vector<16x256xf32>
    %cst_776 = arith.constant 0.000000e+00 : f32
    %cst_777 = arith.constant 4.000000e+00 : f32
    %1747 = vector.broadcast %cst_776 : f32 to vector<16x256xf32>
    %1748 = arith.maximumf %1747, %1746 : vector<16x256xf32>
    %1749 = vector.broadcast %cst_777 : f32 to vector<16x256xf32>
    %1750 = arith.minimumf %1749, %1748 : vector<16x256xf32>
    %1751 = vector.extract_strided_slice %1750 {offsets = [0, 0], sizes = [16, 128], strides = [1, 1]} : vector<16x256xf32> to vector<16x128xf32>
    %1752 = vector.extract_strided_slice %1750 {offsets = [0, 128], sizes = [16, 128], strides = [1, 1]} : vector<16x256xf32> to vector<16x128xf32>
    %c7_i32_778 = arith.constant 7 : i32
    %1753 = tpu.dynamic_rotate %1751 by %c7_i32_778 dim 1 : vector<16x128xf32>, i32 -> vector<16x128xf32>
    %c7_i32_779 = arith.constant 7 : i32
    %1754 = vector.broadcast %c7_i32_779 : i32 to vector<16x128xi32>
    %1755 = arith.cmpi sge, %14, %1754 : vector<16x128xi32>
    %cst_780 = arith.constant 0.000000e+00 : f32
    %1756 = vector.broadcast %cst_780 : f32 to vector<16x128xf32>
    %1757 = arith.select %1755, %1753, %1756 : vector<16x128xi1>, vector<16x128xf32>
    %c7_i32_781 = arith.constant 7 : i32
    %1758 = tpu.dynamic_rotate %1752 by %c7_i32_781 dim 1 : vector<16x128xf32>, i32 -> vector<16x128xf32>
    %c7_i32_782 = arith.constant 7 : i32
    %1759 = vector.broadcast %c7_i32_782 : i32 to vector<16x128xi32>
    %1760 = arith.cmpi sge, %14, %1759 : vector<16x128xi32>
    %cst_783 = arith.constant 0.000000e+00 : f32
    %1761 = vector.broadcast %cst_783 : f32 to vector<16x128xf32>
    %1762 = arith.select %1760, %1758, %1761 : vector<16x128xi1>, vector<16x128xf32>
    %1763 = tpu.concatenate %1757, %1762 in 1 : vector<16x128xf32>, vector<16x128xf32> -> vector<16x256xf32>
    %1764 = arith.truncf %1763 : vector<16x256xf32> to vector<16x256xbf16>
    %c6_i32_784 = arith.constant 6 : i32
    %1765 = tpu.dynamic_rotate %1751 by %c6_i32_784 dim 1 : vector<16x128xf32>, i32 -> vector<16x128xf32>
    %c6_i32_785 = arith.constant 6 : i32
    %1766 = vector.broadcast %c6_i32_785 : i32 to vector<16x128xi32>
    %1767 = arith.cmpi sge, %14, %1766 : vector<16x128xi32>
    %cst_786 = arith.constant 0.000000e+00 : f32
    %1768 = vector.broadcast %cst_786 : f32 to vector<16x128xf32>
    %1769 = arith.select %1767, %1765, %1768 : vector<16x128xi1>, vector<16x128xf32>
    %c6_i32_787 = arith.constant 6 : i32
    %1770 = tpu.dynamic_rotate %1752 by %c6_i32_787 dim 1 : vector<16x128xf32>, i32 -> vector<16x128xf32>
    %c6_i32_788 = arith.constant 6 : i32
    %1771 = vector.broadcast %c6_i32_788 : i32 to vector<16x128xi32>
    %1772 = arith.cmpi sge, %14, %1771 : vector<16x128xi32>
    %cst_789 = arith.constant 0.000000e+00 : f32
    %1773 = vector.broadcast %cst_789 : f32 to vector<16x128xf32>
    %1774 = arith.select %1772, %1770, %1773 : vector<16x128xi1>, vector<16x128xf32>
    %1775 = tpu.concatenate %1769, %1774 in 1 : vector<16x128xf32>, vector<16x128xf32> -> vector<16x256xf32>
    %1776 = arith.truncf %1775 : vector<16x256xf32> to vector<16x256xbf16>
    %c5_i32_790 = arith.constant 5 : i32
    %1777 = tpu.dynamic_rotate %1751 by %c5_i32_790 dim 1 : vector<16x128xf32>, i32 -> vector<16x128xf32>
    %c5_i32_791 = arith.constant 5 : i32
    %1778 = vector.broadcast %c5_i32_791 : i32 to vector<16x128xi32>
    %1779 = arith.cmpi sge, %14, %1778 : vector<16x128xi32>
    %cst_792 = arith.constant 0.000000e+00 : f32
    %1780 = vector.broadcast %cst_792 : f32 to vector<16x128xf32>
    %1781 = arith.select %1779, %1777, %1780 : vector<16x128xi1>, vector<16x128xf32>
    %c5_i32_793 = arith.constant 5 : i32
    %1782 = tpu.dynamic_rotate %1752 by %c5_i32_793 dim 1 : vector<16x128xf32>, i32 -> vector<16x128xf32>
    %c5_i32_794 = arith.constant 5 : i32
    %1783 = vector.broadcast %c5_i32_794 : i32 to vector<16x128xi32>
    %1784 = arith.cmpi sge, %14, %1783 : vector<16x128xi32>
    %cst_795 = arith.constant 0.000000e+00 : f32
    %1785 = vector.broadcast %cst_795 : f32 to vector<16x128xf32>
    %1786 = arith.select %1784, %1782, %1785 : vector<16x128xi1>, vector<16x128xf32>
    %1787 = tpu.concatenate %1781, %1786 in 1 : vector<16x128xf32>, vector<16x128xf32> -> vector<16x256xf32>
    %1788 = arith.truncf %1787 : vector<16x256xf32> to vector<16x256xbf16>
    %c4_i32_796 = arith.constant 4 : i32
    %1789 = tpu.dynamic_rotate %1751 by %c4_i32_796 dim 1 : vector<16x128xf32>, i32 -> vector<16x128xf32>
    %c4_i32_797 = arith.constant 4 : i32
    %1790 = vector.broadcast %c4_i32_797 : i32 to vector<16x128xi32>
    %1791 = arith.cmpi sge, %14, %1790 : vector<16x128xi32>
    %cst_798 = arith.constant 0.000000e+00 : f32
    %1792 = vector.broadcast %cst_798 : f32 to vector<16x128xf32>
    %1793 = arith.select %1791, %1789, %1792 : vector<16x128xi1>, vector<16x128xf32>
    %c4_i32_799 = arith.constant 4 : i32
    %1794 = tpu.dynamic_rotate %1752 by %c4_i32_799 dim 1 : vector<16x128xf32>, i32 -> vector<16x128xf32>
    %c4_i32_800 = arith.constant 4 : i32
    %1795 = vector.broadcast %c4_i32_800 : i32 to vector<16x128xi32>
    %1796 = arith.cmpi sge, %14, %1795 : vector<16x128xi32>
    %cst_801 = arith.constant 0.000000e+00 : f32
    %1797 = vector.broadcast %cst_801 : f32 to vector<16x128xf32>
    %1798 = arith.select %1796, %1794, %1797 : vector<16x128xi1>, vector<16x128xf32>
    %1799 = tpu.concatenate %1793, %1798 in 1 : vector<16x128xf32>, vector<16x128xf32> -> vector<16x256xf32>
    %1800 = arith.truncf %1799 : vector<16x256xf32> to vector<16x256xbf16>
    %c3_i32_802 = arith.constant 3 : i32
    %1801 = tpu.dynamic_rotate %1751 by %c3_i32_802 dim 1 : vector<16x128xf32>, i32 -> vector<16x128xf32>
    %c3_i32_803 = arith.constant 3 : i32
    %1802 = vector.broadcast %c3_i32_803 : i32 to vector<16x128xi32>
    %1803 = arith.cmpi sge, %14, %1802 : vector<16x128xi32>
    %cst_804 = arith.constant 0.000000e+00 : f32
    %1804 = vector.broadcast %cst_804 : f32 to vector<16x128xf32>
    %1805 = arith.select %1803, %1801, %1804 : vector<16x128xi1>, vector<16x128xf32>
    %c3_i32_805 = arith.constant 3 : i32
    %1806 = tpu.dynamic_rotate %1752 by %c3_i32_805 dim 1 : vector<16x128xf32>, i32 -> vector<16x128xf32>
    %c3_i32_806 = arith.constant 3 : i32
    %1807 = vector.broadcast %c3_i32_806 : i32 to vector<16x128xi32>
    %1808 = arith.cmpi sge, %14, %1807 : vector<16x128xi32>
    %cst_807 = arith.constant 0.000000e+00 : f32
    %1809 = vector.broadcast %cst_807 : f32 to vector<16x128xf32>
    %1810 = arith.select %1808, %1806, %1809 : vector<16x128xi1>, vector<16x128xf32>
    %1811 = tpu.concatenate %1805, %1810 in 1 : vector<16x128xf32>, vector<16x128xf32> -> vector<16x256xf32>
    %1812 = arith.truncf %1811 : vector<16x256xf32> to vector<16x256xbf16>
    %c2_i32_808 = arith.constant 2 : i32
    %1813 = tpu.dynamic_rotate %1751 by %c2_i32_808 dim 1 : vector<16x128xf32>, i32 -> vector<16x128xf32>
    %c2_i32_809 = arith.constant 2 : i32
    %1814 = vector.broadcast %c2_i32_809 : i32 to vector<16x128xi32>
    %1815 = arith.cmpi sge, %14, %1814 : vector<16x128xi32>
    %cst_810 = arith.constant 0.000000e+00 : f32
    %1816 = vector.broadcast %cst_810 : f32 to vector<16x128xf32>
    %1817 = arith.select %1815, %1813, %1816 : vector<16x128xi1>, vector<16x128xf32>
    %c2_i32_811 = arith.constant 2 : i32
    %1818 = tpu.dynamic_rotate %1752 by %c2_i32_811 dim 1 : vector<16x128xf32>, i32 -> vector<16x128xf32>
    %c2_i32_812 = arith.constant 2 : i32
    %1819 = vector.broadcast %c2_i32_812 : i32 to vector<16x128xi32>
    %1820 = arith.cmpi sge, %14, %1819 : vector<16x128xi32>
    %cst_813 = arith.constant 0.000000e+00 : f32
    %1821 = vector.broadcast %cst_813 : f32 to vector<16x128xf32>
    %1822 = arith.select %1820, %1818, %1821 : vector<16x128xi1>, vector<16x128xf32>
    %1823 = tpu.concatenate %1817, %1822 in 1 : vector<16x128xf32>, vector<16x128xf32> -> vector<16x256xf32>
    %1824 = arith.truncf %1823 : vector<16x256xf32> to vector<16x256xbf16>
    %c1_i32_814 = arith.constant 1 : i32
    %1825 = tpu.dynamic_rotate %1751 by %c1_i32_814 dim 1 : vector<16x128xf32>, i32 -> vector<16x128xf32>
    %c1_i32_815 = arith.constant 1 : i32
    %1826 = vector.broadcast %c1_i32_815 : i32 to vector<16x128xi32>
    %1827 = arith.cmpi sge, %14, %1826 : vector<16x128xi32>
    %cst_816 = arith.constant 0.000000e+00 : f32
    %1828 = vector.broadcast %cst_816 : f32 to vector<16x128xf32>
    %1829 = arith.select %1827, %1825, %1828 : vector<16x128xi1>, vector<16x128xf32>
    %c1_i32_817 = arith.constant 1 : i32
    %1830 = tpu.dynamic_rotate %1752 by %c1_i32_817 dim 1 : vector<16x128xf32>, i32 -> vector<16x128xf32>
    %c1_i32_818 = arith.constant 1 : i32
    %1831 = vector.broadcast %c1_i32_818 : i32 to vector<16x128xi32>
    %1832 = arith.cmpi sge, %14, %1831 : vector<16x128xi32>
    %cst_819 = arith.constant 0.000000e+00 : f32
    %1833 = vector.broadcast %cst_819 : f32 to vector<16x128xf32>
    %1834 = arith.select %1832, %1830, %1833 : vector<16x128xi1>, vector<16x128xf32>
    %1835 = tpu.concatenate %1829, %1834 in 1 : vector<16x128xf32>, vector<16x128xf32> -> vector<16x256xf32>
    %1836 = arith.truncf %1835 : vector<16x256xf32> to vector<16x256xbf16>
    %1837 = tpu.concatenate %1751, %1752 in 1 : vector<16x128xf32>, vector<16x128xf32> -> vector<16x256xf32>
    %1838 = arith.truncf %1837 : vector<16x256xf32> to vector<16x256xbf16>
    %c127_i32_820 = arith.constant 127 : i32
    %1839 = tpu.dynamic_rotate %1751 by %c127_i32_820 dim 1 : vector<16x128xf32>, i32 -> vector<16x128xf32>
    %c127_i32_821 = arith.constant 127 : i32
    %1840 = vector.broadcast %c127_i32_821 : i32 to vector<16x128xi32>
    %1841 = arith.cmpi slt, %14, %1840 : vector<16x128xi32>
    %cst_822 = arith.constant 0.000000e+00 : f32
    %1842 = vector.broadcast %cst_822 : f32 to vector<16x128xf32>
    %1843 = arith.select %1841, %1839, %1842 : vector<16x128xi1>, vector<16x128xf32>
    %c127_i32_823 = arith.constant 127 : i32
    %1844 = tpu.dynamic_rotate %1752 by %c127_i32_823 dim 1 : vector<16x128xf32>, i32 -> vector<16x128xf32>
    %c127_i32_824 = arith.constant 127 : i32
    %1845 = vector.broadcast %c127_i32_824 : i32 to vector<16x128xi32>
    %1846 = arith.cmpi slt, %14, %1845 : vector<16x128xi32>
    %cst_825 = arith.constant 0.000000e+00 : f32
    %1847 = vector.broadcast %cst_825 : f32 to vector<16x128xf32>
    %1848 = arith.select %1846, %1844, %1847 : vector<16x128xi1>, vector<16x128xf32>
    %1849 = tpu.concatenate %1843, %1848 in 1 : vector<16x128xf32>, vector<16x128xf32> -> vector<16x256xf32>
    %1850 = arith.truncf %1849 : vector<16x256xf32> to vector<16x256xbf16>
    %c126_i32_826 = arith.constant 126 : i32
    %1851 = tpu.dynamic_rotate %1751 by %c126_i32_826 dim 1 : vector<16x128xf32>, i32 -> vector<16x128xf32>
    %c126_i32_827 = arith.constant 126 : i32
    %1852 = vector.broadcast %c126_i32_827 : i32 to vector<16x128xi32>
    %1853 = arith.cmpi slt, %14, %1852 : vector<16x128xi32>
    %cst_828 = arith.constant 0.000000e+00 : f32
    %1854 = vector.broadcast %cst_828 : f32 to vector<16x128xf32>
    %1855 = arith.select %1853, %1851, %1854 : vector<16x128xi1>, vector<16x128xf32>
    %c126_i32_829 = arith.constant 126 : i32
    %1856 = tpu.dynamic_rotate %1752 by %c126_i32_829 dim 1 : vector<16x128xf32>, i32 -> vector<16x128xf32>
    %c126_i32_830 = arith.constant 126 : i32
    %1857 = vector.broadcast %c126_i32_830 : i32 to vector<16x128xi32>
    %1858 = arith.cmpi slt, %14, %1857 : vector<16x128xi32>
    %cst_831 = arith.constant 0.000000e+00 : f32
    %1859 = vector.broadcast %cst_831 : f32 to vector<16x128xf32>
    %1860 = arith.select %1858, %1856, %1859 : vector<16x128xi1>, vector<16x128xf32>
    %1861 = tpu.concatenate %1855, %1860 in 1 : vector<16x128xf32>, vector<16x128xf32> -> vector<16x256xf32>
    %1862 = arith.truncf %1861 : vector<16x256xf32> to vector<16x256xbf16>
    %c125_i32_832 = arith.constant 125 : i32
    %1863 = tpu.dynamic_rotate %1751 by %c125_i32_832 dim 1 : vector<16x128xf32>, i32 -> vector<16x128xf32>
    %c125_i32_833 = arith.constant 125 : i32
    %1864 = vector.broadcast %c125_i32_833 : i32 to vector<16x128xi32>
    %1865 = arith.cmpi slt, %14, %1864 : vector<16x128xi32>
    %cst_834 = arith.constant 0.000000e+00 : f32
    %1866 = vector.broadcast %cst_834 : f32 to vector<16x128xf32>
    %1867 = arith.select %1865, %1863, %1866 : vector<16x128xi1>, vector<16x128xf32>
    %c125_i32_835 = arith.constant 125 : i32
    %1868 = tpu.dynamic_rotate %1752 by %c125_i32_835 dim 1 : vector<16x128xf32>, i32 -> vector<16x128xf32>
    %c125_i32_836 = arith.constant 125 : i32
    %1869 = vector.broadcast %c125_i32_836 : i32 to vector<16x128xi32>
    %1870 = arith.cmpi slt, %14, %1869 : vector<16x128xi32>
    %cst_837 = arith.constant 0.000000e+00 : f32
    %1871 = vector.broadcast %cst_837 : f32 to vector<16x128xf32>
    %1872 = arith.select %1870, %1868, %1871 : vector<16x128xi1>, vector<16x128xf32>
    %1873 = tpu.concatenate %1867, %1872 in 1 : vector<16x128xf32>, vector<16x128xf32> -> vector<16x256xf32>
    %1874 = arith.truncf %1873 : vector<16x256xf32> to vector<16x256xbf16>
    %c124_i32_838 = arith.constant 124 : i32
    %1875 = tpu.dynamic_rotate %1751 by %c124_i32_838 dim 1 : vector<16x128xf32>, i32 -> vector<16x128xf32>
    %c124_i32_839 = arith.constant 124 : i32
    %1876 = vector.broadcast %c124_i32_839 : i32 to vector<16x128xi32>
    %1877 = arith.cmpi slt, %14, %1876 : vector<16x128xi32>
    %cst_840 = arith.constant 0.000000e+00 : f32
    %1878 = vector.broadcast %cst_840 : f32 to vector<16x128xf32>
    %1879 = arith.select %1877, %1875, %1878 : vector<16x128xi1>, vector<16x128xf32>
    %c124_i32_841 = arith.constant 124 : i32
    %1880 = tpu.dynamic_rotate %1752 by %c124_i32_841 dim 1 : vector<16x128xf32>, i32 -> vector<16x128xf32>
    %c124_i32_842 = arith.constant 124 : i32
    %1881 = vector.broadcast %c124_i32_842 : i32 to vector<16x128xi32>
    %1882 = arith.cmpi slt, %14, %1881 : vector<16x128xi32>
    %cst_843 = arith.constant 0.000000e+00 : f32
    %1883 = vector.broadcast %cst_843 : f32 to vector<16x128xf32>
    %1884 = arith.select %1882, %1880, %1883 : vector<16x128xi1>, vector<16x128xf32>
    %1885 = tpu.concatenate %1879, %1884 in 1 : vector<16x128xf32>, vector<16x128xf32> -> vector<16x256xf32>
    %1886 = arith.truncf %1885 : vector<16x256xf32> to vector<16x256xbf16>
    %c123_i32_844 = arith.constant 123 : i32
    %1887 = tpu.dynamic_rotate %1751 by %c123_i32_844 dim 1 : vector<16x128xf32>, i32 -> vector<16x128xf32>
    %c123_i32_845 = arith.constant 123 : i32
    %1888 = vector.broadcast %c123_i32_845 : i32 to vector<16x128xi32>
    %1889 = arith.cmpi slt, %14, %1888 : vector<16x128xi32>
    %cst_846 = arith.constant 0.000000e+00 : f32
    %1890 = vector.broadcast %cst_846 : f32 to vector<16x128xf32>
    %1891 = arith.select %1889, %1887, %1890 : vector<16x128xi1>, vector<16x128xf32>
    %c123_i32_847 = arith.constant 123 : i32
    %1892 = tpu.dynamic_rotate %1752 by %c123_i32_847 dim 1 : vector<16x128xf32>, i32 -> vector<16x128xf32>
    %c123_i32_848 = arith.constant 123 : i32
    %1893 = vector.broadcast %c123_i32_848 : i32 to vector<16x128xi32>
    %1894 = arith.cmpi slt, %14, %1893 : vector<16x128xi32>
    %cst_849 = arith.constant 0.000000e+00 : f32
    %1895 = vector.broadcast %cst_849 : f32 to vector<16x128xf32>
    %1896 = arith.select %1894, %1892, %1895 : vector<16x128xi1>, vector<16x128xf32>
    %1897 = tpu.concatenate %1891, %1896 in 1 : vector<16x128xf32>, vector<16x128xf32> -> vector<16x256xf32>
    %1898 = arith.truncf %1897 : vector<16x256xf32> to vector<16x256xbf16>
    %c122_i32_850 = arith.constant 122 : i32
    %1899 = tpu.dynamic_rotate %1751 by %c122_i32_850 dim 1 : vector<16x128xf32>, i32 -> vector<16x128xf32>
    %c122_i32_851 = arith.constant 122 : i32
    %1900 = vector.broadcast %c122_i32_851 : i32 to vector<16x128xi32>
    %1901 = arith.cmpi slt, %14, %1900 : vector<16x128xi32>
    %cst_852 = arith.constant 0.000000e+00 : f32
    %1902 = vector.broadcast %cst_852 : f32 to vector<16x128xf32>
    %1903 = arith.select %1901, %1899, %1902 : vector<16x128xi1>, vector<16x128xf32>
    %c122_i32_853 = arith.constant 122 : i32
    %1904 = tpu.dynamic_rotate %1752 by %c122_i32_853 dim 1 : vector<16x128xf32>, i32 -> vector<16x128xf32>
    %c122_i32_854 = arith.constant 122 : i32
    %1905 = vector.broadcast %c122_i32_854 : i32 to vector<16x128xi32>
    %1906 = arith.cmpi slt, %14, %1905 : vector<16x128xi32>
    %cst_855 = arith.constant 0.000000e+00 : f32
    %1907 = vector.broadcast %cst_855 : f32 to vector<16x128xf32>
    %1908 = arith.select %1906, %1904, %1907 : vector<16x128xi1>, vector<16x128xf32>
    %1909 = tpu.concatenate %1903, %1908 in 1 : vector<16x128xf32>, vector<16x128xf32> -> vector<16x256xf32>
    %1910 = arith.truncf %1909 : vector<16x256xf32> to vector<16x256xbf16>
    %c121_i32_856 = arith.constant 121 : i32
    %1911 = tpu.dynamic_rotate %1751 by %c121_i32_856 dim 1 : vector<16x128xf32>, i32 -> vector<16x128xf32>
    %c121_i32_857 = arith.constant 121 : i32
    %1912 = vector.broadcast %c121_i32_857 : i32 to vector<16x128xi32>
    %1913 = arith.cmpi slt, %14, %1912 : vector<16x128xi32>
    %cst_858 = arith.constant 0.000000e+00 : f32
    %1914 = vector.broadcast %cst_858 : f32 to vector<16x128xf32>
    %1915 = arith.select %1913, %1911, %1914 : vector<16x128xi1>, vector<16x128xf32>
    %c121_i32_859 = arith.constant 121 : i32
    %1916 = tpu.dynamic_rotate %1752 by %c121_i32_859 dim 1 : vector<16x128xf32>, i32 -> vector<16x128xf32>
    %c121_i32_860 = arith.constant 121 : i32
    %1917 = vector.broadcast %c121_i32_860 : i32 to vector<16x128xi32>
    %1918 = arith.cmpi slt, %14, %1917 : vector<16x128xi32>
    %cst_861 = arith.constant 0.000000e+00 : f32
    %1919 = vector.broadcast %cst_861 : f32 to vector<16x128xf32>
    %1920 = arith.select %1918, %1916, %1919 : vector<16x128xi1>, vector<16x128xf32>
    %1921 = tpu.concatenate %1915, %1920 in 1 : vector<16x128xf32>, vector<16x128xf32> -> vector<16x256xf32>
    %1922 = arith.truncf %1921 : vector<16x256xf32> to vector<16x256xbf16>
    %c120_i32_862 = arith.constant 120 : i32
    %1923 = tpu.dynamic_rotate %1751 by %c120_i32_862 dim 1 : vector<16x128xf32>, i32 -> vector<16x128xf32>
    %c120_i32_863 = arith.constant 120 : i32
    %1924 = vector.broadcast %c120_i32_863 : i32 to vector<16x128xi32>
    %1925 = arith.cmpi slt, %14, %1924 : vector<16x128xi32>
    %cst_864 = arith.constant 0.000000e+00 : f32
    %1926 = vector.broadcast %cst_864 : f32 to vector<16x128xf32>
    %1927 = arith.select %1925, %1923, %1926 : vector<16x128xi1>, vector<16x128xf32>
    %c120_i32_865 = arith.constant 120 : i32
    %1928 = tpu.dynamic_rotate %1752 by %c120_i32_865 dim 1 : vector<16x128xf32>, i32 -> vector<16x128xf32>
    %c120_i32_866 = arith.constant 120 : i32
    %1929 = vector.broadcast %c120_i32_866 : i32 to vector<16x128xi32>
    %1930 = arith.cmpi slt, %14, %1929 : vector<16x128xi32>
    %cst_867 = arith.constant 0.000000e+00 : f32
    %1931 = vector.broadcast %cst_867 : f32 to vector<16x128xf32>
    %1932 = arith.select %1930, %1928, %1931 : vector<16x128xi1>, vector<16x128xf32>
    %1933 = tpu.concatenate %1927, %1932 in 1 : vector<16x128xf32>, vector<16x128xf32> -> vector<16x256xf32>
    %1934 = arith.truncf %1933 : vector<16x256xf32> to vector<16x256xbf16>
    %1935 = tpu.concatenate %1764, %1776, %1788, %1800, %1812, %1824, %1836, %1838 in 0 : vector<16x256xbf16>, vector<16x256xbf16>, vector<16x256xbf16>, vector<16x256xbf16>, vector<16x256xbf16>, vector<16x256xbf16>, vector<16x256xbf16>, vector<16x256xbf16> -> vector<128x256xbf16>
    %1936 = tpu.concatenate %1850, %1862, %1874, %1886, %1898, %1910, %1922, %1934 in 0 : vector<16x256xbf16>, vector<16x256xbf16>, vector<16x256xbf16>, vector<16x256xbf16>, vector<16x256xbf16>, vector<16x256xbf16>, vector<16x256xbf16>, vector<16x256xbf16> -> vector<128x256xbf16>
    %cst_868 = arith.constant dense<0.000000e+00> : vector<16x256xf32>
    %1937 = tpu.matmul %12, %1935, %cst_868 {dimension_numbers = #tpu.dot_dimension_numbers<[1], [0], [0], [1], [0, 0, 1, 1], [], []>} : vector<16x128xbf16>, vector<128x256xbf16>, vector<16x256xf32> -> vector<16x256xf32>
    %cst_869 = arith.constant dense<0.000000e+00> : vector<16x256xf32>
    %1938 = tpu.matmul %13, %1936, %cst_869 {dimension_numbers = #tpu.dot_dimension_numbers<[1], [0], [0], [1], [0, 0, 1, 1], [], []>} : vector<16x128xbf16>, vector<128x256xbf16>, vector<16x256xf32> -> vector<16x256xf32>
    %1939 = vector.extract_strided_slice %1937 {offsets = [0, 0], sizes = [8, 256], strides = [1, 1]} : vector<16x256xf32> to vector<8x256xf32>
    %1940 = vector.extract_strided_slice %1937 {offsets = [8, 0], sizes = [8, 256], strides = [1, 1]} : vector<16x256xf32> to vector<8x256xf32>
    %1941 = arith.addf %1939, %1940 : vector<8x256xf32>
    %1942 = vector.extract_strided_slice %1938 {offsets = [0, 0], sizes = [8, 256], strides = [1, 1]} : vector<16x256xf32> to vector<8x256xf32>
    %1943 = arith.addf %1941, %1942 : vector<8x256xf32>
    %1944 = vector.extract_strided_slice %1938 {offsets = [8, 0], sizes = [8, 256], strides = [1, 1]} : vector<16x256xf32> to vector<8x256xf32>
    %1945 = arith.addf %1943, %1944 : vector<8x256xf32>
    %1946 = vector.broadcast %10 : vector<8x1xf32> to vector<8x256xf32>
    %1947 = arith.addf %1945, %1946 : vector<8x256xf32>
    %cst_870 = arith.constant 2.500000e-01 : f32
    %1948 = vector.broadcast %cst_870 : f32 to vector<8x256xf32>
    %1949 = arith.mulf %1708, %1948 : vector<8x256xf32>
    %cst_871 = arith.constant 1.000000e+00 : f32
    %1950 = vector.broadcast %cst_871 : f32 to vector<8x256xf32>
    %1951 = arith.minimumf %1713, %1950 : vector<8x256xf32>
    %cst_872 = arith.constant 1.000000e+00 : f32
    %1952 = vector.broadcast %cst_872 : f32 to vector<8x256xf32>
    %1953 = arith.subf %1952, %1951 : vector<8x256xf32>
    %1954 = arith.mulf %1949, %1953 : vector<8x256xf32>
    %1955 = arith.addf %1954, %1947 : vector<8x256xf32>
    %1956 = math.floor %1955 : vector<8x256xf32>
    %cst_873 = arith.constant 0.000000e+00 : f32
    %cst_874 = arith.constant 4.000000e+00 : f32
    %1957 = vector.broadcast %cst_873 : f32 to vector<8x256xf32>
    %1958 = arith.maximumf %1957, %1956 : vector<8x256xf32>
    %1959 = vector.broadcast %cst_874 : f32 to vector<8x256xf32>
    %1960 = arith.minimumf %1959, %1958 : vector<8x256xf32>
    %1961 = tpu.concatenate %1960, %1960, %1960, %1960 in 0 : vector<8x256xf32>, vector<8x256xf32>, vector<8x256xf32>, vector<8x256xf32> -> vector<32x256xf32>
    %c7 = arith.constant 7 : index
    %c0_875 = arith.constant 0 : index
    %c0_876 = arith.constant 0 : index
    %1962 = vector.load %arg8[%c7, %c0_875, %c0_876] : memref<8x32x256xf32, #tpu.memory_space<vmem>>, vector<1x32x256xf32>
    %1963 = vector.shape_cast %1962 : vector<1x32x256xf32> to vector<32x256xf32>
    %1964 = arith.mulf %1963, %1961 : vector<32x256xf32>
    %1965 = arith.addf %1718, %1964 : vector<32x256xf32>
    %1966 = vector.extract_strided_slice %1965 {offsets = [0, 0], sizes = [8, 256], strides = [1, 1]} : vector<32x256xf32> to vector<8x256xf32>
    %cst_877 = arith.constant dense<0.000000e+00> : vector<256xf32>
    %1967 = vector.multi_reduction <add>, %1966, %cst_877 [0] : vector<8x256xf32> to vector<256xf32>
    %1968 = vector.shape_cast %1967 : vector<256xf32> to vector<1x256xf32>
    %1969 = vector.extract_strided_slice %1965 {offsets = [8, 0], sizes = [8, 256], strides = [1, 1]} : vector<32x256xf32> to vector<8x256xf32>
    %cst_878 = arith.constant dense<0.000000e+00> : vector<256xf32>
    %1970 = vector.multi_reduction <add>, %1969, %cst_878 [0] : vector<8x256xf32> to vector<256xf32>
    %1971 = vector.shape_cast %1970 : vector<256xf32> to vector<1x256xf32>
    %1972 = vector.extract_strided_slice %1965 {offsets = [16, 0], sizes = [8, 256], strides = [1, 1]} : vector<32x256xf32> to vector<8x256xf32>
    %cst_879 = arith.constant dense<0.000000e+00> : vector<256xf32>
    %1973 = vector.multi_reduction <add>, %1972, %cst_879 [0] : vector<8x256xf32> to vector<256xf32>
    %1974 = vector.shape_cast %1973 : vector<256xf32> to vector<1x256xf32>
    %1975 = vector.extract_strided_slice %1965 {offsets = [24, 0], sizes = [8, 256], strides = [1, 1]} : vector<32x256xf32> to vector<8x256xf32>
    %cst_880 = arith.constant dense<0.000000e+00> : vector<256xf32>
    %1976 = vector.multi_reduction <add>, %1975, %cst_880 [0] : vector<8x256xf32> to vector<256xf32>
    %1977 = vector.shape_cast %1976 : vector<256xf32> to vector<1x256xf32>
    %1978 = tpu.concatenate %1968, %1971, %1974, %1977 in 0 : vector<1x256xf32>, vector<1x256xf32>, vector<1x256xf32>, vector<1x256xf32> -> vector<4x256xf32>
    %1979 = vector.extract_strided_slice %1978 {offsets = [0, 0], sizes = [4, 128], strides = [1, 1]} : vector<4x256xf32> to vector<4x128xf32>
    %cst_881 = arith.constant dense<0.000000e+00> : vector<4xf32>
    %1980 = vector.multi_reduction <add>, %1979, %cst_881 [1] : vector<4x128xf32> to vector<4xf32>
    %1981 = vector.shape_cast %1980 : vector<4xf32> to vector<4x1xf32>
    %1982 = vector.extract_strided_slice %1978 {offsets = [0, 128], sizes = [4, 128], strides = [1, 1]} : vector<4x256xf32> to vector<4x128xf32>
    %cst_882 = arith.constant dense<0.000000e+00> : vector<4xf32>
    %1983 = vector.multi_reduction <add>, %1982, %cst_882 [1] : vector<4x128xf32> to vector<4xf32>
    %1984 = vector.shape_cast %1983 : vector<4xf32> to vector<4x1xf32>
    %1985 = tpu.concatenate %1981, %1984 in 1 : vector<4x1xf32>, vector<4x1xf32> -> vector<4x2xf32>
    %1986 = vector.broadcast %11 : vector<4x1xf32> to vector<4x2xf32>
    %1987 = arith.addf %1985, %1986 : vector<4x2xf32>
    %1988 = vector.shape_cast %1987 : vector<4x2xf32> to vector<1x4x2xf32>
    %c0_883 = arith.constant 0 : index
    %c0_884 = arith.constant 0 : index
    %c0_885 = arith.constant 0 : index
    %1989 = vector.load %arg10[%c0_883, %c0_884, %c0_885] : memref<1x4x2xf32, #tpu.memory_space<vmem>>, vector<1x4x2xf32>
    tpu.vector_store %arg10[%c0_883, %c0_884, %c0_885], %1988 {strides = array<i32>} : memref<1x4x2xf32, #tpu.memory_space<vmem>>, vector<1x4x2xf32>,
    return
  }
  func.func @transform_0(%arg0: i32) -> (i32, i32, i32) {
    %c0_i32 = arith.constant 0 : i32
    %c0_i32_0 = arith.constant 0 : i32
    %c0_i32_1 = arith.constant 0 : i32
    return %arg0, %c0_i32, %c0_i32_0 : i32, i32, i32
  }
  func.func @transform_1(%arg0: i32) -> (i32, i32) {
    %c0_i32 = arith.constant 0 : i32
    %c0_i32_0 = arith.constant 0 : i32
    %c0_i32_1 = arith.constant 0 : i32
    return %c0_i32, %c0_i32_0 : i32, i32
  }
  func.func @transform_2(%arg0: i32) -> (i32, i32) {
    %c0_i32 = arith.constant 0 : i32
    %c0_i32_0 = arith.constant 0 : i32
    %c0_i32_1 = arith.constant 0 : i32
    return %c0_i32, %c0_i32_0 : i32, i32
  }
  func.func @transform_3(%arg0: i32) -> (i32, i32) {
    %c0_i32 = arith.constant 0 : i32
    %c0_i32_0 = arith.constant 0 : i32
    %c0_i32_1 = arith.constant 0 : i32
    return %c0_i32, %c0_i32_0 : i32, i32
  }
  func.func @transform_4(%arg0: i32) -> (i32, i32) {
    %c0_i32 = arith.constant 0 : i32
    %c0_i32_0 = arith.constant 0 : i32
    %c0_i32_1 = arith.constant 0 : i32
    return %c0_i32, %c0_i32_0 : i32, i32
  }
  func.func @transform_5(%arg0: i32) -> (i32, i32) {
    %c0_i32 = arith.constant 0 : i32
    %c0_i32_0 = arith.constant 0 : i32
    %c0_i32_1 = arith.constant 0 : i32
    return %c0_i32, %c0_i32_0 : i32, i32
  }
  func.func @transform_6(%arg0: i32) -> (i32, i32) {
    %c0_i32 = arith.constant 0 : i32
    %c0_i32_0 = arith.constant 0 : i32
    %c0_i32_1 = arith.constant 0 : i32
    return %c0_i32, %c0_i32_0 : i32, i32
  }
  func.func @transform_7(%arg0: i32) -> (i32, i32, i32) {
    %c0_i32 = arith.constant 0 : i32
    %c0_i32_0 = arith.constant 0 : i32
    %c0_i32_1 = arith.constant 0 : i32
    %c0_i32_2 = arith.constant 0 : i32
    return %c0_i32, %c0_i32_0, %c0_i32_1 : i32, i32, i32
  }
  func.func @transform_8(%arg0: i32) -> (i32, i32) {
    %c0_i32 = arith.constant 0 : i32
    %c0_i32_0 = arith.constant 0 : i32
    %c0_i32_1 = arith.constant 0 : i32
    return %c0_i32, %c0_i32_0 : i32, i32
  }
  func.func @transform_9(%arg0: i32) -> (i32, i32, i32) {
    %c0_i32 = arith.constant 0 : i32
    %c0_i32_0 = arith.constant 0 : i32
    %c0_i32_1 = arith.constant 0 : i32
    return %arg0, %c0_i32, %c0_i32_0 : i32, i32, i32
  }
}

</mosaic_0001>

<llo_original>
// kernel: spike_eegnet_forward.1
$region0: #{spike_eegnet_forward.1}
  #allocation0 [shape = 'u32[]', space=smem, size = 0x4, offset = 0x4, fixed_abs, tag = 'smem constant byte address 0x4 - core index']
  #allocation1 [shape = 'u32[144,128]{1,0:T(1,128)}', space=vmem, size = 0x12000, scoped, tag = 'internal scratch']
  #allocation2 [shape = 'f32[8,2048]{1,0:T(8,128)}', space=vmem, size = 0x10000, scoped, tag = 'scratch operand']
  %s0 = inlined_call_operand.vmem [shape: f32[1,8,2048], index: 0, kind: input, shape index: {}]
  %s1 = inlined_call_operand.vmem [shape: f32[8,8], index: 1, kind: input, shape index: {}]
  %s2 = inlined_call_operand.vmem [shape: f32[8,1], index: 2, kind: input, shape index: {}]
  %s3 = inlined_call_operand.vmem [shape: f32[16,1], index: 3, kind: input, shape index: {}]
  %s4 = inlined_call_operand.vmem [shape: f32[16,1], index: 4, kind: input, shape index: {}]
  %s5 = inlined_call_operand.vmem [shape: bf16[16,256], index: 5, kind: input, shape index: {}]
  %s6 = inlined_call_operand.vmem [shape: f32[8,1], index: 6, kind: input, shape index: {}]
  %s7 = inlined_call_operand.hbm [shape: f32[8,32,256], index: 7, kind: input, shape index: {}]
  %s8 = inlined_call_operand.vmem [shape: f32[4,1], index: 8, kind: input, shape index: {}]
  %s9 = inlined_call_operand.vmem [shape: f32[1,4,2], index: 9, kind: output, shape index: {}]
  %s10 = sld [smem:[#allocation0]]
  $region50: #{spike_eegnet_forward.1} parent=0
    _
  %s12 = ssub.s32 1, %s10
  %s13 = scalar_select 0, %s12, %s10
  $region1: #{spike_eegnet_forward.1} parent=0
    #allocation3 [shape = 'u8[262144]{0}', space=vmem, size = 0x40000, scoped, tag = 'input window, operand 7, single buffered']
    #allocation4 [shape = 's32[1]{0}', space=sflag, size = 0x4, scoped, tag = 'scoped memory for spike_eegnet_forward.1']
    %14 = vsyncpa [#allocation4], 0
    // Predicated region
    $region2: #{spike_eegnet_forward.1} parent=1 // pred_check
      _
    $region3: #{spike_eegnet_forward.1} parent=1 // pred_check_branch
      %16 = sbr.rel (0) target = $region5
    $region4: #{spike_eegnet_forward.1} parent=1 // pred_region
      _
    $region5: #{spike_eegnet_forward.1} parent=1 // pred_fallthru
      _
    // Predicated region
    $region6: #{spike_eegnet_forward.1} parent=1 // pred_check
      _
    $region7: #{spike_eegnet_forward.1} parent=1 // pred_check_branch
      %18 = sbr.rel (0) target = $region9
    $region8: #{spike_eegnet_forward.1} parent=1 // pred_region
      _
    $region9: #{spike_eegnet_forward.1} parent=1 // pred_fallthru
      _
    // Predicated region
    $region10: #{spike_eegnet_forward.1} parent=1 // pred_check
      _
    $region11: #{spike_eegnet_forward.1} parent=1 // pred_check_branch
      %20 = sbr.rel (0) target = $region13
    $region12: #{spike_eegnet_forward.1} parent=1 // pred_region
      _
    $region13: #{spike_eegnet_forward.1} parent=1 // pred_fallthru
      _
    // Predicated region
    $region14: #{spike_eegnet_forward.1} parent=1 // pred_check
      _
    $region15: #{spike_eegnet_forward.1} parent=1 // pred_check_branch
      %22 = sbr.rel (0) target = $region17
    $region16: #{spike_eegnet_forward.1} parent=1 // pred_region
      _
    $region17: #{spike_eegnet_forward.1} parent=1 // pred_fallthru
      _
    // Predicated region
    $region18: #{spike_eegnet_forward.1} parent=1 // pred_check
      _
    $region19: #{spike_eegnet_forward.1} parent=1 // pred_check_branch
      %24 = sbr.rel (0) target = $region21
    $region20: #{spike_eegnet_forward.1} parent=1 // pred_region
      _
    $region21: #{spike_eegnet_forward.1} parent=1 // pred_fallthru
      _
    // Predicated region
    $region22: #{spike_eegnet_forward.1} parent=1 // pred_check
      _
    $region23: #{spike_eegnet_forward.1} parent=1 // pred_check_branch
      %26 = sbr.rel (0) target = $region25
    $region24: #{spike_eegnet_forward.1} parent=1 // pred_region
      _
    $region25: #{spike_eegnet_forward.1} parent=1 // pred_fallthru
      _
    // Predicated region
    $region26: #{spike_eegnet_forward.1} parent=1 // pred_check
      _
    $region27: #{spike_eegnet_forward.1} parent=1 // pred_check_branch
      %28 = sbr.rel (0) target = $region29
    $region28: #{spike_eegnet_forward.1} parent=1 // pred_region
      _
    $region29: #{spike_eegnet_forward.1} parent=1 // pred_fallthru
      _
    // Predicated region
    $region30: #{spike_eegnet_forward.1} parent=1 // pred_check
      _
    $region31: #{spike_eegnet_forward.1} parent=1 // pred_check_branch
      %30 = sbr.rel (0) target = $region33
    $region32: #{spike_eegnet_forward.1} parent=1 // pred_region
      %s32 = ssub.s32 8192, 8192
      %33 = vsyncadd [#allocation4], %s32
      %s34 = sshll.u32 [#allocation3], 4
      %s35 = int_to_ptr.vmem [resolvable:$true] %s34
      %40 = dma.hbm_to_vmem [thread:$0]  %s7, 8192, %s35, [#allocation4], 256, 256, 16
    $region33: #{spike_eegnet_forward.1} parent=1 // pred_fallthru
      _
    // Predicated region
    $region34: #{spike_eegnet_forward.1} parent=1 // pred_check
      _
    $region35: #{spike_eegnet_forward.1} parent=1 // pred_check_branch
      %42 = sbr.rel (0) target = $region37
    $region36: #{spike_eegnet_forward.1} parent=1 // pred_region
      _
    $region37: #{spike_eegnet_forward.1} parent=1 // pred_fallthru
      _
    // Predicated region
    $region38: #{spike_eegnet_forward.1} parent=1 // pred_check
      _
    $region39: #{spike_eegnet_forward.1} parent=1 // pred_check_branch
      %44 = sbr.rel (0) target = $region41
    $region40: #{spike_eegnet_forward.1} parent=1 // pred_region
      %45 = dma.done [#allocation4], 8192
    $region41: #{spike_eegnet_forward.1} parent=1 // pred_fallthru
      _
    %v47 = vld [vmem:[%s1] sm:$0xff]
    %v48 = vld [vmem:[%s0] sm:$0xff]
    %v49 = vld [vmem:[%s0 + $0x8] sm:$0xff]
    %v50 = vld [vmem:[%s0 + $0x10] sm:$0xff]
    %v51 = vld [vmem:[%s0 + $0x18] sm:$0xff]
    %v52 = vld [vmem:[%s0 + $0x20] sm:$0xff]
    %v53 = vld [vmem:[%s0 + $0x28] sm:$0xff]
    %v54 = vld [vmem:[%s0 + $0x30] sm:$0xff]
    %v55 = vld [vmem:[%s0 + $0x38] sm:$0xff]
    %v56 = vld [vmem:[%s0 + $0x40] sm:$0xff]
    %v57 = vld [vmem:[%s0 + $0x48] sm:$0xff]
    %v58 = vld [vmem:[%s0 + $0x50] sm:$0xff]
    %v59 = vld [vmem:[%s0 + $0x58] sm:$0xff]
    %v60 = vld [vmem:[%s0 + $0x60] sm:$0xff]
    %v61 = vld [vmem:[%s0 + $0x68] sm:$0xff]
    %v62 = vld [vmem:[%s0 + $0x70] sm:$0xff]
    %v63 = vld [vmem:[%s0 + $0x78] sm:$0xff]
    %v64 = vld [vmem:[%s2] sm:$0xff]
    %66 = vset.pattern.permute.xlu0 0
    %67 = vperm.xlu0 %66, %v64
    %v68 = vpop.permute.xlu0 %67
    %vm70 = vcmask 64512
    %v72 = vsel %vm70, %v47, 0
    %v74 = vand.u32 %v49, 4294901760
    %75 = vmatprep.subr.mxu0 %v74
    %v76 = vand.u32 %v48, 4294901760
    %77 = vmatpush1.msra.mxu0 %v76
    %78 = vmatprep.subr.mxu0 0.0
    %79 = vmatpush1.msra.mxu0 0.0
    %80 = vmatprep.subr.mxu0 0.0
    %81 = vmatpush1.msra.mxu0 0.0
    %82 = vmatprep.subr.mxu0 0.0
    %83 = vmatpush1.msra.mxu0 0.0
    %84 = vmatprep.subr.mxu0 0.0
    %85 = vmatpush1.msra.mxu0 0.0
    %86 = vmatprep.subr.mxu0 0.0
    %87 = vmatpush1.msra.mxu0 0.0
    %88 = vmatprep.subr.mxu0 0.0
    %89 = vmatpush1.msra.mxu0 0.0
    %90 = vmatprep.subr.mxu0 0.0
    %91 = vmatpush1.msra.mxu0 0.0
    %92 = vmatprep.subr.mxu0 0.0
    %93 = vmatpush1.msra.mxu0 0.0
    %94 = vmatprep.subr.mxu0 0.0
    %95 = vmatpush1.msra.mxu0 0.0
    %96 = vmatprep.subr.mxu0 0.0
    %97 = vmatpush1.msra.mxu0 0.0
    %98 = vmatprep.subr.mxu0 0.0
    %99 = vmatpush1.msra.mxu0 0.0
    %100 = vmatprep.subr.mxu0 0.0
    %101 = vmatpush1.msra.mxu0 0.0
    %102 = vmatprep.subr.mxu0 0.0
    %103 = vmatpush1.msra.mxu0 0.0
    %104 = vmatprep.subr.mxu0 0.0
    %105 = vmatpush1.msra.mxu0 0.0
    %106 = vmatprep.subr.mxu0 0.0
    %107 = vmatpush1.msra.mxu0 0.0
    %108 = vmatprep.subr.mxu0 0.0
    %109 = vmatpush1.msra.mxu0 0.0
    %110 = vmatprep.subr.mxu0 0.0
    %111 = vmatpush1.msra.mxu0 0.0
    %112 = vmatprep.subr.mxu0 0.0
    %113 = vmatpush1.msra.mxu0 0.0
    %114 = vmatprep.subr.mxu0 0.0
    %115 = vmatpush1.msra.mxu0 0.0
    %116 = vmatprep.subr.mxu0 0.0
    %117 = vmatpush1.msra.mxu0 0.0
    %118 = vmatprep.subr.mxu0 0.0
    %119 = vmatpush1.msra.mxu0 0.0
    %120 = vmatprep.subr.mxu0 0.0
    %121 = vmatpush1.msra.mxu0 0.0
    %122 = vmatprep.subr.mxu0 0.0
    %123 = vmatpush1.msra.mxu0 0.0
    %124 = vmatprep.subr.mxu0 0.0
    %125 = vmatpush1.msra.mxu0 0.0
    %126 = vmatprep.subr.mxu0 0.0
    %127 = vmatpush1.msra.mxu0 0.0
    %128 = vmatprep.subr.mxu0 0.0
    %129 = vmatpush1.msra.mxu0 0.0
    %130 = vmatprep.subr.mxu0 0.0
    %131 = vmatpush1.msra.mxu0 0.0
    %132 = vmatprep.subr.mxu0 0.0
    %133 = vmatpush1.msra.mxu0 0.0
    %134 = vmatprep.subr.mxu0 0.0
    %135 = vmatpush1.msra.mxu0 0.0
    %136 = vmatprep.subr.mxu0 0.0
    %137 = vmatpush1.msra.mxu0 0.0
    %138 = vmatprep.subr.mxu0 0.0
    %139 = vmatpush1.msra.mxu0 0.0
    %140 = vmatprep.mubr.f32.mxu0 0.0
    %v141 = vand.u32 %v72, 4294901760
    %v142 = vsub.f32 %v72, %v141
    %v143 = vand.u32 %v142, 4294901760
    %v144 = vsub.f32 %v142, %v143
    %v145 = vand.u32 %v144, 4294901760
    %146 = vmatmul.mubr.f32.gmra.mrb[0].mxu0 %v145
    %v147 = vpop.f32.mrb[0].mxu0
    %v148 = vadd.f32 %v68, %v147
    %v149 = vpop.f32.mrb[0].mxu0
    %v150 = vadd.f32 %v68, %v149
    %151 = vdwg.mxu0
    %v152 = vand.u32 %v49, 4294901760
    %v153 = vsub.f32 %v49, %v152
    %v154 = vand.u32 %v153, 4294901760
    %v155 = vsub.f32 %v153, %v154
    %v156 = vand.u32 %v155, 4294901760
    %157 = vmatprep.subr.mxu0 %v156
    %v158 = vand.u32 %v48, 4294901760
    %v159 = vsub.f32 %v48, %v158
    %v160 = vand.u32 %v159, 4294901760
    %v161 = vsub.f32 %v159, %v160
    %v162 = vand.u32 %v161, 4294901760
    %163 = vmatpush1.msra.mxu0 %v162
    %164 = vmatprep.subr.mxu0 0.0
    %165 = vmatpush1.msra.mxu0 0.0
    %166 = vmatprep.subr.mxu0 0.0
    %167 = vmatpush1.msra.mxu0 0.0
    %168 = vmatprep.subr.mxu0 0.0
    %169 = vmatpush1.msra.mxu0 0.0
    %170 = vmatprep.subr.mxu0 0.0
    %171 = vmatpush1.msra.mxu0 0.0
    %172 = vmatprep.subr.mxu0 0.0
    %173 = vmatpush1.msra.mxu0 0.0
    %174 = vmatprep.subr.mxu0 0.0
    %175 = vmatpush1.msra.mxu0 0.0
    %176 = vmatprep.subr.mxu0 0.0
    %177 = vmatpush1.msra.mxu0 0.0
    %178 = vmatprep.subr.mxu0 0.0
    %179 = vmatpush1.msra.mxu0 0.0
    %180 = vmatprep.subr.mxu0 0.0
    %181 = vmatpush1.msra.mxu0 0.0
    %182 = vmatprep.subr.mxu0 0.0
    %183 = vmatpush1.msra.mxu0 0.0
    %184 = vmatprep.subr.mxu0 0.0
    %185 = vmatpush1.msra.mxu0 0.0
    %186 = vmatprep.subr.mxu0 0.0
    %187 = vmatpush1.msra.mxu0 0.0
    %188 = vmatprep.subr.mxu0 0.0
    %189 = vmatpush1.msra.mxu0 0.0
    %190 = vmatprep.subr.mxu0 0.0
    %191 = vmatpush1.msra.mxu0 0.0
    %192 = vmatprep.subr.mxu0 0.0
    %193 = vmatpush1.msra.mxu0 0.0
    %194 = vmatprep.subr.mxu0 0.0
    %195 = vmatpush1.msra.mxu0 0.0
    %196 = vmatprep.subr.mxu0 0.0
    %197 = vmatpush1.msra.mxu0 0.0
    %198 = vmatprep.subr.mxu0 0.0
    %199 = vmatpush1.msra.mxu0 0.0
    %200 = vmatprep.subr.mxu0 0.0
    %201 = vmatpush1.msra.mxu0 0.0
    %202 = vmatprep.subr.mxu0 0.0
    %203 = vmatpush1.msra.mxu0 0.0
    %204 = vmatprep.subr.mxu0 0.0
    %205 = vmatpush1.msra.mxu0 0.0
    %206 = vmatprep.subr.mxu0 0.0
    %207 = vmatpush1.msra.mxu0 0.0
    %208 = vmatprep.subr.mxu0 0.0
    %209 = vmatpush1.msra.mxu0 0.0
    %210 = vmatprep.subr.mxu0 0.0
    %211 = vmatpush1.msra.mxu0 0.0
    %212 = vmatprep.subr.mxu0 0.0
    %213 = vmatpush1.msra.mxu0 0.0
    %214 = vmatprep.subr.mxu0 0.0
    %215 = vmatpush1.msra.mxu0 0.0
    %216 = vmatprep.subr.mxu0 0.0
    %217 = vmatpush1.msra.mxu0 0.0
    %218 = vmatprep.subr.mxu0 0.0
    %219 = vmatpush1.msra.mxu0 0.0
    %220 = vmatprep.subr.mxu0 0.0
    %221 = vmatpush1.msra.mxu0 0.0
    %222 = vmatprep.subr.mxu0 0.0
    %223 = vmatpush1.msra.mxu0 0.0
    %224 = vmatprep.subr.mxu0 0.0
    %225 = vmatpush1.msra.mxu0 0.0
    %226 = vmatprep.mubr.f32.mxu0 0.0
    %v227 = vand.u32 %v72, 4294901760
    %228 = vmatmul.mubr.f32.gmra.mrb[0].mxu0 %v227
    %v229 = vpop.f32.mrb[0].mxu0
    %v230 = vadd.f32 %v148, %v229
    %v231 = vpop.f32.mrb[0].mxu0
    %v232 = vadd.f32 %v150, %v231
    %233 = vdwg.mxu0
    %v234 = vand.u32 %v49, 4294901760
    %v235 = vsub.f32 %v49, %v234
    %236 = vmatprep.subr.mxu0 %v235
    %v237 = vand.u32 %v48, 4294901760
    %v238 = vsub.f32 %v48, %v237
    %239 = vmatpush1.msra.mxu0 %v238
    %240 = vmatprep.subr.mxu0 0.0
    %241 = vmatpush1.msra.mxu0 0.0
    %242 = vmatprep.subr.mxu0 0.0
    %243 = vmatpush1.msra.mxu0 0.0
    %244 = vmatprep.subr.mxu0 0.0
    %245 = vmatpush1.msra.mxu0 0.0
    %246 = vmatprep.subr.mxu0 0.0
    %247 = vmatpush1.msra.mxu0 0.0
    %248 = vmatprep.subr.mxu0 0.0
    %249 = vmatpush1.msra.mxu0 0.0
    %250 = vmatprep.subr.mxu0 0.0
    %251 = vmatpush1.msra.mxu0 0.0
    %252 = vmatprep.subr.mxu0 0.0
    %253 = vmatpush1.msra.mxu0 0.0
    %254 = vmatprep.subr.mxu0 0.0
    %255 = vmatpush1.msra.mxu0 0.0
    %256 = vmatprep.subr.mxu0 0.0
    %257 = vmatpush1.msra.mxu0 0.0
    %258 = vmatprep.subr.mxu0 0.0
    %259 = vmatpush1.msra.mxu0 0.0
    %260 = vmatprep.subr.mxu0 0.0
    %261 = vmatpush1.msra.mxu0 0.0
    %262 = vmatprep.subr.mxu0 0.0
    %263 = vmatpush1.msra.mxu0 0.0
    %264 = vmatprep.subr.mxu0 0.0
    %265 = vmatpush1.msra.mxu0 0.0
    %266 = vmatprep.subr.mxu0 0.0
    %267 = vmatpush1.msra.mxu0 0.0
    %268 = vmatprep.subr.mxu0 0.0
    %269 = vmatpush1.msra.mxu0 0.0
    %270 = vmatprep.subr.mxu0 0.0
    %271 = vmatpush1.msra.mxu0 0.0
    %272 = vmatprep.subr.mxu0 0.0
    %273 = vmatpush1.msra.mxu0 0.0
    %274 = vmatprep.subr.mxu0 0.0
    %275 = vmatpush1.msra.mxu0 0.0
    %276 = vmatprep.subr.mxu0 0.0
    %277 = vmatpush1.msra.mxu0 0.0
    %278 = vmatprep.subr.mxu0 0.0
    %279 = vmatpush1.msra.mxu0 0.0
    %280 = vmatprep.subr.mxu0 0.0
    %281 = vmatpush1.msra.mxu0 0.0
    %282 = vmatprep.subr.mxu0 0.0
    %283 = vmatpush1.msra.mxu0 0.0
    %284 = vmatprep.subr.mxu0 0.0
    %285 = vmatpush1.msra.mxu0 0.0
    %286 = vmatprep.subr.mxu0 0.0
    %287 = vmatpush1.msra.mxu0 0.0
    %288 = vmatprep.subr.mxu0 0.0
    %289 = vmatpush1.msra.mxu0 0.0
    %290 = vmatprep.subr.mxu0 0.0
    %291 = vmatpush1.msra.mxu0 0.0
    %292 = vmatprep.subr.mxu0 0.0
    %293 = vmatpush1.msra.mxu0 0.0
    %294 = vmatprep.subr.mxu0 0.0
    %295 = vmatpush1.msra.mxu0 0.0
    %296 = vmatprep.subr.mxu0 0.0
    %297 = vmatpush1.msra.mxu0 0.0
    %298 = vmatprep.subr.mxu0 0.0
    %299 = vmatpush1.msra.mxu0 0.0
    %300 = vmatprep.subr.mxu0 0.0
    %301 = vmatpush1.msra.mxu0 0.0
    %302 = vmatprep.mubr.f32.mxu0 0.0
    %v303 = vand.u32 %v72, 4294901760
    %v304 = vsub.f32 %v72, %v303
    %305 = vmatmul.mubr.f32.gmra.mrb[0].mxu0 %v304
    %v306 = vpop.f32.mrb[0].mxu0
    %v307 = vadd.f32 %v230, %v306
    %v308 = vpop.f32.mrb[0].mxu0
    %v309 = vadd.f32 %v232, %v308
    %310 = vdwg.mxu0
    %v311 = vand.u32 %v49, 4294901760
    %312 = vmatprep.subr.mxu0 %v311
    %v313 = vand.u32 %v48, 4294901760
    %314 = vmatpush1.msra.mxu0 %v313
    %315 = vmatprep.subr.mxu0 0.0
    %316 = vmatpush1.msra.mxu0 0.0
    %317 = vmatprep.subr.mxu0 0.0
    %318 = vmatpush1.msra.mxu0 0.0
    %319 = vmatprep.subr.mxu0 0.0
    %320 = vmatpush1.msra.mxu0 0.0
    %321 = vmatprep.subr.mxu0 0.0
    %322 = vmatpush1.msra.mxu0 0.0
    %323 = vmatprep.subr.mxu0 0.0
    %324 = vmatpush1.msra.mxu0 0.0
    %325 = vmatprep.subr.mxu0 0.0
    %326 = vmatpush1.msra.mxu0 0.0
    %327 = vmatprep.subr.mxu0 0.0
    %328 = vmatpush1.msra.mxu0 0.0
    %329 = vmatprep.subr.mxu0 0.0
    %330 = vmatpush1.msra.mxu0 0.0
    %331 = vmatprep.subr.mxu0 0.0
    %332 = vmatpush1.msra.mxu0 0.0
    %333 = vmatprep.subr.mxu0 0.0
    %334 = vmatpush1.msra.mxu0 0.0
    %335 = vmatprep.subr.mxu0 0.0
    %336 = vmatpush1.msra.mxu0 0.0
    %337 = vmatprep.subr.mxu0 0.0
    %338 = vmatpush1.msra.mxu0 0.0
    %339 = vmatprep.subr.mxu0 0.0
    %340 = vmatpush1.msra.mxu0 0.0
    %341 = vmatprep.subr.mxu0 0.0
    %342 = vmatpush1.msra.mxu0 0.0
    %343 = vmatprep.subr.mxu0 0.0
    %344 = vmatpush1.msra.mxu0 0.0
    %345 = vmatprep.subr.mxu0 0.0
    %346 = vmatpush1.msra.mxu0 0.0
    %347 = vmatprep.subr.mxu0 0.0
    %348 = vmatpush1.msra.mxu0 0.0
    %349 = vmatprep.subr.mxu0 0.0
    %350 = vmatpush1.msra.mxu0 0.0
    %351 = vmatprep.subr.mxu0 0.0
    %352 = vmatpush1.msra.mxu0 0.0
    %353 = vmatprep.subr.mxu0 0.0
    %354 = vmatpush1.msra.mxu0 0.0
    %355 = vmatprep.subr.mxu0 0.0
    %356 = vmatpush1.msra.mxu0 0.0
    %357 = vmatprep.subr.mxu0 0.0
    %358 = vmatpush1.msra.mxu0 0.0
    %359 = vmatprep.subr.mxu0 0.0
    %360 = vmatpush1.msra.mxu0 0.0
    %361 = vmatprep.subr.mxu0 0.0
    %362 = vmatpush1.msra.mxu0 0.0
    %363 = vmatprep.subr.mxu0 0.0
    %364 = vmatpush1.msra.mxu0 0.0
    %365 = vmatprep.subr.mxu0 0.0
    %366 = vmatpush1.msra.mxu0 0.0
    %367 = vmatprep.subr.mxu0 0.0
    %368 = vmatpush1.msra.mxu0 0.0
    %369 = vmatprep.subr.mxu0 0.0
    %370 = vmatpush1.msra.mxu0 0.0
    %371 = vmatprep.subr.mxu0 0.0
    %372 = vmatpush1.msra.mxu0 0.0
    %373 = vmatprep.subr.mxu0 0.0
    %374 = vmatpush1.msra.mxu0 0.0
    %375 = vmatprep.subr.mxu0 0.0
    %376 = vmatpush1.msra.mxu0 0.0
    %377 = vmatprep.mubr.f32.mxu0 0.0
    %v378 = vand.u32 %v72, 4294901760
    %v379 = vsub.f32 %v72, %v378
    %v380 = vand.u32 %v379, 4294901760
    %381 = vmatmul.mubr.f32.gmra.mrb[0].mxu0 %v380
    %v382 = vpop.f32.mrb[0].mxu0
    %v383 = vadd.f32 %v307, %v382
    %v384 = vpop.f32.mrb[0].mxu0
    %v385 = vadd.f32 %v309, %v384
    %386 = vdwg.mxu0
    %v387 = vand.u32 %v49, 4294901760
    %v388 = vsub.f32 %v49, %v387
    %v389 = vand.u32 %v388, 4294901760
    %390 = vmatprep.subr.mxu0 %v389
    %v391 = vand.u32 %v48, 4294901760
    %v392 = vsub.f32 %v48, %v391
    %v393 = vand.u32 %v392, 4294901760
    %394 = vmatpush1.msra.mxu0 %v393
    %395 = vmatprep.subr.mxu0 0.0
    %396 = vmatpush1.msra.mxu0 0.0
    %397 = vmatprep.subr.mxu0 0.0
    %398 = vmatpush1.msra.mxu0 0.0
    %399 = vmatprep.subr.mxu0 0.0
    %400 = vmatpush1.msra.mxu0 0.0
    %401 = vmatprep.subr.mxu0 0.0
    %402 = vmatpush1.msra.mxu0 0.0
    %403 = vmatprep.subr.mxu0 0.0
    %404 = vmatpush1.msra.mxu0 0.0
    %405 = vmatprep.subr.mxu0 0.0
    %406 = vmatpush1.msra.mxu0 0.0
    %407 = vmatprep.subr.mxu0 0.0
    %408 = vmatpush1.msra.mxu0 0.0
    %409 = vmatprep.subr.mxu0 0.0
    %410 = vmatpush1.msra.mxu0 0.0
    %411 = vmatprep.subr.mxu0 0.0
    %412 = vmatpush1.msra.mxu0 0.0
    %413 = vmatprep.subr.mxu0 0.0
    %414 = vmatpush1.msra.mxu0 0.0
    %415 = vmatprep.subr.mxu0 0.0
    %416 = vmatpush1.msra.mxu0 0.0
    %417 = vmatprep.subr.mxu0 0.0
    %418 = vmatpush1.msra.mxu0 0.0
    %419 = vmatprep.subr.mxu0 0.0
    %420 = vmatpush1.msra.mxu0 0.0
    %421 = vmatprep.subr.mxu0 0.0
    %422 = vmatpush1.msra.mxu0 0.0
    %423 = vmatprep.subr.mxu0 0.0
    %424 = vmatpush1.msra.mxu0 0.0
    %425 = vmatprep.subr.mxu0 0.0
    %426 = vmatpush1.msra.mxu0 0.0
    %427 = vmatprep.subr.mxu0 0.0
    %428 = vmatpush1.msra.mxu0 0.0
    %429 = vmatprep.subr.mxu0 0.0
    %430 = vmatpush1.msra.mxu0 0.0
    %431 = vmatprep.subr.mxu0 0.0
    %432 = vmatpush1.msra.mxu0 0.0
    %433 = vmatprep.subr.mxu0 0.0
    %434 = vmatpush1.msra.mxu0 0.0
    %435 = vmatprep.subr.mxu0 0.0
    %436 = vmatpush1.msra.mxu0 0.0
    %437 = vmatprep.subr.mxu0 0.0
    %438 = vmatpush1.msra.mxu0 0.0
    %439 = vmatprep.subr.mxu0 0.0
    %440 = vmatpush1.msra.mxu0 0.0
    %441 = vmatprep.subr.mxu0 0.0
    %442 = vmatpush1.msra.mxu0 0.0
    %443 = vmatprep.subr.mxu0 0.0
    %444 = vmatpush1.msra.mxu0 0.0
    %445 = vmatprep.subr.mxu0 0.0
    %446 = vmatpush1.msra.mxu0 0.0
    %447 = vmatprep.subr.mxu0 0.0
    %448 = vmatpush1.msra.mxu0 0.0
    %449 = vmatprep.subr.mxu0 0.0
    %450 = vmatpush1.msra.mxu0 0.0
    %451 = vmatprep.subr.mxu0 0.0
    %452 = vmatpush1.msra.mxu0 0.0
    %453 = vmatprep.subr.mxu0 0.0
    %454 = vmatpush1.msra.mxu0 0.0
    %455 = vmatprep.subr.mxu0 0.0
    %456 = vmatpush1.msra.mxu0 0.0
    %457 = vmatprep.mubr.f32.mxu0 0.0
    %v458 = vand.u32 %v72, 4294901760
    %459 = vmatmul.mubr.f32.gmra.mrb[0].mxu0 %v458
    %v460 = vpop.f32.mrb[0].mxu0
    %v461 = vadd.f32 %v383, %v460
    %v462 = vpop.f32.mrb[0].mxu0
    %v463 = vadd.f32 %v385, %v462
    %464 = vdwg.mxu0
    %v465 = vand.u32 %v49, 4294901760
    %466 = vmatprep.subr.mxu0 %v465
    %v467 = vand.u32 %v48, 4294901760
    %468 = vmatpush1.msra.mxu0 %v467
    %469 = vmatprep.subr.mxu0 0.0
    %470 = vmatpush1.msra.mxu0 0.0
    %471 = vmatprep.subr.mxu0 0.0
    %472 = vmatpush1.msra.mxu0 0.0
    %473 = vmatprep.subr.mxu0 0.0
    %474 = vmatpush1.msra.mxu0 0.0
    %475 = vmatprep.subr.mxu0 0.0
    %476 = vmatpush1.msra.mxu0 0.0
    %477 = vmatprep.subr.mxu0 0.0
    %478 = vmatpush1.msra.mxu0 0.0
    %479 = vmatprep.subr.mxu0 0.0
    %480 = vmatpush1.msra.mxu0 0.0
    %481 = vmatprep.subr.mxu0 0.0
    %482 = vmatpush1.msra.mxu0 0.0
    %483 = vmatprep.subr.mxu0 0.0
    %484 = vmatpush1.msra.mxu0 0.0
    %485 = vmatprep.subr.mxu0 0.0
    %486 = vmatpush1.msra.mxu0 0.0
    %487 = vmatprep.subr.mxu0 0.0
    %488 = vmatpush1.msra.mxu0 0.0
    %489 = vmatprep.subr.mxu0 0.0
    %490 = vmatpush1.msra.mxu0 0.0
    %491 = vmatprep.subr.mxu0 0.0
    %492 = vmatpush1.msra.mxu0 0.0
    %493 = vmatprep.subr.mxu0 0.0
    %494 = vmatpush1.msra.mxu0 0.0
    %495 = vmatprep.subr.mxu0 0.0
    %496 = vmatpush1.msra.mxu0 0.0
    %497 = vmatprep.subr.mxu0 0.0
    %498 = vmatpush1.msra.mxu0 0.0
    %499 = vmatprep.subr.mxu0 0.0
    %500 = vmatpush1.msra.mxu0 0.0
    %501 = vmatprep.subr.mxu0 0.0
    %502 = vmatpush1.msra.mxu0 0.0
    %503 = vmatprep.subr.mxu0 0.0
    %504 = vmatpush1.msra.mxu0 0.0
    %505 = vmatprep.subr.mxu0 0.0
    %506 = vmatpush1.msra.mxu0 0.0
    %507 = vmatprep.subr.mxu0 0.0
    %508 = vmatpush1.msra.mxu0 0.0
    %509 = vmatprep.subr.mxu0 0.0
    %510 = vmatpush1.msra.mxu0 0.0
    %511 = vmatprep.subr.mxu0 0.0
    %512 = vmatpush1.msra.mxu0 0.0
    %513 = vmatprep.subr.mxu0 0.0
    %514 = vmatpush1.msra.mxu0 0.0
    %515 = vmatprep.subr.mxu0 0.0
    %516 = vmatpush1.msra.mxu0 0.0
    %517 = vmatprep.subr.mxu0 0.0
    %518 = vmatpush1.msra.mxu0 0.0
    %519 = vmatprep.subr.mxu0 0.0
    %520 = vmatpush1.msra.mxu0 0.0
    %521 = vmatprep.subr.mxu0 0.0
    %522 = vmatpush1.msra.mxu0 0.0
    %523 = vmatprep.subr.mxu0 0.0
    %524 = vmatpush1.msra.mxu0 0.0
    %525 = vmatprep.subr.mxu0 0.0
    %526 = vmatpush1.msra.mxu0 0.0
    %527 = vmatprep.subr.mxu0 0.0
    %528 = vmatpush1.msra.mxu0 0.0
    %529 = vmatprep.subr.mxu0 0.0
    %530 = vmatpush1.msra.mxu0 0.0
    %531 = vmatprep.mubr.f32.mxu0 0.0
    %v532 = vand.u32 %v72, 4294901760
    %533 = vmatmul.mubr.f32.gmra.mrb[0].mxu0 %v532
    %v534 = vpop.f32.mrb[0].mxu0
    %v535 = vadd.f32 %v461, %v534
    %v536 = vpop.f32.mrb[0].mxu0
    %v537 = vadd.f32 %v463, %v536
    %538 = vdwg.mxu0
    %v539 = vand.u32 %v51, 4294901760
    %540 = vmatprep.subr.mxu0 %v539
    %v541 = vand.u32 %v50, 4294901760
    %542 = vmatpush1.msra.mxu0 %v541
    %543 = vmatprep.subr.mxu0 0.0
    %544 = vmatpush1.msra.mxu0 0.0
    %545 = vmatprep.subr.mxu0 0.0
    %546 = vmatpush1.msra.mxu0 0.0
    %547 = vmatprep.subr.mxu0 0.0
    %548 = vmatpush1.msra.mxu0 0.0
    %549 = vmatprep.subr.mxu0 0.0
    %550 = vmatpush1.msra.mxu0 0.0
    %551 = vmatprep.subr.mxu0 0.0
    %552 = vmatpush1.msra.mxu0 0.0
    %553 = vmatprep.subr.mxu0 0.0
    %554 = vmatpush1.msra.mxu0 0.0
    %555 = vmatprep.subr.mxu0 0.0
    %556 = vmatpush1.msra.mxu0 0.0
    %557 = vmatprep.subr.mxu0 0.0
    %558 = vmatpush1.msra.mxu0 0.0
    %559 = vmatprep.subr.mxu0 0.0
    %560 = vmatpush1.msra.mxu0 0.0
    %561 = vmatprep.subr.mxu0 0.0
    %562 = vmatpush1.msra.mxu0 0.0
    %563 = vmatprep.subr.mxu0 0.0
    %564 = vmatpush1.msra.mxu0 0.0
    %565 = vmatprep.subr.mxu0 0.0
    %566 = vmatpush1.msra.mxu0 0.0
    %567 = vmatprep.subr.mxu0 0.0
    %568 = vmatpush1.msra.mxu0 0.0
    %569 = vmatprep.subr.mxu0 0.0
    %570 = vmatpush1.msra.mxu0 0.0
    %571 = vmatprep.subr.mxu0 0.0
    %572 = vmatpush1.msra.mxu0 0.0
    %573 = vmatprep.subr.mxu0 0.0
    %574 = vmatpush1.msra.mxu0 0.0
    %575 = vmatprep.subr.mxu0 0.0
    %576 = vmatpush1.msra.mxu0 0.0
    %577 = vmatprep.subr.mxu0 0.0
    %578 = vmatpush1.msra.mxu0 0.0
    %579 = vmatprep.subr.mxu0 0.0
    %580 = vmatpush1.msra.mxu0 0.0
    %581 = vmatprep.subr.mxu0 0.0
    %582 = vmatpush1.msra.mxu0 0.0
    %583 = vmatprep.subr.mxu0 0.0
    %584 = vmatpush1.msra.mxu0 0.0
    %585 = vmatprep.subr.mxu0 0.0
    %586 = vmatpush1.msra.mxu0 0.0
    %587 = vmatprep.subr.mxu0 0.0
    %588 = vmatpush1.msra.mxu0 0.0
    %589 = vmatprep.subr.mxu0 0.0
    %590 = vmatpush1.msra.mxu0 0.0
    %591 = vmatprep.subr.mxu0 0.0
    %592 = vmatpush1.msra.mxu0 0.0
    %593 = vmatprep.subr.mxu0 0.0
    %594 = vmatpush1.msra.mxu0 0.0
    %595 = vmatprep.subr.mxu0 0.0
    %596 = vmatpush1.msra.mxu0 0.0
    %597 = vmatprep.subr.mxu0 0.0
    %598 = vmatpush1.msra.mxu0 0.0
    %599 = vmatprep.subr.mxu0 0.0
    %600 = vmatpush1.msra.mxu0 0.0
    %601 = vmatprep.subr.mxu0 0.0
    %602 = vmatpush1.msra.mxu0 0.0
    %603 = vmatprep.subr.mxu0 0.0
    %604 = vmatpush1.msra.mxu0 0.0
    %605 = vmatprep.mubr.f32.mxu0 0.0
    %v606 = vand.u32 %v72, 4294901760
    %v607 = vsub.f32 %v72, %v606
    %v608 = vand.u32 %v607, 4294901760
    %v609 = vsub.f32 %v607, %v608
    %v610 = vand.u32 %v609, 4294901760
    %611 = vmatmul.mubr.f32.gmra.mrb[0].mxu0 %v610
    %v612 = vpop.f32.mrb[0].mxu0
    %v613 = vadd.f32 %v68, %v612
    %v614 = vpop.f32.mrb[0].mxu0
    %v615 = vadd.f32 %v68, %v614
    %616 = vdwg.mxu0
    %v617 = vand.u32 %v51, 4294901760
    %v618 = vsub.f32 %v51, %v617
    %v619 = vand.u32 %v618, 4294901760
    %v620 = vsub.f32 %v618, %v619
    %v621 = vand.u32 %v620, 4294901760
    %622 = vmatprep.subr.mxu0 %v621
    %v623 = vand.u32 %v50, 4294901760
    %v624 = vsub.f32 %v50, %v623
    %v625 = vand.u32 %v624, 4294901760
    %v626 = vsub.f32 %v624, %v625
    %v627 = vand.u32 %v626, 4294901760
    %628 = vmatpush1.msra.mxu0 %v627
    %629 = vmatprep.subr.mxu0 0.0
    %630 = vmatpush1.msra.mxu0 0.0
    %631 = vmatprep.subr.mxu0 0.0
    %632 = vmatpush1.msra.mxu0 0.0
    %633 = vmatprep.subr.mxu0 0.0
    %634 = vmatpush1.msra.mxu0 0.0
    %635 = vmatprep.subr.mxu0 0.0
    %636 = vmatpush1.msra.mxu0 0.0
    %637 = vmatprep.subr.mxu0 0.0
    %638 = vmatpush1.msra.mxu0 0.0
    %639 = vmatprep.subr.mxu0 0.0
    %640 = vmatpush1.msra.mxu0 0.0
    %641 = vmatprep.subr.mxu0 0.0
    %642 = vmatpush1.msra.mxu0 0.0
    %643 = vmatprep.subr.mxu0 0.0
    %644 = vmatpush1.msra.mxu0 0.0
    %645 = vmatprep.subr.mxu0 0.0
    %646 = vmatpush1.msra.mxu0 0.0
    %647 = vmatprep.subr.mxu0 0.0
    %648 = vmatpush1.msra.mxu0 0.0
    %649 = vmatprep.subr.mxu0 0.0
    %650 = vmatpush1.msra.mxu0 0.0
    %651 = vmatprep.subr.mxu0 0.0
    %652 = vmatpush1.msra.mxu0 0.0
    %653 = vmatprep.subr.mxu0 0.0
    %654 = vmatpush1.msra.mxu0 0.0
    %655 = vmatprep.subr.mxu0 0.0
    %656 = vmatpush1.msra.mxu0 0.0
    %657 = vmatprep.subr.mxu0 0.0
    %658 = vmatpush1.msra.mxu0 0.0
    %659 = vmatprep.subr.mxu0 0.0
    %660 = vmatpush1.msra.mxu0 0.0
    %661 = vmatprep.subr.mxu0 0.0
    %662 = vmatpush1.msra.mxu0 0.0
    %663 = vmatprep.subr.mxu0 0.0
    %664 = vmatpush1.msra.mxu0 0.0
    %665 = vmatprep.subr.mxu0 0.0
    %666 = vmatpush1.msra.mxu0 0.0
    %667 = vmatprep.subr.mxu0 0.0
    %668 = vmatpush1.msra.mxu0 0.0
    %669 = vmatprep.subr.mxu0 0.0
    %670 = vmatpush1.msra.mxu0 0.0
    %671 = vmatprep.subr.mxu0 0.0
    %672 = vmatpush1.msra.mxu0 0.0
    %673 = vmatprep.subr.mxu0 0.0
    %674 = vmatpush1.msra.mxu0 0.0
    %675 = vmatprep.subr.mxu0 0.0
    %676 = vmatpush1.msra.mxu0 0.0
    %677 = vmatprep.subr.mxu0 0.0
    %678 = vmatpush1.msra.mxu0 0.0
    %679 = vmatprep.subr.mxu0 0.0
    %680 = vmatpush1.msra.mxu0 0.0
    %681 = vmatprep.subr.mxu0 0.0
    %682 = vmatpush1.msra.mxu0 0.0
    %683 = vmatprep.subr.mxu0 0.0
    %684 = vmatpush1.msra.mxu0 0.0
    %685 = vmatprep.subr.mxu0 0.0
    %686 = vmatpush1.msra.mxu0 0.0
    %687 = vmatprep.subr.mxu0 0.0
    %688 = vmatpush1.msra.mxu0 0.0
    %689 = vmatprep.subr.mxu0 0.0
    %690 = vmatpush1.msra.mxu0 0.0
    %691 = vmatprep.mubr.f32.mxu0 0.0
    %v692 = vand.u32 %v72, 4294901760
    %693 = vmatmul.mubr.f32.gmra.mrb[0].mxu0 %v692
    %v694 = vpop.f32.mrb[0].mxu0
    %v695 = vadd.f32 %v613, %v694
    %v696 = vpop.f32.mrb[0].mxu0
    %v697 = vadd.f32 %v615, %v696
    %698 = vdwg.mxu0
    %v699 = vand.u32 %v51, 4294901760
    %v700 = vsub.f32 %v51, %v699
    %701 = vmatprep.subr.mxu0 %v700
    %v702 = vand.u32 %v50, 4294901760
    %v703 = vsub.f32 %v50, %v702
    %704 = vmatpush1.msra.mxu0 %v703
    %705 = vmatprep.subr.mxu0 0.0
    %706 = vmatpush1.msra.mxu0 0.0
    %707 = vmatprep.subr.mxu0 0.0
    %708 = vmatpush1.msra.mxu0 0.0
    %709 = vmatprep.subr.mxu0 0.0
    %710 = vmatpush1.msra.mxu0 0.0
    %711 = vmatprep.subr.mxu0 0.0
    %712 = vmatpush1.msra.mxu0 0.0
    %713 = vmatprep.subr.mxu0 0.0
    %714 = vmatpush1.msra.mxu0 0.0
    %715 = vmatprep.subr.mxu0 0.0
    %716 = vmatpush1.msra.mxu0 0.0
    %717 = vmatprep.subr.mxu0 0.0
    %718 = vmatpush1.msra.mxu0 0.0
    %719 = vmatprep.subr.mxu0 0.0
    %720 = vmatpush1.msra.mxu0 0.0
    %721 = vmatprep.subr.mxu0 0.0
    %722 = vmatpush1.msra.mxu0 0.0
    %723 = vmatprep.subr.mxu0 0.0
    %724 = vmatpush1.msra.mxu0 0.0
    %725 = vmatprep.subr.mxu0 0.0
    %726 = vmatpush1.msra.mxu0 0.0
    %727 = vmatprep.subr.mxu0 0.0
    %728 = vmatpush1.msra.mxu0 0.0
    %729 = vmatprep.subr.mxu0 0.0
    %730 = vmatpush1.msra.mxu0 0.0
    %731 = vmatprep.subr.mxu0 0.0
    %732 = vmatpush1.msra.mxu0 0.0
    %733 = vmatprep.subr.mxu0 0.0
    %734 = vmatpush1.msra.mxu0 0.0
    %735 = vmatprep.subr.mxu0 0.0
    %736 = vmatpush1.msra.mxu0 0.0
    %737 = vmatprep.subr.mxu0 0.0
    %738 = vmatpush1.msra.mxu0 0.0
    %739 = vmatprep.subr.mxu0 0.0
    %740 = vmatpush1.msra.mxu0 0.0
    %741 = vmatprep.subr.mxu0 0.0
    %742 = vmatpush1.msra.mxu0 0.0
    %743 = vmatprep.subr.mxu0 0.0
    %744 = vmatpush1.msra.mxu0 0.0
    %745 = vmatprep.subr.mxu0 0.0
    %746 = vmatpush1.msra.mxu0 0.0
    %747 = vmatprep.subr.mxu0 0.0
    %748 = vmatpush1.msra.mxu0 0.0
    %749 = vmatprep.subr.mxu0 0.0
    %750 = vmatpush1.msra.mxu0 0.0
    %751 = vmatprep.subr.mxu0 0.0
    %752 = vmatpush1.msra.mxu0 0.0
    %753 = vmatprep.subr.mxu0 0.0
    %754 = vmatpush1.msra.mxu0 0.0
    %755 = vmatprep.subr.mxu0 0.0
    %756 = vmatpush1.msra.mxu0 0.0
    %757 = vmatprep.subr.mxu0 0.0
    %758 = vmatpush1.msra.mxu0 0.0
    %759 = vmatprep.subr.mxu0 0.0
    %760 = vmatpush1.msra.mxu0 0.0
    %761 = vmatprep.subr.mxu0 0.0
    %762 = vmatpush1.msra.mxu0 0.0
    %763 = vmatprep.subr.mxu0 0.0
    %764 = vmatpush1.msra.mxu0 0.0
    %765 = vmatprep.subr.mxu0 0.0
    %766 = vmatpush1.msra.mxu0 0.0
    %767 = vmatprep.mubr.f32.mxu0 0.0
    %v768 = vand.u32 %v72, 4294901760
    %v769 = vsub.f32 %v72, %v768
    %770 = vmatmul.mubr.f32.gmra.mrb[0].mxu0 %v769
    %v771 = vpop.f32.mrb[0].mxu0
    %v772 = vadd.f32 %v695, %v771
    %v773 = vpop.f32.mrb[0].mxu0
    %v774 = vadd.f32 %v697, %v773
    %775 = vdwg.mxu0
    %v776 = vand.u32 %v51, 4294901760
    %777 = vmatprep.subr.mxu0 %v776
    %v778 = vand.u32 %v50, 4294901760
    %779 = vmatpush1.msra.mxu0 %v778
    %780 = vmatprep.subr.mxu0 0.0
    %781 = vmatpush1.msra.mxu0 0.0
    %782 = vmatprep.subr.mxu0 0.0
    %783 = vmatpush1.msra.mxu0 0.0
    %784 = vmatprep.subr.mxu0 0.0
    %785 = vmatpush1.msra.mxu0 0.0
    %786 = vmatprep.subr.mxu0 0.0
    %787 = vmatpush1.msra.mxu0 0.0
    %788 = vmatprep.subr.mxu0 0.0
    %789 = vmatpush1.msra.mxu0 0.0
    %790 = vmatprep.subr.mxu0 0.0
    %791 = vmatpush1.msra.mxu0 0.0
    %792 = vmatprep.subr.mxu0 0.0
    %793 = vmatpush1.msra.mxu0 0.0
    %794 = vmatprep.subr.mxu0 0.0
    %795 = vmatpush1.msra.mxu0 0.0
    %796 = vmatprep.subr.mxu0 0.0
    %797 = vmatpush1.msra.mxu0 0.0
    %798 = vmatprep.subr.mxu0 0.0
    %799 = vmatpush1.msra.mxu0 0.0
    %800 = vmatprep.subr.mxu0 0.0
    %801 = vmatpush1.msra.mxu0 0.0
    %802 = vmatprep.subr.mxu0 0.0
    %803 = vmatpush1.msra.mxu0 0.0
    %804 = vmatprep.subr.mxu0 0.0
    %805 = vmatpush1.msra.mxu0 0.0
    %806 = vmatprep.subr.mxu0 0.0
    %807 = vmatpush1.msra.mxu0 0.0
    %808 = vmatprep.subr.mxu0 0.0
    %809 = vmatpush1.msra.mxu0 0.0
    %810 = vmatprep.subr.mxu0 0.0
    %811 = vmatpush1.msra.mxu0 0.0
    %812 = vmatprep.subr.mxu0 0.0
    %813 = vmatpush1.msra.mxu0 0.0
    %814 = vmatprep.subr.mxu0 0.0
    %815 = vmatpush1.msra.mxu0 0.0
    %816 = vmatprep.subr.mxu0 0.0
    %817 = vmatpush1.msra.mxu0 0.0
    %818 = vmatprep.subr.mxu0 0.0
    %819 = vmatpush1.msra.mxu0 0.0
    %820 = vmatprep.subr.mxu0 0.0
    %821 = vmatpush1.msra.mxu0 0.0
    %822 = vmatprep.subr.mxu0 0.0
    %823 = vmatpush1.msra.mxu0 0.0
    %824 = vmatprep.subr.mxu0 0.0
    %825 = vmatpush1.msra.mxu0 0.0
    %826 = vmatprep.subr.mxu0 0.0
    %827 = vmatpush1.msra.mxu0 0.0
    %828 = vmatprep.subr.mxu0 0.0
    %829 = vmatpush1.msra.mxu0 0.0
    %830 = vmatprep.subr.mxu0 0.0
    %831 = vmatpush1.msra.mxu0 0.0
    %832 = vmatprep.subr.mxu0 0.0
    %833 = vmatpush1.msra.mxu0 0.0
    %834 = vmatprep.subr.mxu0 0.0
    %835 = vmatpush1.msra.mxu0 0.0
    %836 = vmatprep.subr.mxu0 0.0
    %837 = vmatpush1.msra.mxu0 0.0
    %838 = vmatprep.subr.mxu0 0.0
    %839 = vmatpush1.msra.mxu0 0.0
    %840 = vmatprep.subr.mxu0 0.0
    %841 = vmatpush1.msra.mxu0 0.0
    %842 = vmatprep.mubr.f32.mxu0 0.0
    %v843 = vand.u32 %v72, 4294901760
    %v844 = vsub.f32 %v72, %v843
    %v845 = vand.u32 %v844, 4294901760
    %846 = vmatmul.mubr.f32.gmra.mrb[0].mxu0 %v845
    %v847 = vpop.f32.mrb[0].mxu0
    %v848 = vadd.f32 %v772, %v847
    %v849 = vpop.f32.mrb[0].mxu0
    %v850 = vadd.f32 %v774, %v849
    %851 = vdwg.mxu0
    %v852 = vand.u32 %v51, 4294901760
    %v853 = vsub.f32 %v51, %v852
    %v854 = vand.u32 %v853, 4294901760
    %855 = vmatprep.subr.mxu0 %v854
    %v856 = vand.u32 %v50, 4294901760
    %v857 = vsub.f32 %v50, %v856
    %v858 = vand.u32 %v857, 4294901760
    %859 = vmatpush1.msra.mxu0 %v858
    %860 = vmatprep.subr.mxu0 0.0
    %861 = vmatpush1.msra.mxu0 0.0
    %862 = vmatprep.subr.mxu0 0.0
    %863 = vmatpush1.msra.mxu0 0.0
    %864 = vmatprep.subr.mxu0 0.0
    %865 = vmatpush1.msra.mxu0 0.0
    %866 = vmatprep.subr.mxu0 0.0
    %867 = vmatpush1.msra.mxu0 0.0
    %868 = vmatprep.subr.mxu0 0.0
    %869 = vmatpush1.msra.mxu0 0.0
    %870 = vmatprep.subr.mxu0 0.0
    %871 = vmatpush1.msra.mxu0 0.0
    %872 = vmatprep.subr.mxu0 0.0
    %873 = vmatpush1.msra.mxu0 0.0
    %874 = vmatprep.subr.mxu0 0.0
    %875 = vmatpush1.msra.mxu0 0.0
    %876 = vmatprep.subr.mxu0 0.0
    %877 = vmatpush1.msra.mxu0 0.0
    %878 = vmatprep.subr.mxu0 0.0
    %879 = vmatpush1.msra.mxu0 0.0
    %880 = vmatprep.subr.mxu0 0.0
    %881 = vmatpush1.msra.mxu0 0.0
    %882 = vmatprep.subr.mxu0 0.0
    %883 = vmatpush1.msra.mxu0 0.0
    %884 = vmatprep.subr.mxu0 0.0
    %885 = vmatpush1.msra.mxu0 0.0
    %886 = vmatprep.subr.mxu0 0.0
    %887 = vmatpush1.msra.mxu0 0.0
    %888 = vmatprep.subr.mxu0 0.0
    %889 = vmatpush1.msra.mxu0 0.0
    %890 = vmatprep.subr.mxu0 0.0
    %891 = vmatpush1.msra.mxu0 0.0
    %892 = vmatprep.subr.mxu0 0.0
    %893 = vmatpush1.msra.mxu0 0.0
    %894 = vmatprep.subr.mxu0 0.0
    %895 = vmatpush1.msra.mxu0 0.0
    %896 = vmatprep.subr.mxu0 0.0
    %897 = vmatpush1.msra.mxu0 0.0
    %898 = vmatprep.subr.mxu0 0.0
    %899 = vmatpush1.msra.mxu0 0.0
    %900 = vmatprep.subr.mxu0 0.0
    %901 = vmatpush1.msra.mxu0 0.0
    %902 = vmatprep.subr.mxu0 0.0
    %903 = vmatpush1.msra.mxu0 0.0
    %904 = vmatprep.subr.mxu0 0.0
    %905 = vmatpush1.msra.mxu0 0.0
    %906 = vmatprep.subr.mxu0 0.0
    %907 = vmatpush1.msra.mxu0 0.0
    %908 = vmatprep.subr.mxu0 0.0
    %909 = vmatpush1.msra.mxu0 0.0
    %910 = vmatprep.subr.mxu0 0.0
    %911 = vmatpush1.msra.mxu0 0.0
    %912 = vmatprep.subr.mxu0 0.0
    %913 = vmatpush1.msra.mxu0 0.0
    %914 = vmatprep.subr.mxu0 0.0
    %915 = vmatpush1.msra.mxu0 0.0
    %916 = vmatprep.subr.mxu0 0.0
    %917 = vmatpush1.msra.mxu0 0.0
    %918 = vmatprep.subr.mxu0 0.0
    %919 = vmatpush1.msra.mxu0 0.0
    %920 = vmatprep.subr.mxu0 0.0
    %921 = vmatpush1.msra.mxu0 0.0
    %922 = vmatprep.mubr.f32.mxu0 0.0
    %v923 = vand.u32 %v72, 4294901760
    %924 = vmatmul.mubr.f32.gmra.mrb[0].mxu0 %v923
    %v925 = vpop.f32.mrb[0].mxu0
    %v926 = vadd.f32 %v848, %v925
    %v927 = vpop.f32.mrb[0].mxu0
    %v928 = vadd.f32 %v850, %v927
    %929 = vdwg.mxu0
    %v930 = vand.u32 %v51, 4294901760
    %931 = vmatprep.subr.mxu0 %v930
    %v932 = vand.u32 %v50, 4294901760
    %933 = vmatpush1.msra.mxu0 %v932
    %934 = vmatprep.subr.mxu0 0.0
    %935 = vmatpush1.msra.mxu0 0.0
    %936 = vmatprep.subr.mxu0 0.0
    %937 = vmatpush1.msra.mxu0 0.0
    %938 = vmatprep.subr.mxu0 0.0
    %939 = vmatpush1.msra.mxu0 0.0
    %940 = vmatprep.subr.mxu0 0.0
    %941 = vmatpush1.msra.mxu0 0.0
    %942 = vmatprep.subr.mxu0 0.0
    %943 = vmatpush1.msra.mxu0 0.0
    %944 = vmatprep.subr.mxu0 0.0
    %945 = vmatpush1.msra.mxu0 0.0
    %946 = vmatprep.subr.mxu0 0.0
    %947 = vmatpush1.msra.mxu0 0.0
    %948 = vmatprep.subr.mxu0 0.0
    %949 = vmatpush1.msra.mxu0 0.0
    %950 = vmatprep.subr.mxu0 0.0
    %951 = vmatpush1.msra.mxu0 0.0
    %952 = vmatprep.subr.mxu0 0.0
    %953 = vmatpush1.msra.mxu0 0.0
    %954 = vmatprep.subr.mxu0 0.0
    %955 = vmatpush1.msra.mxu0 0.0
    %956 = vmatprep.subr.mxu0 0.0
    %957 = vmatpush1.msra.mxu0 0.0
    %958 = vmatprep.subr.mxu0 0.0
    %959 = vmatpush1.msra.mxu0 0.0
    %960 = vmatprep.subr.mxu0 0.0
    %961 = vmatpush1.msra.mxu0 0.0
    %962 = vmatprep.subr.mxu0 0.0
    %963 = vmatpush1.msra.mxu0 0.0
    %964 = vmatprep.subr.mxu0 0.0
    %965 = vmatpush1.msra.mxu0 0.0
    %966 = vmatprep.subr.mxu0 0.0
    %967 = vmatpush1.msra.mxu0 0.0
    %968 = vmatprep.subr.mxu0 0.0
    %969 = vmatpush1.msra.mxu0 0.0
    %970 = vmatprep.subr.mxu0 0.0
    %971 = vmatpush1.msra.mxu0 0.0
    %972 = vmatprep.subr.mxu0 0.0
    %973 = vmatpush1.msra.mxu0 0.0
    %974 = vmatprep.subr.mxu0 0.0
    %975 = vmatpush1.msra.mxu0 0.0
    %976 = vmatprep.subr.mxu0 0.0
    %977 = vmatpush1.msra.mxu0 0.0
    %978 = vmatprep.subr.mxu0 0.0
    %979 = vmatpush1.msra.mxu0 0.0
    %980 = vmatprep.subr.mxu0 0.0
    %981 = vmatpush1.msra.mxu0 0.0
    %982 = vmatprep.subr.mxu0 0.0
    %983 = vmatpush1.msra.mxu0 0.0
    %984 = vmatprep.subr.mxu0 0.0
    %985 = vmatpush1.msra.mxu0 0.0
    %986 = vmatprep.subr.mxu0 0.0
    %987 = vmatpush1.msra.mxu0 0.0
    %988 = vmatprep.subr.mxu0 0.0
    %989 = vmatpush1.msra.mxu0 0.0
    %990 = vmatprep.subr.mxu0 0.0
    %991 = vmatpush1.msra.mxu0 0.0
    %992 = vmatprep.subr.mxu0 0.0
    %993 = vmatpush1.msra.mxu0 0.0
    %994 = vmatprep.subr.mxu0 0.0
    %995 = vmatpush1.msra.mxu0 0.0
    %996 = vmatprep.mubr.f32.mxu0 0.0
    %v997 = vand.u32 %v72, 4294901760
    %998 = vmatmul.mubr.f32.gmra.mrb[0].mxu0 %v997
    %v999 = vpop.f32.mrb[0].mxu0
    %v1000 = vadd.f32 %v926, %v999
    %v1001 = vpop.f32.mrb[0].mxu0
    %v1002 = vadd.f32 %v928, %v1001
    %1003 = vdwg.mxu0
    %v1004 = vand.u32 %v53, 4294901760
    %1005 = vmatprep.subr.mxu0 %v1004
    %v1006 = vand.u32 %v52, 4294901760
    %1007 = vmatpush1.msra.mxu0 %v1006
    %1008 = vmatprep.subr.mxu0 0.0
    %1009 = vmatpush1.msra.mxu0 0.0
    %1010 = vmatprep.subr.mxu0 0.0
    %1011 = vmatpush1.msra.mxu0 0.0
    %1012 = vmatprep.subr.mxu0 0.0
    %1013 = vmatpush1.msra.mxu0 0.0
    %1014 = vmatprep.subr.mxu0 0.0
    %1015 = vmatpush1.msra.mxu0 0.0
    %1016 = vmatprep.subr.mxu0 0.0
    %1017 = vmatpush1.msra.mxu0 0.0
    %1018 = vmatprep.subr.mxu0 0.0
    %1019 = vmatpush1.msra.mxu0 0.0
    %1020 = vmatprep.subr.mxu0 0.0
    %1021 = vmatpush1.msra.mxu0 0.0
    %1022 = vmatprep.subr.mxu0 0.0
    %1023 = vmatpush1.msra.mxu0 0.0
    %1024 = vmatprep.subr.mxu0 0.0
    %1025 = vmatpush1.msra.mxu0 0.0
    %1026 = vmatprep.subr.mxu0 0.0
    %1027 = vmatpush1.msra.mxu0 0.0
    %1028 = vmatprep.subr.mxu0 0.0
    %1029 = vmatpush1.msra.mxu0 0.0
    %1030 = vmatprep.subr.mxu0 0.0
    %1031 = vmatpush1.msra.mxu0 0.0
    %1032 = vmatprep.subr.mxu0 0.0
    %1033 = vmatpush1.msra.mxu0 0.0
    %1034 = vmatprep.subr.mxu0 0.0
    %1035 = vmatpush1.msra.mxu0 0.0
    %1036 = vmatprep.subr.mxu0 0.0
    %1037 = vmatpush1.msra.mxu0 0.0
    %1038 = vmatprep.subr.mxu0 0.0
    %1039 = vmatpush1.msra.mxu0 0.0
    %1040 = vmatprep.subr.mxu0 0.0
    %1041 = vmatpush1.msra.mxu0 0.0
    %1042 = vmatprep.subr.mxu0 0.0
    %1043 = vmatpush1.msra.mxu0 0.0
    %1044 = vmatprep.subr.mxu0 0.0
    %1045 = vmatpush1.msra.mxu0 0.0
    %1046 = vmatprep.subr.mxu0 0.0
    %1047 = vmatpush1.msra.mxu0 0.0
    %1048 = vmatprep.subr.mxu0 0.0
    %1049 = vmatpush1.msra.mxu0 0.0
    %1050 = vmatprep.subr.mxu0 0.0
    %1051 = vmatpush1.msra.mxu0 0.0
    %1052 = vmatprep.subr.mxu0 0.0
    %1053 = vmatpush1.msra.mxu0 0.0
    %1054 = vmatprep.subr.mxu0 0.0
    %1055 = vmatpush1.msra.mxu0 0.0
    %1056 = vmatprep.subr.mxu0 0.0
    %1057 = vmatpush1.msra.mxu0 0.0
    %1058 = vmatprep.subr.mxu0 0.0
    %1059 = vmatpush1.msra.mxu0 0.0
    %1060 = vmatprep.subr.mxu0 0.0
    %1061 = vmatpush1.msra.mxu0 0.0
    %1062 = vmatprep.subr.mxu0 0.0
    %1063 = vmatpush1.msra.mxu0 0.0
    %1064 = vmatprep.subr.mxu0 0.0
    %1065 = vmatpush1.msra.mxu0 0.0
    %1066 = vmatprep.subr.mxu0 0.0
    %1067 = vmatpush1.msra.mxu0 0.0
    %1068 = vmatprep.subr.mxu0 0.0
    %1069 = vmatpush1.msra.mxu0 0.0
    %1070 = vmatprep.mubr.f32.mxu0 0.0
    %v1071 = vand.u32 %v72, 4294901760
    %v1072 = vsub.f32 %v72, %v1071
    %v1073 = vand.u32 %v1072, 4294901760
    %v1074 = vsub.f32 %v1072, %v1073
    %v1075 = vand.u32 %v1074, 4294901760
    %1076 = vmatmul.mubr.f32.gmra.mrb[0].mxu0 %v1075
    %v1077 = vpop.f32.mrb[0].mxu0
    %v1078 = vadd.f32 %v68, %v1077
    %v1079 = vpop.f32.mrb[0].mxu0
    %v1080 = vadd.f32 %v68, %v1079
    %1081 = vdwg.mxu0
    %v1082 = vand.u32 %v53, 4294901760
    %v1083 = vsub.f32 %v53, %v1082
    %v1084 = vand.u32 %v1083, 4294901760
    %v1085 = vsub.f32 %v1083, %v1084
    %v1086 = vand.u32 %v1085, 4294901760
    %1087 = vmatprep.subr.mxu0 %v1086
    %v1088 = vand.u32 %v52, 4294901760
    %v1089 = vsub.f32 %v52, %v1088
    %v1090 = vand.u32 %v1089, 4294901760
    %v1091 = vsub.f32 %v1089, %v1090
    %v1092 = vand.u32 %v1091, 4294901760
    %1093 = vmatpush1.msra.mxu0 %v1092
    %1094 = vmatprep.subr.mxu0 0.0
    %1095 = vmatpush1.msra.mxu0 0.0
    %1096 = vmatprep.subr.mxu0 0.0
    %1097 = vmatpush1.msra.mxu0 0.0
    %1098 = vmatprep.subr.mxu0 0.0
    %1099 = vmatpush1.msra.mxu0 0.0
    %1100 = vmatprep.subr.mxu0 0.0
    %1101 = vmatpush1.msra.mxu0 0.0
    %1102 = vmatprep.subr.mxu0 0.0
    %1103 = vmatpush1.msra.mxu0 0.0
    %1104 = vmatprep.subr.mxu0 0.0
    %1105 = vmatpush1.msra.mxu0 0.0
    %1106 = vmatprep.subr.mxu0 0.0
    %1107 = vmatpush1.msra.mxu0 0.0
    %1108 = vmatprep.subr.mxu0 0.0
    %1109 = vmatpush1.msra.mxu0 0.0
    %1110 = vmatprep.subr.mxu0 0.0
    %1111 = vmatpush1.msra.mxu0 0.0
    %1112 = vmatprep.subr.mxu0 0.0
    %1113 = vmatpush1.msra.mxu0 0.0
    %1114 = vmatprep.subr.mxu0 0.0
    %1115 = vmatpush1.msra.mxu0 0.0
    %1116 = vmatprep.subr.mxu0 0.0
    %1117 = vmatpush1.msra.mxu0 0.0
    %1118 = vmatprep.subr.mxu0 0.0
    %1119 = vmatpush1.msra.mxu0 0.0
    %1120 = vmatprep.subr.mxu0 0.0
    %1121 = vmatpush1.msra.mxu0 0.0
    %1122 = vmatprep.subr.mxu0 0.0
    %1123 = vmatpush1.msra.mxu0 0.0
    %1124 = vmatprep.subr.mxu0 0.0
    %1125 = vmatpush1.msra.mxu0 0.0
    %1126 = vmatprep.subr.mxu0 0.0
    %1127 = vmatpush1.msra.mxu0 0.0
    %1128 = vmatprep.subr.mxu0 0.0
    %1129 = vmatpush1.msra.mxu0 0.0
    %1130 = vmatprep.subr.mxu0 0.0
    %1131 = vmatpush1.msra.mxu0 0.0
    %1132 = vmatprep.subr.mxu0 0.0
    %1133 = vmatpush1.msra.mxu0 0.0
    %1134 = vmatprep.subr.mxu0 0.0
    %1135 = vmatpush1.msra.mxu0 0.0
    %1136 = vmatprep.subr.mxu0 0.0
    %1137 = vmatpush1.msra.mxu0 0.0
    %1138 = vmatprep.subr.mxu0 0.0
    %1139 = vmatpush1.msra.mxu0 0.0
    %1140 = vmatprep.subr.mxu0 0.0
    %1141 = vmatpush1.msra.mxu0 0.0
    %1142 = vmatprep.subr.mxu0 0.0
    %1143 = vmatpush1.msra.mxu0 0.0
    %1144 = vmatprep.subr.mxu0 0.0
    %1145 = vmatpush1.msra.mxu0 0.0
    %1146 = vmatprep.subr.mxu0 0.0
    %1147 = vmatpush1.msra.mxu0 0.0
    %1148 = vmatprep.subr.mxu0 0.0
    %1149 = vmatpush1.msra.mxu0 0.0
    %1150 = vmatprep.subr.mxu0 0.0
    %1151 = vmatpush1.msra.mxu0 0.0
    %1152 = vmatprep.subr.mxu0 0.0
    %1153 = vmatpush1.msra.mxu0 0.0
    %1154 = vmatprep.subr.mxu0 0.0
    %1155 = vmatpush1.msra.mxu0 0.0
    %1156 = vmatprep.mubr.f32.mxu0 0.0
    %v1157 = vand.u32 %v72, 4294901760
    %1158 = vmatmul.mubr.f32.gmra.mrb[0].mxu0 %v1157
    %v1159 = vpop.f32.mrb[0].mxu0
    %v1160 = vadd.f32 %v1078, %v1159
    %v1161 = vpop.f32.mrb[0].mxu0
    %v1162 = vadd.f32 %v1080, %v1161
    %1163 = vdwg.mxu0
    %v1164 = vand.u32 %v53, 4294901760
    %v1165 = vsub.f32 %v53, %v1164
    %1166 = vmatprep.subr.mxu0 %v1165
    %v1167 = vand.u32 %v52, 4294901760
    %v1168 = vsub.f32 %v52, %v1167
    %1169 = vmatpush1.msra.mxu0 %v1168
    %1170 = vmatprep.subr.mxu0 0.0
    %1171 = vmatpush1.msra.mxu0 0.0
    %1172 = vmatprep.subr.mxu0 0.0
    %1173 = vmatpush1.msra.mxu0 0.0
    %1174 = vmatprep.subr.mxu0 0.0
    %1175 = vmatpush1.msra.mxu0 0.0
    %1176 = vmatprep.subr.mxu0 0.0
    %1177 = vmatpush1.msra.mxu0 0.0
    %1178 = vmatprep.subr.mxu0 0.0
    %1179 = vmatpush1.msra.mxu0 0.0
    %1180 = vmatprep.subr.mxu0 0.0
    %1181 = vmatpush1.msra.mxu0 0.0
    %1182 = vmatprep.subr.mxu0 0.0
    %1183 = vmatpush1.msra.mxu0 0.0
    %1184 = vmatprep.subr.mxu0 0.0
    %1185 = vmatpush1.msra.mxu0 0.0
    %1186 = vmatprep.subr.mxu0 0.0
    %1187 = vmatpush1.msra.mxu0 0.0
    %1188 = vmatprep.subr.mxu0 0.0
    %1189 = vmatpush1.msra.mxu0 0.0
    %1190 = vmatprep.subr.mxu0 0.0
    %1191 = vmatpush1.msra.mxu0 0.0
    %1192 = vmatprep.subr.mxu0 0.0
    %1193 = vmatpush1.msra.mxu0 0.0
    %1194 = vmatprep.subr.mxu0 0.0
    %1195 = vmatpush1.msra.mxu0 0.0
    %1196 = vmatprep.subr.mxu0 0.0
    %1197 = vmatpush1.msra.mxu0 0.0
    %1198 = vmatprep.subr.mxu0 0.0
    %1199 = vmatpush1.msra.mxu0 0.0
    %1200 = vmatprep.subr.mxu0 0.0
    %1201 = vmatpush1.msra.mxu0 0.0
    %1202 = vmatprep.subr.mxu0 0.0
    %1203 = vmatpush1.msra.mxu0 0.0
    %1204 = vmatprep.subr.mxu0 0.0
    %1205 = vmatpush1.msra.mxu0 0.0
    %1206 = vmatprep.subr.mxu0 0.0
    %1207 = vmatpush1.msra.mxu0 0.0
    %1208 = vmatprep.subr.mxu0 0.0
    %1209 = vmatpush1.msra.mxu0 0.0
    %1210 = vmatprep.subr.mxu0 0.0
    %1211 = vmatpush1.msra.mxu0 0.0
    %1212 = vmatprep.subr.mxu0 0.0
    %1213 = vmatpush1.msra.mxu0 0.0
    %1214 = vmatprep.subr.mxu0 0.0
    %1215 = vmatpush1.msra.mxu0 0.0
    %1216 = vmatprep.subr.mxu0 0.0
    %1217 = vmatpush1.msra.mxu0 0.0
    %1218 = vmatprep.subr.mxu0 0.0
    %1219 = vmatpush1.msra.mxu0 0.0
    %1220 = vmatprep.subr.mxu0 0.0
    %1221 = vmatpush1.msra.mxu0 0.0
    %1222 = vmatprep.subr.mxu0 0.0
    %1223 = vmatpush1.msra.mxu0 0.0
    %1224 = vmatprep.subr.mxu0 0.0
    %1225 = vmatpush1.msra.mxu0 0.0
    %1226 = vmatprep.subr.mxu0 0.0
    %1227 = vmatpush1.msra.mxu0 0.0
    %1228 = vmatprep.subr.mxu0 0.0
    %1229 = vmatpush1.msra.mxu0 0.0
    %1230 = vmatprep.subr.mxu0 0.0
    %1231 = vmatpush1.msra.mxu0 0.0
    %1232 = vmatprep.mubr.f32.mxu0 0.0
    %v1233 = vand.u32 %v72, 4294901760
    %v1234 = vsub.f32 %v72, %v1233
    %1235 = vmatmul.mubr.f32.gmra.mrb[0].mxu0 %v1234
    %v1236 = vpop.f32.mrb[0].mxu0
    %v1237 = vadd.f32 %v1160, %v1236
    %v1238 = vpop.f32.mrb[0].mxu0
    %v1239 = vadd.f32 %v1162, %v1238
    %1240 = vdwg.mxu0
    %v1241 = vand.u32 %v53, 4294901760
    %1242 = vmatprep.subr.mxu0 %v1241
    %v1243 = vand.u32 %v52, 4294901760
    %1244 = vmatpush1.msra.mxu0 %v1243
    %1245 = vmatprep.subr.mxu0 0.0
    %1246 = vmatpush1.msra.mxu0 0.0
    %1247 = vmatprep.subr.mxu0 0.0
    %1248 = vmatpush1.msra.mxu0 0.0
    %1249 = vmatprep.subr.mxu0 0.0
    %1250 = vmatpush1.msra.mxu0 0.0
    %1251 = vmatprep.subr.mxu0 0.0
    %1252 = vmatpush1.msra.mxu0 0.0
    %1253 = vmatprep.subr.mxu0 0.0
    %1254 = vmatpush1.msra.mxu0 0.0
    %1255 = vmatprep.subr.mxu0 0.0
    %1256 = vmatpush1.msra.mxu0 0.0
    %1257 = vmatprep.subr.mxu0 0.0
    %1258 = vmatpush1.msra.mxu0 0.0
    %1259 = vmatprep.subr.mxu0 0.0
    %1260 = vmatpush1.msra.mxu0 0.0
    %1261 = vmatprep.subr.mxu0 0.0
    %1262 = vmatpush1.msra.mxu0 0.0
    %1263 = vmatprep.subr.mxu0 0.0
    %1264 = vmatpush1.msra.mxu0 0.0
    %1265 = vmatprep.subr.mxu0 0.0
    %1266 = vmatpush1.msra.mxu0 0.0
    %1267 = vmatprep.subr.mxu0 0.0
    %1268 = vmatpush1.msra.mxu0 0.0
    %1269 = vmatprep.subr.mxu0 0.0
    %1270 = vmatpush1.msra.mxu0 0.0
    %1271 = vmatprep.subr.mxu0 0.0
    %1272 = vmatpush1.msra.mxu0 0.0
    %1273 = vmatprep.subr.mxu0 0.0
    %1274 = vmatpush1.msra.mxu0 0.0
    %1275 = vmatprep.subr.mxu0 0.0
    %1276 = vmatpush1.msra.mxu0 0.0
    %1277 = vmatprep.subr.mxu0 0.0
    %1278 = vmatpush1.msra.mxu0 0.0
    %1279 = vmatprep.subr.mxu0 0.0
    %1280 = vmatpush1.msra.mxu0 0.0
    %1281 = vmatprep.subr.mxu0 0.0
    %1282 = vmatpush1.msra.mxu0 0.0
    %1283 = vmatprep.subr.mxu0 0.0
    %1284 = vmatpush1.msra.mxu0 0.0
    %1285 = vmatprep.subr.mxu0 0.0
    %1286 = vmatpush1.msra.mxu0 0.0
    %1287 = vmatprep.subr.mxu0 0.0
    %1288 = vmatpush1.msra.mxu0 0.0
    %1289 = vmatprep.subr.mxu0 0.0
    %1290 = vmatpush1.msra.mxu0 0.0
    %1291 = vmatprep.subr.mxu0 0.0
    %1292 = vmatpush1.msra.mxu0 0.0
    %1293 = vmatprep.subr.mxu0 0.0
    %1294 = vmatpush1.msra.mxu0 0.0
    %1295 = vmatprep.subr.mxu0 0.0
    %1296 = vmatpush1.msra.mxu0 0.0
    %1297 = vmatprep.subr.mxu0 0.0
    %1298 = vmatpush1.msra.mxu0 0.0
    %1299 = vmatprep.subr.mxu0 0.0
    %1300 = vmatpush1.msra.mxu0 0.0
    %1301 = vmatprep.subr.mxu0 0.0
    %1302 = vmatpush1.msra.mxu0 0.0
    %1303 = vmatprep.subr.mxu0 0.0
    %1304 = vmatpush1.msra.mxu0 0.0
    %1305 = vmatprep.subr.mxu0 0.0
    %1306 = vmatpush1.msra.mxu0 0.0
    %1307 = vmatprep.mubr.f32.mxu0 0.0
    %v1308 = vand.u32 %v72, 4294901760
    %v1309 = vsub.f32 %v72, %v1308
    %v1310 = vand.u32 %v1309, 4294901760
    %1311 = vmatmul.mubr.f32.gmra.mrb[0].mxu0 %v1310
    %v1312 = vpop.f32.mrb[0].mxu0
    %v1313 = vadd.f32 %v1237, %v1312
    %v1314 = vpop.f32.mrb[0].mxu0
    %v1315 = vadd.f32 %v1239, %v1314
    %1316 = vdwg.mxu0
    %v1317 = vand.u32 %v53, 4294901760
    %v1318 = vsub.f32 %v53, %v1317
    %v1319 = vand.u32 %v1318, 4294901760
    %1320 = vmatprep.subr.mxu0 %v1319
    %v1321 = vand.u32 %v52, 4294901760
    %v1322 = vsub.f32 %v52, %v1321
    %v1323 = vand.u32 %v1322, 4294901760
    %1324 = vmatpush1.msra.mxu0 %v1323
    %1325 = vmatprep.subr.mxu0 0.0
    %1326 = vmatpush1.msra.mxu0 0.0
    %1327 = vmatprep.subr.mxu0 0.0
    %1328 = vmatpush1.msra.mxu0 0.0
    %1329 = vmatprep.subr.mxu0 0.0
    %1330 = vmatpush1.msra.mxu0 0.0
    %1331 = vmatprep.subr.mxu0 0.0
    %1332 = vmatpush1.msra.mxu0 0.0
    %1333 = vmatprep.subr.mxu0 0.0
    %1334 = vmatpush1.msra.mxu0 0.0
    %1335 = vmatprep.subr.mxu0 0.0
    %1336 = vmatpush1.msra.mxu0 0.0
    %1337 = vmatprep.subr.mxu0 0.0
    %1338 = vmatpush1.msra.mxu0 0.0
    %1339 = vmatprep.subr.mxu0 0.0
    %1340 = vmatpush1.msra.mxu0 0.0
    %1341 = vmatprep.subr.mxu0 0.0
    %1342 = vmatpush1.msra.mxu0 0.0
    %1343 = vmatprep.subr.mxu0 0.0
    %1344 = vmatpush1.msra.mxu0 0.0
    %1345 = vmatprep.subr.mxu0 0.0
    %1346 = vmatpush1.msra.mxu0 0.0
    %1347 = vmatprep.subr.mxu0 0.0
    %1348 = vmatpush1.msra.mxu0 0.0
    %1349 = vmatprep.subr.mxu0 0.0
    %1350 = vmatpush1.msra.mxu0 0.0
    %1351 = vmatprep.subr.mxu0 0.0
    %1352 = vmatpush1.msra.mxu0 0.0
    %1353 = vmatprep.subr.mxu0 0.0
    %1354 = vmatpush1.msra.mxu0 0.0
    %1355 = vmatprep.subr.mxu0 0.0
    %1356 = vmatpush1.msra.mxu0 0.0
    %1357 = vmatprep.subr.mxu0 0.0
    %1358 = vmatpush1.msra.mxu0 0.0
    %1359 = vmatprep.subr.mxu0 0.0
    %1360 = vmatpush1.msra.mxu0 0.0
    %1361 = vmatprep.subr.mxu0 0.0
    %1362 = vmatpush1.msra.mxu0 0.0
    %1363 = vmatprep.subr.mxu0 0.0
    %1364 = vmatpush1.msra.mxu0 0.0
    %1365 = vmatprep.subr.mxu0 0.0
    %1366 = vmatpush1.msra.mxu0 0.0
    %1367 = vmatprep.subr.mxu0 0.0
    %1368 = vmatpush1.msra.mxu0 0.0
    %1369 = vmatprep.subr.mxu0 0.0
    %1370 = vmatpush1.msra.mxu0 0.0
    %1371 = vmatprep.subr.mxu0 0.0
    %1372 = vmatpush1.msra.mxu0 0.0
    %1373 = vmatprep.subr.mxu0 0.0
    %1374 = vmatpush1.msra.mxu0 0.0
    %1375 = vmatprep.subr.mxu0 0.0
    %1376 = vmatpush1.msra.mxu0 0.0
    %1377 = vmatprep.subr.mxu0 0.0
    %1378 = vmatpush1.msra.mxu0 0.0
    %1379 = vmatprep.subr.mxu0 0.0
    %1380 = vmatpush1.msra.mxu0 0.0
    %1381 = vmatprep.subr.mxu0 0.0
    %1382 = vmatpush1.msra.mxu0 0.0
    %1383 = vmatprep.subr.mxu0 0.0
    %1384 = vmatpush1.msra.mxu0 0.0
    %1385 = vmatprep.subr.mxu0 0.0
    %1386 = vmatpush1.msra.mxu0 0.0
    %1387 = vmatprep.mubr.f32.mxu0 0.0
    %v1388 = vand.u32 %v72, 4294901760
    %1389 = vmatmul.mubr.f32.gmra.mrb[0].mxu0 %v1388
    %v1390 = vpop.f32.mrb[0].mxu0
    %v1391 = vadd.f32 %v1313, %v1390
    %v1392 = vpop.f32.mrb[0].mxu0
    %v1393 = vadd.f32 %v1315, %v1392
    %1394 = vdwg.mxu0
    %v1395 = vand.u32 %v53, 4294901760
    %1396 = vmatprep.subr.mxu0 %v1395
    %v1397 = vand.u32 %v52, 4294901760
    %1398 = vmatpush1.msra.mxu0 %v1397
    %1399 = vmatprep.subr.mxu0 0.0
    %1400 = vmatpush1.msra.mxu0 0.0
    %1401 = vmatprep.subr.mxu0 0.0
    %1402 = vmatpush1.msra.mxu0 0.0
    %1403 = vmatprep.subr.mxu0 0.0
    %1404 = vmatpush1.msra.mxu0 0.0
    %1405 = vmatprep.subr.mxu0 0.0
    %1406 = vmatpush1.msra.mxu0 0.0
    %1407 = vmatprep.subr.mxu0 0.0
    %1408 = vmatpush1.msra.mxu0 0.0
    %1409 = vmatprep.subr.mxu0 0.0
    %1410 = vmatpush1.msra.mxu0 0.0
    %1411 = vmatprep.subr.mxu0 0.0
    %1412 = vmatpush1.msra.mxu0 0.0
    %1413 = vmatprep.subr.mxu0 0.0
    %1414 = vmatpush1.msra.mxu0 0.0
    %1415 = vmatprep.subr.mxu0 0.0
    %1416 = vmatpush1.msra.mxu0 0.0
    %1417 = vmatprep.subr.mxu0 0.0
    %1418 = vmatpush1.msra.mxu0 0.0
    %1419 = vmatprep.subr.mxu0 0.0
    %1420 = vmatpush1.msra.mxu0 0.0
    %1421 = vmatprep.subr.mxu0 0.0
    %1422 = vmatpush1.msra.mxu0 0.0
    %1423 = vmatprep.subr.mxu0 0.0
    %1424 = vmatpush1.msra.mxu0 0.0
    %1425 = vmatprep.subr.mxu0 0.0
    %1426 = vmatpush1.msra.mxu0 0.0
    %1427 = vmatprep.subr.mxu0 0.0
    %1428 = vmatpush1.msra.mxu0 0.0
    %1429 = vmatprep.subr.mxu0 0.0
    %1430 = vmatpush1.msra.mxu0 0.0
    %1431 = vmatprep.subr.mxu0 0.0
    %1432 = vmatpush1.msra.mxu0 0.0
    %1433 = vmatprep.subr.mxu0 0.0
    %1434 = vmatpush1.msra.mxu0 0.0
    %1435 = vmatprep.subr.mxu0 0.0
    %1436 = vmatpush1.msra.mxu0 0.0
    %1437 = vmatprep.subr.mxu0 0.0
    %1438 = vmatpush1.msra.mxu0 0.0
    %1439 = vmatprep.subr.mxu0 0.0
    %1440 = vmatpush1.msra.mxu0 0.0
    %1441 = vmatprep.subr.mxu0 0.0
    %1442 = vmatpush1.msra.mxu0 0.0
    %1443 = vmatprep.subr.mxu0 0.0
    %1444 = vmatpush1.msra.mxu0 0.0
    %1445 = vmatprep.subr.mxu0 0.0
    %1446 = vmatpush1.msra.mxu0 0.0
    %1447 = vmatprep.subr.mxu0 0.0
    %1448 = vmatpush1.msra.mxu0 0.0
    %1449 = vmatprep.subr.mxu0 0.0
    %1450 = vmatpush1.msra.mxu0 0.0
    %1451 = vmatprep.subr.mxu0 0.0
    %1452 = vmatpush1.msra.mxu0 0.0
    %1453 = vmatprep.subr.mxu0 0.0
    %1454 = vmatpush1.msra.mxu0 0.0
    %1455 = vmatprep.subr.mxu0 0.0
    %1456 = vmatpush1.msra.mxu0 0.0
    %1457 = vmatprep.subr.mxu0 0.0
    %1458 = vmatpush1.msra.mxu0 0.0
    %1459 = vmatprep.subr.mxu0 0.0
    %1460 = vmatpush1.msra.mxu0 0.0
    %1461 = vmatprep.mubr.f32.mxu0 0.0
    %v1462 = vand.u32 %v72, 4294901760
    %1463 = vmatmul.mubr.f32.gmra.mrb[0].mxu0 %v1462
    %v1464 = vpop.f32.mrb[0].mxu0
    %v1465 = vadd.f32 %v1391, %v1464
    %v1466 = vpop.f32.mrb[0].mxu0
    %v1467 = vadd.f32 %v1393, %v1466
    %1468 = vdwg.mxu0
    %v1469 = vand.u32 %v55, 4294901760
    %1470 = vmatprep.subr.mxu0 %v1469
    %v1471 = vand.u32 %v54, 4294901760
    %1472 = vmatpush1.msra.mxu0 %v1471
    %1473 = vmatprep.subr.mxu0 0.0
    %1474 = vmatpush1.msra.mxu0 0.0
    %1475 = vmatprep.subr.mxu0 0.0
    %1476 = vmatpush1.msra.mxu0 0.0
    %1477 = vmatprep.subr.mxu0 0.0
    %1478 = vmatpush1.msra.mxu0 0.0
    %1479 = vmatprep.subr.mxu0 0.0
    %1480 = vmatpush1.msra.mxu0 0.0
    %1481 = vmatprep.subr.mxu0 0.0
    %1482 = vmatpush1.msra.mxu0 0.0
    %1483 = vmatprep.subr.mxu0 0.0
    %1484 = vmatpush1.msra.mxu0 0.0
    %1485 = vmatprep.subr.mxu0 0.0
    %1486 = vmatpush1.msra.mxu0 0.0
    %1487 = vmatprep.subr.mxu0 0.0
    %1488 = vmatpush1.msra.mxu0 0.0
    %1489 = vmatprep.subr.mxu0 0.0
    %1490 = vmatpush1.msra.mxu0 0.0
    %1491 = vmatprep.subr.mxu0 0.0
    %1492 = vmatpush1.msra.mxu0 0.0
    %1493 = vmatprep.subr.mxu0 0.0
    %1494 = vmatpush1.msra.mxu0 0.0
    %1495 = vmatprep.subr.mxu0 0.0
    %1496 = vmatpush1.msra.mxu0 0.0
    %1497 = vmatprep.subr.mxu0 0.0
    %1498 = vmatpush1.msra.mxu0 0.0
    %1499 = vmatprep.subr.mxu0 0.0
    %1500 = vmatpush1.msra.mxu0 0.0
    %1501 = vmatprep.subr.mxu0 0.0
    %1502 = vmatpush1.msra.mxu0 0.0
    %1503 = vmatprep.subr.mxu0 0.0
    %1504 = vmatpush1.msra.mxu0 0.0
    %1505 = vmatprep.subr.mxu0 0.0
    %1506 = vmatpush1.msra.mxu0 0.0
    %1507 = vmatprep.subr.mxu0 0.0
    %1508 = vmatpush1.msra.mxu0 0.0
    %1509 = vmatprep.subr.mxu0 0.0
    %1510 = vmatpush1.msra.mxu0 0.0
    %1511 = vmatprep.subr.mxu0 0.0
    %1512 = vmatpush1.msra.mxu0 0.0
    %1513 = vmatprep.subr.mxu0 0.0
    %1514 = vmatpush1.msra.mxu0 0.0
    %1515 = vmatprep.subr.mxu0 0.0
    %1516 = vmatpush1.msra.mxu0 0.0
    %1517 = vmatprep.subr.mxu0 0.0
    %1518 = vmatpush1.msra.mxu0 0.0
    %1519 = vmatprep.subr.mxu0 0.0
    %1520 = vmatpush1.msra.mxu0 0.0
    %1521 = vmatprep.subr.mxu0 0.0
    %1522 = vmatpush1.msra.mxu0 0.0
    %1523 = vmatprep.subr.mxu0 0.0
    %1524 = vmatpush1.msra.mxu0 0.0
    %1525 = vmatprep.subr.mxu0 0.0
    %1526 = vmatpush1.msra.mxu0 0.0
    %1527 = vmatprep.subr.mxu0 0.0
    %1528 = vmatpush1.msra.mxu0 0.0
    %1529 = vmatprep.subr.mxu0 0.0
    %1530 = vmatpush1.msra.mxu0 0.0
    %1531 = vmatprep.subr.mxu0 0.0
    %1532 = vmatpush1.msra.mxu0 0.0
    %1533 = vmatprep.subr.mxu0 0.0
    %1534 = vmatpush1.msra.mxu0 0.0
    %1535 = vmatprep.mubr.f32.mxu0 0.0
    %v1536 = vand.u32 %v72, 4294901760
    %v1537 = vsub.f32 %v72, %v1536
    %v1538 = vand.u32 %v1537, 4294901760
    %v1539 = vsub.f32 %v1537, %v1538
    %v1540 = vand.u32 %v1539, 4294901760
    %1541 = vmatmul.mubr.f32.gmra.mrb[0].mxu0 %v1540
    %v1542 = vpop.f32.mrb[0].mxu0
    %v1543 = vadd.f32 %v68, %v1542
    %v1544 = vpop.f32.mrb[0].mxu0
    %v1545 = vadd.f32 %v68, %v1544
    %1546 = vdwg.mxu0
    %v1547 = vand.u32 %v55, 4294901760
    %v1548 = vsub.f32 %v55, %v1547
    %v1549 = vand.u32 %v1548, 4294901760
    %v1550 = vsub.f32 %v1548, %v1549
    %v1551 = vand.u32 %v1550, 4294901760
    %1552 = vmatprep.subr.mxu0 %v1551
    %v1553 = vand.u32 %v54, 4294901760
    %v1554 = vsub.f32 %v54, %v1553
    %v1555 = vand.u32 %v1554, 4294901760
    %v1556 = vsub.f32 %v1554, %v1555
    %v1557 = vand.u32 %v1556, 4294901760
    %1558 = vmatpush1.msra.mxu0 %v1557
    %1559 = vmatprep.subr.mxu0 0.0
    %1560 = vmatpush1.msra.mxu0 0.0
    %1561 = vmatprep.subr.mxu0 0.0
    %1562 = vmatpush1.msra.mxu0 0.0
    %1563 = vmatprep.subr.mxu0 0.0
    %1564 = vmatpush1.msra.mxu0 0.0
    %1565 = vmatprep.subr.mxu0 0.0
    %1566 = vmatpush1.msra.mxu0 0.0
    %1567 = vmatprep.subr.mxu0 0.0
    %1568 = vmatpush1.msra.mxu0 0.0
    %1569 = vmatprep.subr.mxu0 0.0
    %1570 = vmatpush1.msra.mxu0 0.0
    %1571 = vmatprep.subr.mxu0 0.0
    %1572 = vmatpush1.msra.mxu0 0.0
    %1573 = vmatprep.subr.mxu0 0.0
    %1574 = vmatpush1.msra.mxu0 0.0
    %1575 = vmatprep.subr.mxu0 0.0
    %1576 = vmatpush1.msra.mxu0 0.0
    %1577 = vmatprep.subr.mxu0 0.0
    %1578 = vmatpush1.msra.mxu0 0.0
    %1579 = vmatprep.subr.mxu0 0.0
    %1580 = vmatpush1.msra.mxu0 0.0
    %1581 = vmatprep.subr.mxu0 0.0
    %1582 = vmatpush1.msra.mxu0 0.0
    %1583 = vmatprep.subr.mxu0 0.0
    %1584 = vmatpush1.msra.mxu0 0.0
    %1585 = vmatprep.subr.mxu0 0.0
    %1586 = vmatpush1.msra.mxu0 0.0
    %1587 = vmatprep.subr.mxu0 0.0
    %1588 = vmatpush1.msra.mxu0 0.0
    %1589 = vmatprep.subr.mxu0 0.0
    %1590 = vmatpush1.msra.mxu0 0.0
    %1591 = vmatprep.subr.mxu0 0.0
    %1592 = vmatpush1.msra.mxu0 0.0
    %1593 = vmatprep.subr.mxu0 0.0
    %1594 = vmatpush1.msra.mxu0 0.0
    %1595 = vmatprep.subr.mxu0 0.0
    %1596 = vmatpush1.msra.mxu0 0.0
    %1597 = vmatprep.subr.mxu0 0.0
    %1598 = vmatpush1.msra.mxu0 0.0
    %1599 = vmatprep.subr.mxu0 0.0
    %1600 = vmatpush1.msra.mxu0 0.0
    %1601 = vmatprep.subr.mxu0 0.0
    %1602 = vmatpush1.msra.mxu0 0.0
    %1603 = vmatprep.subr.mxu0 0.0
    %1604 = vmatpush1.msra.mxu0 0.0
    %1605 = vmatprep.subr.mxu0 0.0
    %1606 = vmatpush1.msra.mxu0 0.0
    %1607 = vmatprep.subr.mxu0 0.0
    %1608 = vmatpush1.msra.mxu0 0.0
    %1609 = vmatprep.subr.mxu0 0.0
    %1610 = vmatpush1.msra.mxu0 0.0
    %1611 = vmatprep.subr.mxu0 0.0
    %1612 = vmatpush1.msra.mxu0 0.0
    %1613 = vmatprep.subr.mxu0 0.0
    %1614 = vmatpush1.msra.mxu0 0.0
    %1615 = vmatprep.subr.mxu0 0.0
    %1616 = vmatpush1.msra.mxu0 0.0
    %1617 = vmatprep.subr.mxu0 0.0
    %1618 = vmatpush1.msra.mxu0 0.0
    %1619 = vmatprep.subr.mxu0 0.0
    %1620 = vmatpush1.msra.mxu0 0.0
    %1621 = vmatprep.mubr.f32.mxu0 0.0
    %v1622 = vand.u32 %v72, 4294901760
    %1623 = vmatmul.mubr.f32.gmra.mrb[0].mxu0 %v1622
    %v1624 = vpop.f32.mrb[0].mxu0
    %v1625 = vadd.f32 %v1543, %v1624
    %v1626 = vpop.f32.mrb[0].mxu0
    %v1627 = vadd.f32 %v1545, %v1626
    %1628 = vdwg.mxu0
    %v1629 = vand.u32 %v55, 4294901760
    %v1630 = vsub.f32 %v55, %v1629
    %1631 = vmatprep.subr.mxu0 %v1630
    %v1632 = vand.u32 %v54, 4294901760
    %v1633 = vsub.f32 %v54, %v1632
    %1634 = vmatpush1.msra.mxu0 %v1633
    %1635 = vmatprep.subr.mxu0 0.0
    %1636 = vmatpush1.msra.mxu0 0.0
    %1637 = vmatprep.subr.mxu0 0.0
    %1638 = vmatpush1.msra.mxu0 0.0
    %1639 = vmatprep.subr.mxu0 0.0
    %1640 = vmatpush1.msra.mxu0 0.0
    %1641 = vmatprep.subr.mxu0 0.0
    %1642 = vmatpush1.msra.mxu0 0.0
    %1643 = vmatprep.subr.mxu0 0.0
    %1644 = vmatpush1.msra.mxu0 0.0
    %1645 = vmatprep.subr.mxu0 0.0
    %1646 = vmatpush1.msra.mxu0 0.0
    %1647 = vmatprep.subr.mxu0 0.0
    %1648 = vmatpush1.msra.mxu0 0.0
    %1649 = vmatprep.subr.mxu0 0.0
    %1650 = vmatpush1.msra.mxu0 0.0
    %1651 = vmatprep.subr.mxu0 0.0
    %1652 = vmatpush1.msra.mxu0 0.0
    %1653 = vmatprep.subr.mxu0 0.0
    %1654 = vmatpush1.msra.mxu0 0.0
    %1655 = vmatprep.subr.mxu0 0.0
    %1656 = vmatpush1.msra.mxu0 0.0
    %1657 = vmatprep.subr.mxu0 0.0
    %1658 = vmatpush1.msra.mxu0 0.0
    %1659 = vmatprep.subr.mxu0 0.0
    %1660 = vmatpush1.msra.mxu0 0.0
    %1661 = vmatprep.subr.mxu0 0.0
    %1662 = vmatpush1.msra.mxu0 0.0
    %1663 = vmatprep.subr.mxu0 0.0
    %1664 = vmatpush1.msra.mxu0 0.0
    %1665 = vmatprep.subr.mxu0 0.0
    %1666 = vmatpush1.msra.mxu0 0.0
    %1667 = vmatprep.subr.mxu0 0.0
    %1668 = vmatpush1.msra.mxu0 0.0
    %1669 = vmatprep.subr.mxu0 0.0
    %1670 = vmatpush1.msra.mxu0 0.0
    %1671 = vmatprep.subr.mxu0 0.0
    %1672 = vmatpush1.msra.mxu0 0.0
    %1673 = vmatprep.subr.mxu0 0.0
    %1674 = vmatpush1.msra.mxu0 0.0
    %1675 = vmatprep.subr.mxu0 0.0
    %1676 = vmatpush1.msra.mxu0 0.0
    %1677 = vmatprep.subr.mxu0 0.0
    %1678 = vmatpush1.msra.mxu0 0.0
    %1679 = vmatprep.subr.mxu0 0.0
    %1680 = vmatpush1.msra.mxu0 0.0
    %1681 = vmatprep.subr.mxu0 0.0
    %1682 = vmatpush1.msra.mxu0 0.0
    %1683 = vmatprep.subr.mxu0 0.0
    %1684 = vmatpush1.msra.mxu0 0.0
    %1685 = vmatprep.subr.mxu0 0.0
    %1686 = vmatpush1.msra.mxu0 0.0
    %1687 = vmatprep.subr.mxu0 0.0
    %1688 = vmatpush1.msra.mxu0 0.0
    %1689 = vmatprep.subr.mxu0 0.0
    %1690 = vmatpush1.msra.mxu0 0.0
    %1691 = vmatprep.subr.mxu0 0.0
    %1692 = vmatpush1.msra.mxu0 0.0
    %1693 = vmatprep.subr.mxu0 0.0
    %1694 = vmatpush1.msra.mxu0 0.0
    %1695 = vmatprep.subr.mxu0 0.0
    %1696 = vmatpush1.msra.mxu0 0.0
    %1697 = vmatprep.mubr.f32.mxu0 0.0
    %v1698 = vand.u32 %v72, 4294901760
    %v1699 = vsub.f32 %v72, %v1698
    %1700 = vmatmul.mubr.f32.gmra.mrb[0].mxu0 %v1699
    %v1701 = vpop.f32.mrb[0].mxu0
    %v1702 = vadd.f32 %v1625, %v1701
    %v1703 = vpop.f32.mrb[0].mxu0
    %v1704 = vadd.f32 %v1627, %v1703
    %1705 = vdwg.mxu0
    %v1706 = vand.u32 %v55, 4294901760
    %1707 = vmatprep.subr.mxu0 %v1706
    %v1708 = vand.u32 %v54, 4294901760
    %1709 = vmatpush1.msra.mxu0 %v1708
    %1710 = vmatprep.subr.mxu0 0.0
    %1711 = vmatpush1.msra.mxu0 0.0
    %1712 = vmatprep.subr.mxu0 0.0
    %1713 = vmatpush1.msra.mxu0 0.0
    %1714 = vmatprep.subr.mxu0 0.0
    %1715 = vmatpush1.msra.mxu0 0.0
    %1716 = vmatprep.subr.mxu0 0.0
    %1717 = vmatpush1.msra.mxu0 0.0
    %1718 = vmatprep.subr.mxu0 0.0
    %1719 = vmatpush1.msra.mxu0 0.0
    %1720 = vmatprep.subr.mxu0 0.0
    %1721 = vmatpush1.msra.mxu0 0.0
    %1722 = vmatprep.subr.mxu0 0.0
    %1723 = vmatpush1.msra.mxu0 0.0
    %1724 = vmatprep.subr.mxu0 0.0
    %1725 = vmatpush1.msra.mxu0 0.0
    %1726 = vmatprep.subr.mxu0 0.0
    %1727 = vmatpush1.msra.mxu0 0.0
    %1728 = vmatprep.subr.mxu0 0.0
    %1729 = vmatpush1.msra.mxu0 0.0
    %1730 = vmatprep.subr.mxu0 0.0
    %1731 = vmatpush1.msra.mxu0 0.0
    %1732 = vmatprep.subr.mxu0 0.0
    %1733 = vmatpush1.msra.mxu0 0.0
    %1734 = vmatprep.subr.mxu0 0.0
    %1735 = vmatpush1.msra.mxu0 0.0
    %1736 = vmatprep.subr.mxu0 0.0
    %1737 = vmatpush1.msra.mxu0 0.0
    %1738 = vmatprep.subr.mxu0 0.0
    %1739 = vmatpush1.msra.mxu0 0.0
    %1740 = vmatprep.subr.mxu0 0.0
    %1741 = vmatpush1.msra.mxu0 0.0
    %1742 = vmatprep.subr.mxu0 0.0
    %1743 = vmatpush1.msra.mxu0 0.0
    %1744 = vmatprep.subr.mxu0 0.0
    %1745 = vmatpush1.msra.mxu0 0.0
    %1746 = vmatprep.subr.mxu0 0.0
    %1747 = vmatpush1.msra.mxu0 0.0
    %1748 = vmatprep.subr.mxu0 0.0
    %1749 = vmatpush1.msra.mxu0 0.0
    %1750 = vmatprep.subr.mxu0 0.0
    %1751 = vmatpush1.msra.mxu0 0.0
    %1752 = vmatprep.subr.mxu0 0.0
    %1753 = vmatpush1.msra.mxu0 0.0
    %1754 = vmatprep.subr.mxu0 0.0
    %1755 = vmatpush1.msra.mxu0 0.0
    %1756 = vmatprep.subr.mxu0 0.0
    %1757 = vmatpush1.msra.mxu0 0.0
    %1758 = vmatprep.subr.mxu0 0.0
    %1759 = vmatpush1.msra.mxu0 0.0
    %1760 = vmatprep.subr.mxu0 0.0
    %1761 = vmatpush1.msra.mxu0 0.0
    %1762 = vmatprep.subr.mxu0 0.0
    %1763 = vmatpush1.msra.mxu0 0.0
    %1764 = vmatprep.subr.mxu0 0.0
    %1765 = vmatpush1.msra.mxu0 0.0
    %1766 = vmatprep.subr.mxu0 0.0
    %1767 = vmatpush1.msra.mxu0 0.0
    %1768 = vmatprep.subr.mxu0 0.0
    %1769 = vmatpush1.msra.mxu0 0.0
    %1770 = vmatprep.subr.mxu0 0.0
    %1771 = vmatpush1.msra.mxu0 0.0
    %1772 = vmatprep.mubr.f32.mxu0 0.0
    %v1773 = vand.u32 %v72, 4294901760
    %v1774 = vsub.f32 %v72, %v1773
    %v1775 = vand.u32 %v1774, 4294901760
    %1776 = vmatmul.mubr.f32.gmra.mrb[0].mxu0 %v1775
    %v1777 = vpop.f32.mrb[0].mxu0
    %v1778 = vadd.f32 %v1702, %v1777
    %v1779 = vpop.f32.mrb[0].mxu0
    %v1780 = vadd.f32 %v1704, %v1779
    %1781 = vdwg.mxu0
    %v1782 = vand.u32 %v55, 4294901760
    %v1783 = vsub.f32 %v55, %v1782
    %v1784 = vand.u32 %v1783, 4294901760
    %1785 = vmatprep.subr.mxu0 %v1784
    %v1786 = vand.u32 %v54, 4294901760
    %v1787 = vsub.f32 %v54, %v1786
    %v1788 = vand.u32 %v1787, 4294901760
    %1789 = vmatpush1.msra.mxu0 %v1788
    %1790 = vmatprep.subr.mxu0 0.0
    %1791 = vmatpush1.msra.mxu0 0.0
    %1792 = vmatprep.subr.mxu0 0.0
    %1793 = vmatpush1.msra.mxu0 0.0
    %1794 = vmatprep.subr.mxu0 0.0
    %1795 = vmatpush1.msra.mxu0 0.0
    %1796 = vmatprep.subr.mxu0 0.0
    %1797 = vmatpush1.msra.mxu0 0.0
    %1798 = vmatprep.subr.mxu0 0.0
    %1799 = vmatpush1.msra.mxu0 0.0
    %1800 = vmatprep.subr.mxu0 0.0
    %1801 = vmatpush1.msra.mxu0 0.0
    %1802 = vmatprep.subr.mxu0 0.0
    %1803 = vmatpush1.msra.mxu0 0.0
    %1804 = vmatprep.subr.mxu0 0.0
    %1805 = vmatpush1.msra.mxu0 0.0
    %1806 = vmatprep.subr.mxu0 0.0
    %1807 = vmatpush1.msra.mxu0 0.0
    %1808 = vmatprep.subr.mxu0 0.0
    %1809 = vmatpush1.msra.mxu0 0.0
    %1810 = vmatprep.subr.mxu0 0.0
    %1811 = vmatpush1.msra.mxu0 0.0
    %1812 = vmatprep.subr.mxu0 0.0
    %1813 = vmatpush1.msra.mxu0 0.0
    %1814 = vmatprep.subr.mxu0 0.0
    %1815 = vmatpush1.msra.mxu0 0.0
    %1816 = vmatprep.subr.mxu0 0.0
    %1817 = vmatpush1.msra.mxu0 0.0
    %1818 = vmatprep.subr.mxu0 0.0
    %1819 = vmatpush1.msra.mxu0 0.0
    %1820 = vmatprep.subr.mxu0 0.0
    %1821 = vmatpush1.msra.mxu0 0.0
    %1822 = vmatprep.subr.mxu0 0.0
    %1823 = vmatpush1.msra.mxu0 0.0
    %1824 = vmatprep.subr.mxu0 0.0
    %1825 = vmatpush1.msra.mxu0 0.0
    %1826 = vmatprep.subr.mxu0 0.0
    %1827 = vmatpush1.msra.mxu0 0.0
    %1828 = vmatprep.subr.mxu0 0.0
    %1829 = vmatpush1.msra.mxu0 0.0
    %1830 = vmatprep.subr.mxu0 0.0
    %1831 = vmatpush1.msra.mxu0 0.0
    %1832 = vmatprep.subr.mxu0 0.0
    %1833 = vmatpush1.msra.mxu0 0.0
    %1834 = vmatprep.subr.mxu0 0.0
    %1835 = vmatpush1.msra.mxu0 0.0
    %1836 = vmatprep.subr.mxu0 0.0
    %1837 = vmatpush1.msra.mxu0 0.0
    %1838 = vmatprep.subr.mxu0 0.0
    %1839 = vmatpush1.msra.mxu0 0.0
    %1840 = vmatprep.subr.mxu0 0.0
    %1841 = vmatpush1.msra.mxu0 0.0
    %1842 = vmatprep.subr.mxu0 0.0
    %1843 = vmatpush1.msra.mxu0 0.0
    %1844 = vmatprep.subr.mxu0 0.0
    %1845 = vmatpush1.msra.mxu0 0.0
    %1846 = vmatprep.subr.mxu0 0.0
    %1847 = vmatpush1.msra.mxu0 0.0
    %1848 = vmatprep.subr.mxu0 0.0
    %1849 = vmatpush1.msra.mxu0 0.0
    %1850 = vmatprep.subr.mxu0 0.0
    %1851 = vmatpush1.msra.mxu0 0.0
    %1852 = vmatprep.mubr.f32.mxu0 0.0
    %v1853 = vand.u32 %v72, 4294901760
    %1854 = vmatmul.mubr.f32.gmra.mrb[0].mxu0 %v1853
    %v1855 = vpop.f32.mrb[0].mxu0
    %v1856 = vadd.f32 %v1778, %v1855
    %v1857 = vpop.f32.mrb[0].mxu0
    %v1858 = vadd.f32 %v1780, %v1857
    %1859 = vdwg.mxu0
    %v1860 = vand.u32 %v55, 4294901760
    %1861 = vmatprep.subr.mxu0 %v1860
    %v1862 = vand.u32 %v54, 4294901760
    %1863 = vmatpush1.msra.mxu0 %v1862
    %1864 = vmatprep.subr.mxu0 0.0
    %1865 = vmatpush1.msra.mxu0 0.0
    %1866 = vmatprep.subr.mxu0 0.0
    %1867 = vmatpush1.msra.mxu0 0.0
    %1868 = vmatprep.subr.mxu0 0.0
    %1869 = vmatpush1.msra.mxu0 0.0
    %1870 = vmatprep.subr.mxu0 0.0
    %1871 = vmatpush1.msra.mxu0 0.0
    %1872 = vmatprep.subr.mxu0 0.0
    %1873 = vmatpush1.msra.mxu0 0.0
    %1874 = vmatprep.subr.mxu0 0.0
    %1875 = vmatpush1.msra.mxu0 0.0
    %1876 = vmatprep.subr.mxu0 0.0
    %1877 = vmatpush1.msra.mxu0 0.0
    %1878 = vmatprep.subr.mxu0 0.0
    %1879 = vmatpush1.msra.mxu0 0.0
    %1880 = vmatprep.subr.mxu0 0.0
    %1881 = vmatpush1.msra.mxu0 0.0
    %1882 = vmatprep.subr.mxu0 0.0
    %1883 = vmatpush1.msra.mxu0 0.0
    %1884 = vmatprep.subr.mxu0 0.0
    %1885 = vmatpush1.msra.mxu0 0.0
    %1886 = vmatprep.subr.mxu0 0.0
    %1887 = vmatpush1.msra.mxu0 0.0
    %1888 = vmatprep.subr.mxu0 0.0
    %1889 = vmatpush1.msra.mxu0 0.0
    %1890 = vmatprep.subr.mxu0 0.0
    %1891 = vmatpush1.msra.mxu0 0.0
    %1892 = vmatprep.subr.mxu0 0.0
    %1893 = vmatpush1.msra.mxu0 0.0
    %1894 = vmatprep.subr.mxu0 0.0
    %1895 = vmatpush1.msra.mxu0 0.0
    %1896 = vmatprep.subr.mxu0 0.0
    %1897 = vmatpush1.msra.mxu0 0.0
    %1898 = vmatprep.subr.mxu0 0.0
    %1899 = vmatpush1.msra.mxu0 0.0
    %1900 = vmatprep.subr.mxu0 0.0
    %1901 = vmatpush1.msra.mxu0 0.0
    %1902 = vmatprep.subr.mxu0 0.0
    %1903 = vmatpush1.msra.mxu0 0.0
    %1904 = vmatprep.subr.mxu0 0.0
    %1905 = vmatpush1.msra.mxu0 0.0
    %1906 = vmatprep.subr.mxu0 0.0
    %1907 = vmatpush1.msra.mxu0 0.0
    %1908 = vmatprep.subr.mxu0 0.0
    %1909 = vmatpush1.msra.mxu0 0.0
    %1910 = vmatprep.subr.mxu0 0.0
    %1911 = vmatpush1.msra.mxu0 0.0
    %1912 = vmatprep.subr.mxu0 0.0
    %1913 = vmatpush1.msra.mxu0 0.0
    %1914 = vmatprep.subr.mxu0 0.0
    %1915 = vmatpush1.msra.mxu0 0.0
    %1916 = vmatprep.subr.mxu0 0.0
    %1917 = vmatpush1.msra.mxu0 0.0
    %1918 = vmatprep.subr.mxu0 0.0
    %1919 = vmatpush1.msra.mxu0 0.0
    %1920 = vmatprep.subr.mxu0 0.0
    %1921 = vmatpush1.msra.mxu0 0.0
    %1922 = vmatprep.subr.mxu0 0.0
    %1923 = vmatpush1.msra.mxu0 0.0
    %1924 = vmatprep.subr.mxu0 0.0
    %1925 = vmatpush1.msra.mxu0 0.0
    %1926 = vmatprep.mubr.f32.mxu0 0.0
    %v1927 = vand.u32 %v72, 4294901760
    %1928 = vmatmul.mubr.f32.gmra.mrb[0].mxu0 %v1927
    %v1929 = vpop.f32.mrb[0].mxu0
    %v1930 = vadd.f32 %v1856, %v1929
    %v1931 = vpop.f32.mrb[0].mxu0
    %v1932 = vadd.f32 %v1858, %v1931
    %1933 = vdwg.mxu0
    %v1934 = vand.u32 %v57, 4294901760
    %1935 = vmatprep.subr.mxu0 %v1934
    %v1936 = vand.u32 %v56, 4294901760
    %1937 = vmatpush1.msra.mxu0 %v1936
    %1938 = vmatprep.subr.mxu0 0.0
    %1939 = vmatpush1.msra.mxu0 0.0
    %1940 = vmatprep.subr.mxu0 0.0
    %1941 = vmatpush1.msra.mxu0 0.0
    %1942 = vmatprep.subr.mxu0 0.0
    %1943 = vmatpush1.msra.mxu0 0.0
    %1944 = vmatprep.subr.mxu0 0.0
    %1945 = vmatpush1.msra.mxu0 0.0
    %1946 = vmatprep.subr.mxu0 0.0
    %1947 = vmatpush1.msra.mxu0 0.0
    %1948 = vmatprep.subr.mxu0 0.0
    %1949 = vmatpush1.msra.mxu0 0.0
    %1950 = vmatprep.subr.mxu0 0.0
    %1951 = vmatpush1.msra.mxu0 0.0
    %1952 = vmatprep.subr.mxu0 0.0
    %1953 = vmatpush1.msra.mxu0 0.0
    %1954 = vmatprep.subr.mxu0 0.0
    %1955 = vmatpush1.msra.mxu0 0.0
    %1956 = vmatprep.subr.mxu0 0.0
    %1957 = vmatpush1.msra.mxu0 0.0
    %1958 = vmatprep.subr.mxu0 0.0
    %1959 = vmatpush1.msra.mxu0 0.0
    %1960 = vmatprep.subr.mxu0 0.0
    %1961 = vmatpush1.msra.mxu0 0.0
    %1962 = vmatprep.subr.mxu0 0.0
    %1963 = vmatpush1.msra.mxu0 0.0
    %1964 = vmatprep.subr.mxu0 0.0
    %1965 = vmatpush1.msra.mxu0 0.0
    %1966 = vmatprep.subr.mxu0 0.0
    %1967 = vmatpush1.msra.mxu0 0.0
    %1968 = vmatprep.subr.mxu0 0.0
    %1969 = vmatpush1.msra.mxu0 0.0
    %1970 = vmatprep.subr.mxu0 0.0
    %1971 = vmatpush1.msra.mxu0 0.0
    %1972 = vmatprep.subr.mxu0 0.0
    %1973 = vmatpush1.msra.mxu0 0.0
    %1974 = vmatprep.subr.mxu0 0.0
    %1975 = vmatpush1.msra.mxu0 0.0
    %1976 = vmatprep.subr.mxu0 0.0
    %1977 = vmatpush1.msra.mxu0 0.0
    %1978 = vmatprep.subr.mxu0 0.0
    %1979 = vmatpush1.msra.mxu0 0.0
    %1980 = vmatprep.subr.mxu0 0.0
    %1981 = vmatpush1.msra.mxu0 0.0
    %1982 = vmatprep.subr.mxu0 0.0
    %1983 = vmatpush1.msra.mxu0 0.0
    %1984 = vmatprep.subr.mxu0 0.0
    %1985 = vmatpush1.msra.mxu0 0.0
    %1986 = vmatprep.subr.mxu0 0.0
    %1987 = vmatpush1.msra.mxu0 0.0
    %1988 = vmatprep.subr.mxu0 0.0
    %1989 = vmatpush1.msra.mxu0 0.0
    %1990 = vmatprep.subr.mxu0 0.0
    %1991 = vmatpush1.msra.mxu0 0.0
    %1992 = vmatprep.subr.mxu0 0.0
    %1993 = vmatpush1.msra.mxu0 0.0
    %1994 = vmatprep.subr.mxu0 0.0
    %1995 = vmatpush1.msra.mxu0 0.0
    %1996 = vmatprep.subr.mxu0 0.0
    %1997 = vmatpush1.msra.mxu0 0.0
    %1998 = vmatprep.subr.mxu0 0.0
    %1999 = vmatpush1.msra.mxu0 0.0
    %2000 = vmatprep.mubr.f32.mxu0 0.0
    %v2001 = vand.u32 %v72, 4294901760
    %v2002 = vsub.f32 %v72, %v2001
    %v2003 = vand.u32 %v2002, 4294901760
    %v2004 = vsub.f32 %v2002, %v2003
    %v2005 = vand.u32 %v2004, 4294901760
    %2006 = vmatmul.mubr.f32.gmra.mrb[0].mxu0 %v2005
    %v2007 = vpop.f32.mrb[0].mxu0
    %v2008 = vadd.f32 %v68, %v2007
    %v2009 = vpop.f32.mrb[0].mxu0
    %v2010 = vadd.f32 %v68, %v2009
    %2011 = vdwg.mxu0
    %v2012 = vand.u32 %v57, 4294901760
    %v2013 = vsub.f32 %v57, %v2012
    %v2014 = vand.u32 %v2013, 4294901760
    %v2015 = vsub.f32 %v2013, %v2014
    %v2016 = vand.u32 %v2015, 4294901760
    %2017 = vmatprep.subr.mxu0 %v2016
    %v2018 = vand.u32 %v56, 4294901760
    %v2019 = vsub.f32 %v56, %v2018
    %v2020 = vand.u32 %v2019, 4294901760
    %v2021 = vsub.f32 %v2019, %v2020
    %v2022 = vand.u32 %v2021, 4294901760
    %2023 = vmatpush1.msra.mxu0 %v2022
    %2024 = vmatprep.subr.mxu0 0.0
    %2025 = vmatpush1.msra.mxu0 0.0
    %2026 = vmatprep.subr.mxu0 0.0
    %2027 = vmatpush1.msra.mxu0 0.0
    %2028 = vmatprep.subr.mxu0 0.0
    %2029 = vmatpush1.msra.mxu0 0.0
    %2030 = vmatprep.subr.mxu0 0.0
    %2031 = vmatpush1.msra.mxu0 0.0
    %2032 = vmatprep.subr.mxu0 0.0
    %2033 = vmatpush1.msra.mxu0 0.0
    %2034 = vmatprep.subr.mxu0 0.0
    %2035 = vmatpush1.msra.mxu0 0.0
    %2036 = vmatprep.subr.mxu0 0.0
    %2037 = vmatpush1.msra.mxu0 0.0
    %2038 = vmatprep.subr.mxu0 0.0
    %2039 = vmatpush1.msra.mxu0 0.0
    %2040 = vmatprep.subr.mxu0 0.0
    %2041 = vmatpush1.msra.mxu0 0.0
    %2042 = vmatprep.subr.mxu0 0.0
    %2043 = vmatpush1.msra.mxu0 0.0
    %2044 = vmatprep.subr.mxu0 0.0
    %2045 = vmatpush1.msra.mxu0 0.0
    %2046 = vmatprep.subr.mxu0 0.0
    %2047 = vmatpush1.msra.mxu0 0.0
    %2048 = vmatprep.subr.mxu0 0.0
    %2049 = vmatpush1.msra.mxu0 0.0
    %2050 = vmatprep.subr.mxu0 0.0
    %2051 = vmatpush1.msra.mxu0 0.0
    %2052 = vmatprep.subr.mxu0 0.0
    %2053 = vmatpush1.msra.mxu0 0.0
    %2054 = vmatprep.subr.mxu0 0.0
    %2055 = vmatpush1.msra.mxu0 0.0
    %2056 = vmatprep.subr.mxu0 0.0
    %2057 = vmatpush1.msra.mxu0 0.0
    %2058 = vmatprep.subr.mxu0 0.0
    %2059 = vmatpush1.msra.mxu0 0.0
    %2060 = vmatprep.subr.mxu0 0.0
    %2061 = vmatpush1.msra.mxu0 0.0
    %2062 = vmatprep.subr.mxu0 0.0
    %2063 = vmatpush1.msra.mxu0 0.0
    %2064 = vmatprep.subr.mxu0 0.0
    %2065 = vmatpush1.msra.mxu0 0.0
    %2066 = vmatprep.subr.mxu0 0.0
    %2067 = vmatpush1.msra.mxu0 0.0
    %2068 = vmatprep.subr.mxu0 0.0
    %2069 = vmatpush1.msra.mxu0 0.0
    %2070 = vmatprep.subr.mxu0 0.0
    %2071 = vmatpush1.msra.mxu0 0.0
    %2072 = vmatprep.subr.mxu0 0.0
    %2073 = vmatpush1.msra.mxu0 0.0
    %2074 = vmatprep.subr.mxu0 0.0
    %2075 = vmatpush1.msra.mxu0 0.0
    %2076 = vmatprep.subr.mxu0 0.0
    %2077 = vmatpush1.msra.mxu0 0.0
    %2078 = vmatprep.subr.mxu0 0.0
    %2079 = vmatpush1.msra.mxu0 0.0
    %2080 = vmatprep.subr.mxu0 0.0
    %2081 = vmatpush1.msra.mxu0 0.0
    %2082 = vmatprep.subr.mxu0 0.0
    %2083 = vmatpush1.msra.mxu0 0.0
    %2084 = vmatprep.subr.mxu0 0.0
    %2085 = vmatpush1.msra.mxu0 0.0
    %2086 = vmatprep.mubr.f32.mxu0 0.0
    %v2087 = vand.u32 %v72, 4294901760
    %2088 = vmatmul.mubr.f32.gmra.mrb[0].mxu0 %v2087
    %v2089 = vpop.f32.mrb[0].mxu0
    %v2090 = vadd.f32 %v2008, %v2089
    %v2091 = vpop.f32.mrb[0].mxu0
    %v2092 = vadd.f32 %v2010, %v2091
    %2093 = vdwg.mxu0
    %v2094 = vand.u32 %v57, 4294901760
    %v2095 = vsub.f32 %v57, %v2094
    %2096 = vmatprep.subr.mxu0 %v2095
    %v2097 = vand.u32 %v56, 4294901760
    %v2098 = vsub.f32 %v56, %v2097
    %2099 = vmatpush1.msra.mxu0 %v2098
    %2100 = vmatprep.subr.mxu0 0.0
    %2101 = vmatpush1.msra.mxu0 0.0
    %2102 = vmatprep.subr.mxu0 0.0
    %2103 = vmatpush1.msra.mxu0 0.0
    %2104 = vmatprep.subr.mxu0 0.0
    %2105 = vmatpush1.msra.mxu0 0.0
    %2106 = vmatprep.subr.mxu0 0.0
    %2107 = vmatpush1.msra.mxu0 0.0
    %2108 = vmatprep.subr.mxu0 0.0
    %2109 = vmatpush1.msra.mxu0 0.0
    %2110 = vmatprep.subr.mxu0 0.0
    %2111 = vmatpush1.msra.mxu0 0.0
    %2112 = vmatprep.subr.mxu0 0.0
    %2113 = vmatpush1.msra.mxu0 0.0
    %2114 = vmatprep.subr.mxu0 0.0
    %2115 = vmatpush1.msra.mxu0 0.0
    %2116 = vmatprep.subr.mxu0 0.0
    %2117 = vmatpush1.msra.mxu0 0.0
    %2118 = vmatprep.subr.mxu0 0.0
    %2119 = vmatpush1.msra.mxu0 0.0
    %2120 = vmatprep.subr.mxu0 0.0
    %2121 = vmatpush1.msra.mxu0 0.0
    %2122 = vmatprep.subr.mxu0 0.0
    %2123 = vmatpush1.msra.mxu0 0.0
    %2124 = vmatprep.subr.mxu0 0.0
    %2125 = vmatpush1.msra.mxu0 0.0
    %2126 = vmatprep.subr.mxu0 0.0
    %2127 = vmatpush1.msra.mxu0 0.0
    %2128 = vmatprep.subr.mxu0 0.0
    %2129 = vmatpush1.msra.mxu0 0.0
    %2130 = vmatprep.subr.mxu0 0.0
    %2131 = vmatpush1.msra.mxu0 0.0
    %2132 = vmatprep.subr.mxu0 0.0
    %2133 = vmatpush1.msra.mxu0 0.0
    %2134 = vmatprep.subr.mxu0 0.0
    %2135 = vmatpush1.msra.mxu0 0.0
    %2136 = vmatprep.subr.mxu0 0.0
    %2137 = vmatpush1.msra.mxu0 0.0
    %2138 = vmatprep.subr.mxu0 0.0
    %2139 = vmatpush1.msra.mxu0 0.0
    %2140 = vmatprep.subr.mxu0 0.0
    %2141 = vmatpush1.msra.mxu0 0.0
    %2142 = vmatprep.subr.mxu0 0.0
    %2143 = vmatpush1.msra.mxu0 0.0
    %2144 = vmatprep.subr.mxu0 0.0
    %2145 = vmatpush1.msra.mxu0 0.0
    %2146 = vmatprep.subr.mxu0 0.0
    %2147 = vmatpush1.msra.mxu0 0.0
    %2148 = vmatprep.subr.mxu0 0.0
    %2149 = vmatpush1.msra.mxu0 0.0
    %2150 = vmatprep.subr.mxu0 0.0
    %2151 = vmatpush1.msra.mxu0 0.0
    %2152 = vmatprep.subr.mxu0 0.0
    %2153 = vmatpush1.msra.mxu0 0.0
    %2154 = vmatprep.subr.mxu0 0.0
    %2155 = vmatpush1.msra.mxu0 0.0
    %2156 = vmatprep.subr.mxu0 0.0
    %2157 = vmatpush1.msra.mxu0 0.0
    %2158 = vmatprep.subr.mxu0 0.0
    %2159 = vmatpush1.msra.mxu0 0.0
    %2160 = vmatprep.subr.mxu0 0.0
    %2161 = vmatpush1.msra.mxu0 0.0
    %2162 = vmatprep.mubr.f32.mxu0 0.0
    %v2163 = vand.u32 %v72, 4294901760
    %v2164 = vsub.f32 %v72, %v2163
    %2165 = vmatmul.mubr.f32.gmra.mrb[0].mxu0 %v2164
    %v2166 = vpop.f32.mrb[0].mxu0
    %v2167 = vadd.f32 %v2090, %v2166
    %v2168 = vpop.f32.mrb[0].mxu0
    %v2169 = vadd.f32 %v2092, %v2168
    %2170 = vdwg.mxu0
    %v2171 = vand.u32 %v57, 4294901760
    %2172 = vmatprep.subr.mxu0 %v2171
    %v2173 = vand.u32 %v56, 4294901760
    %2174 = vmatpush1.msra.mxu0 %v2173
    %2175 = vmatprep.subr.mxu0 0.0
    %2176 = vmatpush1.msra.mxu0 0.0
    %2177 = vmatprep.subr.mxu0 0.0
    %2178 = vmatpush1.msra.mxu0 0.0
    %2179 = vmatprep.subr.mxu0 0.0
    %2180 = vmatpush1.msra.mxu0 0.0
    %2181 = vmatprep.subr.mxu0 0.0
    %2182 = vmatpush1.msra.mxu0 0.0
    %2183 = vmatprep.subr.mxu0 0.0
    %2184 = vmatpush1.msra.mxu0 0.0
    %2185 = vmatprep.subr.mxu0 0.0
    %2186 = vmatpush1.msra.mxu0 0.0
    %2187 = vmatprep.subr.mxu0 0.0
    %2188 = vmatpush1.msra.mxu0 0.0
    %2189 = vmatprep.subr.mxu0 0.0
    %2190 = vmatpush1.msra.mxu0 0.0
    %2191 = vmatprep.subr.mxu0 0.0
    %2192 = vmatpush1.msra.mxu0 0.0
    %2193 = vmatprep.subr.mxu0 0.0
    %2194 = vmatpush1.msra.mxu0 0.0
    %2195 = vmatprep.subr.mxu0 0.0
    %2196 = vmatpush1.msra.mxu0 0.0
    %2197 = vmatprep.subr.mxu0 0.0
    %2198 = vmatpush1.msra.mxu0 0.0
    %2199 = vmatprep.subr.mxu0 0.0
    %2200 = vmatpush1.msra.mxu0 0.0
    %2201 = vmatprep.subr.mxu0 0.0
    %2202 = vmatpush1.msra.mxu0 0.0
    %2203 = vmatprep.subr.mxu0 0.0
    %2204 = vmatpush1.msra.mxu0 0.0
    %2205 = vmatprep.subr.mxu0 0.0
    %2206 = vmatpush1.msra.mxu0 0.0
    %2207 = vmatprep.subr.mxu0 0.0
    %2208 = vmatpush1.msra.mxu0 0.0
    %2209 = vmatprep.subr.mxu0 0.0
    %2210 = vmatpush1.msra.mxu0 0.0
    %2211 = vmatprep.subr.mxu0 0.0
    %2212 = vmatpush1.msra.mxu0 0.0
    %2213 = vmatprep.subr.mxu0 0.0
    %2214 = vmatpush1.msra.mxu0 0.0
    %2215 = vmatprep.subr.mxu0 0.0
    %2216 = vmatpush1.msra.mxu0 0.0
    %2217 = vmatprep.subr.mxu0 0.0
    %2218 = vmatpush1.msra.mxu0 0.0
    %2219 = vmatprep.subr.mxu0 0.0
    %2220 = vmatpush1.msra.mxu0 0.0
    %2221 = vmatprep.subr.mxu0 0.0
    %2222 = vmatpush1.msra.mxu0 0.0
    %2223 = vmatprep.subr.mxu0 0.0
    %2224 = vmatpush1.msra.mxu0 0.0
    %2225 = vmatprep.subr.mxu0 0.0
    %2226 = vmatpush1.msra.mxu0 0.0
    %2227 = vmatprep.subr.mxu0 0.0
    %2228 = vmatpush1.msra.mxu0 0.0
    %2229 = vmatprep.subr.mxu0 0.0
    %2230 = vmatpush1.msra.mxu0 0.0
    %2231 = vmatprep.subr.mxu0 0.0
    %2232 = vmatpush1.msra.mxu0 0.0
    %2233 = vmatprep.subr.mxu0 0.0
    %2234 = vmatpush1.msra.mxu0 0.0
    %2235 = vmatprep.subr.mxu0 0.0
    %2236 = vmatpush1.msra.mxu0 0.0
    %2237 = vmatprep.mubr.f32.mxu0 0.0
    %v2238 = vand.u32 %v72, 4294901760
    %v2239 = vsub.f32 %v72, %v2238
    %v2240 = vand.u32 %v2239, 4294901760
    %2241 = vmatmul.mubr.f32.gmra.mrb[0].mxu0 %v2240
    %v2242 = vpop.f32.mrb[0].mxu0
    %v2243 = vadd.f32 %v2167, %v2242
    %v2244 = vpop.f32.mrb[0].mxu0
    %v2245 = vadd.f32 %v2169, %v2244
    %2246 = vdwg.mxu0
    %v2247 = vand.u32 %v57, 4294901760
    %v2248 = vsub.f32 %v57, %v2247
    %v2249 = vand.u32 %v2248, 4294901760
    %2250 = vmatprep.subr.mxu0 %v2249
    %v2251 = vand.u32 %v56, 4294901760
    %v2252 = vsub.f32 %v56, %v2251
    %v2253 = vand.u32 %v2252, 4294901760
    %2254 = vmatpush1.msra.mxu0 %v2253
    %2255 = vmatprep.subr.mxu0 0.0
    %2256 = vmatpush1.msra.mxu0 0.0
    %2257 = vmatprep.subr.mxu0 0.0
    %2258 = vmatpush1.msra.mxu0 0.0
    %2259 = vmatprep.subr.mxu0 0.0
    %2260 = vmatpush1.msra.mxu0 0.0
    %2261 = vmatprep.subr.mxu0 0.0
    %2262 = vmatpush1.msra.mxu0 0.0
    %2263 = vmatprep.subr.mxu0 0.0
    %2264 = vmatpush1.msra.mxu0 0.0
    %2265 = vmatprep.subr.mxu0 0.0
    %2266 = vmatpush1.msra.mxu0 0.0
    %2267 = vmatprep.subr.mxu0 0.0
    %2268 = vmatpush1.msra.mxu0 0.0
    %2269 = vmatprep.subr.mxu0 0.0
    %2270 = vmatpush1.msra.mxu0 0.0
    %2271 = vmatprep.subr.mxu0 0.0
    %2272 = vmatpush1.msra.mxu0 0.0
    %2273 = vmatprep.subr.mxu0 0.0
    %2274 = vmatpush1.msra.mxu0 0.0
    %2275 = vmatprep.subr.mxu0 0.0
    %2276 = vmatpush1.msra.mxu0 0.0
    %2277 = vmatprep.subr.mxu0 0.0
    %2278 = vmatpush1.msra.mxu0 0.0
    %2279 = vmatprep.subr.mxu0 0.0
    %2280 = vmatpush1.msra.mxu0 0.0
    %2281 = vmatprep.subr.mxu0 0.0
    %2282 = vmatpush1.msra.mxu0 0.0
    %2283 = vmatprep.subr.mxu0 0.0
    %2284 = vmatpush1.msra.mxu0 0.0
    %2285 = vmatprep.subr.mxu0 0.0
    %2286 = vmatpush1.msra.mxu0 0.0
    %2287 = vmatprep.subr.mxu0 0.0
    %2288 = vmatpush1.msra.mxu0 0.0
    %2289 = vmatprep.subr.mxu0 0.0
    %2290 = vmatpush1.msra.mxu0 0.0
    %2291 = vmatprep.subr.mxu0 0.0
    %2292 = vmatpush1.msra.mxu0 0.0
    %2293 = vmatprep.subr.mxu0 0.0
    %2294 = vmatpush1.msra.mxu0 0.0
    %2295 = vmatprep.subr.mxu0 0.0
    %2296 = vmatpush1.msra.mxu0 0.0
    %2297 = vmatprep.subr.mxu0 0.0
    %2298 = vmatpush1.msra.mxu0 0.0
    %2299 = vmatprep.subr.mxu0 0.0
    %2300 = vmatpush1.msra.mxu0 0.0
    %2301 = vmatprep.subr.mxu0 0.0
    %2302 = vmatpush1.msra.mxu0 0.0
    %2303 = vmatprep.subr.mxu0 0.0
    %2304 = vmatpush1.msra.mxu0 0.0
    %2305 = vmatprep.subr.mxu0 0.0
    %2306 = vmatpush1.msra.mxu0 0.0
    %2307 = vmatprep.subr.mxu0 0.0
    %2308 = vmatpush1.msra.mxu0 0.0
    %2309 = vmatprep.subr.mxu0 0.0
    %2310 = vmatpush1.msra.mxu0 0.0
    %2311 = vmatprep.subr.mxu0 0.0
    %2312 = vmatpush1.msra.mxu0 0.0
    %2313 = vmatprep.subr.mxu0 0.0
    %2314 = vmatpush1.msra.mxu0 0.0
    %2315 = vmatprep.subr.mxu0 0.0
    %2316 = vmatpush1.msra.mxu0 0.0
    %2317 = vmatprep.mubr.f32.mxu0 0.0
    %v2318 = vand.u32 %v72, 4294901760
    %2319 = vmatmul.mubr.f32.gmra.mrb[0].mxu0 %v2318
    %v2320 = vpop.f32.mrb[0].mxu0
    %v2321 = vadd.f32 %v2243, %v2320
    %v2322 = vpop.f32.mrb[0].mxu0
    %v2323 = vadd.f32 %v2245, %v2322
    %2324 = vdwg.mxu0
    %v2325 = vand.u32 %v57, 4294901760
    %2326 = vmatprep.subr.mxu0 %v2325
    %v2327 = vand.u32 %v56, 4294901760
    %2328 = vmatpush1.msra.mxu0 %v2327
    %2329 = vmatprep.subr.mxu0 0.0
    %2330 = vmatpush1.msra.mxu0 0.0
    %2331 = vmatprep.subr.mxu0 0.0
    %2332 = vmatpush1.msra.mxu0 0.0
    %2333 = vmatprep.subr.mxu0 0.0
    %2334 = vmatpush1.msra.mxu0 0.0
    %2335 = vmatprep.subr.mxu0 0.0
    %2336 = vmatpush1.msra.mxu0 0.0
    %2337 = vmatprep.subr.mxu0 0.0
    %2338 = vmatpush1.msra.mxu0 0.0
    %2339 = vmatprep.subr.mxu0 0.0
    %2340 = vmatpush1.msra.mxu0 0.0
    %2341 = vmatprep.subr.mxu0 0.0
    %2342 = vmatpush1.msra.mxu0 0.0
    %2343 = vmatprep.subr.mxu0 0.0
    %2344 = vmatpush1.msra.mxu0 0.0
    %2345 = vmatprep.subr.mxu0 0.0
    %2346 = vmatpush1.msra.mxu0 0.0
    %2347 = vmatprep.subr.mxu0 0.0
    %2348 = vmatpush1.msra.mxu0 0.0
    %2349 = vmatprep.subr.mxu0 0.0
    %2350 = vmatpush1.msra.mxu0 0.0
    %2351 = vmatprep.subr.mxu0 0.0
    %2352 = vmatpush1.msra.mxu0 0.0
    %2353 = vmatprep.subr.mxu0 0.0
    %2354 = vmatpush1.msra.mxu0 0.0
    %2355 = vmatprep.subr.mxu0 0.0
    %2356 = vmatpush1.msra.mxu0 0.0
    %2357 = vmatprep.subr.mxu0 0.0
    %2358 = vmatpush1.msra.mxu0 0.0
    %2359 = vmatprep.subr.mxu0 0.0
    %2360 = vmatpush1.msra.mxu0 0.0
    %2361 = vmatprep.subr.mxu0 0.0
    %2362 = vmatpush1.msra.mxu0 0.0
    %2363 = vmatprep.subr.mxu0 0.0
    %2364 = vmatpush1.msra.mxu0 0.0
    %2365 = vmatprep.subr.mxu0 0.0
    %2366 = vmatpush1.msra.mxu0 0.0
    %2367 = vmatprep.subr.mxu0 0.0
    %2368 = vmatpush1.msra.mxu0 0.0
    %2369 = vmatprep.subr.mxu0 0.0
    %2370 = vmatpush1.msra.mxu0 0.0
    %2371 = vmatprep.subr.mxu0 0.0
    %2372 = vmatpush1.msra.mxu0 0.0
    %2373 = vmatprep.subr.mxu0 0.0
    %2374 = vmatpush1.msra.mxu0 0.0
    %2375 = vmatprep.subr.mxu0 0.0
    %2376 = vmatpush1.msra.mxu0 0.0
    %2377 = vmatprep.subr.mxu0 0.0
    %2378 = vmatpush1.msra.mxu0 0.0
    %2379 = vmatprep.subr.mxu0 0.0
    %2380 = vmatpush1.msra.mxu0 0.0
    %2381 = vmatprep.subr.mxu0 0.0
    %2382 = vmatpush1.msra.mxu0 0.0
    %2383 = vmatprep.subr.mxu0 0.0
    %2384 = vmatpush1.msra.mxu0 0.0
    %2385 = vmatprep.subr.mxu0 0.0
    %2386 = vmatpush1.msra.mxu0 0.0
    %2387 = vmatprep.subr.mxu0 0.0
    %2388 = vmatpush1.msra.mxu0 0.0
    %2389 = vmatprep.subr.mxu0 0.0
    %2390 = vmatpush1.msra.mxu0 0.0
    %2391 = vmatprep.mubr.f32.mxu0 0.0
    %v2392 = vand.u32 %v72, 4294901760
    %2393 = vmatmul.mubr.f32.gmra.mrb[0].mxu0 %v2392
    %v2394 = vpop.f32.mrb[0].mxu0
    %v2395 = vadd.f32 %v2321, %v2394
    %v2396 = vpop.f32.mrb[0].mxu0
    %v2397 = vadd.f32 %v2323, %v2396
    %2398 = vdwg.mxu0
    %v2399 = vand.u32 %v59, 4294901760
    %2400 = vmatprep.subr.mxu0 %v2399
    %v2401 = vand.u32 %v58, 4294901760
    %2402 = vmatpush1.msra.mxu0 %v2401
    %2403 = vmatprep.subr.mxu0 0.0
    %2404 = vmatpush1.msra.mxu0 0.0
    %2405 = vmatprep.subr.mxu0 0.0
    %2406 = vmatpush1.msra.mxu0 0.0
    %2407 = vmatprep.subr.mxu0 0.0
    %2408 = vmatpush1.msra.mxu0 0.0
    %2409 = vmatprep.subr.mxu0 0.0
    %2410 = vmatpush1.msra.mxu0 0.0
    %2411 = vmatprep.subr.mxu0 0.0
    %2412 = vmatpush1.msra.mxu0 0.0
    %2413 = vmatprep.subr.mxu0 0.0
    %2414 = vmatpush1.msra.mxu0 0.0
    %2415 = vmatprep.subr.mxu0 0.0
    %2416 = vmatpush1.msra.mxu0 0.0
    %2417 = vmatprep.subr.mxu0 0.0
    %2418 = vmatpush1.msra.mxu0 0.0
    %2419 = vmatprep.subr.mxu0 0.0
    %2420 = vmatpush1.msra.mxu0 0.0
    %2421 = vmatprep.subr.mxu0 0.0
    %2422 = vmatpush1.msra.mxu0 0.0
    %2423 = vmatprep.subr.mxu0 0.0
    %2424 = vmatpush1.msra.mxu0 0.0
    %2425 = vmatprep.subr.mxu0 0.0
    %2426 = vmatpush1.msra.mxu0 0.0
    %2427 = vmatprep.subr.mxu0 0.0
    %2428 = vmatpush1.msra.mxu0 0.0
    %2429 = vmatprep.subr.mxu0 0.0
    %2430 = vmatpush1.msra.mxu0 0.0
    %2431 = vmatprep.subr.mxu0 0.0
    %2432 = vmatpush1.msra.mxu0 0.0
    %2433 = vmatprep.subr.mxu0 0.0
    %2434 = vmatpush1.msra.mxu0 0.0
    %2435 = vmatprep.subr.mxu0 0.0
    %2436 = vmatpush1.msra.mxu0 0.0
    %2437 = vmatprep.subr.mxu0 0.0
    %2438 = vmatpush1.msra.mxu0 0.0
    %2439 = vmatprep.subr.mxu0 0.0
    %2440 = vmatpush1.msra.mxu0 0.0
    %2441 = vmatprep.subr.mxu0 0.0
    %2442 = vmatpush1.msra.mxu0 0.0
    %2443 = vmatprep.subr.mxu0 0.0
    %2444 = vmatpush1.msra.mxu0 0.0
    %2445 = vmatprep.subr.mxu0 0.0
    %2446 = vmatpush1.msra.mxu0 0.0
    %2447 = vmatprep.subr.mxu0 0.0
    %2448 = vmatpush1.msra.mxu0 0.0
    %2449 = vmatprep.subr.mxu0 0.0
    %2450 = vmatpush1.msra.mxu0 0.0
    %2451 = vmatprep.subr.mxu0 0.0
    %2452 = vmatpush1.msra.mxu0 0.0
    %2453 = vmatprep.subr.mxu0 0.0
    %2454 = vmatpush1.msra.mxu0 0.0
    %2455 = vmatprep.subr.mxu0 0.0
    %2456 = vmatpush1.msra.mxu0 0.0
    %2457 = vmatprep.subr.mxu0 0.0
    %2458 = vmatpush1.msra.mxu0 0.0
    %2459 = vmatprep.subr.mxu0 0.0
    %2460 = vmatpush1.msra.mxu0 0.0
    %2461 = vmatprep.subr.mxu0 0.0
    %2462 = vmatpush1.msra.mxu0 0.0
    %2463 = vmatprep.subr.mxu0 0.0
    %2464 = vmatpush1.msra.mxu0 0.0
    %2465 = vmatprep.mubr.f32.mxu0 0.0
    %v2466 = vand.u32 %v72, 4294901760
    %v2467 = vsub.f32 %v72, %v2466
    %v2468 = vand.u32 %v2467, 4294901760
    %v2469 = vsub.f32 %v2467, %v2468
    %v2470 = vand.u32 %v2469, 4294901760
    %2471 = vmatmul.mubr.f32.gmra.mrb[0].mxu0 %v2470
    %v2472 = vpop.f32.mrb[0].mxu0
    %v2473 = vadd.f32 %v68, %v2472
    %v2474 = vpop.f32.mrb[0].mxu0
    %v2475 = vadd.f32 %v68, %v2474
    %2476 = vdwg.mxu0
    %v2477 = vand.u32 %v59, 4294901760
    %v2478 = vsub.f32 %v59, %v2477
    %v2479 = vand.u32 %v2478, 4294901760
    %v2480 = vsub.f32 %v2478, %v2479
    %v2481 = vand.u32 %v2480, 4294901760
    %2482 = vmatprep.subr.mxu0 %v2481
    %v2483 = vand.u32 %v58, 4294901760
    %v2484 = vsub.f32 %v58, %v2483
    %v2485 = vand.u32 %v2484, 4294901760
    %v2486 = vsub.f32 %v2484, %v2485
    %v2487 = vand.u32 %v2486, 4294901760
    %2488 = vmatpush1.msra.mxu0 %v2487
    %2489 = vmatprep.subr.mxu0 0.0
    %2490 = vmatpush1.msra.mxu0 0.0
    %2491 = vmatprep.subr.mxu0 0.0
    %2492 = vmatpush1.msra.mxu0 0.0
    %2493 = vmatprep.subr.mxu0 0.0
    %2494 = vmatpush1.msra.mxu0 0.0
    %2495 = vmatprep.subr.mxu0 0.0
    %2496 = vmatpush1.msra.mxu0 0.0
    %2497 = vmatprep.subr.mxu0 0.0
    %2498 = vmatpush1.msra.mxu0 0.0
    %2499 = vmatprep.subr.mxu0 0.0
    %2500 = vmatpush1.msra.mxu0 0.0
    %2501 = vmatprep.subr.mxu0 0.0
    %2502 = vmatpush1.msra.mxu0 0.0
    %2503 = vmatprep.subr.mxu0 0.0
    %2504 = vmatpush1.msra.mxu0 0.0
    %2505 = vmatprep.subr.mxu0 0.0
    %2506 = vmatpush1.msra.mxu0 0.0
    %2507 = vmatprep.subr.mxu0 0.0
    %2508 = vmatpush1.msra.mxu0 0.0
    %2509 = vmatprep.subr.mxu0 0.0
    %2510 = vmatpush1.msra.mxu0 0.0
    %2511 = vmatprep.subr.mxu0 0.0
    %2512 = vmatpush1.msra.mxu0 0.0
    %2513 = vmatprep.subr.mxu0 0.0
    %2514 = vmatpush1.msra.mxu0 0.0
    %2515 = vmatprep.subr.mxu0 0.0
    %2516 = vmatpush1.msra.mxu0 0.0
    %2517 = vmatprep.subr.mxu0 0.0
    %2518 = vmatpush1.msra.mxu0 0.0
    %2519 = vmatprep.subr.mxu0 0.0
    %2520 = vmatpush1.msra.mxu0 0.0
    %2521 = vmatprep.subr.mxu0 0.0
    %2522 = vmatpush1.msra.mxu0 0.0
    %2523 = vmatprep.subr.mxu0 0.0
    %2524 = vmatpush1.msra.mxu0 0.0
    %2525 = vmatprep.subr.mxu0 0.0
    %2526 = vmatpush1.msra.mxu0 0.0
    %2527 = vmatprep.subr.mxu0 0.0
    %2528 = vmatpush1.msra.mxu0 0.0
    %2529 = vmatprep.subr.mxu0 0.0
    %2530 = vmatpush1.msra.mxu0 0.0
    %2531 = vmatprep.subr.mxu0 0.0
    %2532 = vmatpush1.msra.mxu0 0.0
    %2533 = vmatprep.subr.mxu0 0.0
    %2534 = vmatpush1.msra.mxu0 0.0
    %2535 = vmatprep.subr.mxu0 0.0
    %2536 = vmatpush1.msra.mxu0 0.0
    %2537 = vmatprep.subr.mxu0 0.0
    %2538 = vmatpush1.msra.mxu0 0.0
    %2539 = vmatprep.subr.mxu0 0.0
    %2540 = vmatpush1.msra.mxu0 0.0
    %2541 = vmatprep.subr.mxu0 0.0
    %2542 = vmatpush1.msra.mxu0 0.0
    %2543 = vmatprep.subr.mxu0 0.0
    %2544 = vmatpush1.msra.mxu0 0.0
    %2545 = vmatprep.subr.mxu0 0.0
    %2546 = vmatpush1.msra.mxu0 0.0
    %2547 = vmatprep.subr.mxu0 0.0
    %2548 = vmatpush1.msra.mxu0 0.0
    %2549 = vmatprep.subr.mxu0 0.0
    %2550 = vmatpush1.msra.mxu0 0.0
    %2551 = vmatprep.mubr.f32.mxu0 0.0
    %v2552 = vand.u32 %v72, 4294901760
    %2553 = vmatmul.mubr.f32.gmra.mrb[0].mxu0 %v2552
    %v2554 = vpop.f32.mrb[0].mxu0
    %v2555 = vadd.f32 %v2473, %v2554
    %v2556 = vpop.f32.mrb[0].mxu0
    %v2557 = vadd.f32 %v2475, %v2556
    %2558 = vdwg.mxu0
    %v2559 = vand.u32 %v59, 4294901760
    %v2560 = vsub.f32 %v59, %v2559
    %2561 = vmatprep.subr.mxu0 %v2560
    %v2562 = vand.u32 %v58, 4294901760
    %v2563 = vsub.f32 %v58, %v2562
    %2564 = vmatpush1.msra.mxu0 %v2563
    %2565 = vmatprep.subr.mxu0 0.0
    %2566 = vmatpush1.msra.mxu0 0.0
    %2567 = vmatprep.subr.mxu0 0.0
    %2568 = vmatpush1.msra.mxu0 0.0
    %2569 = vmatprep.subr.mxu0 0.0
    %2570 = vmatpush1.msra.mxu0 0.0
    %2571 = vmatprep.subr.mxu0 0.0
    %2572 = vmatpush1.msra.mxu0 0.0
    %2573 = vmatprep.subr.mxu0 0.0
    %2574 = vmatpush1.msra.mxu0 0.0
    %2575 = vmatprep.subr.mxu0 0.0
    %2576 = vmatpush1.msra.mxu0 0.0
    %2577 = vmatprep.subr.mxu0 0.0
    %2578 = vmatpush1.msra.mxu0 0.0
    %2579 = vmatprep.subr.mxu0 0.0
    %2580 = vmatpush1.msra.mxu0 0.0
    %2581 = vmatprep.subr.mxu0 0.0
    %2582 = vmatpush1.msra.mxu0 0.0
    %2583 = vmatprep.subr.mxu0 0.0
    %2584 = vmatpush1.msra.mxu0 0.0
    %2585 = vmatprep.subr.mxu0 0.0
    %2586 = vmatpush1.msra.mxu0 0.0
    %2587 = vmatprep.subr.mxu0 0.0
    %2588 = vmatpush1.msra.mxu0 0.0
    %2589 = vmatprep.subr.mxu0 0.0
    %2590 = vmatpush1.msra.mxu0 0.0
    %2591 = vmatprep.subr.mxu0 0.0
    %2592 = vmatpush1.msra.mxu0 0.0
    %2593 = vmatprep.subr.mxu0 0.0
    %2594 = vmatpush1.msra.mxu0 0.0
    %2595 = vmatprep.subr.mxu0 0.0
    %2596 = vmatpush1.msra.mxu0 0.0
    %2597 = vmatprep.subr.mxu0 0.0
    %2598 = vmatpush1.msra.mxu0 0.0
    %2599 = vmatprep.subr.mxu0 0.0
    %2600 = vmatpush1.msra.mxu0 0.0
    %2601 = vmatprep.subr.mxu0 0.0
    %2602 = vmatpush1.msra.mxu0 0.0
    %2603 = vmatprep.subr.mxu0 0.0
    %2604 = vmatpush1.msra.mxu0 0.0
    %2605 = vmatprep.subr.mxu0 0.0
    %2606 = vmatpush1.msra.mxu0 0.0
    %2607 = vmatprep.subr.mxu0 0.0
    %2608 = vmatpush1.msra.mxu0 0.0
    %2609 = vmatprep.subr.mxu0 0.0
    %2610 = vmatpush1.msra.mxu0 0.0
    %2611 = vmatprep.subr.mxu0 0.0
    %2612 = vmatpush1.msra.mxu0 0.0
    %2613 = vmatprep.subr.mxu0 0.0
    %2614 = vmatpush1.msra.mxu0 0.0
    %2615 = vmatprep.subr.mxu0 0.0
    %2616 = vmatpush1.msra.mxu0 0.0
    %2617 = vmatprep.subr.mxu0 0.0
    %2618 = vmatpush1.msra.mxu0 0.0
    %2619 = vmatprep.subr.mxu0 0.0
    %2620 = vmatpush1.msra.mxu0 0.0
    %2621 = vmatprep.subr.mxu0 0.0
    %2622 = vmatpush1.msra.mxu0 0.0
    %2623 = vmatprep.subr.mxu0 0.0
    %2624 = vmatpush1.msra.mxu0 0.0
    %2625 = vmatprep.subr.mxu0 0.0
    %2626 = vmatpush1.msra.mxu0 0.0
    %2627 = vmatprep.mubr.f32.mxu0 0.0
    %v2628 = vand.u32 %v72, 4294901760
    %v2629 = vsub.f32 %v72, %v2628
    %2630 = vmatmul.mubr.f32.gmra.mrb[0].mxu0 %v2629
    %v2631 = vpop.f32.mrb[0].mxu0
    %v2632 = vadd.f32 %v2555, %v2631
    %v2633 = vpop.f32.mrb[0].mxu0
    %v2634 = vadd.f32 %v2557, %v2633
    %2635 = vdwg.mxu0
    %v2636 = vand.u32 %v59, 4294901760
    %2637 = vmatprep.subr.mxu0 %v2636
    %v2638 = vand.u32 %v58, 4294901760
    %2639 = vmatpush1.msra.mxu0 %v2638
    %2640 = vmatprep.subr.mxu0 0.0
    %2641 = vmatpush1.msra.mxu0 0.0
    %2642 = vmatprep.subr.mxu0 0.0
    %2643 = vmatpush1.msra.mxu0 0.0
    %2644 = vmatprep.subr.mxu0 0.0
    %2645 = vmatpush1.msra.mxu0 0.0
    %2646 = vmatprep.subr.mxu0 0.0
    %2647 = vmatpush1.msra.mxu0 0.0
    %2648 = vmatprep.subr.mxu0 0.0
    %2649 = vmatpush1.msra.mxu0 0.0
    %2650 = vmatprep.subr.mxu0 0.0
    %2651 = vmatpush1.msra.mxu0 0.0
    %2652 = vmatprep.subr.mxu0 0.0
    %2653 = vmatpush1.msra.mxu0 0.0
    %2654 = vmatprep.subr.mxu0 0.0
    %2655 = vmatpush1.msra.mxu0 0.0
    %2656 = vmatprep.subr.mxu0 0.0
    %2657 = vmatpush1.msra.mxu0 0.0
    %2658 = vmatprep.subr.mxu0 0.0
    %2659 = vmatpush1.msra.mxu0 0.0
    %2660 = vmatprep.subr.mxu0 0.0
    %2661 = vmatpush1.msra.mxu0 0.0
    %2662 = vmatprep.subr.mxu0 0.0
    %2663 = vmatpush1.msra.mxu0 0.0
    %2664 = vmatprep.subr.mxu0 0.0
    %2665 = vmatpush1.msra.mxu0 0.0
    %2666 = vmatprep.subr.mxu0 0.0
    %2667 = vmatpush1.msra.mxu0 0.0
    %2668 = vmatprep.subr.mxu0 0.0
    %2669 = vmatpush1.msra.mxu0 0.0
    %2670 = vmatprep.subr.mxu0 0.0
    %2671 = vmatpush1.msra.mxu0 0.0
    %2672 = vmatprep.subr.mxu0 0.0
    %2673 = vmatpush1.msra.mxu0 0.0
    %2674 = vmatprep.subr.mxu0 0.0
    %2675 = vmatpush1.msra.mxu0 0.0
    %2676 = vmatprep.subr.mxu0 0.0
    %2677 = vmatpush1.msra.mxu0 0.0
    %2678 = vmatprep.subr.mxu0 0.0
    %2679 = vmatpush1.msra.mxu0 0.0
    %2680 = vmatprep.subr.mxu0 0.0
    %2681 = vmatpush1.msra.mxu0 0.0
    %2682 = vmatprep.subr.mxu0 0.0
    %2683 = vmatpush1.msra.mxu0 0.0
    %2684 = vmatprep.subr.mxu0 0.0
    %2685 = vmatpush1.msra.mxu0 0.0
    %2686 = vmatprep.subr.mxu0 0.0
    %2687 = vmatpush1.msra.mxu0 0.0
    %2688 = vmatprep.subr.mxu0 0.0
    %2689 = vmatpush1.msra.mxu0 0.0
    %2690 = vmatprep.subr.mxu0 0.0
    %2691 = vmatpush1.msra.mxu0 0.0
    %2692 = vmatprep.subr.mxu0 0.0
    %2693 = vmatpush1.msra.mxu0 0.0
    %2694 = vmatprep.subr.mxu0 0.0
    %2695 = vmatpush1.msra.mxu0 0.0
    %2696 = vmatprep.subr.mxu0 0.0
    %2697 = vmatpush1.msra.mxu0 0.0
    %2698 = vmatprep.subr.mxu0 0.0
    %2699 = vmatpush1.msra.mxu0 0.0
    %2700 = vmatprep.subr.mxu0 0.0
    %2701 = vmatpush1.msra.mxu0 0.0
    %2702 = vmatprep.mubr.f32.mxu0 0.0
    %v2703 = vand.u32 %v72, 4294901760
    %v2704 = vsub.f32 %v72, %v2703
    %v2705 = vand.u32 %v2704, 4294901760
    %2706 = vmatmul.mubr.f32.gmra.mrb[0].mxu0 %v2705
    %v2707 = vpop.f32.mrb[0].mxu0
    %v2708 = vadd.f32 %v2632, %v2707
    %v2709 = vpop.f32.mrb[0].mxu0
    %v2710 = vadd.f32 %v2634, %v2709
    %2711 = vdwg.mxu0
    %v2712 = vand.u32 %v59, 4294901760
    %v2713 = vsub.f32 %v59, %v2712
    %v2714 = vand.u32 %v2713, 4294901760
    %2715 = vmatprep.subr.mxu0 %v2714
    %v2716 = vand.u32 %v58, 4294901760
    %v2717 = vsub.f32 %v58, %v2716
    %v2718 = vand.u32 %v2717, 4294901760
    %2719 = vmatpush1.msra.mxu0 %v2718
    %2720 = vmatprep.subr.mxu0 0.0
    %2721 = vmatpush1.msra.mxu0 0.0
    %2722 = vmatprep.subr.mxu0 0.0
    %2723 = vmatpush1.msra.mxu0 0.0
    %2724 = vmatprep.subr.mxu0 0.0
    %2725 = vmatpush1.msra.mxu0 0.0
    %2726 = vmatprep.subr.mxu0 0.0
    %2727 = vmatpush1.msra.mxu0 0.0
    %2728 = vmatprep.subr.mxu0 0.0
    %2729 = vmatpush1.msra.mxu0 0.0
    %2730 = vmatprep.subr.mxu0 0.0
    %2731 = vmatpush1.msra.mxu0 0.0
    %2732 = vmatprep.subr.mxu0 0.0
    %2733 = vmatpush1.msra.mxu0 0.0
    %2734 = vmatprep.subr.mxu0 0.0
    %2735 = vmatpush1.msra.mxu0 0.0
    %2736 = vmatprep.subr.mxu0 0.0
    %2737 = vmatpush1.msra.mxu0 0.0
    %2738 = vmatprep.subr.mxu0 0.0
    %2739 = vmatpush1.msra.mxu0 0.0
    %2740 = vmatprep.subr.mxu0 0.0
    %2741 = vmatpush1.msra.mxu0 0.0
    %2742 = vmatprep.subr.mxu0 0.0
    %2743 = vmatpush1.msra.mxu0 0.0
    %2744 = vmatprep.subr.mxu0 0.0
    %2745 = vmatpush1.msra.mxu0 0.0
    %2746 = vmatprep.subr.mxu0 0.0
    %2747 = vmatpush1.msra.mxu0 0.0
    %2748 = vmatprep.subr.mxu0 0.0
    %2749 = vmatpush1.msra.mxu0 0.0
    %2750 = vmatprep.subr.mxu0 0.0
    %2751 = vmatpush1.msra.mxu0 0.0
    %2752 = vmatprep.subr.mxu0 0.0
    %2753 = vmatpush1.msra.mxu0 0.0
    %2754 = vmatprep.subr.mxu0 0.0
    %2755 = vmatpush1.msra.mxu0 0.0
    %2756 = vmatprep.subr.mxu0 0.0
    %2757 = vmatpush1.msra.mxu0 0.0
    %2758 = vmatprep.subr.mxu0 0.0
    %2759 = vmatpush1.msra.mxu0 0.0
    %2760 = vmatprep.subr.mxu0 0.0
    %2761 = vmatpush1.msra.mxu0 0.0
    %2762 = vmatprep.subr.mxu0 0.0
    %2763 = vmatpush1.msra.mxu0 0.0
    %2764 = vmatprep.subr.mxu0 0.0
    %2765 = vmatpush1.msra.mxu0 0.0
    %2766 = vmatprep.subr.mxu0 0.0
    %2767 = vmatpush1.msra.mxu0 0.0
    %2768 = vmatprep.subr.mxu0 0.0
    %2769 = vmatpush1.msra.mxu0 0.0
    %2770 = vmatprep.subr.mxu0 0.0
    %2771 = vmatpush1.msra.mxu0 0.0
    %2772 = vmatprep.subr.mxu0 0.0
    %2773 = vmatpush1.msra.mxu0 0.0
    %2774 = vmatprep.subr.mxu0 0.0
    %2775 = vmatpush1.msra.mxu0 0.0
    %2776 = vmatprep.subr.mxu0 0.0
    %2777 = vmatpush1.msra.mxu0 0.0
    %2778 = vmatprep.subr.mxu0 0.0
    %2779 = vmatpush1.msra.mxu0 0.0
    %2780 = vmatprep.subr.mxu0 0.0
    %2781 = vmatpush1.msra.mxu0 0.0
    %2782 = vmatprep.mubr.f32.mxu0 0.0
    %v2783 = vand.u32 %v72, 4294901760
    %2784 = vmatmul.mubr.f32.gmra.mrb[0].mxu0 %v2783
    %v2785 = vpop.f32.mrb[0].mxu0
    %v2786 = vadd.f32 %v2708, %v2785
    %v2787 = vpop.f32.mrb[0].mxu0
    %v2788 = vadd.f32 %v2710, %v2787
    %2789 = vdwg.mxu0
    %v2790 = vand.u32 %v59, 4294901760
    %2791 = vmatprep.subr.mxu0 %v2790
    %v2792 = vand.u32 %v58, 4294901760
    %2793 = vmatpush1.msra.mxu0 %v2792
    %2794 = vmatprep.subr.mxu0 0.0
    %2795 = vmatpush1.msra.mxu0 0.0
    %2796 = vmatprep.subr.mxu0 0.0
    %2797 = vmatpush1.msra.mxu0 0.0
    %2798 = vmatprep.subr.mxu0 0.0
    %2799 = vmatpush1.msra.mxu0 0.0
    %2800 = vmatprep.subr.mxu0 0.0
    %2801 = vmatpush1.msra.mxu0 0.0
    %2802 = vmatprep.subr.mxu0 0.0
    %2803 = vmatpush1.msra.mxu0 0.0
    %2804 = vmatprep.subr.mxu0 0.0
    %2805 = vmatpush1.msra.mxu0 0.0
    %2806 = vmatprep.subr.mxu0 0.0
    %2807 = vmatpush1.msra.mxu0 0.0
    %2808 = vmatprep.subr.mxu0 0.0
    %2809 = vmatpush1.msra.mxu0 0.0
    %2810 = vmatprep.subr.mxu0 0.0
    %2811 = vmatpush1.msra.mxu0 0.0
    %2812 = vmatprep.subr.mxu0 0.0
    %2813 = vmatpush1.msra.mxu0 0.0
    %2814 = vmatprep.subr.mxu0 0.0
    %2815 = vmatpush1.msra.mxu0 0.0
    %2816 = vmatprep.subr.mxu0 0.0
    %2817 = vmatpush1.msra.mxu0 0.0
    %2818 = vmatprep.subr.mxu0 0.0
    %2819 = vmatpush1.msra.mxu0 0.0
    %2820 = vmatprep.subr.mxu0 0.0
    %2821 = vmatpush1.msra.mxu0 0.0
    %2822 = vmatprep.subr.mxu0 0.0
    %2823 = vmatpush1.msra.mxu0 0.0
    %2824 = vmatprep.subr.mxu0 0.0
    %2825 = vmatpush1.msra.mxu0 0.0
    %2826 = vmatprep.subr.mxu0 0.0
    %2827 = vmatpush1.msra.mxu0 0.0
    %2828 = vmatprep.subr.mxu0 0.0
    %2829 = vmatpush1.msra.mxu0 0.0
    %2830 = vmatprep.subr.mxu0 0.0
    %2831 = vmatpush1.msra.mxu0 0.0
    %2832 = vmatprep.subr.mxu0 0.0
    %2833 = vmatpush1.msra.mxu0 0.0
    %2834 = vmatprep.subr.mxu0 0.0
    %2835 = vmatpush1.msra.mxu0 0.0
    %2836 = vmatprep.subr.mxu0 0.0
    %2837 = vmatpush1.msra.mxu0 0.0
    %2838 = vmatprep.subr.mxu0 0.0
    %2839 = vmatpush1.msra.mxu0 0.0
    %2840 = vmatprep.subr.mxu0 0.0
    %2841 = vmatpush1.msra.mxu0 0.0
    %2842 = vmatprep.subr.mxu0 0.0
    %2843 = vmatpush1.msra.mxu0 0.0
    %2844 = vmatprep.subr.mxu0 0.0
    %2845 = vmatpush1.msra.mxu0 0.0
    %2846 = vmatprep.subr.mxu0 0.0
    %2847 = vmatpush1.msra.mxu0 0.0
    %2848 = vmatprep.subr.mxu0 0.0
    %2849 = vmatpush1.msra.mxu0 0.0
    %2850 = vmatprep.subr.mxu0 0.0
    %2851 = vmatpush1.msra.mxu0 0.0
    %2852 = vmatprep.subr.mxu0 0.0
    %2853 = vmatpush1.msra.mxu0 0.0
    %2854 = vmatprep.subr.mxu0 0.0
    %2855 = vmatpush1.msra.mxu0 0.0
    %2856 = vmatprep.mubr.f32.mxu0 0.0
    %v2857 = vand.u32 %v72, 4294901760
    %2858 = vmatmul.mubr.f32.gmra.mrb[0].mxu0 %v2857
    %v2859 = vpop.f32.mrb[0].mxu0
    %v2860 = vadd.f32 %v2786, %v2859
    %v2861 = vpop.f32.mrb[0].mxu0
    %v2862 = vadd.f32 %v2788, %v2861
    %2863 = vdwg.mxu0
    %v2864 = vand.u32 %v61, 4294901760
    %2865 = vmatprep.subr.mxu0 %v2864
    %v2866 = vand.u32 %v60, 4294901760
    %2867 = vmatpush1.msra.mxu0 %v2866
    %2868 = vmatprep.subr.mxu0 0.0
    %2869 = vmatpush1.msra.mxu0 0.0
    %2870 = vmatprep.subr.mxu0 0.0
    %2871 = vmatpush1.msra.mxu0 0.0
    %2872 = vmatprep.subr.mxu0 0.0
    %2873 = vmatpush1.msra.mxu0 0.0
    %2874 = vmatprep.subr.mxu0 0.0
    %2875 = vmatpush1.msra.mxu0 0.0
    %2876 = vmatprep.subr.mxu0 0.0
    %2877 = vmatpush1.msra.mxu0 0.0
    %2878 = vmatprep.subr.mxu0 0.0
    %2879 = vmatpush1.msra.mxu0 0.0
    %2880 = vmatprep.subr.mxu0 0.0
    %2881 = vmatpush1.msra.mxu0 0.0
    %2882 = vmatprep.subr.mxu0 0.0
    %2883 = vmatpush1.msra.mxu0 0.0
    %2884 = vmatprep.subr.mxu0 0.0
    %2885 = vmatpush1.msra.mxu0 0.0
    %2886 = vmatprep.subr.mxu0 0.0
    %2887 = vmatpush1.msra.mxu0 0.0
    %2888 = vmatprep.subr.mxu0 0.0
    %2889 = vmatpush1.msra.mxu0 0.0
    %2890 = vmatprep.subr.mxu0 0.0
    %2891 = vmatpush1.msra.mxu0 0.0
    %2892 = vmatprep.subr.mxu0 0.0
    %2893 = vmatpush1.msra.mxu0 0.0
    %2894 = vmatprep.subr.mxu0 0.0
    %2895 = vmatpush1.msra.mxu0 0.0
    %2896 = vmatprep.subr.mxu0 0.0
    %2897 = vmatpush1.msra.mxu0 0.0
    %2898 = vmatprep.subr.mxu0 0.0
    %2899 = vmatpush1.msra.mxu0 0.0
    %2900 = vmatprep.subr.mxu0 0.0
    %2901 = vmatpush1.msra.mxu0 0.0
    %2902 = vmatprep.subr.mxu0 0.0
    %2903 = vmatpush1.msra.mxu0 0.0
    %2904 = vmatprep.subr.mxu0 0.0
    %2905 = vmatpush1.msra.mxu0 0.0
    %2906 = vmatprep.subr.mxu0 0.0
    %2907 = vmatpush1.msra.mxu0 0.0
    %2908 = vmatprep.subr.mxu0 0.0
    %2909 = vmatpush1.msra.mxu0 0.0
    %2910 = vmatprep.subr.mxu0 0.0
    %2911 = vmatpush1.msra.mxu0 0.0
    %2912 = vmatprep.subr.mxu0 0.0
    %2913 = vmatpush1.msra.mxu0 0.0
    %2914 = vmatprep.subr.mxu0 0.0
    %2915 = vmatpush1.msra.mxu0 0.0
    %2916 = vmatprep.subr.mxu0 0.0
    %2917 = vmatpush1.msra.mxu0 0.0
    %2918 = vmatprep.subr.mxu0 0.0
    %2919 = vmatpush1.msra.mxu0 0.0
    %2920 = vmatprep.subr.mxu0 0.0
    %2921 = vmatpush1.msra.mxu0 0.0
    %2922 = vmatprep.subr.mxu0 0.0
    %2923 = vmatpush1.msra.mxu0 0.0
    %2924 = vmatprep.subr.mxu0 0.0
    %2925 = vmatpush1.msra.mxu0 0.0
    %2926 = vmatprep.subr.mxu0 0.0
    %2927 = vmatpush1.msra.mxu0 0.0
    %2928 = vmatprep.subr.mxu0 0.0
    %2929 = vmatpush1.msra.mxu0 0.0
    %2930 = vmatprep.mubr.f32.mxu0 0.0
    %v2931 = vand.u32 %v72, 4294901760
    %v2932 = vsub.f32 %v72, %v2931
    %v2933 = vand.u32 %v2932, 4294901760
    %v2934 = vsub.f32 %v2932, %v2933
    %v2935 = vand.u32 %v2934, 4294901760
    %2936 = vmatmul.mubr.f32.gmra.mrb[0].mxu0 %v2935
    %v2937 = vpop.f32.mrb[0].mxu0
    %v2938 = vadd.f32 %v68, %v2937
    %v2939 = vpop.f32.mrb[0].mxu0
    %v2940 = vadd.f32 %v68, %v2939
    %2941 = vdwg.mxu0
    %v2942 = vand.u32 %v61, 4294901760
    %v2943 = vsub.f32 %v61, %v2942
    %v2944 = vand.u32 %v2943, 4294901760
    %v2945 = vsub.f32 %v2943, %v2944
    %v2946 = vand.u32 %v2945, 4294901760
    %2947 = vmatprep.subr.mxu0 %v2946
    %v2948 = vand.u32 %v60, 4294901760
    %v2949 = vsub.f32 %v60, %v2948
    %v2950 = vand.u32 %v2949, 4294901760
    %v2951 = vsub.f32 %v2949, %v2950
    %v2952 = vand.u32 %v2951, 4294901760
    %2953 = vmatpush1.msra.mxu0 %v2952
    %2954 = vmatprep.subr.mxu0 0.0
    %2955 = vmatpush1.msra.mxu0 0.0
    %2956 = vmatprep.subr.mxu0 0.0
    %2957 = vmatpush1.msra.mxu0 0.0
    %2958 = vmatprep.subr.mxu0 0.0
    %2959 = vmatpush1.msra.mxu0 0.0
    %2960 = vmatprep.subr.mxu0 0.0
    %2961 = vmatpush1.msra.mxu0 0.0
    %2962 = vmatprep.subr.mxu0 0.0
    %2963 = vmatpush1.msra.mxu0 0.0
    %2964 = vmatprep.subr.mxu0 0.0
    %2965 = vmatpush1.msra.mxu0 0.0
    %2966 = vmatprep.subr.mxu0 0.0
    %2967 = vmatpush1.msra.mxu0 0.0
    %2968 = vmatprep.subr.mxu0 0.0
    %2969 = vmatpush1.msra.mxu0 0.0
    %2970 = vmatprep.subr.mxu0 0.0
    %2971 = vmatpush1.msra.mxu0 0.0
    %2972 = vmatprep.subr.mxu0 0.0
    %2973 = vmatpush1.msra.mxu0 0.0
    %2974 = vmatprep.subr.mxu0 0.0
    %2975 = vmatpush1.msra.mxu0 0.0
    %2976 = vmatprep.subr.mxu0 0.0
    %2977 = vmatpush1.msra.mxu0 0.0
    %2978 = vmatprep.subr.mxu0 0.0
    %2979 = vmatpush1.msra.mxu0 0.0
    %2980 = vmatprep.subr.mxu0 0.0
    %2981 = vmatpush1.msra.mxu0 0.0
    %2982 = vmatprep.subr.mxu0 0.0
    %2983 = vmatpush1.msra.mxu0 0.0
    %2984 = vmatprep.subr.mxu0 0.0
    %2985 = vmatpush1.msra.mxu0 0.0
    %2986 = vmatprep.subr.mxu0 0.0
    %2987 = vmatpush1.msra.mxu0 0.0
    %2988 = vmatprep.subr.mxu0 0.0
    %2989 = vmatpush1.msra.mxu0 0.0
    %2990 = vmatprep.subr.mxu0 0.0
    %2991 = vmatpush1.msra.mxu0 0.0
    %2992 = vmatprep.subr.mxu0 0.0
    %2993 = vmatpush1.msra.mxu0 0.0
    %2994 = vmatprep.subr.mxu0 0.0
    %2995 = vmatpush1.msra.mxu0 0.0
    %2996 = vmatprep.subr.mxu0 0.0
    %2997 = vmatpush1.msra.mxu0 0.0
    %2998 = vmatprep.subr.mxu0 0.0
    %2999 = vmatpush1.msra.mxu0 0.0
    %3000 = vmatprep.subr.mxu0 0.0
    %3001 = vmatpush1.msra.mxu0 0.0
    %3002 = vmatprep.subr.mxu0 0.0
    %3003 = vmatpush1.msra.mxu0 0.0
    %3004 = vmatprep.subr.mxu0 0.0
    %3005 = vmatpush1.msra.mxu0 0.0
    %3006 = vmatprep.subr.mxu0 0.0
    %3007 = vmatpush1.msra.mxu0 0.0
    %3008 = vmatprep.subr.mxu0 0.0
    %3009 = vmatpush1.msra.mxu0 0.0
    %3010 = vmatprep.subr.mxu0 0.0
    %3011 = vmatpush1.msra.mxu0 0.0
    %3012 = vmatprep.subr.mxu0 0.0
    %3013 = vmatpush1.msra.mxu0 0.0
    %3014 = vmatprep.subr.mxu0 0.0
    %3015 = vmatpush1.msra.mxu0 0.0
    %3016 = vmatprep.mubr.f32.mxu0 0.0
    %v3017 = vand.u32 %v72, 4294901760
    %3018 = vmatmul.mubr.f32.gmra.mrb[0].mxu0 %v3017
    %v3019 = vpop.f32.mrb[0].mxu0
    %v3020 = vadd.f32 %v2938, %v3019
    %v3021 = vpop.f32.mrb[0].mxu0
    %v3022 = vadd.f32 %v2940, %v3021
    %3023 = vdwg.mxu0
    %v3024 = vand.u32 %v61, 4294901760
    %v3025 = vsub.f32 %v61, %v3024
    %3026 = vmatprep.subr.mxu0 %v3025
    %v3027 = vand.u32 %v60, 4294901760
    %v3028 = vsub.f32 %v60, %v3027
    %3029 = vmatpush1.msra.mxu0 %v3028
    %3030 = vmatprep.subr.mxu0 0.0
    %3031 = vmatpush1.msra.mxu0 0.0
    %3032 = vmatprep.subr.mxu0 0.0
    %3033 = vmatpush1.msra.mxu0 0.0
    %3034 = vmatprep.subr.mxu0 0.0
    %3035 = vmatpush1.msra.mxu0 0.0
    %3036 = vmatprep.subr.mxu0 0.0
    %3037 = vmatpush1.msra.mxu0 0.0
    %3038 = vmatprep.subr.mxu0 0.0
    %3039 = vmatpush1.msra.mxu0 0.0
    %3040 = vmatprep.subr.mxu0 0.0
    %3041 = vmatpush1.msra.mxu0 0.0
    %3042 = vmatprep.subr.mxu0 0.0
    %3043 = vmatpush1.msra.mxu0 0.0
    %3044 = vmatprep.subr.mxu0 0.0
    %3045 = vmatpush1.msra.mxu0 0.0
    %3046 = vmatprep.subr.mxu0 0.0
    %3047 = vmatpush1.msra.mxu0 0.0
    %3048 = vmatprep.subr.mxu0 0.0
    %3049 = vmatpush1.msra.mxu0 0.0
    %3050 = vmatprep.subr.mxu0 0.0
    %3051 = vmatpush1.msra.mxu0 0.0
    %3052 = vmatprep.subr.mxu0 0.0
    %3053 = vmatpush1.msra.mxu0 0.0
    %3054 = vmatprep.subr.mxu0 0.0
    %3055 = vmatpush1.msra.mxu0 0.0
    %3056 = vmatprep.subr.mxu0 0.0
    %3057 = vmatpush1.msra.mxu0 0.0
    %3058 = vmatprep.subr.mxu0 0.0
    %3059 = vmatpush1.msra.mxu0 0.0
    %3060 = vmatprep.subr.mxu0 0.0
    %3061 = vmatpush1.msra.mxu0 0.0
    %3062 = vmatprep.subr.mxu0 0.0
    %3063 = vmatpush1.msra.mxu0 0.0
    %3064 = vmatprep.subr.mxu0 0.0
    %3065 = vmatpush1.msra.mxu0 0.0
    %3066 = vmatprep.subr.mxu0 0.0
    %3067 = vmatpush1.msra.mxu0 0.0
    %3068 = vmatprep.subr.mxu0 0.0
    %3069 = vmatpush1.msra.mxu0 0.0
    %3070 = vmatprep.subr.mxu0 0.0
    %3071 = vmatpush1.msra.mxu0 0.0
    %3072 = vmatprep.subr.mxu0 0.0
    %3073 = vmatpush1.msra.mxu0 0.0
    %3074 = vmatprep.subr.mxu0 0.0
    %3075 = vmatpush1.msra.mxu0 0.0
    %3076 = vmatprep.subr.mxu0 0.0
    %3077 = vmatpush1.msra.mxu0 0.0
    %3078 = vmatprep.subr.mxu0 0.0
    %3079 = vmatpush1.msra.mxu0 0.0
    %3080 = vmatprep.subr.mxu0 0.0
    %3081 = vmatpush1.msra.mxu0 0.0
    %3082 = vmatprep.subr.mxu0 0.0
    %3083 = vmatpush1.msra.mxu0 0.0
    %3084 = vmatprep.subr.mxu0 0.0
    %3085 = vmatpush1.msra.mxu0 0.0
    %3086 = vmatprep.subr.mxu0 0.0
    %3087 = vmatpush1.msra.mxu0 0.0
    %3088 = vmatprep.subr.mxu0 0.0
    %3089 = vmatpush1.msra.mxu0 0.0
    %3090 = vmatprep.subr.mxu0 0.0
    %3091 = vmatpush1.msra.mxu0 0.0
    %3092 = vmatprep.mubr.f32.mxu0 0.0
    %v3093 = vand.u32 %v72, 4294901760
    %v3094 = vsub.f32 %v72, %v3093
    %3095 = vmatmul.mubr.f32.gmra.mrb[0].mxu0 %v3094
    %v3096 = vpop.f32.mrb[0].mxu0
    %v3097 = vadd.f32 %v3020, %v3096
    %v3098 = vpop.f32.mrb[0].mxu0
    %v3099 = vadd.f32 %v3022, %v3098
    %3100 = vdwg.mxu0
    %v3101 = vand.u32 %v61, 4294901760
    %3102 = vmatprep.subr.mxu0 %v3101
    %v3103 = vand.u32 %v60, 4294901760
    %3104 = vmatpush1.msra.mxu0 %v3103
    %3105 = vmatprep.subr.mxu0 0.0
    %3106 = vmatpush1.msra.mxu0 0.0
    %3107 = vmatprep.subr.mxu0 0.0
    %3108 = vmatpush1.msra.mxu0 0.0
    %3109 = vmatprep.subr.mxu0 0.0
    %3110 = vmatpush1.msra.mxu0 0.0
    %3111 = vmatprep.subr.mxu0 0.0
    %3112 = vmatpush1.msra.mxu0 0.0
    %3113 = vmatprep.subr.mxu0 0.0
    %3114 = vmatpush1.msra.mxu0 0.0
    %3115 = vmatprep.subr.mxu0 0.0
    %3116 = vmatpush1.msra.mxu0 0.0
    %3117 = vmatprep.subr.mxu0 0.0
    %3118 = vmatpush1.msra.mxu0 0.0
    %3119 = vmatprep.subr.mxu0 0.0
    %3120 = vmatpush1.msra.mxu0 0.0
    %3121 = vmatprep.subr.mxu0 0.0
    %3122 = vmatpush1.msra.mxu0 0.0
    %3123 = vmatprep.subr.mxu0 0.0
    %3124 = vmatpush1.msra.mxu0 0.0
    %3125 = vmatprep.subr.mxu0 0.0
    %3126 = vmatpush1.msra.mxu0 0.0
    %3127 = vmatprep.subr.mxu0 0.0
    %3128 = vmatpush1.msra.mxu0 0.0
    %3129 = vmatprep.subr.mxu0 0.0
    %3130 = vmatpush1.msra.mxu0 0.0
    %3131 = vmatprep.subr.mxu0 0.0
    %3132 = vmatpush1.msra.mxu0 0.0
    %3133 = vmatprep.subr.mxu0 0.0
    %3134 = vmatpush1.msra.mxu0 0.0
    %3135 = vmatprep.subr.mxu0 0.0
    %3136 = vmatpush1.msra.mxu0 0.0
    %3137 = vmatprep.subr.mxu0 0.0
    %3138 = vmatpush1.msra.mxu0 0.0
    %3139 = vmatprep.subr.mxu0 0.0
    %3140 = vmatpush1.msra.mxu0 0.0
    %3141 = vmatprep.subr.mxu0 0.0
    %3142 = vmatpush1.msra.mxu0 0.0
    %3143 = vmatprep.subr.mxu0 0.0
    %3144 = vmatpush1.msra.mxu0 0.0
    %3145 = vmatprep.subr.mxu0 0.0
    %3146 = vmatpush1.msra.mxu0 0.0
    %3147 = vmatprep.subr.mxu0 0.0
    %3148 = vmatpush1.msra.mxu0 0.0
    %3149 = vmatprep.subr.mxu0 0.0
    %3150 = vmatpush1.msra.mxu0 0.0
    %3151 = vmatprep.subr.mxu0 0.0
    %3152 = vmatpush1.msra.mxu0 0.0
    %3153 = vmatprep.subr.mxu0 0.0
    %3154 = vmatpush1.msra.mxu0 0.0
    %3155 = vmatprep.subr.mxu0 0.0
    %3156 = vmatpush1.msra.mxu0 0.0
    %3157 = vmatprep.subr.mxu0 0.0
    %3158 = vmatpush1.msra.mxu0 0.0
    %3159 = vmatprep.subr.mxu0 0.0
    %3160 = vmatpush1.msra.mxu0 0.0
    %3161 = vmatprep.subr.mxu0 0.0
    %3162 = vmatpush1.msra.mxu0 0.0
    %3163 = vmatprep.subr.mxu0 0.0
    %3164 = vmatpush1.msra.mxu0 0.0
    %3165 = vmatprep.subr.mxu0 0.0
    %3166 = vmatpush1.msra.mxu0 0.0
    %3167 = vmatprep.mubr.f32.mxu0 0.0
    %v3168 = vand.u32 %v72, 4294901760
    %v3169 = vsub.f32 %v72, %v3168
    %v3170 = vand.u32 %v3169, 4294901760
    %3171 = vmatmul.mubr.f32.gmra.mrb[0].mxu0 %v3170
    %v3172 = vpop.f32.mrb[0].mxu0
    %v3173 = vadd.f32 %v3097, %v3172
    %v3174 = vpop.f32.mrb[0].mxu0
    %v3175 = vadd.f32 %v3099, %v3174
    %3176 = vdwg.mxu0
    %v3177 = vand.u32 %v61, 4294901760
    %v3178 = vsub.f32 %v61, %v3177
    %v3179 = vand.u32 %v3178, 4294901760
    %3180 = vmatprep.subr.mxu0 %v3179
    %v3181 = vand.u32 %v60, 4294901760
    %v3182 = vsub.f32 %v60, %v3181
    %v3183 = vand.u32 %v3182, 4294901760
    %3184 = vmatpush1.msra.mxu0 %v3183
    %3185 = vmatprep.subr.mxu0 0.0
    %3186 = vmatpush1.msra.mxu0 0.0
    %3187 = vmatprep.subr.mxu0 0.0
    %3188 = vmatpush1.msra.mxu0 0.0
    %3189 = vmatprep.subr.mxu0 0.0
    %3190 = vmatpush1.msra.mxu0 0.0
    %3191 = vmatprep.subr.mxu0 0.0
    %3192 = vmatpush1.msra.mxu0 0.0
    %3193 = vmatprep.subr.mxu0 0.0
    %3194 = vmatpush1.msra.mxu0 0.0
    %3195 = vmatprep.subr.mxu0 0.0
    %3196 = vmatpush1.msra.mxu0 0.0
    %3197 = vmatprep.subr.mxu0 0.0
    %3198 = vmatpush1.msra.mxu0 0.0
    %3199 = vmatprep.subr.mxu0 0.0
    %3200 = vmatpush1.msra.mxu0 0.0
    %3201 = vmatprep.subr.mxu0 0.0
    %3202 = vmatpush1.msra.mxu0 0.0
    %3203 = vmatprep.subr.mxu0 0.0
    %3204 = vmatpush1.msra.mxu0 0.0
    %3205 = vmatprep.subr.mxu0 0.0
    %3206 = vmatpush1.msra.mxu0 0.0
    %3207 = vmatprep.subr.mxu0 0.0
    %3208 = vmatpush1.msra.mxu0 0.0
    %3209 = vmatprep.subr.mxu0 0.0
    %3210 = vmatpush1.msra.mxu0 0.0
    %3211 = vmatprep.subr.mxu0 0.0
    %3212 = vmatpush1.msra.mxu0 0.0
    %3213 = vmatprep.subr.mxu0 0.0
    %3214 = vmatpush1.msra.mxu0 0.0
    %3215 = vmatprep.subr.mxu0 0.0
    %3216 = vmatpush1.msra.mxu0 0.0
    %3217 = vmatprep.subr.mxu0 0.0
    %3218 = vmatpush1.msra.mxu0 0.0
    %3219 = vmatprep.subr.mxu0 0.0
    %3220 = vmatpush1.msra.mxu0 0.0
    %3221 = vmatprep.subr.mxu0 0.0
    %3222 = vmatpush1.msra.mxu0 0.0
    %3223 = vmatprep.subr.mxu0 0.0
    %3224 = vmatpush1.msra.mxu0 0.0
    %3225 = vmatprep.subr.mxu0 0.0
    %3226 = vmatpush1.msra.mxu0 0.0
    %3227 = vmatprep.subr.mxu0 0.0
    %3228 = vmatpush1.msra.mxu0 0.0
    %3229 = vmatprep.subr.mxu0 0.0
    %3230 = vmatpush1.msra.mxu0 0.0
    %3231 = vmatprep.subr.mxu0 0.0
    %3232 = vmatpush1.msra.mxu0 0.0
    %3233 = vmatprep.subr.mxu0 0.0
    %3234 = vmatpush1.msra.mxu0 0.0
    %3235 = vmatprep.subr.mxu0 0.0
    %3236 = vmatpush1.msra.mxu0 0.0
    %3237 = vmatprep.subr.mxu0 0.0
    %3238 = vmatpush1.msra.mxu0 0.0
    %3239 = vmatprep.subr.mxu0 0.0
    %3240 = vmatpush1.msra.mxu0 0.0
    %3241 = vmatprep.subr.mxu0 0.0
    %3242 = vmatpush1.msra.mxu0 0.0
    %3243 = vmatprep.subr.mxu0 0.0
    %3244 = vmatpush1.msra.mxu0 0.0
    %3245 = vmatprep.subr.mxu0 0.0
    %3246 = vmatpush1.msra.mxu0 0.0
    %3247 = vmatprep.mubr.f32.mxu0 0.0
    %v3248 = vand.u32 %v72, 4294901760
    %3249 = vmatmul.mubr.f32.gmra.mrb[0].mxu0 %v3248
    %v3250 = vpop.f32.mrb[0].mxu0
    %v3251 = vadd.f32 %v3173, %v3250
    %v3252 = vpop.f32.mrb[0].mxu0
    %v3253 = vadd.f32 %v3175, %v3252
    %3254 = vdwg.mxu0
    %v3255 = vand.u32 %v61, 4294901760
    %3256 = vmatprep.subr.mxu0 %v3255
    %v3257 = vand.u32 %v60, 4294901760
    %3258 = vmatpush1.msra.mxu0 %v3257
    %3259 = vmatprep.subr.mxu0 0.0
    %3260 = vmatpush1.msra.mxu0 0.0
    %3261 = vmatprep.subr.mxu0 0.0
    %3262 = vmatpush1.msra.mxu0 0.0
    %3263 = vmatprep.subr.mxu0 0.0
    %3264 = vmatpush1.msra.mxu0 0.0
    %3265 = vmatprep.subr.mxu0 0.0
    %3266 = vmatpush1.msra.mxu0 0.0
    %3267 = vmatprep.subr.mxu0 0.0
    %3268 = vmatpush1.msra.mxu0 0.0
    %3269 = vmatprep.subr.mxu0 0.0
    %3270 = vmatpush1.msra.mxu0 0.0
    %3271 = vmatprep.subr.mxu0 0.0
    %3272 = vmatpush1.msra.mxu0 0.0
    %3273 = vmatprep.subr.mxu0 0.0
    %3274 = vmatpush1.msra.mxu0 0.0
    %3275 = vmatprep.subr.mxu0 0.0
    %3276 = vmatpush1.msra.mxu0 0.0
    %3277 = vmatprep.subr.mxu0 0.0
    %3278 = vmatpush1.msra.mxu0 0.0
    %3279 = vmatprep.subr.mxu0 0.0
    %3280 = vmatpush1.msra.mxu0 0.0
    %3281 = vmatprep.subr.mxu0 0.0
    %3282 = vmatpush1.msra.mxu0 0.0
    %3283 = vmatprep.subr.mxu0 0.0
    %3284 = vmatpush1.msra.mxu0 0.0
    %3285 = vmatprep.subr.mxu0 0.0
    %3286 = vmatpush1.msra.mxu0 0.0
    %3287 = vmatprep.subr.mxu0 0.0
    %3288 = vmatpush1.msra.mxu0 0.0
    %3289 = vmatprep.subr.mxu0 0.0
    %3290 = vmatpush1.msra.mxu0 0.0
    %3291 = vmatprep.subr.mxu0 0.0
    %3292 = vmatpush1.msra.mxu0 0.0
    %3293 = vmatprep.subr.mxu0 0.0
    %3294 = vmatpush1.msra.mxu0 0.0
    %3295 = vmatprep.subr.mxu0 0.0
    %3296 = vmatpush1.msra.mxu0 0.0
    %3297 = vmatprep.subr.mxu0 0.0
    %3298 = vmatpush1.msra.mxu0 0.0
    %3299 = vmatprep.subr.mxu0 0.0
    %3300 = vmatpush1.msra.mxu0 0.0
    %3301 = vmatprep.subr.mxu0 0.0
    %3302 = vmatpush1.msra.mxu0 0.0
    %3303 = vmatprep.subr.mxu0 0.0
    %3304 = vmatpush1.msra.mxu0 0.0
    %3305 = vmatprep.subr.mxu0 0.0
    %3306 = vmatpush1.msra.mxu0 0.0
    %3307 = vmatprep.subr.mxu0 0.0
    %3308 = vmatpush1.msra.mxu0 0.0
    %3309 = vmatprep.subr.mxu0 0.0
    %3310 = vmatpush1.msra.mxu0 0.0
    %3311 = vmatprep.subr.mxu0 0.0
    %3312 = vmatpush1.msra.mxu0 0.0
    %3313 = vmatprep.subr.mxu0 0.0
    %3314 = vmatpush1.msra.mxu0 0.0
    %3315 = vmatprep.subr.mxu0 0.0
    %3316 = vmatpush1.msra.mxu0 0.0
    %3317 = vmatprep.subr.mxu0 0.0
    %3318 = vmatpush1.msra.mxu0 0.0
    %3319 = vmatprep.subr.mxu0 0.0
    %3320 = vmatpush1.msra.mxu0 0.0
    %3321 = vmatprep.mubr.f32.mxu0 0.0
    %v3322 = vand.u32 %v72, 4294901760
    %3323 = vmatmul.mubr.f32.gmra.mrb[0].mxu0 %v3322
    %v3324 = vpop.f32.mrb[0].mxu0
    %v3325 = vadd.f32 %v3251, %v3324
    %v3326 = vpop.f32.mrb[0].mxu0
    %v3327 = vadd.f32 %v3253, %v3326
    %3328 = vdwg.mxu0
    %v3329 = vand.u32 %v63, 4294901760
    %3330 = vmatprep.subr.mxu0 %v3329
    %v3331 = vand.u32 %v62, 4294901760
    %3332 = vmatpush1.msra.mxu0 %v3331
    %3333 = vmatprep.subr.mxu0 0.0
    %3334 = vmatpush1.msra.mxu0 0.0
    %3335 = vmatprep.subr.mxu0 0.0
    %3336 = vmatpush1.msra.mxu0 0.0
    %3337 = vmatprep.subr.mxu0 0.0
    %3338 = vmatpush1.msra.mxu0 0.0
    %3339 = vmatprep.subr.mxu0 0.0
    %3340 = vmatpush1.msra.mxu0 0.0
    %3341 = vmatprep.subr.mxu0 0.0
    %3342 = vmatpush1.msra.mxu0 0.0
    %3343 = vmatprep.subr.mxu0 0.0
    %3344 = vmatpush1.msra.mxu0 0.0
    %3345 = vmatprep.subr.mxu0 0.0
    %3346 = vmatpush1.msra.mxu0 0.0
    %3347 = vmatprep.subr.mxu0 0.0
    %3348 = vmatpush1.msra.mxu0 0.0
    %3349 = vmatprep.subr.mxu0 0.0
    %3350 = vmatpush1.msra.mxu0 0.0
    %3351 = vmatprep.subr.mxu0 0.0
    %3352 = vmatpush1.msra.mxu0 0.0
    %3353 = vmatprep.subr.mxu0 0.0
    %3354 = vmatpush1.msra.mxu0 0.0
    %3355 = vmatprep.subr.mxu0 0.0
    %3356 = vmatpush1.msra.mxu0 0.0
    %3357 = vmatprep.subr.mxu0 0.0
    %3358 = vmatpush1.msra.mxu0 0.0
    %3359 = vmatprep.subr.mxu0 0.0
    %3360 = vmatpush1.msra.mxu0 0.0
    %3361 = vmatprep.subr.mxu0 0.0
    %3362 = vmatpush1.msra.mxu0 0.0
    %3363 = vmatprep.subr.mxu0 0.0
    %3364 = vmatpush1.msra.mxu0 0.0
    %3365 = vmatprep.subr.mxu0 0.0
    %3366 = vmatpush1.msra.mxu0 0.0
    %3367 = vmatprep.subr.mxu0 0.0
    %3368 = vmatpush1.msra.mxu0 0.0
    %3369 = vmatprep.subr.mxu0 0.0
    %3370 = vmatpush1.msra.mxu0 0.0
    %3371 = vmatprep.subr.mxu0 0.0
    %3372 = vmatpush1.msra.mxu0 0.0
    %3373 = vmatprep.subr.mxu0 0.0
    %3374 = vmatpush1.msra.mxu0 0.0
    %3375 = vmatprep.subr.mxu0 0.0
    %3376 = vmatpush1.msra.mxu0 0.0
    %3377 = vmatprep.subr.mxu0 0.0
    %3378 = vmatpush1.msra.mxu0 0.0
    %3379 = vmatprep.subr.mxu0 0.0
    %3380 = vmatpush1.msra.mxu0 0.0
    %3381 = vmatprep.subr.mxu0 0.0
    %3382 = vmatpush1.msra.mxu0 0.0
    %3383 = vmatprep.subr.mxu0 0.0
    %3384 = vmatpush1.msra.mxu0 0.0
    %3385 = vmatprep.subr.mxu0 0.0
    %3386 = vmatpush1.msra.mxu0 0.0
    %3387 = vmatprep.subr.mxu0 0.0
    %3388 = vmatpush1.msra.mxu0 0.0
    %3389 = vmatprep.subr.mxu0 0.0
    %3390 = vmatpush1.msra.mxu0 0.0
    %3391 = vmatprep.subr.mxu0 0.0
    %3392 = vmatpush1.msra.mxu0 0.0
    %3393 = vmatprep.subr.mxu0 0.0
    %3394 = vmatpush1.msra.mxu0 0.0
    %3395 = vmatprep.mubr.f32.mxu0 0.0
    %v3396 = vand.u32 %v72, 4294901760
    %v3397 = vsub.f32 %v72, %v3396
    %v3398 = vand.u32 %v3397, 4294901760
    %v3399 = vsub.f32 %v3397, %v3398
    %v3400 = vand.u32 %v3399, 4294901760
    %3401 = vmatmul.mubr.f32.gmra.mrb[0].mxu0 %v3400
    %v3402 = vpop.f32.mrb[0].mxu0
    %v3403 = vadd.f32 %v68, %v3402
    %v3404 = vpop.f32.mrb[0].mxu0
    %v3405 = vadd.f32 %v68, %v3404
    %3406 = vdwg.mxu0
    %v3407 = vand.u32 %v63, 4294901760
    %v3408 = vsub.f32 %v63, %v3407
    %v3409 = vand.u32 %v3408, 4294901760
    %v3410 = vsub.f32 %v3408, %v3409
    %v3411 = vand.u32 %v3410, 4294901760
    %3412 = vmatprep.subr.mxu0 %v3411
    %v3413 = vand.u32 %v62, 4294901760
    %v3414 = vsub.f32 %v62, %v3413
    %v3415 = vand.u32 %v3414, 4294901760
    %v3416 = vsub.f32 %v3414, %v3415
    %v3417 = vand.u32 %v3416, 4294901760
    %3418 = vmatpush1.msra.mxu0 %v3417
    %3419 = vmatprep.subr.mxu0 0.0
    %3420 = vmatpush1.msra.mxu0 0.0
    %3421 = vmatprep.subr.mxu0 0.0
    %3422 = vmatpush1.msra.mxu0 0.0
    %3423 = vmatprep.subr.mxu0 0.0
    %3424 = vmatpush1.msra.mxu0 0.0
    %3425 = vmatprep.subr.mxu0 0.0
    %3426 = vmatpush1.msra.mxu0 0.0
    %3427 = vmatprep.subr.mxu0 0.0
    %3428 = vmatpush1.msra.mxu0 0.0
    %3429 = vmatprep.subr.mxu0 0.0
    %3430 = vmatpush1.msra.mxu0 0.0
    %3431 = vmatprep.subr.mxu0 0.0
    %3432 = vmatpush1.msra.mxu0 0.0
    %3433 = vmatprep.subr.mxu0 0.0
    %3434 = vmatpush1.msra.mxu0 0.0
    %3435 = vmatprep.subr.mxu0 0.0
    %3436 = vmatpush1.msra.mxu0 0.0
    %3437 = vmatprep.subr.mxu0 0.0
    %3438 = vmatpush1.msra.mxu0 0.0
    %3439 = vmatprep.subr.mxu0 0.0
    %3440 = vmatpush1.msra.mxu0 0.0
    %3441 = vmatprep.subr.mxu0 0.0
    %3442 = vmatpush1.msra.mxu0 0.0
    %3443 = vmatprep.subr.mxu0 0.0
    %3444 = vmatpush1.msra.mxu0 0.0
    %3445 = vmatprep.subr.mxu0 0.0
    %3446 = vmatpush1.msra.mxu0 0.0
    %3447 = vmatprep.subr.mxu0 0.0
    %3448 = vmatpush1.msra.mxu0 0.0
    %3449 = vmatprep.subr.mxu0 0.0
    %3450 = vmatpush1.msra.mxu0 0.0
    %3451 = vmatprep.subr.mxu0 0.0
    %3452 = vmatpush1.msra.mxu0 0.0
    %3453 = vmatprep.subr.mxu0 0.0
    %3454 = vmatpush1.msra.mxu0 0.0
    %3455 = vmatprep.subr.mxu0 0.0
    %3456 = vmatpush1.msra.mxu0 0.0
    %3457 = vmatprep.subr.mxu0 0.0
    %3458 = vmatpush1.msra.mxu0 0.0
    %3459 = vmatprep.subr.mxu0 0.0
    %3460 = vmatpush1.msra.mxu0 0.0
    %3461 = vmatprep.subr.mxu0 0.0
    %3462 = vmatpush1.msra.mxu0 0.0
    %3463 = vmatprep.subr.mxu0 0.0
    %3464 = vmatpush1.msra.mxu0 0.0
    %3465 = vmatprep.subr.mxu0 0.0
    %3466 = vmatpush1.msra.mxu0 0.0
    %3467 = vmatprep.subr.mxu0 0.0
    %3468 = vmatpush1.msra.mxu0 0.0
    %3469 = vmatprep.subr.mxu0 0.0
    %3470 = vmatpush1.msra.mxu0 0.0
    %3471 = vmatprep.subr.mxu0 0.0
    %3472 = vmatpush1.msra.mxu0 0.0
    %3473 = vmatprep.subr.mxu0 0.0
    %3474 = vmatpush1.msra.mxu0 0.0
    %3475 = vmatprep.subr.mxu0 0.0
    %3476 = vmatpush1.msra.mxu0 0.0
    %3477 = vmatprep.subr.mxu0 0.0
    %3478 = vmatpush1.msra.mxu0 0.0
    %3479 = vmatprep.subr.mxu0 0.0
    %3480 = vmatpush1.msra.mxu0 0.0
    %3481 = vmatprep.mubr.f32.mxu0 0.0
    %v3482 = vand.u32 %v72, 4294901760
    %3483 = vmatmul.mubr.f32.gmra.mrb[0].mxu0 %v3482
    %v3484 = vpop.f32.mrb[0].mxu0
    %v3485 = vadd.f32 %v3403, %v3484
    %v3486 = vpop.f32.mrb[0].mxu0
    %v3487 = vadd.f32 %v3405, %v3486
    %3488 = vdwg.mxu0
    %v3489 = vand.u32 %v63, 4294901760
    %v3490 = vsub.f32 %v63, %v3489
    %3491 = vmatprep.subr.mxu0 %v3490
    %v3492 = vand.u32 %v62, 4294901760
    %v3493 = vsub.f32 %v62, %v3492
    %3494 = vmatpush1.msra.mxu0 %v3493
    %3495 = vmatprep.subr.mxu0 0.0
    %3496 = vmatpush1.msra.mxu0 0.0
    %3497 = vmatprep.subr.mxu0 0.0
    %3498 = vmatpush1.msra.mxu0 0.0
    %3499 = vmatprep.subr.mxu0 0.0
    %3500 = vmatpush1.msra.mxu0 0.0
    %3501 = vmatprep.subr.mxu0 0.0
    %3502 = vmatpush1.msra.mxu0 0.0
    %3503 = vmatprep.subr.mxu0 0.0
    %3504 = vmatpush1.msra.mxu0 0.0
    %3505 = vmatprep.subr.mxu0 0.0
    %3506 = vmatpush1.msra.mxu0 0.0
    %3507 = vmatprep.subr.mxu0 0.0
    %3508 = vmatpush1.msra.mxu0 0.0
    %3509 = vmatprep.subr.mxu0 0.0
    %3510 = vmatpush1.msra.mxu0 0.0
    %3511 = vmatprep.subr.mxu0 0.0
    %3512 = vmatpush1.msra.mxu0 0.0
    %3513 = vmatprep.subr.mxu0 0.0
    %3514 = vmatpush1.msra.mxu0 0.0
    %3515 = vmatprep.subr.mxu0 0.0
    %3516 = vmatpush1.msra.mxu0 0.0
    %3517 = vmatprep.subr.mxu0 0.0
    %3518 = vmatpush1.msra.mxu0 0.0
    %3519 = vmatprep.subr.mxu0 0.0
    %3520 = vmatpush1.msra.mxu0 0.0
    %3521 = vmatprep.subr.mxu0 0.0
    %3522 = vmatpush1.msra.mxu0 0.0
    %3523 = vmatprep.subr.mxu0 0.0
    %3524 = vmatpush1.msra.mxu0 0.0
    %3525 = vmatprep.subr.mxu0 0.0
    %3526 = vmatpush1.msra.mxu0 0.0
    %3527 = vmatprep.subr.mxu0 0.0
    %3528 = vmatpush1.msra.mxu0 0.0
    %3529 = vmatprep.subr.mxu0 0.0
    %3530 = vmatpush1.msra.mxu0 0.0
    %3531 = vmatprep.subr.mxu0 0.0
    %3532 = vmatpush1.msra.mxu0 0.0
    %3533 = vmatprep.subr.mxu0 0.0
    %3534 = vmatpush1.msra.mxu0 0.0
    %3535 = vmatprep.subr.mxu0 0.0
    %3536 = vmatpush1.msra.mxu0 0.0
    %3537 = vmatprep.subr.mxu0 0.0
    %3538 = vmatpush1.msra.mxu0 0.0
    %3539 = vmatprep.subr.mxu0 0.0
    %3540 = vmatpush1.msra.mxu0 0.0
    %3541 = vmatprep.subr.mxu0 0.0
    %3542 = vmatpush1.msra.mxu0 0.0
    %3543 = vmatprep.subr.mxu0 0.0
    %3544 = vmatpush1.msra.mxu0 0.0
    %3545 = vmatprep.subr.mxu0 0.0
    %3546 = vmatpush1.msra.mxu0 0.0
    %3547 = vmatprep.subr.mxu0 0.0
    %3548 = vmatpush1.msra.mxu0 0.0
    %3549 = vmatprep.subr.mxu0 0.0
    %3550 = vmatpush1.msra.mxu0 0.0
    %3551 = vmatprep.subr.mxu0 0.0
    %3552 = vmatpush1.msra.mxu0 0.0
    %3553 = vmatprep.subr.mxu0 0.0
    %3554 = vmatpush1.msra.mxu0 0.0
    %3555 = vmatprep.subr.mxu0 0.0
    %3556 = vmatpush1.msra.mxu0 0.0
    %3557 = vmatprep.mubr.f32.mxu0 0.0
    %v3558 = vand.u32 %v72, 4294901760
    %v3559 = vsub.f32 %v72, %v3558
    %3560 = vmatmul.mubr.f32.gmra.mrb[0].mxu0 %v3559
    %v3561 = vpop.f32.mrb[0].mxu0
    %v3562 = vadd.f32 %v3485, %v3561
    %v3563 = vpop.f32.mrb[0].mxu0
    %v3564 = vadd.f32 %v3487, %v3563
    %3565 = vdwg.mxu0
    %v3566 = vand.u32 %v63, 4294901760
    %3567 = vmatprep.subr.mxu0 %v3566
    %v3568 = vand.u32 %v62, 4294901760
    %3569 = vmatpush1.msra.mxu0 %v3568
    %3570 = vmatprep.subr.mxu0 0.0
    %3571 = vmatpush1.msra.mxu0 0.0
    %3572 = vmatprep.subr.mxu0 0.0
    %3573 = vmatpush1.msra.mxu0 0.0
    %3574 = vmatprep.subr.mxu0 0.0
    %3575 = vmatpush1.msra.mxu0 0.0
    %3576 = vmatprep.subr.mxu0 0.0
    %3577 = vmatpush1.msra.mxu0 0.0
    %3578 = vmatprep.subr.mxu0 0.0
    %3579 = vmatpush1.msra.mxu0 0.0
    %3580 = vmatprep.subr.mxu0 0.0
    %3581 = vmatpush1.msra.mxu0 0.0
    %3582 = vmatprep.subr.mxu0 0.0
    %3583 = vmatpush1.msra.mxu0 0.0
    %3584 = vmatprep.subr.mxu0 0.0
    %3585 = vmatpush1.msra.mxu0 0.0
    %3586 = vmatprep.subr.mxu0 0.0
    %3587 = vmatpush1.msra.mxu0 0.0
    %3588 = vmatprep.subr.mxu0 0.0
    %3589 = vmatpush1.msra.mxu0 0.0
    %3590 = vmatprep.subr.mxu0 0.0
    %3591 = vmatpush1.msra.mxu0 0.0
    %3592 = vmatprep.subr.mxu0 0.0
    %3593 = vmatpush1.msra.mxu0 0.0
    %3594 = vmatprep.subr.mxu0 0.0
    %3595 = vmatpush1.msra.mxu0 0.0
    %3596 = vmatprep.subr.mxu0 0.0
    %3597 = vmatpush1.msra.mxu0 0.0
    %3598 = vmatprep.subr.mxu0 0.0
    %3599 = vmatpush1.msra.mxu0 0.0
    %3600 = vmatprep.subr.mxu0 0.0
    %3601 = vmatpush1.msra.mxu0 0.0
    %3602 = vmatprep.subr.mxu0 0.0
    %3603 = vmatpush1.msra.mxu0 0.0
    %3604 = vmatprep.subr.mxu0 0.0
    %3605 = vmatpush1.msra.mxu0 0.0
    %3606 = vmatprep.subr.mxu0 0.0
    %3607 = vmatpush1.msra.mxu0 0.0
    %3608 = vmatprep.subr.mxu0 0.0
    %3609 = vmatpush1.msra.mxu0 0.0
    %3610 = vmatprep.subr.mxu0 0.0
    %3611 = vmatpush1.msra.mxu0 0.0
    %3612 = vmatprep.subr.mxu0 0.0
    %3613 = vmatpush1.msra.mxu0 0.0
    %3614 = vmatprep.subr.mxu0 0.0
    %3615 = vmatpush1.msra.mxu0 0.0
    %3616 = vmatprep.subr.mxu0 0.0
    %3617 = vmatpush1.msra.mxu0 0.0
    %3618 = vmatprep.subr.mxu0 0.0
    %3619 = vmatpush1.msra.mxu0 0.0
    %3620 = vmatprep.subr.mxu0 0.0
    %3621 = vmatpush1.msra.mxu0 0.0
    %3622 = vmatprep.subr.mxu0 0.0
    %3623 = vmatpush1.msra.mxu0 0.0
    %3624 = vmatprep.subr.mxu0 0.0
    %3625 = vmatpush1.msra.mxu0 0.0
    %3626 = vmatprep.subr.mxu0 0.0
    %3627 = vmatpush1.msra.mxu0 0.0
    %3628 = vmatprep.subr.mxu0 0.0
    %3629 = vmatpush1.msra.mxu0 0.0
    %3630 = vmatprep.subr.mxu0 0.0
    %3631 = vmatpush1.msra.mxu0 0.0
    %3632 = vmatprep.mubr.f32.mxu0 0.0
    %v3633 = vand.u32 %v72, 4294901760
    %v3634 = vsub.f32 %v72, %v3633
    %v3635 = vand.u32 %v3634, 4294901760
    %3636 = vmatmul.mubr.f32.gmra.mrb[0].mxu0 %v3635
    %v3637 = vpop.f32.mrb[0].mxu0
    %v3638 = vadd.f32 %v3562, %v3637
    %v3639 = vpop.f32.mrb[0].mxu0
    %v3640 = vadd.f32 %v3564, %v3639
    %3641 = vdwg.mxu0
    %v3642 = vand.u32 %v63, 4294901760
    %v3643 = vsub.f32 %v63, %v3642
    %v3644 = vand.u32 %v3643, 4294901760
    %3645 = vmatprep.subr.mxu0 %v3644
    %v3646 = vand.u32 %v62, 4294901760
    %v3647 = vsub.f32 %v62, %v3646
    %v3648 = vand.u32 %v3647, 4294901760
    %3649 = vmatpush1.msra.mxu0 %v3648
    %3650 = vmatprep.subr.mxu0 0.0
    %3651 = vmatpush1.msra.mxu0 0.0
    %3652 = vmatprep.subr.mxu0 0.0
    %3653 = vmatpush1.msra.mxu0 0.0
    %3654 = vmatprep.subr.mxu0 0.0
    %3655 = vmatpush1.msra.mxu0 0.0
    %3656 = vmatprep.subr.mxu0 0.0
    %3657 = vmatpush1.msra.mxu0 0.0
    %3658 = vmatprep.subr.mxu0 0.0
    %3659 = vmatpush1.msra.mxu0 0.0
    %3660 = vmatprep.subr.mxu0 0.0
    %3661 = vmatpush1.msra.mxu0 0.0
    %3662 = vmatprep.subr.mxu0 0.0
    %3663 = vmatpush1.msra.mxu0 0.0
    %3664 = vmatprep.subr.mxu0 0.0
    %3665 = vmatpush1.msra.mxu0 0.0
    %3666 = vmatprep.subr.mxu0 0.0
    %3667 = vmatpush1.msra.mxu0 0.0
    %3668 = vmatprep.subr.mxu0 0.0
    %3669 = vmatpush1.msra.mxu0 0.0
    %3670 = vmatprep.subr.mxu0 0.0
    %3671 = vmatpush1.msra.mxu0 0.0
    %3672 = vmatprep.subr.mxu0 0.0
    %3673 = vmatpush1.msra.mxu0 0.0
    %3674 = vmatprep.subr.mxu0 0.0
    %3675 = vmatpush1.msra.mxu0 0.0
    %3676 = vmatprep.subr.mxu0 0.0
    %3677 = vmatpush1.msra.mxu0 0.0
    %3678 = vmatprep.subr.mxu0 0.0
    %3679 = vmatpush1.msra.mxu0 0.0
    %3680 = vmatprep.subr.mxu0 0.0
    %3681 = vmatpush1.msra.mxu0 0.0
    %3682 = vmatprep.subr.mxu0 0.0
    %3683 = vmatpush1.msra.mxu0 0.0
    %3684 = vmatprep.subr.mxu0 0.0
    %3685 = vmatpush1.msra.mxu0 0.0
    %3686 = vmatprep.subr.mxu0 0.0
    %3687 = vmatpush1.msra.mxu0 0.0
    %3688 = vmatprep.subr.mxu0 0.0
    %3689 = vmatpush1.msra.mxu0 0.0
    %3690 = vmatprep.subr.mxu0 0.0
    %3691 = vmatpush1.msra.mxu0 0.0
    %3692 = vmatprep.subr.mxu0 0.0
    %3693 = vmatpush1.msra.mxu0 0.0
    %3694 = vmatprep.subr.mxu0 0.0
    %3695 = vmatpush1.msra.mxu0 0.0
    %3696 = vmatprep.subr.mxu0 0.0
    %3697 = vmatpush1.msra.mxu0 0.0
    %3698 = vmatprep.subr.mxu0 0.0
    %3699 = vmatpush1.msra.mxu0 0.0
    %3700 = vmatprep.subr.mxu0 0.0
    %3701 = vmatpush1.msra.mxu0 0.0
    %3702 = vmatprep.subr.mxu0 0.0
    %3703 = vmatpush1.msra.mxu0 0.0
    %3704 = vmatprep.subr.mxu0 0.0
    %3705 = vmatpush1.msra.mxu0 0.0
    %3706 = vmatprep.subr.mxu0 0.0
    %3707 = vmatpush1.msra.mxu0 0.0
    %3708 = vmatprep.subr.mxu0 0.0
    %3709 = vmatpush1.msra.mxu0 0.0
    %3710 = vmatprep.subr.mxu0 0.0
    %3711 = vmatpush1.msra.mxu0 0.0
    %3712 = vmatprep.mubr.f32.mxu0 0.0
    %v3713 = vand.u32 %v72, 4294901760
    %3714 = vmatmul.mubr.f32.gmra.mrb[0].mxu0 %v3713
    %v3715 = vpop.f32.mrb[0].mxu0
    %v3716 = vadd.f32 %v3638, %v3715
    %v3717 = vpop.f32.mrb[0].mxu0
    %v3718 = vadd.f32 %v3640, %v3717
    %3719 = vdwg.mxu0
    %v3720 = vand.u32 %v63, 4294901760
    %3721 = vmatprep.subr.mxu0 %v3720
    %v3722 = vand.u32 %v62, 4294901760
    %3723 = vmatpush1.msra.mxu0 %v3722
    %3724 = vmatprep.subr.mxu0 0.0
    %3725 = vmatpush1.msra.mxu0 0.0
    %3726 = vmatprep.subr.mxu0 0.0
    %3727 = vmatpush1.msra.mxu0 0.0
    %3728 = vmatprep.subr.mxu0 0.0
    %3729 = vmatpush1.msra.mxu0 0.0
    %3730 = vmatprep.subr.mxu0 0.0
    %3731 = vmatpush1.msra.mxu0 0.0
    %3732 = vmatprep.subr.mxu0 0.0
    %3733 = vmatpush1.msra.mxu0 0.0
    %3734 = vmatprep.subr.mxu0 0.0
    %3735 = vmatpush1.msra.mxu0 0.0
    %3736 = vmatprep.subr.mxu0 0.0
    %3737 = vmatpush1.msra.mxu0 0.0
    %3738 = vmatprep.subr.mxu0 0.0
    %3739 = vmatpush1.msra.mxu0 0.0
    %3740 = vmatprep.subr.mxu0 0.0
    %3741 = vmatpush1.msra.mxu0 0.0
    %3742 = vmatprep.subr.mxu0 0.0
    %3743 = vmatpush1.msra.mxu0 0.0
    %3744 = vmatprep.subr.mxu0 0.0
    %3745 = vmatpush1.msra.mxu0 0.0
    %3746 = vmatprep.subr.mxu0 0.0
    %3747 = vmatpush1.msra.mxu0 0.0
    %3748 = vmatprep.subr.mxu0 0.0
    %3749 = vmatpush1.msra.mxu0 0.0
    %3750 = vmatprep.subr.mxu0 0.0
    %3751 = vmatpush1.msra.mxu0 0.0
    %3752 = vmatprep.subr.mxu0 0.0
    %3753 = vmatpush1.msra.mxu0 0.0
    %3754 = vmatprep.subr.mxu0 0.0
    %3755 = vmatpush1.msra.mxu0 0.0
    %3756 = vmatprep.subr.mxu0 0.0
    %3757 = vmatpush1.msra.mxu0 0.0
    %3758 = vmatprep.subr.mxu0 0.0
    %3759 = vmatpush1.msra.mxu0 0.0
    %3760 = vmatprep.subr.mxu0 0.0
    %3761 = vmatpush1.msra.mxu0 0.0
    %3762 = vmatprep.subr.mxu0 0.0
    %3763 = vmatpush1.msra.mxu0 0.0
    %3764 = vmatprep.subr.mxu0 0.0
    %3765 = vmatpush1.msra.mxu0 0.0
    %3766 = vmatprep.subr.mxu0 0.0
    %3767 = vmatpush1.msra.mxu0 0.0
    %3768 = vmatprep.subr.mxu0 0.0
    %3769 = vmatpush1.msra.mxu0 0.0
    %3770 = vmatprep.subr.mxu0 0.0
    %3771 = vmatpush1.msra.mxu0 0.0
    %3772 = vmatprep.subr.mxu0 0.0
    %3773 = vmatpush1.msra.mxu0 0.0
    %3774 = vmatprep.subr.mxu0 0.0
    %3775 = vmatpush1.msra.mxu0 0.0
    %3776 = vmatprep.subr.mxu0 0.0
    %3777 = vmatpush1.msra.mxu0 0.0
    %3778 = vmatprep.subr.mxu0 0.0
    %3779 = vmatpush1.msra.mxu0 0.0
    %3780 = vmatprep.subr.mxu0 0.0
    %3781 = vmatpush1.msra.mxu0 0.0
    %3782 = vmatprep.subr.mxu0 0.0
    %3783 = vmatpush1.msra.mxu0 0.0
    %3784 = vmatprep.subr.mxu0 0.0
    %3785 = vmatpush1.msra.mxu0 0.0
    %3786 = vmatprep.mubr.f32.mxu0 0.0
    %v3787 = vand.u32 %v72, 4294901760
    %3788 = vmatmul.mubr.f32.gmra.mrb[0].mxu0 %v3787
    %v3789 = vpop.f32.mrb[0].mxu0
    %v3790 = vadd.f32 %v3716, %v3789
    %v3791 = vpop.f32.mrb[0].mxu0
    %v3792 = vadd.f32 %v3718, %v3791
    %3793 = vdwg.mxu0
    %3794 = vst [vmem:[#allocation2] sm:$0xff] %v535
    %3795 = vst [vmem:[#allocation2 + $0x8] sm:$0xff] %v537
    %3796 = vst [vmem:[#allocation2 + $0x10] sm:$0xff] %v1000
    %3797 = vst [vmem:[#allocation2 + $0x18] sm:$0xff] %v1002
    %3798 = vst [vmem:[#allocation2 + $0x20] sm:$0xff] %v1465
    %3799 = vst [vmem:[#allocation2 + $0x28] sm:$0xff] %v1467
    %3800 = vst [vmem:[#allocation2 + $0x30] sm:$0xff] %v1930
    %3801 = vst [vmem:[#allocation2 + $0x38] sm:$0xff] %v1932
    %3802 = vst [vmem:[#allocation2 + $0x40] sm:$0xff] %v2395
    %3803 = vst [vmem:[#allocation2 + $0x48] sm:$0xff] %v2397
    %3804 = vst [vmem:[#allocation2 + $0x50] sm:$0xff] %v2860
    %3805 = vst [vmem:[#allocation2 + $0x58] sm:$0xff] %v2862
    %3806 = vst [vmem:[#allocation2 + $0x60] sm:$0xff] %v3325
    %3807 = vst [vmem:[#allocation2 + $0x68] sm:$0xff] %v3327
    %3808 = vst [vmem:[#allocation2 + $0x70] sm:$0xff] %v3790
    %3809 = vst [vmem:[#allocation2 + $0x78] sm:$0xff] %v3792
    %v3810 = vld [vmem:[%s3] sm:$0xff]
    %v3811 = vld [vmem:[%s3 + $0x8] sm:$0xff]
    %v3812 = vld [vmem:[%s4] sm:$0xff]
    %v3813 = vld [vmem:[%s4 + $0x8] sm:$0xff]
    %v3814 = vld [vmem:[%s6] sm:$0xff]
    %v3815 = vld [vmem:[%s8] sm:$0xf]
    %v3816 = vld [vmem:[%s5] sm:$0xf]
    %v3817 = vld [vmem:[%s5 + $0x8] sm:$0xf]
    %v3818 = vld [vmem:[%s5 + $0x4] sm:$0xf]
    %v3819 = vld [vmem:[%s5 + $0xc] sm:$0xf]
    %v3820 = vlaneseq
    %v3821 = vand.u32 %v3820, 127
    %v3822 = vld [vmem:[#allocation2] sm:$0xff]
    %v3823 = vld [vmem:[#allocation2 + $0x8] sm:$0xff]
    %v3824 = vfloor.f32 %v3822
    %v3825 = vfloor.f32 %v3823
    %v3826 = vmax.f32 %v3824, 0.0
    %v3827 = vmax.f32 %v3825, 0.0
    %v3828 = vmin.f32 %v3826, 4.0
    %v3829 = vmin.f32 %v3827, 4.0
    %3831 = vset.pattern.permute.xlu0 0
    %3832 = vperm.xlu0 %3831, %v3810
    %v3833 = vpop.permute.xlu0 %3832
    %3836 = vset.pattern.permute.xlu0 0
    %3837 = vperm.xlu0 %3836, %v3811
    %v3838 = vpop.permute.xlu0 %3837
    %v3840 = vmul.f32 %v3833, %v3828
    %v3841 = vmul.f32 %v3833, %v3829
    %v3842 = vmul.f32 %v3838, %v3828
    %v3843 = vmul.f32 %v3838, %v3829
    %3845 = vset.pattern.permute.xlu0 0
    %3846 = vperm.xlu0 %3845, %v3812
    %v3847 = vpop.permute.xlu0 %3846
    %3850 = vset.pattern.permute.xlu0 0
    %3851 = vperm.xlu0 %3850, %v3813
    %v3852 = vpop.permute.xlu0 %3851
    %v3854 = vadd.f32 %v3840, %v3847
    %v3855 = vadd.f32 %v3841, %v3847
    %v3856 = vadd.f32 %v3842, %v3852
    %v3857 = vadd.f32 %v3843, %v3852
    %v3858 = vfloor.f32 %v3854
    %v3859 = vfloor.f32 %v3855
    %v3860 = vfloor.f32 %v3856
    %v3861 = vfloor.f32 %v3857
    %v3862 = vmax.f32 %v3858, 0.0
    %v3863 = vmax.f32 %v3859, 0.0
    %v3864 = vmax.f32 %v3860, 0.0
    %v3865 = vmax.f32 %v3861, 0.0
    %v3866 = vmin.f32 %v3862, 4.0
    %v3867 = vmin.f32 %v3863, 4.0
    %v3868 = vmin.f32 %v3864, 4.0
    %v3869 = vmin.f32 %v3865, 4.0
    %3870 = vrot.lane.b32.xlu0 %v3866, 7
    %v3871 = vpop.permute.xlu0 %3870
    %3872 = vrot.lane.b32.xlu0 %v3868, 7
    %v3873 = vpop.permute.xlu0 %3872
    %vm3874 = vcmp.ge.s32.totalorder %v3821, 7
    %v3875 = vsel %vm3874, %v3871, 0.0
    %v3876 = vsel %vm3874, %v3873, 0.0
    %3877 = vrot.lane.b32.xlu0 %v3867, 7
    %v3878 = vpop.permute.xlu0 %3877
    %3879 = vrot.lane.b32.xlu0 %v3869, 7
    %v3880 = vpop.permute.xlu0 %3879
    %v3881 = vsel %vm3874, %v3878, 0.0
    %v3882 = vsel %vm3874, %v3880, 0.0
    %v3883 = vpack.c.bf16 %v3876, %v3875
    %v3884 = vpack.c.bf16 %v3882, %v3881
    %3885 = vrot.lane.b32.xlu0 %v3866, 6
    %v3886 = vpop.permute.xlu0 %3885
    %3887 = vrot.lane.b32.xlu0 %v3868, 6
    %v3888 = vpop.permute.xlu0 %3887
    %vm3889 = vcmp.ge.s32.totalorder %v3821, 6
    %v3890 = vsel %vm3889, %v3886, 0.0
    %v3891 = vsel %vm3889, %v3888, 0.0
    %3892 = vrot.lane.b32.xlu0 %v3867, 6
    %v3893 = vpop.permute.xlu0 %3892
    %3894 = vrot.lane.b32.xlu0 %v3869, 6
    %v3895 = vpop.permute.xlu0 %3894
    %v3896 = vsel %vm3889, %v3893, 0.0
    %v3897 = vsel %vm3889, %v3895, 0.0
    %v3898 = vpack.c.bf16 %v3891, %v3890
    %v3899 = vpack.c.bf16 %v3897, %v3896
    %3900 = vrot.lane.b32.xlu0 %v3866, 5
    %v3901 = vpop.permute.xlu0 %3900
    %3902 = vrot.lane.b32.xlu0 %v3868, 5
    %v3903 = vpop.permute.xlu0 %3902
    %vm3904 = vcmp.ge.s32.totalorder %v3821, 5
    %v3905 = vsel %vm3904, %v3901, 0.0
    %v3906 = vsel %vm3904, %v3903, 0.0
    %3907 = vrot.lane.b32.xlu0 %v3867, 5
    %v3908 = vpop.permute.xlu0 %3907
    %3909 = vrot.lane.b32.xlu0 %v3869, 5
    %v3910 = vpop.permute.xlu0 %3909
    %v3911 = vsel %vm3904, %v3908, 0.0
    %v3912 = vsel %vm3904, %v3910, 0.0
    %v3913 = vpack.c.bf16 %v3906, %v3905
    %v3914 = vpack.c.bf16 %v3912, %v3911
    %3915 = vrot.lane.b32.xlu0 %v3866, 4
    %v3916 = vpop.permute.xlu0 %3915
    %3917 = vrot.lane.b32.xlu0 %v3868, 4
    %v3918 = vpop.permute.xlu0 %3917
    %vm3919 = vcmp.ge.s32.totalorder %v3821, 4
    %v3920 = vsel %vm3919, %v3916, 0.0
    %v3921 = vsel %vm3919, %v3918, 0.0
    %3922 = vrot.lane.b32.xlu0 %v3867, 4
    %v3923 = vpop.permute.xlu0 %3922
    %3924 = vrot.lane.b32.xlu0 %v3869, 4
    %v3925 = vpop.permute.xlu0 %3924
    %v3926 = vsel %vm3919, %v3923, 0.0
    %v3927 = vsel %vm3919, %v3925, 0.0
    %v3928 = vpack.c.bf16 %v3921, %v3920
    %v3929 = vpack.c.bf16 %v3927, %v3926
    %3930 = vrot.lane.b32.xlu0 %v3866, 3
    %v3931 = vpop.permute.xlu0 %3930
    %3932 = vrot.lane.b32.xlu0 %v3868, 3
    %v3933 = vpop.permute.xlu0 %3932
    %vm3934 = vcmp.ge.s32.totalorder %v3821, 3
    %v3935 = vsel %vm3934, %v3931, 0.0
    %v3936 = vsel %vm3934, %v3933, 0.0
    %3937 = vrot.lane.b32.xlu0 %v3867, 3
    %v3938 = vpop.permute.xlu0 %3937
    %3939 = vrot.lane.b32.xlu0 %v3869, 3
    %v3940 = vpop.permute.xlu0 %3939
    %v3941 = vsel %vm3934, %v3938, 0.0
    %v3942 = vsel %vm3934, %v3940, 0.0
    %v3943 = vpack.c.bf16 %v3936, %v3935
    %v3944 = vpack.c.bf16 %v3942, %v3941
    %3945 = vrot.lane.b32.xlu0 %v3866, 2
    %v3946 = vpop.permute.xlu0 %3945
    %3947 = vrot.lane.b32.xlu0 %v3868, 2
    %v3948 = vpop.permute.xlu0 %3947
    %vm3949 = vcmp.ge.s32.totalorder %v3821, 2
    %v3950 = vsel %vm3949, %v3946, 0.0
    %v3951 = vsel %vm3949, %v3948, 0.0
    %3952 = vrot.lane.b32.xlu0 %v3867, 2
    %v3953 = vpop.permute.xlu0 %3952
    %3954 = vrot.lane.b32.xlu0 %v3869, 2
    %v3955 = vpop.permute.xlu0 %3954
    %v3956 = vsel %vm3949, %v3953, 0.0
    %v3957 = vsel %vm3949, %v3955, 0.0
    %v3958 = vpack.c.bf16 %v3951, %v3950
    %v3959 = vpack.c.bf16 %v3957, %v3956
    %3960 = vrot.lane.b32.xlu0 %v3866, 1
    %v3961 = vpop.permute.xlu0 %3960
    %3962 = vrot.lane.b32.xlu0 %v3868, 1
    %v3963 = vpop.permute.xlu0 %3962
    %vm3964 = vcmp.ge.s32.totalorder %v3821, 1
    %v3965 = vsel %vm3964, %v3961, 0.0
    %v3966 = vsel %vm3964, %v3963, 0.0
    %3967 = vrot.lane.b32.xlu0 %v3867, 1
    %v3968 = vpop.permute.xlu0 %3967
    %3969 = vrot.lane.b32.xlu0 %v3869, 1
    %v3970 = vpop.permute.xlu0 %3969
    %v3971 = vsel %vm3964, %v3968, 0.0
    %v3972 = vsel %vm3964, %v3970, 0.0
    %v3973 = vpack.c.bf16 %v3966, %v3965
    %v3974 = vpack.c.bf16 %v3972, %v3971
    %v3975 = vpack.c.bf16 %v3868, %v3866
    %v3976 = vpack.c.bf16 %v3869, %v3867
    %3977 = vrot.lane.b32.xlu0 %v3866, 127
    %v3978 = vpop.permute.xlu0 %3977
    %3979 = vrot.lane.b32.xlu0 %v3868, 127
    %v3980 = vpop.permute.xlu0 %3979
    %vm3981 = vcmp.lt.s32.totalorder %v3821, 127
    %v3982 = vsel %vm3981, %v3978, 0.0
    %v3983 = vsel %vm3981, %v3980, 0.0
    %3984 = vrot.lane.b32.xlu0 %v3867, 127
    %v3985 = vpop.permute.xlu0 %3984
    %3986 = vrot.lane.b32.xlu0 %v3869, 127
    %v3987 = vpop.permute.xlu0 %3986
    %v3988 = vsel %vm3981, %v3985, 0.0
    %v3989 = vsel %vm3981, %v3987, 0.0
    %v3990 = vpack.c.bf16 %v3983, %v3982
    %v3991 = vpack.c.bf16 %v3989, %v3988
    %3992 = vrot.lane.b32.xlu0 %v3866, 126
    %v3993 = vpop.permute.xlu0 %3992
    %3994 = vrot.lane.b32.xlu0 %v3868, 126
    %v3995 = vpop.permute.xlu0 %3994
    %vm3996 = vcmp.lt.s32.totalorder %v3821, 126
    %v3997 = vsel %vm3996, %v3993, 0.0
    %v3998 = vsel %vm3996, %v3995, 0.0
    %3999 = vrot.lane.b32.xlu0 %v3867, 126
    %v4000 = vpop.permute.xlu0 %3999
    %4001 = vrot.lane.b32.xlu0 %v3869, 126
    %v4002 = vpop.permute.xlu0 %4001
    %v4003 = vsel %vm3996, %v4000, 0.0
    %v4004 = vsel %vm3996, %v4002, 0.0
    %v4005 = vpack.c.bf16 %v3998, %v3997
    %v4006 = vpack.c.bf16 %v4004, %v4003
    %4007 = vrot.lane.b32.xlu0 %v3866, 125
    %v4008 = vpop.permute.xlu0 %4007
    %4009 = vrot.lane.b32.xlu0 %v3868, 125
    %v4010 = vpop.permute.xlu0 %4009
    %vm4011 = vcmp.lt.s32.totalorder %v3821, 125
    %v4012 = vsel %vm4011, %v4008, 0.0
    %v4013 = vsel %vm4011, %v4010, 0.0
    %4014 = vrot.lane.b32.xlu0 %v3867, 125
    %v4015 = vpop.permute.xlu0 %4014
    %4016 = vrot.lane.b32.xlu0 %v3869, 125
    %v4017 = vpop.permute.xlu0 %4016
    %v4018 = vsel %vm4011, %v4015, 0.0
    %v4019 = vsel %vm4011, %v4017, 0.0
    %v4020 = vpack.c.bf16 %v4013, %v4012
    %v4021 = vpack.c.bf16 %v4019, %v4018
    %4022 = vrot.lane.b32.xlu0 %v3866, 124
    %v4023 = vpop.permute.xlu0 %4022
    %4024 = vrot.lane.b32.xlu0 %v3868, 124
    %v4025 = vpop.permute.xlu0 %4024
    %vm4026 = vcmp.lt.s32.totalorder %v3821, 124
    %v4027 = vsel %vm4026, %v4023, 0.0
    %v4028 = vsel %vm4026, %v4025, 0.0
    %4029 = vrot.lane.b32.xlu0 %v3867, 124
    %v4030 = vpop.permute.xlu0 %4029
    %4031 = vrot.lane.b32.xlu0 %v3869, 124
    %v4032 = vpop.permute.xlu0 %4031
    %v4033 = vsel %vm4026, %v4030, 0.0
    %v4034 = vsel %vm4026, %v4032, 0.0
    %v4035 = vpack.c.bf16 %v4028, %v4027
    %v4036 = vpack.c.bf16 %v4034, %v4033
    %4037 = vrot.lane.b32.xlu0 %v3866, 123
    %v4038 = vpop.permute.xlu0 %4037
    %4039 = vrot.lane.b32.xlu0 %v3868, 123
    %v4040 = vpop.permute.xlu0 %4039
    %vm4041 = vcmp.lt.s32.totalorder %v3821, 123
    %v4042 = vsel %vm4041, %v4038, 0.0
    %v4043 = vsel %vm4041, %v4040, 0.0
    %4044 = vrot.lane.b32.xlu0 %v3867, 123
    %v4045 = vpop.permute.xlu0 %4044
    %4046 = vrot.lane.b32.xlu0 %v3869, 123
    %v4047 = vpop.permute.xlu0 %4046
    %v4048 = vsel %vm4041, %v4045, 0.0
    %v4049 = vsel %vm4041, %v4047, 0.0
    %v4050 = vpack.c.bf16 %v4043, %v4042
    %v4051 = vpack.c.bf16 %v4049, %v4048
    %4052 = vrot.lane.b32.xlu0 %v3866, 122
    %v4053 = vpop.permute.xlu0 %4052
    %4054 = vrot.lane.b32.xlu0 %v3868, 122
    %v4055 = vpop.permute.xlu0 %4054
    %vm4056 = vcmp.lt.s32.totalorder %v3821, 122
    %v4057 = vsel %vm4056, %v4053, 0.0
    %v4058 = vsel %vm4056, %v4055, 0.0
    %4059 = vrot.lane.b32.xlu0 %v3867, 122
    %v4060 = vpop.permute.xlu0 %4059
    %4061 = vrot.lane.b32.xlu0 %v3869, 122
    %v4062 = vpop.permute.xlu0 %4061
    %v4063 = vsel %vm4056, %v4060, 0.0
    %v4064 = vsel %vm4056, %v4062, 0.0
    %v4065 = vpack.c.bf16 %v4058, %v4057
    %v4066 = vpack.c.bf16 %v4064, %v4063
    %4067 = vrot.lane.b32.xlu0 %v3866, 121
    %v4068 = vpop.permute.xlu0 %4067
    %4069 = vrot.lane.b32.xlu0 %v3868, 121
    %v4070 = vpop.permute.xlu0 %4069
    %vm4071 = vcmp.lt.s32.totalorder %v3821, 121
    %v4072 = vsel %vm4071, %v4068, 0.0
    %v4073 = vsel %vm4071, %v4070, 0.0
    %4074 = vrot.lane.b32.xlu0 %v3867, 121
    %v4075 = vpop.permute.xlu0 %4074
    %4076 = vrot.lane.b32.xlu0 %v3869, 121
    %v4077 = vpop.permute.xlu0 %4076
    %v4078 = vsel %vm4071, %v4075, 0.0
    %v4079 = vsel %vm4071, %v4077, 0.0
    %v4080 = vpack.c.bf16 %v4073, %v4072
    %v4081 = vpack.c.bf16 %v4079, %v4078
    %4082 = vrot.lane.b32.xlu0 %v3866, 120
    %v4083 = vpop.permute.xlu0 %4082
    %4084 = vrot.lane.b32.xlu0 %v3868, 120
    %v4085 = vpop.permute.xlu0 %4084
    %vm4086 = vcmp.lt.s32.totalorder %v3821, 120
    %v4087 = vsel %vm4086, %v4083, 0.0
    %v4088 = vsel %vm4086, %v4085, 0.0
    %4089 = vrot.lane.b32.xlu0 %v3867, 120
    %v4090 = vpop.permute.xlu0 %4089
    %4091 = vrot.lane.b32.xlu0 %v3869, 120
    %v4092 = vpop.permute.xlu0 %4091
    %v4093 = vsel %vm4086, %v4090, 0.0
    %v4094 = vsel %vm4086, %v4092, 0.0
    %v4095 = vpack.c.bf16 %v4088, %v4087
    %v4096 = vpack.c.bf16 %v4094, %v4093
    %v4099 = vunpack.c.l.b16 %v3816
    %v4100 = vunpack.c.l.b16 %v3817
    %v4101 = vpack.c.b16 %v4100, %v4099
    %4103 = vmatprep.subr.bf16.mxu0 %v3884
    %4104 = vmatpush1.bf16.msra.mxu0 %v3883
    %4105 = vmatprep.subr.bf16.mxu0 %v3899
    %4106 = vmatpush1.bf16.msra.mxu0 %v3898
    %4107 = vmatprep.subr.bf16.mxu0 %v3914
    %4108 = vmatpush1.bf16.msra.mxu0 %v3913
    %4109 = vmatprep.subr.bf16.mxu0 %v3929
    %4110 = vmatpush1.bf16.msra.mxu0 %v3928
    %4111 = vmatprep.subr.bf16.mxu0 %v3944
    %4112 = vmatpush1.bf16.msra.mxu0 %v3943
    %4113 = vmatprep.subr.bf16.mxu0 %v3959
    %4114 = vmatpush1.bf16.msra.mxu0 %v3958
    %4115 = vmatprep.subr.bf16.mxu0 %v3974
    %4116 = vmatpush1.bf16.msra.mxu0 %v3973
    %4117 = vmatprep.subr.bf16.mxu0 %v3976
    %4118 = vmatpush1.bf16.msra.mxu0 %v3975
    %4119 = vmatprep.subr.bf16.mxu0 0
    %4120 = vmatpush1.bf16.msra.mxu0 0
    %4121 = vmatprep.subr.bf16.mxu0 0
    %4122 = vmatpush1.bf16.msra.mxu0 0
    %4123 = vmatprep.subr.bf16.mxu0 0
    %4124 = vmatpush1.bf16.msra.mxu0 0
    %4125 = vmatprep.subr.bf16.mxu0 0
    %4126 = vmatpush1.bf16.msra.mxu0 0
    %4127 = vmatprep.subr.bf16.mxu0 0
    %4128 = vmatpush1.bf16.msra.mxu0 0
    %4129 = vmatprep.subr.bf16.mxu0 0
    %4130 = vmatpush1.bf16.msra.mxu0 0
    %4131 = vmatprep.subr.bf16.mxu0 0
    %4132 = vmatpush1.bf16.msra.mxu0 0
    %4133 = vmatprep.subr.bf16.mxu0 0
    %4134 = vmatpush1.bf16.msra.mxu0 0
    %4135 = vmatprep.mubr.bf16.mxu0 0
    %4136 = vmatmul.mubr.bf16.gmra.mrb[0].mxu0 %v4101
    %v4137 = vpop.f32.mrb[0].mxu0
    %v4138 = vadd.f32 0.0, %v4137
    %v4139 = vpop.f32.mrb[0].mxu0
    %v4140 = vadd.f32 0.0, %v4139
    %v4141 = vpop.f32.mrb[0].mxu0
    %v4142 = vadd.f32 0.0, %v4141
    %v4143 = vpop.f32.mrb[0].mxu0
    %v4144 = vadd.f32 0.0, %v4143
    %4145 = vdwg.mxu0
    %v4148 = vunpack.c.l.b16 %v3818
    %v4149 = vunpack.c.l.b16 %v3819
    %v4150 = vpack.c.b16 %v4149, %v4148
    %4152 = vmatprep.subr.bf16.mxu0 %v3991
    %4153 = vmatpush1.bf16.msra.mxu0 %v3990
    %4154 = vmatprep.subr.bf16.mxu0 %v4006
    %4155 = vmatpush1.bf16.msra.mxu0 %v4005
    %4156 = vmatprep.subr.bf16.mxu0 %v4021
    %4157 = vmatpush1.bf16.msra.mxu0 %v4020
    %4158 = vmatprep.subr.bf16.mxu0 %v4036
    %4159 = vmatpush1.bf16.msra.mxu0 %v4035
    %4160 = vmatprep.subr.bf16.mxu0 %v4051
    %4161 = vmatpush1.bf16.msra.mxu0 %v4050
    %4162 = vmatprep.subr.bf16.mxu0 %v4066
    %4163 = vmatpush1.bf16.msra.mxu0 %v4065
    %4164 = vmatprep.subr.bf16.mxu0 %v4081
    %4165 = vmatpush1.bf16.msra.mxu0 %v4080
    %4166 = vmatprep.subr.bf16.mxu0 %v4096
    %4167 = vmatpush1.bf16.msra.mxu0 %v4095
    %4168 = vmatprep.subr.bf16.mxu0 0
    %4169 = vmatpush1.bf16.msra.mxu0 0
    %4170 = vmatprep.subr.bf16.mxu0 0
    %4171 = vmatpush1.bf16.msra.mxu0 0
    %4172 = vmatprep.subr.bf16.mxu0 0
    %4173 = vmatpush1.bf16.msra.mxu0 0
    %4174 = vmatprep.subr.bf16.mxu0 0
    %4175 = vmatpush1.bf16.msra.mxu0 0
    %4176 = vmatprep.subr.bf16.mxu0 0
    %4177 = vmatpush1.bf16.msra.mxu0 0
    %4178 = vmatprep.subr.bf16.mxu0 0
    %4179 = vmatpush1.bf16.msra.mxu0 0
    %4180 = vmatprep.subr.bf16.mxu0 0
    %4181 = vmatpush1.bf16.msra.mxu0 0
    %4182 = vmatprep.subr.bf16.mxu0 0
    %4183 = vmatpush1.bf16.msra.mxu0 0
    %4184 = vmatprep.mubr.bf16.mxu0 0
    %4185 = vmatmul.mubr.bf16.gmra.mrb[0].mxu0 %v4150
    %v4186 = vpop.f32.mrb[0].mxu0
    %v4187 = vadd.f32 0.0, %v4186
    %v4188 = vpop.f32.mrb[0].mxu0
    %v4189 = vadd.f32 0.0, %v4188
    %v4190 = vpop.f32.mrb[0].mxu0
    %v4191 = vadd.f32 0.0, %v4190
    %v4192 = vpop.f32.mrb[0].mxu0
    %v4193 = vadd.f32 0.0, %v4192
    %4194 = vdwg.mxu0
    %v4195 = vadd.f32 %v4138, %v4142
    %v4196 = vadd.f32 %v4140, %v4144
    %v4197 = vadd.f32 %v4195, %v4187
    %v4198 = vadd.f32 %v4196, %v4189
    %v4199 = vadd.f32 %v4197, %v4191
    %v4200 = vadd.f32 %v4198, %v4193
    %4202 = vset.pattern.permute.xlu0 0
    %4203 = vperm.xlu0 %4202, %v3814
    %v4204 = vpop.permute.xlu0 %4203
    %v4206 = vadd.f32 %v4199, %v4204
    %v4207 = vadd.f32 %v4200, %v4204
    %v4208 = vfloor.f32 %v4206
    %v4209 = vfloor.f32 %v4207
    %v4210 = vmax.f32 %v4208, 0.0
    %v4211 = vmax.f32 %v4209, 0.0
    %v4212 = vmin.f32 %v4210, 4.0
    %v4213 = vmin.f32 %v4211, 4.0
    %v4214 = vld [vmem:[#allocation3] sm:$0xff]
    %v4215 = vld [vmem:[#allocation3 + $0x8] sm:$0xff]
    %v4216 = vld [vmem:[#allocation3 + $0x10] sm:$0xff]
    %v4217 = vld [vmem:[#allocation3 + $0x18] sm:$0xff]
    %v4218 = vld [vmem:[#allocation3 + $0x20] sm:$0xff]
    %v4219 = vld [vmem:[#allocation3 + $0x28] sm:$0xff]
    %v4220 = vld [vmem:[#allocation3 + $0x30] sm:$0xff]
    %v4221 = vld [vmem:[#allocation3 + $0x38] sm:$0xff]
    %v4222 = vmul.f32 %v4214, %v4212
    %v4223 = vmul.f32 %v4215, %v4213
    %v4224 = vmul.f32 %v4216, %v4212
    %v4225 = vmul.f32 %v4217, %v4213
    %v4226 = vmul.f32 %v4218, %v4212
    %v4227 = vmul.f32 %v4219, %v4213
    %v4228 = vmul.f32 %v4220, %v4212
    %v4229 = vmul.f32 %v4221, %v4213
    %v4230 = vld [vmem:[#allocation2 + $0x10] sm:$0xff]
    %v4231 = vld [vmem:[#allocation2 + $0x18] sm:$0xff]
    %v4232 = vmul.f32 %v3822, 0.25
    %v4233 = vmul.f32 %v3823, 0.25
    %v4234 = vmin.f32 %v3828, 1.0
    %v4235 = vmin.f32 %v3829, 1.0
    %v4236 = vsub.f32 1.0, %v4234
    %v4237 = vsub.f32 1.0, %v4235
    %v4238 = vmul.f32 %v4232, %v4236
    %v4239 = vmul.f32 %v4233, %v4237
    %v4240 = vadd.f32 %v4238, %v4230
    %v4241 = vadd.f32 %v4239, %v4231
    %v4242 = vfloor.f32 %v4240
    %v4243 = vfloor.f32 %v4241
    %v4244 = vmax.f32 %v4242, 0.0
    %v4245 = vmax.f32 %v4243, 0.0
    %v4246 = vmin.f32 %v4244, 4.0
    %v4247 = vmin.f32 %v4245, 4.0
    %v4248 = vmul.f32 %v3833, %v4246
    %v4249 = vmul.f32 %v3833, %v4247
    %v4250 = vmul.f32 %v3838, %v4246
    %v4251 = vmul.f32 %v3838, %v4247
    %v4252 = vadd.f32 %v4248, %v3847
    %v4253 = vadd.f32 %v4249, %v3847
    %v4254 = vadd.f32 %v4250, %v3852
    %v4255 = vadd.f32 %v4251, %v3852
    %v4256 = vmul.f32 %v3854, 0.25
    %v4257 = vmul.f32 %v3855, 0.25
    %v4258 = vmul.f32 %v3856, 0.25
    %v4259 = vmul.f32 %v3857, 0.25
    %v4260 = vmin.f32 %v3866, 1.0
    %v4261 = vmin.f32 %v3867, 1.0
    %v4262 = vmin.f32 %v3868, 1.0
    %v4263 = vmin.f32 %v3869, 1.0
    %v4264 = vsub.f32 1.0, %v4260
    %v4265 = vsub.f32 1.0, %v4261
    %v4266 = vsub.f32 1.0, %v4262
    %v4267 = vsub.f32 1.0, %v4263
    %v4268 = vmul.f32 %v4256, %v4264
    %v4269 = vmul.f32 %v4257, %v4265
    %v4270 = vmul.f32 %v4258, %v4266
    %v4271 = vmul.f32 %v4259, %v4267
    %v4272 = vadd.f32 %v4268, %v4252
    %v4273 = vadd.f32 %v4269, %v4253
    %v4274 = vadd.f32 %v4270, %v4254
    %v4275 = vadd.f32 %v4271, %v4255
    %v4276 = vfloor.f32 %v4272
    %v4277 = vfloor.f32 %v4273
    %v4278 = vfloor.f32 %v4274
    %v4279 = vfloor.f32 %v4275
    %v4280 = vmax.f32 %v4276, 0.0
    %v4281 = vmax.f32 %v4277, 0.0
    %v4282 = vmax.f32 %v4278, 0.0
    %v4283 = vmax.f32 %v4279, 0.0
    %v4284 = vmin.f32 %v4280, 4.0
    %v4285 = vmin.f32 %v4281, 4.0
    %v4286 = vmin.f32 %v4282, 4.0
    %v4287 = vmin.f32 %v4283, 4.0
    %4288 = vrot.lane.b32.xlu0 %v4284, 7
    %v4289 = vpop.permute.xlu0 %4288
    %4290 = vrot.lane.b32.xlu0 %v4286, 7
    %v4291 = vpop.permute.xlu0 %4290
    %v4292 = vsel %vm3874, %v4289, 0.0
    %v4293 = vsel %vm3874, %v4291, 0.0
    %4294 = vrot.lane.b32.xlu0 %v4285, 7
    %v4295 = vpop.permute.xlu0 %4294
    %4296 = vrot.lane.b32.xlu0 %v4287, 7
    %v4297 = vpop.permute.xlu0 %4296
    %v4298 = vsel %vm3874, %v4295, 0.0
    %v4299 = vsel %vm3874, %v4297, 0.0
    %v4300 = vpack.c.bf16 %v4293, %v4292
    %v4301 = vpack.c.bf16 %v4299, %v4298
    %4302 = vrot.lane.b32.xlu0 %v4284, 6
    %v4303 = vpop.permute.xlu0 %4302
    %4304 = vrot.lane.b32.xlu0 %v4286, 6
    %v4305 = vpop.permute.xlu0 %4304
    %v4306 = vsel %vm3889, %v4303, 0.0
    %v4307 = vsel %vm3889, %v4305, 0.0
    %4308 = vrot.lane.b32.xlu0 %v4285, 6
    %v4309 = vpop.permute.xlu0 %4308
    %4310 = vrot.lane.b32.xlu0 %v4287, 6
    %v4311 = vpop.permute.xlu0 %4310
    %v4312 = vsel %vm3889, %v4309, 0.0
    %v4313 = vsel %vm3889, %v4311, 0.0
    %v4314 = vpack.c.bf16 %v4307, %v4306
    %v4315 = vpack.c.bf16 %v4313, %v4312
    %4316 = vrot.lane.b32.xlu0 %v4284, 5
    %v4317 = vpop.permute.xlu0 %4316
    %4318 = vrot.lane.b32.xlu0 %v4286, 5
    %v4319 = vpop.permute.xlu0 %4318
    %v4320 = vsel %vm3904, %v4317, 0.0
    %v4321 = vsel %vm3904, %v4319, 0.0
    %4322 = vrot.lane.b32.xlu0 %v4285, 5
    %v4323 = vpop.permute.xlu0 %4322
    %4324 = vrot.lane.b32.xlu0 %v4287, 5
    %v4325 = vpop.permute.xlu0 %4324
    %v4326 = vsel %vm3904, %v4323, 0.0
    %v4327 = vsel %vm3904, %v4325, 0.0
    %v4328 = vpack.c.bf16 %v4321, %v4320
    %v4329 = vpack.c.bf16 %v4327, %v4326
    %4330 = vrot.lane.b32.xlu0 %v4284, 4
    %v4331 = vpop.permute.xlu0 %4330
    %4332 = vrot.lane.b32.xlu0 %v4286, 4
    %v4333 = vpop.permute.xlu0 %4332
    %v4334 = vsel %vm3919, %v4331, 0.0
    %v4335 = vsel %vm3919, %v4333, 0.0
    %4336 = vrot.lane.b32.xlu0 %v4285, 4
    %v4337 = vpop.permute.xlu0 %4336
    %4338 = vrot.lane.b32.xlu0 %v4287, 4
    %v4339 = vpop.permute.xlu0 %4338
    %v4340 = vsel %vm3919, %v4337, 0.0
    %v4341 = vsel %vm3919, %v4339, 0.0
    %v4342 = vpack.c.bf16 %v4335, %v4334
    %v4343 = vpack.c.bf16 %v4341, %v4340
    %4344 = vrot.lane.b32.xlu0 %v4284, 3
    %v4345 = vpop.permute.xlu0 %4344
    %4346 = vrot.lane.b32.xlu0 %v4286, 3
    %v4347 = vpop.permute.xlu0 %4346
    %v4348 = vsel %vm3934, %v4345, 0.0
    %v4349 = vsel %vm3934, %v4347, 0.0
    %4350 = vrot.lane.b32.xlu0 %v4285, 3
    %v4351 = vpop.permute.xlu0 %4350
    %4352 = vrot.lane.b32.xlu0 %v4287, 3
    %v4353 = vpop.permute.xlu0 %4352
    %v4354 = vsel %vm3934, %v4351, 0.0
    %v4355 = vsel %vm3934, %v4353, 0.0
    %v4356 = vpack.c.bf16 %v4349, %v4348
    %v4357 = vpack.c.bf16 %v4355, %v4354
    %4358 = vrot.lane.b32.xlu0 %v4284, 2
    %v4359 = vpop.permute.xlu0 %4358
    %4360 = vrot.lane.b32.xlu0 %v4286, 2
    %v4361 = vpop.permute.xlu0 %4360
    %v4362 = vsel %vm3949, %v4359, 0.0
    %v4363 = vsel %vm3949, %v4361, 0.0
    %4364 = vrot.lane.b32.xlu0 %v4285, 2
    %v4365 = vpop.permute.xlu0 %4364
    %4366 = vrot.lane.b32.xlu0 %v4287, 2
    %v4367 = vpop.permute.xlu0 %4366
    %v4368 = vsel %vm3949, %v4365, 0.0
    %v4369 = vsel %vm3949, %v4367, 0.0
    %v4370 = vpack.c.bf16 %v4363, %v4362
    %v4371 = vpack.c.bf16 %v4369, %v4368
    %4372 = vrot.lane.b32.xlu0 %v4284, 1
    %v4373 = vpop.permute.xlu0 %4372
    %4374 = vrot.lane.b32.xlu0 %v4286, 1
    %v4375 = vpop.permute.xlu0 %4374
    %v4376 = vsel %vm3964, %v4373, 0.0
    %v4377 = vsel %vm3964, %v4375, 0.0
    %4378 = vrot.lane.b32.xlu0 %v4285, 1
    %v4379 = vpop.permute.xlu0 %4378
    %4380 = vrot.lane.b32.xlu0 %v4287, 1
    %v4381 = vpop.permute.xlu0 %4380
    %v4382 = vsel %vm3964, %v4379, 0.0
    %v4383 = vsel %vm3964, %v4381, 0.0
    %v4384 = vpack.c.bf16 %v4377, %v4376
    %v4385 = vpack.c.bf16 %v4383, %v4382
    %v4386 = vpack.c.bf16 %v4286, %v4284
    %v4387 = vpack.c.bf16 %v4287, %v4285
    %4388 = vrot.lane.b32.xlu0 %v4284, 127
    %v4389 = vpop.permute.xlu0 %4388
    %4390 = vrot.lane.b32.xlu0 %v4286, 127
    %v4391 = vpop.permute.xlu0 %4390
    %v4392 = vsel %vm3981, %v4389, 0.0
    %v4393 = vsel %vm3981, %v4391, 0.0
    %4394 = vrot.lane.b32.xlu0 %v4285, 127
    %v4395 = vpop.permute.xlu0 %4394
    %4396 = vrot.lane.b32.xlu0 %v4287, 127
    %v4397 = vpop.permute.xlu0 %4396
    %v4398 = vsel %vm3981, %v4395, 0.0
    %v4399 = vsel %vm3981, %v4397, 0.0
    %v4400 = vpack.c.bf16 %v4393, %v4392
    %v4401 = vpack.c.bf16 %v4399, %v4398
    %4402 = vrot.lane.b32.xlu0 %v4284, 126
    %v4403 = vpop.permute.xlu0 %4402
    %4404 = vrot.lane.b32.xlu0 %v4286, 126
    %v4405 = vpop.permute.xlu0 %4404
    %v4406 = vsel %vm3996, %v4403, 0.0
    %v4407 = vsel %vm3996, %v4405, 0.0
    %4408 = vrot.lane.b32.xlu0 %v4285, 126
    %v4409 = vpop.permute.xlu0 %4408
    %4410 = vrot.lane.b32.xlu0 %v4287, 126
    %v4411 = vpop.permute.xlu0 %4410
    %v4412 = vsel %vm3996, %v4409, 0.0
    %v4413 = vsel %vm3996, %v4411, 0.0
    %v4414 = vpack.c.bf16 %v4407, %v4406
    %v4415 = vpack.c.bf16 %v4413, %v4412
    %4416 = vrot.lane.b32.xlu0 %v4284, 125
    %v4417 = vpop.permute.xlu0 %4416
    %4418 = vrot.lane.b32.xlu0 %v4286, 125
    %v4419 = vpop.permute.xlu0 %4418
    %v4420 = vsel %vm4011, %v4417, 0.0
    %v4421 = vsel %vm4011, %v4419, 0.0
    %4422 = vrot.lane.b32.xlu0 %v4285, 125
    %v4423 = vpop.permute.xlu0 %4422
    %4424 = vrot.lane.b32.xlu0 %v4287, 125
    %v4425 = vpop.permute.xlu0 %4424
    %v4426 = vsel %vm4011, %v4423, 0.0
    %v4427 = vsel %vm4011, %v4425, 0.0
    %v4428 = vpack.c.bf16 %v4421, %v4420
    %v4429 = vpack.c.bf16 %v4427, %v4426
    %4430 = vrot.lane.b32.xlu0 %v4284, 124
    %v4431 = vpop.permute.xlu0 %4430
    %4432 = vrot.lane.b32.xlu0 %v4286, 124
    %v4433 = vpop.permute.xlu0 %4432
    %v4434 = vsel %vm4026, %v4431, 0.0
    %v4435 = vsel %vm4026, %v4433, 0.0
    %4436 = vrot.lane.b32.xlu0 %v4285, 124
    %v4437 = vpop.permute.xlu0 %4436
    %4438 = vrot.lane.b32.xlu0 %v4287, 124
    %v4439 = vpop.permute.xlu0 %4438
    %v4440 = vsel %vm4026, %v4437, 0.0
    %v4441 = vsel %vm4026, %v4439, 0.0
    %v4442 = vpack.c.bf16 %v4435, %v4434
    %v4443 = vpack.c.bf16 %v4441, %v4440
    %4444 = vrot.lane.b32.xlu0 %v4284, 123
    %v4445 = vpop.permute.xlu0 %4444
    %4446 = vrot.lane.b32.xlu0 %v4286, 123
    %v4447 = vpop.permute.xlu0 %4446
    %v4448 = vsel %vm4041, %v4445, 0.0
    %v4449 = vsel %vm4041, %v4447, 0.0
    %4450 = vrot.lane.b32.xlu0 %v4285, 123
    %v4451 = vpop.permute.xlu0 %4450
    %4452 = vrot.lane.b32.xlu0 %v4287, 123
    %v4453 = vpop.permute.xlu0 %4452
    %v4454 = vsel %vm4041, %v4451, 0.0
    %v4455 = vsel %vm4041, %v4453, 0.0
    %v4456 = vpack.c.bf16 %v4449, %v4448
    %v4457 = vpack.c.bf16 %v4455, %v4454
    %4458 = vrot.lane.b32.xlu0 %v4284, 122
    %v4459 = vpop.permute.xlu0 %4458
    %4460 = vrot.lane.b32.xlu0 %v4286, 122
    %v4461 = vpop.permute.xlu0 %4460
    %v4462 = vsel %vm4056, %v4459, 0.0
    %v4463 = vsel %vm4056, %v4461, 0.0
    %4464 = vrot.lane.b32.xlu0 %v4285, 122
    %v4465 = vpop.permute.xlu0 %4464
    %4466 = vrot.lane.b32.xlu0 %v4287, 122
    %v4467 = vpop.permute.xlu0 %4466
    %v4468 = vsel %vm4056, %v4465, 0.0
    %v4469 = vsel %vm4056, %v4467, 0.0
    %v4470 = vpack.c.bf16 %v4463, %v4462
    %v4471 = vpack.c.bf16 %v4469, %v4468
    %4472 = vrot.lane.b32.xlu0 %v4284, 121
    %v4473 = vpop.permute.xlu0 %4472
    %4474 = vrot.lane.b32.xlu0 %v4286, 121
    %v4475 = vpop.permute.xlu0 %4474
    %v4476 = vsel %vm4071, %v4473, 0.0
    %v4477 = vsel %vm4071, %v4475, 0.0
    %4478 = vrot.lane.b32.xlu0 %v4285, 121
    %v4479 = vpop.permute.xlu0 %4478
    %4480 = vrot.lane.b32.xlu0 %v4287, 121
    %v4481 = vpop.permute.xlu0 %4480
    %v4482 = vsel %vm4071, %v4479, 0.0
    %v4483 = vsel %vm4071, %v4481, 0.0
    %v4484 = vpack.c.bf16 %v4477, %v4476
    %v4485 = vpack.c.bf16 %v4483, %v4482
    %4486 = vrot.lane.b32.xlu0 %v4284, 120
    %v4487 = vpop.permute.xlu0 %4486
    %4488 = vrot.lane.b32.xlu0 %v4286, 120
    %v4489 = vpop.permute.xlu0 %4488
    %v4490 = vsel %vm4086, %v4487, 0.0
    %v4491 = vsel %vm4086, %v4489, 0.0
    %4492 = vrot.lane.b32.xlu0 %v4285, 120
    %v4493 = vpop.permute.xlu0 %4492
    %4494 = vrot.lane.b32.xlu0 %v4287, 120
    %v4495 = vpop.permute.xlu0 %4494
    %v4496 = vsel %vm4086, %v4493, 0.0
    %v4497 = vsel %vm4086, %v4495, 0.0
    %v4498 = vpack.c.bf16 %v4491, %v4490
    %v4499 = vpack.c.bf16 %v4497, %v4496
    %4500 = vmatprep.subr.bf16.mxu0 %v4301
    %4501 = vmatpush1.bf16.msra.mxu0 %v4300
    %4502 = vmatprep.subr.bf16.mxu0 %v4315
    %4503 = vmatpush1.bf16.msra.mxu0 %v4314
    %4504 = vmatprep.subr.bf16.mxu0 %v4329
    %4505 = vmatpush1.bf16.msra.mxu0 %v4328
    %4506 = vmatprep.subr.bf16.mxu0 %v4343
    %4507 = vmatpush1.bf16.msra.mxu0 %v4342
    %4508 = vmatprep.subr.bf16.mxu0 %v4357
    %4509 = vmatpush1.bf16.msra.mxu0 %v4356
    %4510 = vmatprep.subr.bf16.mxu0 %v4371
    %4511 = vmatpush1.bf16.msra.mxu0 %v4370
    %4512 = vmatprep.subr.bf16.mxu0 %v4385
    %4513 = vmatpush1.bf16.msra.mxu0 %v4384
    %4514 = vmatprep.subr.bf16.mxu0 %v4387
    %4515 = vmatpush1.bf16.msra.mxu0 %v4386
    %4516 = vmatprep.subr.bf16.mxu0 0
    %4517 = vmatpush1.bf16.msra.mxu0 0
    %4518 = vmatprep.subr.bf16.mxu0 0
    %4519 = vmatpush1.bf16.msra.mxu0 0
    %4520 = vmatprep.subr.bf16.mxu0 0
    %4521 = vmatpush1.bf16.msra.mxu0 0
    %4522 = vmatprep.subr.bf16.mxu0 0
    %4523 = vmatpush1.bf16.msra.mxu0 0
    %4524 = vmatprep.subr.bf16.mxu0 0
    %4525 = vmatpush1.bf16.msra.mxu0 0
    %4526 = vmatprep.subr.bf16.mxu0 0
    %4527 = vmatpush1.bf16.msra.mxu0 0
    %4528 = vmatprep.subr.bf16.mxu0 0
    %4529 = vmatpush1.bf16.msra.mxu0 0
    %4530 = vmatprep.subr.bf16.mxu0 0
    %4531 = vmatpush1.bf16.msra.mxu0 0
    %4532 = vmatprep.mubr.bf16.mxu0 0
    %4533 = vmatmul.mubr.bf16.gmra.mrb[0].mxu0 %v4101
    %v4534 = vpop.f32.mrb[0].mxu0
    %v4535 = vadd.f32 0.0, %v4534
    %v4536 = vpop.f32.mrb[0].mxu0
    %v4537 = vadd.f32 0.0, %v4536
    %v4538 = vpop.f32.mrb[0].mxu0
    %v4539 = vadd.f32 0.0, %v4538
    %v4540 = vpop.f32.mrb[0].mxu0
    %v4541 = vadd.f32 0.0, %v4540
    %4542 = vdwg.mxu0
    %4543 = vmatprep.subr.bf16.mxu0 %v4401
    %4544 = vmatpush1.bf16.msra.mxu0 %v4400
    %4545 = vmatprep.subr.bf16.mxu0 %v4415
    %4546 = vmatpush1.bf16.msra.mxu0 %v4414
    %4547 = vmatprep.subr.bf16.mxu0 %v4429
    %4548 = vmatpush1.bf16.msra.mxu0 %v4428
    %4549 = vmatprep.subr.bf16.mxu0 %v4443
    %4550 = vmatpush1.bf16.msra.mxu0 %v4442
    %4551 = vmatprep.subr.bf16.mxu0 %v4457
    %4552 = vmatpush1.bf16.msra.mxu0 %v4456
    %4553 = vmatprep.subr.bf16.mxu0 %v4471
    %4554 = vmatpush1.bf16.msra.mxu0 %v4470
    %4555 = vmatprep.subr.bf16.mxu0 %v4485
    %4556 = vmatpush1.bf16.msra.mxu0 %v4484
    %4557 = vmatprep.subr.bf16.mxu0 %v4499
    %4558 = vmatpush1.bf16.msra.mxu0 %v4498
    %4559 = vmatprep.subr.bf16.mxu0 0
    %4560 = vmatpush1.bf16.msra.mxu0 0
    %4561 = vmatprep.subr.bf16.mxu0 0
    %4562 = vmatpush1.bf16.msra.mxu0 0
    %4563 = vmatprep.subr.bf16.mxu0 0
    %4564 = vmatpush1.bf16.msra.mxu0 0
    %4565 = vmatprep.subr.bf16.mxu0 0
    %4566 = vmatpush1.bf16.msra.mxu0 0
    %4567 = vmatprep.subr.bf16.mxu0 0
    %4568 = vmatpush1.bf16.msra.mxu0 0
    %4569 = vmatprep.subr.bf16.mxu0 0
    %4570 = vmatpush1.bf16.msra.mxu0 0
    %4571 = vmatprep.subr.bf16.mxu0 0
    %4572 = vmatpush1.bf16.msra.mxu0 0
    %4573 = vmatprep.subr.bf16.mxu0 0
    %4574 = vmatpush1.bf16.msra.mxu0 0
    %4575 = vmatprep.mubr.bf16.mxu0 0
    %4576 = vmatmul.mubr.bf16.gmra.mrb[0].mxu0 %v4150
    %v4577 = vpop.f32.mrb[0].mxu0
    %v4578 = vadd.f32 0.0, %v4577
    %v4579 = vpop.f32.mrb[0].mxu0
    %v4580 = vadd.f32 0.0, %v4579
    %v4581 = vpop.f32.mrb[0].mxu0
    %v4582 = vadd.f32 0.0, %v4581
    %v4583 = vpop.f32.mrb[0].mxu0
    %v4584 = vadd.f32 0.0, %v4583
    %4585 = vdwg.mxu0
    %v4586 = vadd.f32 %v4535, %v4539
    %v4587 = vadd.f32 %v4537, %v4541
    %v4588 = vadd.f32 %v4586, %v4578
    %v4589 = vadd.f32 %v4587, %v4580
    %v4590 = vadd.f32 %v4588, %v4582
    %v4591 = vadd.f32 %v4589, %v4584
    %v4592 = vadd.f32 %v4590, %v4204
    %v4593 = vadd.f32 %v4591, %v4204
    %v4594 = vmul.f32 %v4206, 0.25
    %v4595 = vmul.f32 %v4207, 0.25
    %v4596 = vmin.f32 %v4212, 1.0
    %v4597 = vmin.f32 %v4213, 1.0
    %v4598 = vsub.f32 1.0, %v4596
    %v4599 = vsub.f32 1.0, %v4597
    %v4600 = vmul.f32 %v4594, %v4598
    %v4601 = vmul.f32 %v4595, %v4599
    %v4602 = vadd.f32 %v4600, %v4592
    %v4603 = vadd.f32 %v4601, %v4593
    %v4604 = vfloor.f32 %v4602
    %v4605 = vfloor.f32 %v4603
    %v4606 = vmax.f32 %v4604, 0.0
    %v4607 = vmax.f32 %v4605, 0.0
    %v4608 = vmin.f32 %v4606, 4.0
    %v4609 = vmin.f32 %v4607, 4.0
    %s4610 = scalar_lea.vmem [#allocation3], 64
    %v4611 = vld [vmem:[%s4610] sm:$0xff]
    %v4612 = vld [vmem:[%s4610 + $0x8] sm:$0xff]
    %v4613 = vld [vmem:[%s4610 + $0x10] sm:$0xff]
    %v4614 = vld [vmem:[%s4610 + $0x18] sm:$0xff]
    %v4615 = vld [vmem:[%s4610 + $0x20] sm:$0xff]
    %v4616 = vld [vmem:[%s4610 + $0x28] sm:$0xff]
    %v4617 = vld [vmem:[%s4610 + $0x30] sm:$0xff]
    %v4618 = vld [vmem:[%s4610 + $0x38] sm:$0xff]
    %v4619 = vmul.f32 %v4611, %v4608
    %v4620 = vmul.f32 %v4612, %v4609
    %v4621 = vmul.f32 %v4613, %v4608
    %v4622 = vmul.f32 %v4614, %v4609
    %v4623 = vmul.f32 %v4615, %v4608
    %v4624 = vmul.f32 %v4616, %v4609
    %v4625 = vmul.f32 %v4617, %v4608
    %v4626 = vmul.f32 %v4618, %v4609
    %v4627 = vadd.f32 %v4222, %v4619
    %v4628 = vadd.f32 %v4223, %v4620
    %v4629 = vadd.f32 %v4224, %v4621
    %v4630 = vadd.f32 %v4225, %v4622
    %v4631 = vadd.f32 %v4226, %v4623
    %v4632 = vadd.f32 %v4227, %v4624
    %v4633 = vadd.f32 %v4228, %v4625
    %v4634 = vadd.f32 %v4229, %v4626
    %v4635 = vld [vmem:[#allocation2 + $0x20] sm:$0xff]
    %v4636 = vld [vmem:[#allocation2 + $0x28] sm:$0xff]
    %v4637 = vmul.f32 %v4240, 0.25
    %v4638 = vmul.f32 %v4241, 0.25
    %v4639 = vmin.f32 %v4246, 1.0
    %v4640 = vmin.f32 %v4247, 1.0
    %v4641 = vsub.f32 1.0, %v4639
    %v4642 = vsub.f32 1.0, %v4640
    %v4643 = vmul.f32 %v4637, %v4641
    %v4644 = vmul.f32 %v4638, %v4642
    %v4645 = vadd.f32 %v4643, %v4635
    %v4646 = vadd.f32 %v4644, %v4636
    %v4647 = vfloor.f32 %v4645
    %v4648 = vfloor.f32 %v4646
    %v4649 = vmax.f32 %v4647, 0.0
    %v4650 = vmax.f32 %v4648, 0.0
    %v4651 = vmin.f32 %v4649, 4.0
    %v4652 = vmin.f32 %v4650, 4.0
    %v4653 = vmul.f32 %v3833, %v4651
    %v4654 = vmul.f32 %v3833, %v4652
    %v4655 = vmul.f32 %v3838, %v4651
    %v4656 = vmul.f32 %v3838, %v4652
    %v4657 = vadd.f32 %v4653, %v3847
    %v4658 = vadd.f32 %v4654, %v3847
    %v4659 = vadd.f32 %v4655, %v3852
    %v4660 = vadd.f32 %v4656, %v3852
    %v4661 = vmul.f32 %v4272, 0.25
    %v4662 = vmul.f32 %v4273, 0.25
    %v4663 = vmul.f32 %v4274, 0.25
    %v4664 = vmul.f32 %v4275, 0.25
    %v4665 = vmin.f32 %v4284, 1.0
    %v4666 = vmin.f32 %v4285, 1.0
    %v4667 = vmin.f32 %v4286, 1.0
    %v4668 = vmin.f32 %v4287, 1.0
    %v4669 = vsub.f32 1.0, %v4665
    %v4670 = vsub.f32 1.0, %v4666
    %v4671 = vsub.f32 1.0, %v4667
    %v4672 = vsub.f32 1.0, %v4668
    %v4673 = vmul.f32 %v4661, %v4669
    %v4674 = vmul.f32 %v4662, %v4670
    %v4675 = vmul.f32 %v4663, %v4671
    %v4676 = vmul.f32 %v4664, %v4672
    %v4677 = vadd.f32 %v4673, %v4657
    %v4678 = vadd.f32 %v4674, %v4658
    %v4679 = vadd.f32 %v4675, %v4659
    %v4680 = vadd.f32 %v4676, %v4660
    %v4681 = vfloor.f32 %v4677
    %v4682 = vfloor.f32 %v4678
    %v4683 = vfloor.f32 %v4679
    %v4684 = vfloor.f32 %v4680
    %v4685 = vmax.f32 %v4681, 0.0
    %v4686 = vmax.f32 %v4682, 0.0
    %v4687 = vmax.f32 %v4683, 0.0
    %v4688 = vmax.f32 %v4684, 0.0
    %v4689 = vmin.f32 %v4685, 4.0
    %v4690 = vmin.f32 %v4686, 4.0
    %v4691 = vmin.f32 %v4687, 4.0
    %v4692 = vmin.f32 %v4688, 4.0
    %4693 = vrot.lane.b32.xlu0 %v4689, 7
    %v4694 = vpop.permute.xlu0 %4693
    %4695 = vrot.lane.b32.xlu0 %v4691, 7
    %v4696 = vpop.permute.xlu0 %4695
    %v4697 = vsel %vm3874, %v4694, 0.0
    %v4698 = vsel %vm3874, %v4696, 0.0
    %4699 = vrot.lane.b32.xlu0 %v4690, 7
    %v4700 = vpop.permute.xlu0 %4699
    %4701 = vrot.lane.b32.xlu0 %v4692, 7
    %v4702 = vpop.permute.xlu0 %4701
    %v4703 = vsel %vm3874, %v4700, 0.0
    %v4704 = vsel %vm3874, %v4702, 0.0
    %v4705 = vpack.c.bf16 %v4698, %v4697
    %v4706 = vpack.c.bf16 %v4704, %v4703
    %4707 = vrot.lane.b32.xlu0 %v4689, 6
    %v4708 = vpop.permute.xlu0 %4707
    %4709 = vrot.lane.b32.xlu0 %v4691, 6
    %v4710 = vpop.permute.xlu0 %4709
    %v4711 = vsel %vm3889, %v4708, 0.0
    %v4712 = vsel %vm3889, %v4710, 0.0
    %4713 = vrot.lane.b32.xlu0 %v4690, 6
    %v4714 = vpop.permute.xlu0 %4713
    %4715 = vrot.lane.b32.xlu0 %v4692, 6
    %v4716 = vpop.permute.xlu0 %4715
    %v4717 = vsel %vm3889, %v4714, 0.0
    %v4718 = vsel %vm3889, %v4716, 0.0
    %v4719 = vpack.c.bf16 %v4712, %v4711
    %v4720 = vpack.c.bf16 %v4718, %v4717
    %4721 = vrot.lane.b32.xlu0 %v4689, 5
    %v4722 = vpop.permute.xlu0 %4721
    %4723 = vrot.lane.b32.xlu0 %v4691, 5
    %v4724 = vpop.permute.xlu0 %4723
    %v4725 = vsel %vm3904, %v4722, 0.0
    %v4726 = vsel %vm3904, %v4724, 0.0
    %4727 = vrot.lane.b32.xlu0 %v4690, 5
    %v4728 = vpop.permute.xlu0 %4727
    %4729 = vrot.lane.b32.xlu0 %v4692, 5
    %v4730 = vpop.permute.xlu0 %4729
    %v4731 = vsel %vm3904, %v4728, 0.0
    %v4732 = vsel %vm3904, %v4730, 0.0
    %v4733 = vpack.c.bf16 %v4726, %v4725
    %v4734 = vpack.c.bf16 %v4732, %v4731
    %4735 = vrot.lane.b32.xlu0 %v4689, 4
    %v4736 = vpop.permute.xlu0 %4735
    %4737 = vrot.lane.b32.xlu0 %v4691, 4
    %v4738 = vpop.permute.xlu0 %4737
    %v4739 = vsel %vm3919, %v4736, 0.0
    %v4740 = vsel %vm3919, %v4738, 0.0
    %4741 = vrot.lane.b32.xlu0 %v4690, 4
    %v4742 = vpop.permute.xlu0 %4741
    %4743 = vrot.lane.b32.xlu0 %v4692, 4
    %v4744 = vpop.permute.xlu0 %4743
    %v4745 = vsel %vm3919, %v4742, 0.0
    %v4746 = vsel %vm3919, %v4744, 0.0
    %v4747 = vpack.c.bf16 %v4740, %v4739
    %v4748 = vpack.c.bf16 %v4746, %v4745
    %4749 = vrot.lane.b32.xlu0 %v4689, 3
    %v4750 = vpop.permute.xlu0 %4749
    %4751 = vrot.lane.b32.xlu0 %v4691, 3
    %v4752 = vpop.permute.xlu0 %4751
    %v4753 = vsel %vm3934, %v4750, 0.0
    %v4754 = vsel %vm3934, %v4752, 0.0
    %4755 = vrot.lane.b32.xlu0 %v4690, 3
    %v4756 = vpop.permute.xlu0 %4755
    %4757 = vrot.lane.b32.xlu0 %v4692, 3
    %v4758 = vpop.permute.xlu0 %4757
    %v4759 = vsel %vm3934, %v4756, 0.0
    %v4760 = vsel %vm3934, %v4758, 0.0
    %v4761 = vpack.c.bf16 %v4754, %v4753
    %v4762 = vpack.c.bf16 %v4760, %v4759
    %4763 = vrot.lane.b32.xlu0 %v4689, 2
    %v4764 = vpop.permute.xlu0 %4763
    %4765 = vrot.lane.b32.xlu0 %v4691, 2
    %v4766 = vpop.permute.xlu0 %4765
    %v4767 = vsel %vm3949, %v4764, 0.0
    %v4768 = vsel %vm3949, %v4766, 0.0
    %4769 = vrot.lane.b32.xlu0 %v4690, 2
    %v4770 = vpop.permute.xlu0 %4769
    %4771 = vrot.lane.b32.xlu0 %v4692, 2
    %v4772 = vpop.permute.xlu0 %4771
    %v4773 = vsel %vm3949, %v4770, 0.0
    %v4774 = vsel %vm3949, %v4772, 0.0
    %v4775 = vpack.c.bf16 %v4768, %v4767
    %v4776 = vpack.c.bf16 %v4774, %v4773
    %4777 = vrot.lane.b32.xlu0 %v4689, 1
    %v4778 = vpop.permute.xlu0 %4777
    %4779 = vrot.lane.b32.xlu0 %v4691, 1
    %v4780 = vpop.permute.xlu0 %4779
    %v4781 = vsel %vm3964, %v4778, 0.0
    %v4782 = vsel %vm3964, %v4780, 0.0
    %4783 = vrot.lane.b32.xlu0 %v4690, 1
    %v4784 = vpop.permute.xlu0 %4783
    %4785 = vrot.lane.b32.xlu0 %v4692, 1
    %v4786 = vpop.permute.xlu0 %4785
    %v4787 = vsel %vm3964, %v4784, 0.0
    %v4788 = vsel %vm3964, %v4786, 0.0
    %v4789 = vpack.c.bf16 %v4782, %v4781
    %v4790 = vpack.c.bf16 %v4788, %v4787
    %v4791 = vpack.c.bf16 %v4691, %v4689
    %v4792 = vpack.c.bf16 %v4692, %v4690
    %4793 = vrot.lane.b32.xlu0 %v4689, 127
    %v4794 = vpop.permute.xlu0 %4793
    %4795 = vrot.lane.b32.xlu0 %v4691, 127
    %v4796 = vpop.permute.xlu0 %4795
    %v4797 = vsel %vm3981, %v4794, 0.0
    %v4798 = vsel %vm3981, %v4796, 0.0
    %4799 = vrot.lane.b32.xlu0 %v4690, 127
    %v4800 = vpop.permute.xlu0 %4799
    %4801 = vrot.lane.b32.xlu0 %v4692, 127
    %v4802 = vpop.permute.xlu0 %4801
    %v4803 = vsel %vm3981, %v4800, 0.0
    %v4804 = vsel %vm3981, %v4802, 0.0
    %v4805 = vpack.c.bf16 %v4798, %v4797
    %v4806 = vpack.c.bf16 %v4804, %v4803
    %4807 = vrot.lane.b32.xlu0 %v4689, 126
    %v4808 = vpop.permute.xlu0 %4807
    %4809 = vrot.lane.b32.xlu0 %v4691, 126
    %v4810 = vpop.permute.xlu0 %4809
    %v4811 = vsel %vm3996, %v4808, 0.0
    %v4812 = vsel %vm3996, %v4810, 0.0
    %4813 = vrot.lane.b32.xlu0 %v4690, 126
    %v4814 = vpop.permute.xlu0 %4813
    %4815 = vrot.lane.b32.xlu0 %v4692, 126
    %v4816 = vpop.permute.xlu0 %4815
    %v4817 = vsel %vm3996, %v4814, 0.0
    %v4818 = vsel %vm3996, %v4816, 0.0
    %v4819 = vpack.c.bf16 %v4812, %v4811
    %v4820 = vpack.c.bf16 %v4818, %v4817
    %4821 = vrot.lane.b32.xlu0 %v4689, 125
    %v4822 = vpop.permute.xlu0 %4821
    %4823 = vrot.lane.b32.xlu0 %v4691, 125
    %v4824 = vpop.permute.xlu0 %4823
    %v4825 = vsel %vm4011, %v4822, 0.0
    %v4826 = vsel %vm4011, %v4824, 0.0
    %4827 = vrot.lane.b32.xlu0 %v4690, 125
    %v4828 = vpop.permute.xlu0 %4827
    %4829 = vrot.lane.b32.xlu0 %v4692, 125
    %v4830 = vpop.permute.xlu0 %4829
    %v4831 = vsel %vm4011, %v4828, 0.0
    %v4832 = vsel %vm4011, %v4830, 0.0
    %v4833 = vpack.c.bf16 %v4826, %v4825
    %v4834 = vpack.c.bf16 %v4832, %v4831
    %4835 = vrot.lane.b32.xlu0 %v4689, 124
    %v4836 = vpop.permute.xlu0 %4835
    %4837 = vrot.lane.b32.xlu0 %v4691, 124
    %v4838 = vpop.permute.xlu0 %4837
    %v4839 = vsel %vm4026, %v4836, 0.0
    %v4840 = vsel %vm4026, %v4838, 0.0
    %4841 = vrot.lane.b32.xlu0 %v4690, 124
    %v4842 = vpop.permute.xlu0 %4841
    %4843 = vrot.lane.b32.xlu0 %v4692, 124
    %v4844 = vpop.permute.xlu0 %4843
    %v4845 = vsel %vm4026, %v4842, 0.0
    %v4846 = vsel %vm4026, %v4844, 0.0
    %v4847 = vpack.c.bf16 %v4840, %v4839
    %v4848 = vpack.c.bf16 %v4846, %v4845
    %4849 = vrot.lane.b32.xlu0 %v4689, 123
    %v4850 = vpop.permute.xlu0 %4849
    %4851 = vrot.lane.b32.xlu0 %v4691, 123
    %v4852 = vpop.permute.xlu0 %4851
    %v4853 = vsel %vm4041, %v4850, 0.0
    %v4854 = vsel %vm4041, %v4852, 0.0
    %4855 = vrot.lane.b32.xlu0 %v4690, 123
    %v4856 = vpop.permute.xlu0 %4855
    %4857 = vrot.lane.b32.xlu0 %v4692, 123
    %v4858 = vpop.permute.xlu0 %4857
    %v4859 = vsel %vm4041, %v4856, 0.0
    %v4860 = vsel %vm4041, %v4858, 0.0
    %v4861 = vpack.c.bf16 %v4854, %v4853
    %v4862 = vpack.c.bf16 %v4860, %v4859
    %4863 = vrot.lane.b32.xlu0 %v4689, 122
    %v4864 = vpop.permute.xlu0 %4863
    %4865 = vrot.lane.b32.xlu0 %v4691, 122
    %v4866 = vpop.permute.xlu0 %4865
    %v4867 = vsel %vm4056, %v4864, 0.0
    %v4868 = vsel %vm4056, %v4866, 0.0
    %4869 = vrot.lane.b32.xlu0 %v4690, 122
    %v4870 = vpop.permute.xlu0 %4869
    %4871 = vrot.lane.b32.xlu0 %v4692, 122
    %v4872 = vpop.permute.xlu0 %4871
    %v4873 = vsel %vm4056, %v4870, 0.0
    %v4874 = vsel %vm4056, %v4872, 0.0
    %v4875 = vpack.c.bf16 %v4868, %v4867
    %v4876 = vpack.c.bf16 %v4874, %v4873
    %4877 = vrot.lane.b32.xlu0 %v4689, 121
    %v4878 = vpop.permute.xlu0 %4877
    %4879 = vrot.lane.b32.xlu0 %v4691, 121
    %v4880 = vpop.permute.xlu0 %4879
    %v4881 = vsel %vm4071, %v4878, 0.0
    %v4882 = vsel %vm4071, %v4880, 0.0
    %4883 = vrot.lane.b32.xlu0 %v4690, 121
    %v4884 = vpop.permute.xlu0 %4883
    %4885 = vrot.lane.b32.xlu0 %v4692, 121
    %v4886 = vpop.permute.xlu0 %4885
    %v4887 = vsel %vm4071, %v4884, 0.0
    %v4888 = vsel %vm4071, %v4886, 0.0
    %v4889 = vpack.c.bf16 %v4882, %v4881
    %v4890 = vpack.c.bf16 %v4888, %v4887
    %4891 = vrot.lane.b32.xlu0 %v4689, 120
    %v4892 = vpop.permute.xlu0 %4891
    %4893 = vrot.lane.b32.xlu0 %v4691, 120
    %v4894 = vpop.permute.xlu0 %4893
    %v4895 = vsel %vm4086, %v4892, 0.0
    %v4896 = vsel %vm4086, %v4894, 0.0
    %4897 = vrot.lane.b32.xlu0 %v4690, 120
    %v4898 = vpop.permute.xlu0 %4897
    %4899 = vrot.lane.b32.xlu0 %v4692, 120
    %v4900 = vpop.permute.xlu0 %4899
    %v4901 = vsel %vm4086, %v4898, 0.0
    %v4902 = vsel %vm4086, %v4900, 0.0
    %v4903 = vpack.c.bf16 %v4896, %v4895
    %v4904 = vpack.c.bf16 %v4902, %v4901
    %4905 = vmatprep.subr.bf16.mxu0 %v4706
    %4906 = vmatpush1.bf16.msra.mxu0 %v4705
    %4907 = vmatprep.subr.bf16.mxu0 %v4720
    %4908 = vmatpush1.bf16.msra.mxu0 %v4719
    %4909 = vmatprep.subr.bf16.mxu0 %v4734
    %4910 = vmatpush1.bf16.msra.mxu0 %v4733
    %4911 = vmatprep.subr.bf16.mxu0 %v4748
    %4912 = vmatpush1.bf16.msra.mxu0 %v4747
    %4913 = vmatprep.subr.bf16.mxu0 %v4762
    %4914 = vmatpush1.bf16.msra.mxu0 %v4761
    %4915 = vmatprep.subr.bf16.mxu0 %v4776
    %4916 = vmatpush1.bf16.msra.mxu0 %v4775
    %4917 = vmatprep.subr.bf16.mxu0 %v4790
    %4918 = vmatpush1.bf16.msra.mxu0 %v4789
    %4919 = vmatprep.subr.bf16.mxu0 %v4792
    %4920 = vmatpush1.bf16.msra.mxu0 %v4791
    %4921 = vmatprep.subr.bf16.mxu0 0
    %4922 = vmatpush1.bf16.msra.mxu0 0
    %4923 = vmatprep.subr.bf16.mxu0 0
    %4924 = vmatpush1.bf16.msra.mxu0 0
    %4925 = vmatprep.subr.bf16.mxu0 0
    %4926 = vmatpush1.bf16.msra.mxu0 0
    %4927 = vmatprep.subr.bf16.mxu0 0
    %4928 = vmatpush1.bf16.msra.mxu0 0
    %4929 = vmatprep.subr.bf16.mxu0 0
    %4930 = vmatpush1.bf16.msra.mxu0 0
    %4931 = vmatprep.subr.bf16.mxu0 0
    %4932 = vmatpush1.bf16.msra.mxu0 0
    %4933 = vmatprep.subr.bf16.mxu0 0
    %4934 = vmatpush1.bf16.msra.mxu0 0
    %4935 = vmatprep.subr.bf16.mxu0 0
    %4936 = vmatpush1.bf16.msra.mxu0 0
    %4937 = vmatprep.mubr.bf16.mxu0 0
    %4938 = vmatmul.mubr.bf16.gmra.mrb[0].mxu0 %v4101
    %v4939 = vpop.f32.mrb[0].mxu0
    %v4940 = vadd.f32 0.0, %v4939
    %v4941 = vpop.f32.mrb[0].mxu0
    %v4942 = vadd.f32 0.0, %v4941
    %v4943 = vpop.f32.mrb[0].mxu0
    %v4944 = vadd.f32 0.0, %v4943
    %v4945 = vpop.f32.mrb[0].mxu0
    %v4946 = vadd.f32 0.0, %v4945
    %4947 = vdwg.mxu0
    %4948 = vmatprep.subr.bf16.mxu0 %v4806
    %4949 = vmatpush1.bf16.msra.mxu0 %v4805
    %4950 = vmatprep.subr.bf16.mxu0 %v4820
    %4951 = vmatpush1.bf16.msra.mxu0 %v4819
    %4952 = vmatprep.subr.bf16.mxu0 %v4834
    %4953 = vmatpush1.bf16.msra.mxu0 %v4833
    %4954 = vmatprep.subr.bf16.mxu0 %v4848
    %4955 = vmatpush1.bf16.msra.mxu0 %v4847
    %4956 = vmatprep.subr.bf16.mxu0 %v4862
    %4957 = vmatpush1.bf16.msra.mxu0 %v4861
    %4958 = vmatprep.subr.bf16.mxu0 %v4876
    %4959 = vmatpush1.bf16.msra.mxu0 %v4875
    %4960 = vmatprep.subr.bf16.mxu0 %v4890
    %4961 = vmatpush1.bf16.msra.mxu0 %v4889
    %4962 = vmatprep.subr.bf16.mxu0 %v4904
    %4963 = vmatpush1.bf16.msra.mxu0 %v4903
    %4964 = vmatprep.subr.bf16.mxu0 0
    %4965 = vmatpush1.bf16.msra.mxu0 0
    %4966 = vmatprep.subr.bf16.mxu0 0
    %4967 = vmatpush1.bf16.msra.mxu0 0
    %4968 = vmatprep.subr.bf16.mxu0 0
    %4969 = vmatpush1.bf16.msra.mxu0 0
    %4970 = vmatprep.subr.bf16.mxu0 0
    %4971 = vmatpush1.bf16.msra.mxu0 0
    %4972 = vmatprep.subr.bf16.mxu0 0
    %4973 = vmatpush1.bf16.msra.mxu0 0
    %4974 = vmatprep.subr.bf16.mxu0 0
    %4975 = vmatpush1.bf16.msra.mxu0 0
    %4976 = vmatprep.subr.bf16.mxu0 0
    %4977 = vmatpush1.bf16.msra.mxu0 0
    %4978 = vmatprep.subr.bf16.mxu0 0
    %4979 = vmatpush1.bf16.msra.mxu0 0
    %4980 = vmatprep.mubr.bf16.mxu0 0
    %4981 = vmatmul.mubr.bf16.gmra.mrb[0].mxu0 %v4150
    %v4982 = vpop.f32.mrb[0].mxu0
    %v4983 = vadd.f32 0.0, %v4982
    %v4984 = vpop.f32.mrb[0].mxu0
    %v4985 = vadd.f32 0.0, %v4984
    %v4986 = vpop.f32.mrb[0].mxu0
    %v4987 = vadd.f32 0.0, %v4986
    %v4988 = vpop.f32.mrb[0].mxu0
    %v4989 = vadd.f32 0.0, %v4988
    %4990 = vdwg.mxu0
    %v4991 = vadd.f32 %v4940, %v4944
    %v4992 = vadd.f32 %v4942, %v4946
    %v4993 = vadd.f32 %v4991, %v4983
    %v4994 = vadd.f32 %v4992, %v4985
    %v4995 = vadd.f32 %v4993, %v4987
    %v4996 = vadd.f32 %v4994, %v4989
    %v4997 = vadd.f32 %v4995, %v4204
    %v4998 = vadd.f32 %v4996, %v4204
    %v4999 = vmul.f32 %v4602, 0.25
    %v5000 = vmul.f32 %v4603, 0.25
    %v5001 = vmin.f32 %v4608, 1.0
    %v5002 = vmin.f32 %v4609, 1.0
    %v5003 = vsub.f32 1.0, %v5001
    %v5004 = vsub.f32 1.0, %v5002
    %v5005 = vmul.f32 %v4999, %v5003
    %v5006 = vmul.f32 %v5000, %v5004
    %v5007 = vadd.f32 %v5005, %v4997
    %v5008 = vadd.f32 %v5006, %v4998
    %v5009 = vfloor.f32 %v5007
    %v5010 = vfloor.f32 %v5008
    %v5011 = vmax.f32 %v5009, 0.0
    %v5012 = vmax.f32 %v5010, 0.0
    %v5013 = vmin.f32 %v5011, 4.0
    %v5014 = vmin.f32 %v5012, 4.0
    %s5015 = scalar_lea.vmem [#allocation3], 128
    %v5016 = vld [vmem:[%s5015] sm:$0xff]
    %v5017 = vld [vmem:[%s5015 + $0x8] sm:$0xff]
    %v5018 = vld [vmem:[%s5015 + $0x10] sm:$0xff]
    %v5019 = vld [vmem:[%s5015 + $0x18] sm:$0xff]
    %v5020 = vld [vmem:[%s5015 + $0x20] sm:$0xff]
    %v5021 = vld [vmem:[%s5015 + $0x28] sm:$0xff]
    %v5022 = vld [vmem:[%s5015 + $0x30] sm:$0xff]
    %v5023 = vld [vmem:[%s5015 + $0x38] sm:$0xff]
    %v5024 = vmul.f32 %v5016, %v5013
    %v5025 = vmul.f32 %v5017, %v5014
    %v5026 = vmul.f32 %v5018, %v5013
    %v5027 = vmul.f32 %v5019, %v5014
    %v5028 = vmul.f32 %v5020, %v5013
    %v5029 = vmul.f32 %v5021, %v5014
    %v5030 = vmul.f32 %v5022, %v5013
    %v5031 = vmul.f32 %v5023, %v5014
    %v5032 = vadd.f32 %v4627, %v5024
    %v5033 = vadd.f32 %v4628, %v5025
    %v5034 = vadd.f32 %v4629, %v5026
    %v5035 = vadd.f32 %v4630, %v5027
    %v5036 = vadd.f32 %v4631, %v5028
    %v5037 = vadd.f32 %v4632, %v5029
    %v5038 = vadd.f32 %v4633, %v5030
    %v5039 = vadd.f32 %v4634, %v5031
    %v5040 = vld [vmem:[#allocation2 + $0x30] sm:$0xff]
    %v5041 = vld [vmem:[#allocation2 + $0x38] sm:$0xff]
    %v5042 = vmul.f32 %v4645, 0.25
    %v5043 = vmul.f32 %v4646, 0.25
    %v5044 = vmin.f32 %v4651, 1.0
    %v5045 = vmin.f32 %v4652, 1.0
    %v5046 = vsub.f32 1.0, %v5044
    %v5047 = vsub.f32 1.0, %v5045
    %v5048 = vmul.f32 %v5042, %v5046
    %v5049 = vmul.f32 %v5043, %v5047
    %v5050 = vadd.f32 %v5048, %v5040
    %v5051 = vadd.f32 %v5049, %v5041
    %v5052 = vfloor.f32 %v5050
    %v5053 = vfloor.f32 %v5051
    %v5054 = vmax.f32 %v5052, 0.0
    %v5055 = vmax.f32 %v5053, 0.0
    %v5056 = vmin.f32 %v5054, 4.0
    %v5057 = vmin.f32 %v5055, 4.0
    %v5058 = vmul.f32 %v3833, %v5056
    %v5059 = vmul.f32 %v3833, %v5057
    %v5060 = vmul.f32 %v3838, %v5056
    %v5061 = vmul.f32 %v3838, %v5057
    %v5062 = vadd.f32 %v5058, %v3847
    %v5063 = vadd.f32 %v5059, %v3847
    %v5064 = vadd.f32 %v5060, %v3852
    %v5065 = vadd.f32 %v5061, %v3852
    %v5066 = vmul.f32 %v4677, 0.25
    %v5067 = vmul.f32 %v4678, 0.25
    %v5068 = vmul.f32 %v4679, 0.25
    %v5069 = vmul.f32 %v4680, 0.25
    %v5070 = vmin.f32 %v4689, 1.0
    %v5071 = vmin.f32 %v4690, 1.0
    %v5072 = vmin.f32 %v4691, 1.0
    %v5073 = vmin.f32 %v4692, 1.0
    %v5074 = vsub.f32 1.0, %v5070
    %v5075 = vsub.f32 1.0, %v5071
    %v5076 = vsub.f32 1.0, %v5072
    %v5077 = vsub.f32 1.0, %v5073
    %v5078 = vmul.f32 %v5066, %v5074
    %v5079 = vmul.f32 %v5067, %v5075
    %v5080 = vmul.f32 %v5068, %v5076
    %v5081 = vmul.f32 %v5069, %v5077
    %v5082 = vadd.f32 %v5078, %v5062
    %v5083 = vadd.f32 %v5079, %v5063
    %v5084 = vadd.f32 %v5080, %v5064
    %v5085 = vadd.f32 %v5081, %v5065
    %v5086 = vfloor.f32 %v5082
    %v5087 = vfloor.f32 %v5083
    %v5088 = vfloor.f32 %v5084
    %v5089 = vfloor.f32 %v5085
    %v5090 = vmax.f32 %v5086, 0.0
    %v5091 = vmax.f32 %v5087, 0.0
    %v5092 = vmax.f32 %v5088, 0.0
    %v5093 = vmax.f32 %v5089, 0.0
    %v5094 = vmin.f32 %v5090, 4.0
    %v5095 = vmin.f32 %v5091, 4.0
    %v5096 = vmin.f32 %v5092, 4.0
    %v5097 = vmin.f32 %v5093, 4.0
    %5098 = vrot.lane.b32.xlu0 %v5094, 7
    %v5099 = vpop.permute.xlu0 %5098
    %5100 = vrot.lane.b32.xlu0 %v5096, 7
    %v5101 = vpop.permute.xlu0 %5100
    %v5102 = vsel %vm3874, %v5099, 0.0
    %v5103 = vsel %vm3874, %v5101, 0.0
    %5104 = vrot.lane.b32.xlu0 %v5095, 7
    %v5105 = vpop.permute.xlu0 %5104
    %5106 = vrot.lane.b32.xlu0 %v5097, 7
    %v5107 = vpop.permute.xlu0 %5106
    %v5108 = vsel %vm3874, %v5105, 0.0
    %v5109 = vsel %vm3874, %v5107, 0.0
    %v5110 = vpack.c.bf16 %v5103, %v5102
    %v5111 = vpack.c.bf16 %v5109, %v5108
    %5112 = vrot.lane.b32.xlu0 %v5094, 6
    %v5113 = vpop.permute.xlu0 %5112
    %5114 = vrot.lane.b32.xlu0 %v5096, 6
    %v5115 = vpop.permute.xlu0 %5114
    %v5116 = vsel %vm3889, %v5113, 0.0
    %v5117 = vsel %vm3889, %v5115, 0.0
    %5118 = vrot.lane.b32.xlu0 %v5095, 6
    %v5119 = vpop.permute.xlu0 %5118
    %5120 = vrot.lane.b32.xlu0 %v5097, 6
    %v5121 = vpop.permute.xlu0 %5120
    %v5122 = vsel %vm3889, %v5119, 0.0
    %v5123 = vsel %vm3889, %v5121, 0.0
    %v5124 = vpack.c.bf16 %v5117, %v5116
    %v5125 = vpack.c.bf16 %v5123, %v5122
    %5126 = vrot.lane.b32.xlu0 %v5094, 5
    %v5127 = vpop.permute.xlu0 %5126
    %5128 = vrot.lane.b32.xlu0 %v5096, 5
    %v5129 = vpop.permute.xlu0 %5128
    %v5130 = vsel %vm3904, %v5127, 0.0
    %v5131 = vsel %vm3904, %v5129, 0.0
    %5132 = vrot.lane.b32.xlu0 %v5095, 5
    %v5133 = vpop.permute.xlu0 %5132
    %5134 = vrot.lane.b32.xlu0 %v5097, 5
    %v5135 = vpop.permute.xlu0 %5134
    %v5136 = vsel %vm3904, %v5133, 0.0
    %v5137 = vsel %vm3904, %v5135, 0.0
    %v5138 = vpack.c.bf16 %v5131, %v5130
    %v5139 = vpack.c.bf16 %v5137, %v5136
    %5140 = vrot.lane.b32.xlu0 %v5094, 4
    %v5141 = vpop.permute.xlu0 %5140
    %5142 = vrot.lane.b32.xlu0 %v5096, 4
    %v5143 = vpop.permute.xlu0 %5142
    %v5144 = vsel %vm3919, %v5141, 0.0
    %v5145 = vsel %vm3919, %v5143, 0.0
    %5146 = vrot.lane.b32.xlu0 %v5095, 4
    %v5147 = vpop.permute.xlu0 %5146
    %5148 = vrot.lane.b32.xlu0 %v5097, 4
    %v5149 = vpop.permute.xlu0 %5148
    %v5150 = vsel %vm3919, %v5147, 0.0
    %v5151 = vsel %vm3919, %v5149, 0.0
    %v5152 = vpack.c.bf16 %v5145, %v5144
    %v5153 = vpack.c.bf16 %v5151, %v5150
    %5154 = vrot.lane.b32.xlu0 %v5094, 3
    %v5155 = vpop.permute.xlu0 %5154
    %5156 = vrot.lane.b32.xlu0 %v5096, 3
    %v5157 = vpop.permute.xlu0 %5156
    %v5158 = vsel %vm3934, %v5155, 0.0
    %v5159 = vsel %vm3934, %v5157, 0.0
    %5160 = vrot.lane.b32.xlu0 %v5095, 3
    %v5161 = vpop.permute.xlu0 %5160
    %5162 = vrot.lane.b32.xlu0 %v5097, 3
    %v5163 = vpop.permute.xlu0 %5162
    %v5164 = vsel %vm3934, %v5161, 0.0
    %v5165 = vsel %vm3934, %v5163, 0.0
    %v5166 = vpack.c.bf16 %v5159, %v5158
    %v5167 = vpack.c.bf16 %v5165, %v5164
    %5168 = vrot.lane.b32.xlu0 %v5094, 2
    %v5169 = vpop.permute.xlu0 %5168
    %5170 = vrot.lane.b32.xlu0 %v5096, 2
    %v5171 = vpop.permute.xlu0 %5170
    %v5172 = vsel %vm3949, %v5169, 0.0
    %v5173 = vsel %vm3949, %v5171, 0.0
    %5174 = vrot.lane.b32.xlu0 %v5095, 2
    %v5175 = vpop.permute.xlu0 %5174
    %5176 = vrot.lane.b32.xlu0 %v5097, 2
    %v5177 = vpop.permute.xlu0 %5176
    %v5178 = vsel %vm3949, %v5175, 0.0
    %v5179 = vsel %vm3949, %v5177, 0.0
    %v5180 = vpack.c.bf16 %v5173, %v5172
    %v5181 = vpack.c.bf16 %v5179, %v5178
    %5182 = vrot.lane.b32.xlu0 %v5094, 1
    %v5183 = vpop.permute.xlu0 %5182
    %5184 = vrot.lane.b32.xlu0 %v5096, 1
    %v5185 = vpop.permute.xlu0 %5184
    %v5186 = vsel %vm3964, %v5183, 0.0
    %v5187 = vsel %vm3964, %v5185, 0.0
    %5188 = vrot.lane.b32.xlu0 %v5095, 1
    %v5189 = vpop.permute.xlu0 %5188
    %5190 = vrot.lane.b32.xlu0 %v5097, 1
    %v5191 = vpop.permute.xlu0 %5190
    %v5192 = vsel %vm3964, %v5189, 0.0
    %v5193 = vsel %vm3964, %v5191, 0.0
    %v5194 = vpack.c.bf16 %v5187, %v5186
    %v5195 = vpack.c.bf16 %v5193, %v5192
    %v5196 = vpack.c.bf16 %v5096, %v5094
    %v5197 = vpack.c.bf16 %v5097, %v5095
    %5198 = vrot.lane.b32.xlu0 %v5094, 127
    %v5199 = vpop.permute.xlu0 %5198
    %5200 = vrot.lane.b32.xlu0 %v5096, 127
    %v5201 = vpop.permute.xlu0 %5200
    %v5202 = vsel %vm3981, %v5199, 0.0
    %v5203 = vsel %vm3981, %v5201, 0.0
    %5204 = vrot.lane.b32.xlu0 %v5095, 127
    %v5205 = vpop.permute.xlu0 %5204
    %5206 = vrot.lane.b32.xlu0 %v5097, 127
    %v5207 = vpop.permute.xlu0 %5206
    %v5208 = vsel %vm3981, %v5205, 0.0
    %v5209 = vsel %vm3981, %v5207, 0.0
    %v5210 = vpack.c.bf16 %v5203, %v5202
    %v5211 = vpack.c.bf16 %v5209, %v5208
    %5212 = vrot.lane.b32.xlu0 %v5094, 126
    %v5213 = vpop.permute.xlu0 %5212
    %5214 = vrot.lane.b32.xlu0 %v5096, 126
    %v5215 = vpop.permute.xlu0 %5214
    %v5216 = vsel %vm3996, %v5213, 0.0
    %v5217 = vsel %vm3996, %v5215, 0.0
    %5218 = vrot.lane.b32.xlu0 %v5095, 126
    %v5219 = vpop.permute.xlu0 %5218
    %5220 = vrot.lane.b32.xlu0 %v5097, 126
    %v5221 = vpop.permute.xlu0 %5220
    %v5222 = vsel %vm3996, %v5219, 0.0
    %v5223 = vsel %vm3996, %v5221, 0.0
    %v5224 = vpack.c.bf16 %v5217, %v5216
    %v5225 = vpack.c.bf16 %v5223, %v5222
    %5226 = vrot.lane.b32.xlu0 %v5094, 125
    %v5227 = vpop.permute.xlu0 %5226
    %5228 = vrot.lane.b32.xlu0 %v5096, 125
    %v5229 = vpop.permute.xlu0 %5228
    %v5230 = vsel %vm4011, %v5227, 0.0
    %v5231 = vsel %vm4011, %v5229, 0.0
    %5232 = vrot.lane.b32.xlu0 %v5095, 125
    %v5233 = vpop.permute.xlu0 %5232
    %5234 = vrot.lane.b32.xlu0 %v5097, 125
    %v5235 = vpop.permute.xlu0 %5234
    %v5236 = vsel %vm4011, %v5233, 0.0
    %v5237 = vsel %vm4011, %v5235, 0.0
    %v5238 = vpack.c.bf16 %v5231, %v5230
    %v5239 = vpack.c.bf16 %v5237, %v5236
    %5240 = vrot.lane.b32.xlu0 %v5094, 124
    %v5241 = vpop.permute.xlu0 %5240
    %5242 = vrot.lane.b32.xlu0 %v5096, 124
    %v5243 = vpop.permute.xlu0 %5242
    %v5244 = vsel %vm4026, %v5241, 0.0
    %v5245 = vsel %vm4026, %v5243, 0.0
    %5246 = vrot.lane.b32.xlu0 %v5095, 124
    %v5247 = vpop.permute.xlu0 %5246
    %5248 = vrot.lane.b32.xlu0 %v5097, 124
    %v5249 = vpop.permute.xlu0 %5248
    %v5250 = vsel %vm4026, %v5247, 0.0
    %v5251 = vsel %vm4026, %v5249, 0.0
    %v5252 = vpack.c.bf16 %v5245, %v5244
    %v5253 = vpack.c.bf16 %v5251, %v5250
    %5254 = vrot.lane.b32.xlu0 %v5094, 123
    %v5255 = vpop.permute.xlu0 %5254
    %5256 = vrot.lane.b32.xlu0 %v5096, 123
    %v5257 = vpop.permute.xlu0 %5256
    %v5258 = vsel %vm4041, %v5255, 0.0
    %v5259 = vsel %vm4041, %v5257, 0.0
    %5260 = vrot.lane.b32.xlu0 %v5095, 123
    %v5261 = vpop.permute.xlu0 %5260
    %5262 = vrot.lane.b32.xlu0 %v5097, 123
    %v5263 = vpop.permute.xlu0 %5262
    %v5264 = vsel %vm4041, %v5261, 0.0
    %v5265 = vsel %vm4041, %v5263, 0.0
    %v5266 = vpack.c.bf16 %v5259, %v5258
    %v5267 = vpack.c.bf16 %v5265, %v5264
    %5268 = vrot.lane.b32.xlu0 %v5094, 122
    %v5269 = vpop.permute.xlu0 %5268
    %5270 = vrot.lane.b32.xlu0 %v5096, 122
    %v5271 = vpop.permute.xlu0 %5270
    %v5272 = vsel %vm4056, %v5269, 0.0
    %v5273 = vsel %vm4056, %v5271, 0.0
    %5274 = vrot.lane.b32.xlu0 %v5095, 122
    %v5275 = vpop.permute.xlu0 %5274
    %5276 = vrot.lane.b32.xlu0 %v5097, 122
    %v5277 = vpop.permute.xlu0 %5276
    %v5278 = vsel %vm4056, %v5275, 0.0
    %v5279 = vsel %vm4056, %v5277, 0.0
    %v5280 = vpack.c.bf16 %v5273, %v5272
    %v5281 = vpack.c.bf16 %v5279, %v5278
    %5282 = vrot.lane.b32.xlu0 %v5094, 121
    %v5283 = vpop.permute.xlu0 %5282
    %5284 = vrot.lane.b32.xlu0 %v5096, 121
    %v5285 = vpop.permute.xlu0 %5284
    %v5286 = vsel %vm4071, %v5283, 0.0
    %v5287 = vsel %vm4071, %v5285, 0.0
    %5288 = vrot.lane.b32.xlu0 %v5095, 121
    %v5289 = vpop.permute.xlu0 %5288
    %5290 = vrot.lane.b32.xlu0 %v5097, 121
    %v5291 = vpop.permute.xlu0 %5290
    %v5292 = vsel %vm4071, %v5289, 0.0
    %v5293 = vsel %vm4071, %v5291, 0.0
    %v5294 = vpack.c.bf16 %v5287, %v5286
    %v5295 = vpack.c.bf16 %v5293, %v5292
    %5296 = vrot.lane.b32.xlu0 %v5094, 120
    %v5297 = vpop.permute.xlu0 %5296
    %5298 = vrot.lane.b32.xlu0 %v5096, 120
    %v5299 = vpop.permute.xlu0 %5298
    %v5300 = vsel %vm4086, %v5297, 0.0
    %v5301 = vsel %vm4086, %v5299, 0.0
    %5302 = vrot.lane.b32.xlu0 %v5095, 120
    %v5303 = vpop.permute.xlu0 %5302
    %5304 = vrot.lane.b32.xlu0 %v5097, 120
    %v5305 = vpop.permute.xlu0 %5304
    %v5306 = vsel %vm4086, %v5303, 0.0
    %v5307 = vsel %vm4086, %v5305, 0.0
    %v5308 = vpack.c.bf16 %v5301, %v5300
    %v5309 = vpack.c.bf16 %v5307, %v5306
    %5310 = vmatprep.subr.bf16.mxu0 %v5111
    %5311 = vmatpush1.bf16.msra.mxu0 %v5110
    %5312 = vmatprep.subr.bf16.mxu0 %v5125
    %5313 = vmatpush1.bf16.msra.mxu0 %v5124
    %5314 = vmatprep.subr.bf16.mxu0 %v5139
    %5315 = vmatpush1.bf16.msra.mxu0 %v5138
    %5316 = vmatprep.subr.bf16.mxu0 %v5153
    %5317 = vmatpush1.bf16.msra.mxu0 %v5152
    %5318 = vmatprep.subr.bf16.mxu0 %v5167
    %5319 = vmatpush1.bf16.msra.mxu0 %v5166
    %5320 = vmatprep.subr.bf16.mxu0 %v5181
    %5321 = vmatpush1.bf16.msra.mxu0 %v5180
    %5322 = vmatprep.subr.bf16.mxu0 %v5195
    %5323 = vmatpush1.bf16.msra.mxu0 %v5194
    %5324 = vmatprep.subr.bf16.mxu0 %v5197
    %5325 = vmatpush1.bf16.msra.mxu0 %v5196
    %5326 = vmatprep.subr.bf16.mxu0 0
    %5327 = vmatpush1.bf16.msra.mxu0 0
    %5328 = vmatprep.subr.bf16.mxu0 0
    %5329 = vmatpush1.bf16.msra.mxu0 0
    %5330 = vmatprep.subr.bf16.mxu0 0
    %5331 = vmatpush1.bf16.msra.mxu0 0
    %5332 = vmatprep.subr.bf16.mxu0 0
    %5333 = vmatpush1.bf16.msra.mxu0 0
    %5334 = vmatprep.subr.bf16.mxu0 0
    %5335 = vmatpush1.bf16.msra.mxu0 0
    %5336 = vmatprep.subr.bf16.mxu0 0
    %5337 = vmatpush1.bf16.msra.mxu0 0
    %5338 = vmatprep.subr.bf16.mxu0 0
    %5339 = vmatpush1.bf16.msra.mxu0 0
    %5340 = vmatprep.subr.bf16.mxu0 0
    %5341 = vmatpush1.bf16.msra.mxu0 0
    %5342 = vmatprep.mubr.bf16.mxu0 0
    %5343 = vmatmul.mubr.bf16.gmra.mrb[0].mxu0 %v4101
    %v5344 = vpop.f32.mrb[0].mxu0
    %v5345 = vadd.f32 0.0, %v5344
    %v5346 = vpop.f32.mrb[0].mxu0
    %v5347 = vadd.f32 0.0, %v5346
    %v5348 = vpop.f32.mrb[0].mxu0
    %v5349 = vadd.f32 0.0, %v5348
    %v5350 = vpop.f32.mrb[0].mxu0
    %v5351 = vadd.f32 0.0, %v5350
    %5352 = vdwg.mxu0
    %5353 = vmatprep.subr.bf16.mxu0 %v5211
    %5354 = vmatpush1.bf16.msra.mxu0 %v5210
    %5355 = vmatprep.subr.bf16.mxu0 %v5225
    %5356 = vmatpush1.bf16.msra.mxu0 %v5224
    %5357 = vmatprep.subr.bf16.mxu0 %v5239
    %5358 = vmatpush1.bf16.msra.mxu0 %v5238
    %5359 = vmatprep.subr.bf16.mxu0 %v5253
    %5360 = vmatpush1.bf16.msra.mxu0 %v5252
    %5361 = vmatprep.subr.bf16.mxu0 %v5267
    %5362 = vmatpush1.bf16.msra.mxu0 %v5266
    %5363 = vmatprep.subr.bf16.mxu0 %v5281
    %5364 = vmatpush1.bf16.msra.mxu0 %v5280
    %5365 = vmatprep.subr.bf16.mxu0 %v5295
    %5366 = vmatpush1.bf16.msra.mxu0 %v5294
    %5367 = vmatprep.subr.bf16.mxu0 %v5309
    %5368 = vmatpush1.bf16.msra.mxu0 %v5308
    %5369 = vmatprep.subr.bf16.mxu0 0
    %5370 = vmatpush1.bf16.msra.mxu0 0
    %5371 = vmatprep.subr.bf16.mxu0 0
    %5372 = vmatpush1.bf16.msra.mxu0 0
    %5373 = vmatprep.subr.bf16.mxu0 0
    %5374 = vmatpush1.bf16.msra.mxu0 0
    %5375 = vmatprep.subr.bf16.mxu0 0
    %5376 = vmatpush1.bf16.msra.mxu0 0
    %5377 = vmatprep.subr.bf16.mxu0 0
    %5378 = vmatpush1.bf16.msra.mxu0 0
    %5379 = vmatprep.subr.bf16.mxu0 0
    %5380 = vmatpush1.bf16.msra.mxu0 0
    %5381 = vmatprep.subr.bf16.mxu0 0
    %5382 = vmatpush1.bf16.msra.mxu0 0
    %5383 = vmatprep.subr.bf16.mxu0 0
    %5384 = vmatpush1.bf16.msra.mxu0 0
    %5385 = vmatprep.mubr.bf16.mxu0 0
    %5386 = vmatmul.mubr.bf16.gmra.mrb[0].mxu0 %v4150
    %v5387 = vpop.f32.mrb[0].mxu0
    %v5388 = vadd.f32 0.0, %v5387
    %v5389 = vpop.f32.mrb[0].mxu0
    %v5390 = vadd.f32 0.0, %v5389
    %v5391 = vpop.f32.mrb[0].mxu0
    %v5392 = vadd.f32 0.0, %v5391
    %v5393 = vpop.f32.mrb[0].mxu0
    %v5394 = vadd.f32 0.0, %v5393
    %5395 = vdwg.mxu0
    %v5396 = vadd.f32 %v5345, %v5349
    %v5397 = vadd.f32 %v5347, %v5351
    %v5398 = vadd.f32 %v5396, %v5388
    %v5399 = vadd.f32 %v5397, %v5390
    %v5400 = vadd.f32 %v5398, %v5392
    %v5401 = vadd.f32 %v5399, %v5394
    %v5402 = vadd.f32 %v5400, %v4204
    %v5403 = vadd.f32 %v5401, %v4204
    %v5404 = vmul.f32 %v5007, 0.25
    %v5405 = vmul.f32 %v5008, 0.25
    %v5406 = vmin.f32 %v5013, 1.0
    %v5407 = vmin.f32 %v5014, 1.0
    %v5408 = vsub.f32 1.0, %v5406
    %v5409 = vsub.f32 1.0, %v5407
    %v5410 = vmul.f32 %v5404, %v5408
    %v5411 = vmul.f32 %v5405, %v5409
    %v5412 = vadd.f32 %v5410, %v5402
    %v5413 = vadd.f32 %v5411, %v5403
    %v5414 = vfloor.f32 %v5412
    %v5415 = vfloor.f32 %v5413
    %v5416 = vmax.f32 %v5414, 0.0
    %v5417 = vmax.f32 %v5415, 0.0
    %v5418 = vmin.f32 %v5416, 4.0
    %v5419 = vmin.f32 %v5417, 4.0
    %s5420 = scalar_lea.vmem [#allocation3], 192
    %v5421 = vld [vmem:[%s5420] sm:$0xff]
    %v5422 = vld [vmem:[%s5420 + $0x8] sm:$0xff]
    %v5423 = vld [vmem:[%s5420 + $0x10] sm:$0xff]
    %v5424 = vld [vmem:[%s5420 + $0x18] sm:$0xff]
    %v5425 = vld [vmem:[%s5420 + $0x20] sm:$0xff]
    %v5426 = vld [vmem:[%s5420 + $0x28] sm:$0xff]
    %v5427 = vld [vmem:[%s5420 + $0x30] sm:$0xff]
    %v5428 = vld [vmem:[%s5420 + $0x38] sm:$0xff]
    %v5429 = vmul.f32 %v5421, %v5418
    %v5430 = vmul.f32 %v5422, %v5419
    %v5431 = vmul.f32 %v5423, %v5418
    %v5432 = vmul.f32 %v5424, %v5419
    %v5433 = vmul.f32 %v5425, %v5418
    %v5434 = vmul.f32 %v5426, %v5419
    %v5435 = vmul.f32 %v5427, %v5418
    %v5436 = vmul.f32 %v5428, %v5419
    %v5437 = vadd.f32 %v5032, %v5429
    %v5438 = vadd.f32 %v5033, %v5430
    %v5439 = vadd.f32 %v5034, %v5431
    %v5440 = vadd.f32 %v5035, %v5432
    %v5441 = vadd.f32 %v5036, %v5433
    %v5442 = vadd.f32 %v5037, %v5434
    %v5443 = vadd.f32 %v5038, %v5435
    %v5444 = vadd.f32 %v5039, %v5436
    %v5445 = vld [vmem:[#allocation2 + $0x40] sm:$0xff]
    %v5446 = vld [vmem:[#allocation2 + $0x48] sm:$0xff]
    %v5447 = vmul.f32 %v5050, 0.25
    %v5448 = vmul.f32 %v5051, 0.25
    %v5449 = vmin.f32 %v5056, 1.0
    %v5450 = vmin.f32 %v5057, 1.0
    %v5451 = vsub.f32 1.0, %v5449
    %v5452 = vsub.f32 1.0, %v5450
    %v5453 = vmul.f32 %v5447, %v5451
    %v5454 = vmul.f32 %v5448, %v5452
    %v5455 = vadd.f32 %v5453, %v5445
    %v5456 = vadd.f32 %v5454, %v5446
    %v5457 = vfloor.f32 %v5455
    %v5458 = vfloor.f32 %v5456
    %v5459 = vmax.f32 %v5457, 0.0
    %v5460 = vmax.f32 %v5458, 0.0
    %v5461 = vmin.f32 %v5459, 4.0
    %v5462 = vmin.f32 %v5460, 4.0
    %v5463 = vmul.f32 %v3833, %v5461
    %v5464 = vmul.f32 %v3833, %v5462
    %v5465 = vmul.f32 %v3838, %v5461
    %v5466 = vmul.f32 %v3838, %v5462
    %v5467 = vadd.f32 %v5463, %v3847
    %v5468 = vadd.f32 %v5464, %v3847
    %v5469 = vadd.f32 %v5465, %v3852
    %v5470 = vadd.f32 %v5466, %v3852
    %v5471 = vmul.f32 %v5082, 0.25
    %v5472 = vmul.f32 %v5083, 0.25
    %v5473 = vmul.f32 %v5084, 0.25
    %v5474 = vmul.f32 %v5085, 0.25
    %v5475 = vmin.f32 %v5094, 1.0
    %v5476 = vmin.f32 %v5095, 1.0
    %v5477 = vmin.f32 %v5096, 1.0
    %v5478 = vmin.f32 %v5097, 1.0
    %v5479 = vsub.f32 1.0, %v5475
    %v5480 = vsub.f32 1.0, %v5476
    %v5481 = vsub.f32 1.0, %v5477
    %v5482 = vsub.f32 1.0, %v5478
    %v5483 = vmul.f32 %v5471, %v5479
    %v5484 = vmul.f32 %v5472, %v5480
    %v5485 = vmul.f32 %v5473, %v5481
    %v5486 = vmul.f32 %v5474, %v5482
    %v5487 = vadd.f32 %v5483, %v5467
    %v5488 = vadd.f32 %v5484, %v5468
    %v5489 = vadd.f32 %v5485, %v5469
    %v5490 = vadd.f32 %v5486, %v5470
    %v5491 = vfloor.f32 %v5487
    %v5492 = vfloor.f32 %v5488
    %v5493 = vfloor.f32 %v5489
    %v5494 = vfloor.f32 %v5490
    %v5495 = vmax.f32 %v5491, 0.0
    %v5496 = vmax.f32 %v5492, 0.0
    %v5497 = vmax.f32 %v5493, 0.0
    %v5498 = vmax.f32 %v5494, 0.0
    %v5499 = vmin.f32 %v5495, 4.0
    %v5500 = vmin.f32 %v5496, 4.0
    %v5501 = vmin.f32 %v5497, 4.0
    %v5502 = vmin.f32 %v5498, 4.0
    %5503 = vrot.lane.b32.xlu0 %v5499, 7
    %v5504 = vpop.permute.xlu0 %5503
    %5505 = vrot.lane.b32.xlu0 %v5501, 7
    %v5506 = vpop.permute.xlu0 %5505
    %v5507 = vsel %vm3874, %v5504, 0.0
    %v5508 = vsel %vm3874, %v5506, 0.0
    %5509 = vrot.lane.b32.xlu0 %v5500, 7
    %v5510 = vpop.permute.xlu0 %5509
    %5511 = vrot.lane.b32.xlu0 %v5502, 7
    %v5512 = vpop.permute.xlu0 %5511
    %v5513 = vsel %vm3874, %v5510, 0.0
    %v5514 = vsel %vm3874, %v5512, 0.0
    %v5515 = vpack.c.bf16 %v5508, %v5507
    %v5516 = vpack.c.bf16 %v5514, %v5513
    %5517 = vrot.lane.b32.xlu0 %v5499, 6
    %v5518 = vpop.permute.xlu0 %5517
    %5519 = vrot.lane.b32.xlu0 %v5501, 6
    %v5520 = vpop.permute.xlu0 %5519
    %v5521 = vsel %vm3889, %v5518, 0.0
    %v5522 = vsel %vm3889, %v5520, 0.0
    %5523 = vrot.lane.b32.xlu0 %v5500, 6
    %v5524 = vpop.permute.xlu0 %5523
    %5525 = vrot.lane.b32.xlu0 %v5502, 6
    %v5526 = vpop.permute.xlu0 %5525
    %v5527 = vsel %vm3889, %v5524, 0.0
    %v5528 = vsel %vm3889, %v5526, 0.0
    %v5529 = vpack.c.bf16 %v5522, %v5521
    %v5530 = vpack.c.bf16 %v5528, %v5527
    %5531 = vrot.lane.b32.xlu0 %v5499, 5
    %v5532 = vpop.permute.xlu0 %5531
    %5533 = vrot.lane.b32.xlu0 %v5501, 5
    %v5534 = vpop.permute.xlu0 %5533
    %v5535 = vsel %vm3904, %v5532, 0.0
    %v5536 = vsel %vm3904, %v5534, 0.0
    %5537 = vrot.lane.b32.xlu0 %v5500, 5
    %v5538 = vpop.permute.xlu0 %5537
    %5539 = vrot.lane.b32.xlu0 %v5502, 5
    %v5540 = vpop.permute.xlu0 %5539
    %v5541 = vsel %vm3904, %v5538, 0.0
    %v5542 = vsel %vm3904, %v5540, 0.0
    %v5543 = vpack.c.bf16 %v5536, %v5535
    %v5544 = vpack.c.bf16 %v5542, %v5541
    %5545 = vrot.lane.b32.xlu0 %v5499, 4
    %v5546 = vpop.permute.xlu0 %5545
    %5547 = vrot.lane.b32.xlu0 %v5501, 4
    %v5548 = vpop.permute.xlu0 %5547
    %v5549 = vsel %vm3919, %v5546, 0.0
    %v5550 = vsel %vm3919, %v5548, 0.0
    %5551 = vrot.lane.b32.xlu0 %v5500, 4
    %v5552 = vpop.permute.xlu0 %5551
    %5553 = vrot.lane.b32.xlu0 %v5502, 4
    %v5554 = vpop.permute.xlu0 %5553
    %v5555 = vsel %vm3919, %v5552, 0.0
    %v5556 = vsel %vm3919, %v5554, 0.0
    %v5557 = vpack.c.bf16 %v5550, %v5549
    %v5558 = vpack.c.bf16 %v5556, %v5555
    %5559 = vrot.lane.b32.xlu0 %v5499, 3
    %v5560 = vpop.permute.xlu0 %5559
    %5561 = vrot.lane.b32.xlu0 %v5501, 3
    %v5562 = vpop.permute.xlu0 %5561
    %v5563 = vsel %vm3934, %v5560, 0.0
    %v5564 = vsel %vm3934, %v5562, 0.0
    %5565 = vrot.lane.b32.xlu0 %v5500, 3
    %v5566 = vpop.permute.xlu0 %5565
    %5567 = vrot.lane.b32.xlu0 %v5502, 3
    %v5568 = vpop.permute.xlu0 %5567
    %v5569 = vsel %vm3934, %v5566, 0.0
    %v5570 = vsel %vm3934, %v5568, 0.0
    %v5571 = vpack.c.bf16 %v5564, %v5563
    %v5572 = vpack.c.bf16 %v5570, %v5569
    %5573 = vrot.lane.b32.xlu0 %v5499, 2
    %v5574 = vpop.permute.xlu0 %5573
    %5575 = vrot.lane.b32.xlu0 %v5501, 2
    %v5576 = vpop.permute.xlu0 %5575
    %v5577 = vsel %vm3949, %v5574, 0.0
    %v5578 = vsel %vm3949, %v5576, 0.0
    %5579 = vrot.lane.b32.xlu0 %v5500, 2
    %v5580 = vpop.permute.xlu0 %5579
    %5581 = vrot.lane.b32.xlu0 %v5502, 2
    %v5582 = vpop.permute.xlu0 %5581
    %v5583 = vsel %vm3949, %v5580, 0.0
    %v5584 = vsel %vm3949, %v5582, 0.0
    %v5585 = vpack.c.bf16 %v5578, %v5577
    %v5586 = vpack.c.bf16 %v5584, %v5583
    %5587 = vrot.lane.b32.xlu0 %v5499, 1
    %v5588 = vpop.permute.xlu0 %5587
    %5589 = vrot.lane.b32.xlu0 %v5501, 1
    %v5590 = vpop.permute.xlu0 %5589
    %v5591 = vsel %vm3964, %v5588, 0.0
    %v5592 = vsel %vm3964, %v5590, 0.0
    %5593 = vrot.lane.b32.xlu0 %v5500, 1
    %v5594 = vpop.permute.xlu0 %5593
    %5595 = vrot.lane.b32.xlu0 %v5502, 1
    %v5596 = vpop.permute.xlu0 %5595
    %v5597 = vsel %vm3964, %v5594, 0.0
    %v5598 = vsel %vm3964, %v5596, 0.0
    %v5599 = vpack.c.bf16 %v5592, %v5591
    %v5600 = vpack.c.bf16 %v5598, %v5597
    %v5601 = vpack.c.bf16 %v5501, %v5499
    %v5602 = vpack.c.bf16 %v5502, %v5500
    %5603 = vrot.lane.b32.xlu0 %v5499, 127
    %v5604 = vpop.permute.xlu0 %5603
    %5605 = vrot.lane.b32.xlu0 %v5501, 127
    %v5606 = vpop.permute.xlu0 %5605
    %v5607 = vsel %vm3981, %v5604, 0.0
    %v5608 = vsel %vm3981, %v5606, 0.0
    %5609 = vrot.lane.b32.xlu0 %v5500, 127
    %v5610 = vpop.permute.xlu0 %5609
    %5611 = vrot.lane.b32.xlu0 %v5502, 127
    %v5612 = vpop.permute.xlu0 %5611
    %v5613 = vsel %vm3981, %v5610, 0.0
    %v5614 = vsel %vm3981, %v5612, 0.0
    %v5615 = vpack.c.bf16 %v5608, %v5607
    %v5616 = vpack.c.bf16 %v5614, %v5613
    %5617 = vrot.lane.b32.xlu0 %v5499, 126
    %v5618 = vpop.permute.xlu0 %5617
    %5619 = vrot.lane.b32.xlu0 %v5501, 126
    %v5620 = vpop.permute.xlu0 %5619
    %v5621 = vsel %vm3996, %v5618, 0.0
    %v5622 = vsel %vm3996, %v5620, 0.0
    %5623 = vrot.lane.b32.xlu0 %v5500, 126
    %v5624 = vpop.permute.xlu0 %5623
    %5625 = vrot.lane.b32.xlu0 %v5502, 126
    %v5626 = vpop.permute.xlu0 %5625
    %v5627 = vsel %vm3996, %v5624, 0.0
    %v5628 = vsel %vm3996, %v5626, 0.0
    %v5629 = vpack.c.bf16 %v5622, %v5621
    %v5630 = vpack.c.bf16 %v5628, %v5627
    %5631 = vrot.lane.b32.xlu0 %v5499, 125
    %v5632 = vpop.permute.xlu0 %5631
    %5633 = vrot.lane.b32.xlu0 %v5501, 125
    %v5634 = vpop.permute.xlu0 %5633
    %v5635 = vsel %vm4011, %v5632, 0.0
    %v5636 = vsel %vm4011, %v5634, 0.0
    %5637 = vrot.lane.b32.xlu0 %v5500, 125
    %v5638 = vpop.permute.xlu0 %5637
    %5639 = vrot.lane.b32.xlu0 %v5502, 125
    %v5640 = vpop.permute.xlu0 %5639
    %v5641 = vsel %vm4011, %v5638, 0.0
    %v5642 = vsel %vm4011, %v5640, 0.0
    %v5643 = vpack.c.bf16 %v5636, %v5635
    %v5644 = vpack.c.bf16 %v5642, %v5641
    %5645 = vrot.lane.b32.xlu0 %v5499, 124
    %v5646 = vpop.permute.xlu0 %5645
    %5647 = vrot.lane.b32.xlu0 %v5501, 124
    %v5648 = vpop.permute.xlu0 %5647
    %v5649 = vsel %vm4026, %v5646, 0.0
    %v5650 = vsel %vm4026, %v5648, 0.0
    %5651 = vrot.lane.b32.xlu0 %v5500, 124
    %v5652 = vpop.permute.xlu0 %5651
    %5653 = vrot.lane.b32.xlu0 %v5502, 124
    %v5654 = vpop.permute.xlu0 %5653
    %v5655 = vsel %vm4026, %v5652, 0.0
    %v5656 = vsel %vm4026, %v5654, 0.0
    %v5657 = vpack.c.bf16 %v5650, %v5649
    %v5658 = vpack.c.bf16 %v5656, %v5655
    %5659 = vrot.lane.b32.xlu0 %v5499, 123
    %v5660 = vpop.permute.xlu0 %5659
    %5661 = vrot.lane.b32.xlu0 %v5501, 123
    %v5662 = vpop.permute.xlu0 %5661
    %v5663 = vsel %vm4041, %v5660, 0.0
    %v5664 = vsel %vm4041, %v5662, 0.0
    %5665 = vrot.lane.b32.xlu0 %v5500, 123
    %v5666 = vpop.permute.xlu0 %5665
    %5667 = vrot.lane.b32.xlu0 %v5502, 123
    %v5668 = vpop.permute.xlu0 %5667
    %v5669 = vsel %vm4041, %v5666, 0.0
    %v5670 = vsel %vm4041, %v5668, 0.0
    %v5671 = vpack.c.bf16 %v5664, %v5663
    %v5672 = vpack.c.bf16 %v5670, %v5669
    %5673 = vrot.lane.b32.xlu0 %v5499, 122
    %v5674 = vpop.permute.xlu0 %5673
    %5675 = vrot.lane.b32.xlu0 %v5501, 122
    %v5676 = vpop.permute.xlu0 %5675
    %v5677 = vsel %vm4056, %v5674, 0.0
    %v5678 = vsel %vm4056, %v5676, 0.0
    %5679 = vrot.lane.b32.xlu0 %v5500, 122
    %v5680 = vpop.permute.xlu0 %5679
    %5681 = vrot.lane.b32.xlu0 %v5502, 122
    %v5682 = vpop.permute.xlu0 %5681
    %v5683 = vsel %vm4056, %v5680, 0.0
    %v5684 = vsel %vm4056, %v5682, 0.0
    %v5685 = vpack.c.bf16 %v5678, %v5677
    %v5686 = vpack.c.bf16 %v5684, %v5683
    %5687 = vrot.lane.b32.xlu0 %v5499, 121
    %v5688 = vpop.permute.xlu0 %5687
    %5689 = vrot.lane.b32.xlu0 %v5501, 121
    %v5690 = vpop.permute.xlu0 %5689
    %v5691 = vsel %vm4071, %v5688, 0.0
    %v5692 = vsel %vm4071, %v5690, 0.0
    %5693 = vrot.lane.b32.xlu0 %v5500, 121
    %v5694 = vpop.permute.xlu0 %5693
    %5695 = vrot.lane.b32.xlu0 %v5502, 121
    %v5696 = vpop.permute.xlu0 %5695
    %v5697 = vsel %vm4071, %v5694, 0.0
    %v5698 = vsel %vm4071, %v5696, 0.0
    %v5699 = vpack.c.bf16 %v5692, %v5691
    %v5700 = vpack.c.bf16 %v5698, %v5697
    %5701 = vrot.lane.b32.xlu0 %v5499, 120
    %v5702 = vpop.permute.xlu0 %5701
    %5703 = vrot.lane.b32.xlu0 %v5501, 120
    %v5704 = vpop.permute.xlu0 %5703
    %v5705 = vsel %vm4086, %v5702, 0.0
    %v5706 = vsel %vm4086, %v5704, 0.0
    %5707 = vrot.lane.b32.xlu0 %v5500, 120
    %v5708 = vpop.permute.xlu0 %5707
    %5709 = vrot.lane.b32.xlu0 %v5502, 120
    %v5710 = vpop.permute.xlu0 %5709
    %v5711 = vsel %vm4086, %v5708, 0.0
    %v5712 = vsel %vm4086, %v5710, 0.0
    %v5713 = vpack.c.bf16 %v5706, %v5705
    %v5714 = vpack.c.bf16 %v5712, %v5711
    %5715 = vmatprep.subr.bf16.mxu0 %v5516
    %5716 = vmatpush1.bf16.msra.mxu0 %v5515
    %5717 = vmatprep.subr.bf16.mxu0 %v5530
    %5718 = vmatpush1.bf16.msra.mxu0 %v5529
    %5719 = vmatprep.subr.bf16.mxu0 %v5544
    %5720 = vmatpush1.bf16.msra.mxu0 %v5543
    %5721 = vmatprep.subr.bf16.mxu0 %v5558
    %5722 = vmatpush1.bf16.msra.mxu0 %v5557
    %5723 = vmatprep.subr.bf16.mxu0 %v5572
    %5724 = vmatpush1.bf16.msra.mxu0 %v5571
    %5725 = vmatprep.subr.bf16.mxu0 %v5586
    %5726 = vmatpush1.bf16.msra.mxu0 %v5585
    %5727 = vmatprep.subr.bf16.mxu0 %v5600
    %5728 = vmatpush1.bf16.msra.mxu0 %v5599
    %5729 = vmatprep.subr.bf16.mxu0 %v5602
    %5730 = vmatpush1.bf16.msra.mxu0 %v5601
    %5731 = vmatprep.subr.bf16.mxu0 0
    %5732 = vmatpush1.bf16.msra.mxu0 0
    %5733 = vmatprep.subr.bf16.mxu0 0
    %5734 = vmatpush1.bf16.msra.mxu0 0
    %5735 = vmatprep.subr.bf16.mxu0 0
    %5736 = vmatpush1.bf16.msra.mxu0 0
    %5737 = vmatprep.subr.bf16.mxu0 0
    %5738 = vmatpush1.bf16.msra.mxu0 0
    %5739 = vmatprep.subr.bf16.mxu0 0
    %5740 = vmatpush1.bf16.msra.mxu0 0
    %5741 = vmatprep.subr.bf16.mxu0 0
    %5742 = vmatpush1.bf16.msra.mxu0 0
    %5743 = vmatprep.subr.bf16.mxu0 0
    %5744 = vmatpush1.bf16.msra.mxu0 0
    %5745 = vmatprep.subr.bf16.mxu0 0
    %5746 = vmatpush1.bf16.msra.mxu0 0
    %5747 = vmatprep.mubr.bf16.mxu0 0
    %5748 = vmatmul.mubr.bf16.gmra.mrb[0].mxu0 %v4101
    %v5749 = vpop.f32.mrb[0].mxu0
    %v5750 = vadd.f32 0.0, %v5749
    %v5751 = vpop.f32.mrb[0].mxu0
    %v5752 = vadd.f32 0.0, %v5751
    %v5753 = vpop.f32.mrb[0].mxu0
    %v5754 = vadd.f32 0.0, %v5753
    %v5755 = vpop.f32.mrb[0].mxu0
    %v5756 = vadd.f32 0.0, %v5755
    %5757 = vdwg.mxu0
    %5758 = vmatprep.subr.bf16.mxu0 %v5616
    %5759 = vmatpush1.bf16.msra.mxu0 %v5615
    %5760 = vmatprep.subr.bf16.mxu0 %v5630
    %5761 = vmatpush1.bf16.msra.mxu0 %v5629
    %5762 = vmatprep.subr.bf16.mxu0 %v5644
    %5763 = vmatpush1.bf16.msra.mxu0 %v5643
    %5764 = vmatprep.subr.bf16.mxu0 %v5658
    %5765 = vmatpush1.bf16.msra.mxu0 %v5657
    %5766 = vmatprep.subr.bf16.mxu0 %v5672
    %5767 = vmatpush1.bf16.msra.mxu0 %v5671
    %5768 = vmatprep.subr.bf16.mxu0 %v5686
    %5769 = vmatpush1.bf16.msra.mxu0 %v5685
    %5770 = vmatprep.subr.bf16.mxu0 %v5700
    %5771 = vmatpush1.bf16.msra.mxu0 %v5699
    %5772 = vmatprep.subr.bf16.mxu0 %v5714
    %5773 = vmatpush1.bf16.msra.mxu0 %v5713
    %5774 = vmatprep.subr.bf16.mxu0 0
    %5775 = vmatpush1.bf16.msra.mxu0 0
    %5776 = vmatprep.subr.bf16.mxu0 0
    %5777 = vmatpush1.bf16.msra.mxu0 0
    %5778 = vmatprep.subr.bf16.mxu0 0
    %5779 = vmatpush1.bf16.msra.mxu0 0
    %5780 = vmatprep.subr.bf16.mxu0 0
    %5781 = vmatpush1.bf16.msra.mxu0 0
    %5782 = vmatprep.subr.bf16.mxu0 0
    %5783 = vmatpush1.bf16.msra.mxu0 0
    %5784 = vmatprep.subr.bf16.mxu0 0
    %5785 = vmatpush1.bf16.msra.mxu0 0
    %5786 = vmatprep.subr.bf16.mxu0 0
    %5787 = vmatpush1.bf16.msra.mxu0 0
    %5788 = vmatprep.subr.bf16.mxu0 0
    %5789 = vmatpush1.bf16.msra.mxu0 0
    %5790 = vmatprep.mubr.bf16.mxu0 0
    %5791 = vmatmul.mubr.bf16.gmra.mrb[0].mxu0 %v4150
    %v5792 = vpop.f32.mrb[0].mxu0
    %v5793 = vadd.f32 0.0, %v5792
    %v5794 = vpop.f32.mrb[0].mxu0
    %v5795 = vadd.f32 0.0, %v5794
    %v5796 = vpop.f32.mrb[0].mxu0
    %v5797 = vadd.f32 0.0, %v5796
    %v5798 = vpop.f32.mrb[0].mxu0
    %v5799 = vadd.f32 0.0, %v5798
    %5800 = vdwg.mxu0
    %v5801 = vadd.f32 %v5750, %v5754
    %v5802 = vadd.f32 %v5752, %v5756
    %v5803 = vadd.f32 %v5801, %v5793
    %v5804 = vadd.f32 %v5802, %v5795
    %v5805 = vadd.f32 %v5803, %v5797
    %v5806 = vadd.f32 %v5804, %v5799
    %v5807 = vadd.f32 %v5805, %v4204
    %v5808 = vadd.f32 %v5806, %v4204
    %v5809 = vmul.f32 %v5412, 0.25
    %v5810 = vmul.f32 %v5413, 0.25
    %v5811 = vmin.f32 %v5418, 1.0
    %v5812 = vmin.f32 %v5419, 1.0
    %v5813 = vsub.f32 1.0, %v5811
    %v5814 = vsub.f32 1.0, %v5812
    %v5815 = vmul.f32 %v5809, %v5813
    %v5816 = vmul.f32 %v5810, %v5814
    %v5817 = vadd.f32 %v5815, %v5807
    %v5818 = vadd.f32 %v5816, %v5808
    %v5819 = vfloor.f32 %v5817
    %v5820 = vfloor.f32 %v5818
    %v5821 = vmax.f32 %v5819, 0.0
    %v5822 = vmax.f32 %v5820, 0.0
    %v5823 = vmin.f32 %v5821, 4.0
    %v5824 = vmin.f32 %v5822, 4.0
    %s5825 = scalar_lea.vmem [#allocation3], 256
    %v5826 = vld [vmem:[%s5825] sm:$0xff]
    %v5827 = vld [vmem:[%s5825 + $0x8] sm:$0xff]
    %v5828 = vld [vmem:[%s5825 + $0x10] sm:$0xff]
    %v5829 = vld [vmem:[%s5825 + $0x18] sm:$0xff]
    %v5830 = vld [vmem:[%s5825 + $0x20] sm:$0xff]
    %v5831 = vld [vmem:[%s5825 + $0x28] sm:$0xff]
    %v5832 = vld [vmem:[%s5825 + $0x30] sm:$0xff]
    %v5833 = vld [vmem:[%s5825 + $0x38] sm:$0xff]
    %v5834 = vmul.f32 %v5826, %v5823
    %v5835 = vmul.f32 %v5827, %v5824
    %v5836 = vmul.f32 %v5828, %v5823
    %v5837 = vmul.f32 %v5829, %v5824
    %v5838 = vmul.f32 %v5830, %v5823
    %v5839 = vmul.f32 %v5831, %v5824
    %v5840 = vmul.f32 %v5832, %v5823
    %v5841 = vmul.f32 %v5833, %v5824
    %v5842 = vadd.f32 %v5437, %v5834
    %v5843 = vadd.f32 %v5438, %v5835
    %v5844 = vadd.f32 %v5439, %v5836
    %v5845 = vadd.f32 %v5440, %v5837
    %v5846 = vadd.f32 %v5441, %v5838
    %v5847 = vadd.f32 %v5442, %v5839
    %v5848 = vadd.f32 %v5443, %v5840
    %v5849 = vadd.f32 %v5444, %v5841
    %v5850 = vld [vmem:[#allocation2 + $0x50] sm:$0xff]
    %v5851 = vld [vmem:[#allocation2 + $0x58] sm:$0xff]
    %v5852 = vmul.f32 %v5455, 0.25
    %v5853 = vmul.f32 %v5456, 0.25
    %v5854 = vmin.f32 %v5461, 1.0
    %v5855 = vmin.f32 %v5462, 1.0
    %v5856 = vsub.f32 1.0, %v5854
    %v5857 = vsub.f32 1.0, %v5855
    %v5858 = vmul.f32 %v5852, %v5856
    %v5859 = vmul.f32 %v5853, %v5857
    %v5860 = vadd.f32 %v5858, %v5850
    %v5861 = vadd.f32 %v5859, %v5851
    %v5862 = vfloor.f32 %v5860
    %v5863 = vfloor.f32 %v5861
    %v5864 = vmax.f32 %v5862, 0.0
    %v5865 = vmax.f32 %v5863, 0.0
    %v5866 = vmin.f32 %v5864, 4.0
    %v5867 = vmin.f32 %v5865, 4.0
    %v5868 = vmul.f32 %v3833, %v5866
    %v5869 = vmul.f32 %v3833, %v5867
    %v5870 = vmul.f32 %v3838, %v5866
    %v5871 = vmul.f32 %v3838, %v5867
    %v5872 = vadd.f32 %v5868, %v3847
    %v5873 = vadd.f32 %v5869, %v3847
    %v5874 = vadd.f32 %v5870, %v3852
    %v5875 = vadd.f32 %v5871, %v3852
    %v5876 = vmul.f32 %v5487, 0.25
    %v5877 = vmul.f32 %v5488, 0.25
    %v5878 = vmul.f32 %v5489, 0.25
    %v5879 = vmul.f32 %v5490, 0.25
    %v5880 = vmin.f32 %v5499, 1.0
    %v5881 = vmin.f32 %v5500, 1.0
    %v5882 = vmin.f32 %v5501, 1.0
    %v5883 = vmin.f32 %v5502, 1.0
    %v5884 = vsub.f32 1.0, %v5880
    %v5885 = vsub.f32 1.0, %v5881
    %v5886 = vsub.f32 1.0, %v5882
    %v5887 = vsub.f32 1.0, %v5883
    %v5888 = vmul.f32 %v5876, %v5884
    %v5889 = vmul.f32 %v5877, %v5885
    %v5890 = vmul.f32 %v5878, %v5886
    %v5891 = vmul.f32 %v5879, %v5887
    %v5892 = vadd.f32 %v5888, %v5872
    %v5893 = vadd.f32 %v5889, %v5873
    %v5894 = vadd.f32 %v5890, %v5874
    %v5895 = vadd.f32 %v5891, %v5875
    %v5896 = vfloor.f32 %v5892
    %v5897 = vfloor.f32 %v5893
    %v5898 = vfloor.f32 %v5894
    %v5899 = vfloor.f32 %v5895
    %v5900 = vmax.f32 %v5896, 0.0
    %v5901 = vmax.f32 %v5897, 0.0
    %v5902 = vmax.f32 %v5898, 0.0
    %v5903 = vmax.f32 %v5899, 0.0
    %v5904 = vmin.f32 %v5900, 4.0
    %v5905 = vmin.f32 %v5901, 4.0
    %v5906 = vmin.f32 %v5902, 4.0
    %v5907 = vmin.f32 %v5903, 4.0
    %5908 = vrot.lane.b32.xlu0 %v5904, 7
    %v5909 = vpop.permute.xlu0 %5908
    %5910 = vrot.lane.b32.xlu0 %v5906, 7
    %v5911 = vpop.permute.xlu0 %5910
    %v5912 = vsel %vm3874, %v5909, 0.0
    %v5913 = vsel %vm3874, %v5911, 0.0
    %5914 = vrot.lane.b32.xlu0 %v5905, 7
    %v5915 = vpop.permute.xlu0 %5914
    %5916 = vrot.lane.b32.xlu0 %v5907, 7
    %v5917 = vpop.permute.xlu0 %5916
    %v5918 = vsel %vm3874, %v5915, 0.0
    %v5919 = vsel %vm3874, %v5917, 0.0
    %v5920 = vpack.c.bf16 %v5913, %v5912
    %v5921 = vpack.c.bf16 %v5919, %v5918
    %5922 = vrot.lane.b32.xlu0 %v5904, 6
    %v5923 = vpop.permute.xlu0 %5922
    %5924 = vrot.lane.b32.xlu0 %v5906, 6
    %v5925 = vpop.permute.xlu0 %5924
    %v5926 = vsel %vm3889, %v5923, 0.0
    %v5927 = vsel %vm3889, %v5925, 0.0
    %5928 = vrot.lane.b32.xlu0 %v5905, 6
    %v5929 = vpop.permute.xlu0 %5928
    %5930 = vrot.lane.b32.xlu0 %v5907, 6
    %v5931 = vpop.permute.xlu0 %5930
    %v5932 = vsel %vm3889, %v5929, 0.0
    %v5933 = vsel %vm3889, %v5931, 0.0
    %v5934 = vpack.c.bf16 %v5927, %v5926
    %v5935 = vpack.c.bf16 %v5933, %v5932
    %5936 = vrot.lane.b32.xlu0 %v5904, 5
    %v5937 = vpop.permute.xlu0 %5936
    %5938 = vrot.lane.b32.xlu0 %v5906, 5
    %v5939 = vpop.permute.xlu0 %5938
    %v5940 = vsel %vm3904, %v5937, 0.0
    %v5941 = vsel %vm3904, %v5939, 0.0
    %5942 = vrot.lane.b32.xlu0 %v5905, 5
    %v5943 = vpop.permute.xlu0 %5942
    %5944 = vrot.lane.b32.xlu0 %v5907, 5
    %v5945 = vpop.permute.xlu0 %5944
    %v5946 = vsel %vm3904, %v5943, 0.0
    %v5947 = vsel %vm3904, %v5945, 0.0
    %v5948 = vpack.c.bf16 %v5941, %v5940
    %v5949 = vpack.c.bf16 %v5947, %v5946
    %5950 = vrot.lane.b32.xlu0 %v5904, 4
    %v5951 = vpop.permute.xlu0 %5950
    %5952 = vrot.lane.b32.xlu0 %v5906, 4
    %v5953 = vpop.permute.xlu0 %5952
    %v5954 = vsel %vm3919, %v5951, 0.0
    %v5955 = vsel %vm3919, %v5953, 0.0
    %5956 = vrot.lane.b32.xlu0 %v5905, 4
    %v5957 = vpop.permute.xlu0 %5956
    %5958 = vrot.lane.b32.xlu0 %v5907, 4
    %v5959 = vpop.permute.xlu0 %5958
    %v5960 = vsel %vm3919, %v5957, 0.0
    %v5961 = vsel %vm3919, %v5959, 0.0
    %v5962 = vpack.c.bf16 %v5955, %v5954
    %v5963 = vpack.c.bf16 %v5961, %v5960
    %5964 = vrot.lane.b32.xlu0 %v5904, 3
    %v5965 = vpop.permute.xlu0 %5964
    %5966 = vrot.lane.b32.xlu0 %v5906, 3
    %v5967 = vpop.permute.xlu0 %5966
    %v5968 = vsel %vm3934, %v5965, 0.0
    %v5969 = vsel %vm3934, %v5967, 0.0
    %5970 = vrot.lane.b32.xlu0 %v5905, 3
    %v5971 = vpop.permute.xlu0 %5970
    %5972 = vrot.lane.b32.xlu0 %v5907, 3
    %v5973 = vpop.permute.xlu0 %5972
    %v5974 = vsel %vm3934, %v5971, 0.0
    %v5975 = vsel %vm3934, %v5973, 0.0
    %v5976 = vpack.c.bf16 %v5969, %v5968
    %v5977 = vpack.c.bf16 %v5975, %v5974
    %5978 = vrot.lane.b32.xlu0 %v5904, 2
    %v5979 = vpop.permute.xlu0 %5978
    %5980 = vrot.lane.b32.xlu0 %v5906, 2
    %v5981 = vpop.permute.xlu0 %5980
    %v5982 = vsel %vm3949, %v5979, 0.0
    %v5983 = vsel %vm3949, %v5981, 0.0
    %5984 = vrot.lane.b32.xlu0 %v5905, 2
    %v5985 = vpop.permute.xlu0 %5984
    %5986 = vrot.lane.b32.xlu0 %v5907, 2
    %v5987 = vpop.permute.xlu0 %5986
    %v5988 = vsel %vm3949, %v5985, 0.0
    %v5989 = vsel %vm3949, %v5987, 0.0
    %v5990 = vpack.c.bf16 %v5983, %v5982
    %v5991 = vpack.c.bf16 %v5989, %v5988
    %5992 = vrot.lane.b32.xlu0 %v5904, 1
    %v5993 = vpop.permute.xlu0 %5992
    %5994 = vrot.lane.b32.xlu0 %v5906, 1
    %v5995 = vpop.permute.xlu0 %5994
    %v5996 = vsel %vm3964, %v5993, 0.0
    %v5997 = vsel %vm3964, %v5995, 0.0
    %5998 = vrot.lane.b32.xlu0 %v5905, 1
    %v5999 = vpop.permute.xlu0 %5998
    %6000 = vrot.lane.b32.xlu0 %v5907, 1
    %v6001 = vpop.permute.xlu0 %6000
    %v6002 = vsel %vm3964, %v5999, 0.0
    %v6003 = vsel %vm3964, %v6001, 0.0
    %v6004 = vpack.c.bf16 %v5997, %v5996
    %v6005 = vpack.c.bf16 %v6003, %v6002
    %v6006 = vpack.c.bf16 %v5906, %v5904
    %v6007 = vpack.c.bf16 %v5907, %v5905
    %6008 = vrot.lane.b32.xlu0 %v5904, 127
    %v6009 = vpop.permute.xlu0 %6008
    %6010 = vrot.lane.b32.xlu0 %v5906, 127
    %v6011 = vpop.permute.xlu0 %6010
    %v6012 = vsel %vm3981, %v6009, 0.0
    %v6013 = vsel %vm3981, %v6011, 0.0
    %6014 = vrot.lane.b32.xlu0 %v5905, 127
    %v6015 = vpop.permute.xlu0 %6014
    %6016 = vrot.lane.b32.xlu0 %v5907, 127
    %v6017 = vpop.permute.xlu0 %6016
    %v6018 = vsel %vm3981, %v6015, 0.0
    %v6019 = vsel %vm3981, %v6017, 0.0
    %v6020 = vpack.c.bf16 %v6013, %v6012
    %v6021 = vpack.c.bf16 %v6019, %v6018
    %6022 = vrot.lane.b32.xlu0 %v5904, 126
    %v6023 = vpop.permute.xlu0 %6022
    %6024 = vrot.lane.b32.xlu0 %v5906, 126
    %v6025 = vpop.permute.xlu0 %6024
    %v6026 = vsel %vm3996, %v6023, 0.0
    %v6027 = vsel %vm3996, %v6025, 0.0
    %6028 = vrot.lane.b32.xlu0 %v5905, 126
    %v6029 = vpop.permute.xlu0 %6028
    %6030 = vrot.lane.b32.xlu0 %v5907, 126
    %v6031 = vpop.permute.xlu0 %6030
    %v6032 = vsel %vm3996, %v6029, 0.0
    %v6033 = vsel %vm3996, %v6031, 0.0
    %v6034 = vpack.c.bf16 %v6027, %v6026
    %v6035 = vpack.c.bf16 %v6033, %v6032
    %6036 = vrot.lane.b32.xlu0 %v5904, 125
    %v6037 = vpop.permute.xlu0 %6036
    %6038 = vrot.lane.b32.xlu0 %v5906, 125
    %v6039 = vpop.permute.xlu0 %6038
    %v6040 = vsel %vm4011, %v6037, 0.0
    %v6041 = vsel %vm4011, %v6039, 0.0
    %6042 = vrot.lane.b32.xlu0 %v5905, 125
    %v6043 = vpop.permute.xlu0 %6042
    %6044 = vrot.lane.b32.xlu0 %v5907, 125
    %v6045 = vpop.permute.xlu0 %6044
    %v6046 = vsel %vm4011, %v6043, 0.0
    %v6047 = vsel %vm4011, %v6045, 0.0
    %v6048 = vpack.c.bf16 %v6041, %v6040
    %v6049 = vpack.c.bf16 %v6047, %v6046
    %6050 = vrot.lane.b32.xlu0 %v5904, 124
    %v6051 = vpop.permute.xlu0 %6050
    %6052 = vrot.lane.b32.xlu0 %v5906, 124
    %v6053 = vpop.permute.xlu0 %6052
    %v6054 = vsel %vm4026, %v6051, 0.0
    %v6055 = vsel %vm4026, %v6053, 0.0
    %6056 = vrot.lane.b32.xlu0 %v5905, 124
    %v6057 = vpop.permute.xlu0 %6056
    %6058 = vrot.lane.b32.xlu0 %v5907, 124
    %v6059 = vpop.permute.xlu0 %6058
    %v6060 = vsel %vm4026, %v6057, 0.0
    %v6061 = vsel %vm4026, %v6059, 0.0
    %v6062 = vpack.c.bf16 %v6055, %v6054
    %v6063 = vpack.c.bf16 %v6061, %v6060
    %6064 = vrot.lane.b32.xlu0 %v5904, 123
    %v6065 = vpop.permute.xlu0 %6064
    %6066 = vrot.lane.b32.xlu0 %v5906, 123
    %v6067 = vpop.permute.xlu0 %6066
    %v6068 = vsel %vm4041, %v6065, 0.0
    %v6069 = vsel %vm4041, %v6067, 0.0
    %6070 = vrot.lane.b32.xlu0 %v5905, 123
    %v6071 = vpop.permute.xlu0 %6070
    %6072 = vrot.lane.b32.xlu0 %v5907, 123
    %v6073 = vpop.permute.xlu0 %6072
    %v6074 = vsel %vm4041, %v6071, 0.0
    %v6075 = vsel %vm4041, %v6073, 0.0
    %v6076 = vpack.c.bf16 %v6069, %v6068
    %v6077 = vpack.c.bf16 %v6075, %v6074
    %6078 = vrot.lane.b32.xlu0 %v5904, 122
    %v6079 = vpop.permute.xlu0 %6078
    %6080 = vrot.lane.b32.xlu0 %v5906, 122
    %v6081 = vpop.permute.xlu0 %6080
    %v6082 = vsel %vm4056, %v6079, 0.0
    %v6083 = vsel %vm4056, %v6081, 0.0
    %6084 = vrot.lane.b32.xlu0 %v5905, 122
    %v6085 = vpop.permute.xlu0 %6084
    %6086 = vrot.lane.b32.xlu0 %v5907, 122
    %v6087 = vpop.permute.xlu0 %6086
    %v6088 = vsel %vm4056, %v6085, 0.0
    %v6089 = vsel %vm4056, %v6087, 0.0
    %v6090 = vpack.c.bf16 %v6083, %v6082
    %v6091 = vpack.c.bf16 %v6089, %v6088
    %6092 = vrot.lane.b32.xlu0 %v5904, 121
    %v6093 = vpop.permute.xlu0 %6092
    %6094 = vrot.lane.b32.xlu0 %v5906, 121
    %v6095 = vpop.permute.xlu0 %6094
    %v6096 = vsel %vm4071, %v6093, 0.0
    %v6097 = vsel %vm4071, %v6095, 0.0
    %6098 = vrot.lane.b32.xlu0 %v5905, 121
    %v6099 = vpop.permute.xlu0 %6098
    %6100 = vrot.lane.b32.xlu0 %v5907, 121
    %v6101 = vpop.permute.xlu0 %6100
    %v6102 = vsel %vm4071, %v6099, 0.0
    %v6103 = vsel %vm4071, %v6101, 0.0
    %v6104 = vpack.c.bf16 %v6097, %v6096
    %v6105 = vpack.c.bf16 %v6103, %v6102
    %6106 = vrot.lane.b32.xlu0 %v5904, 120
    %v6107 = vpop.permute.xlu0 %6106
    %6108 = vrot.lane.b32.xlu0 %v5906, 120
    %v6109 = vpop.permute.xlu0 %6108
    %v6110 = vsel %vm4086, %v6107, 0.0
    %v6111 = vsel %vm4086, %v6109, 0.0
    %6112 = vrot.lane.b32.xlu0 %v5905, 120
    %v6113 = vpop.permute.xlu0 %6112
    %6114 = vrot.lane.b32.xlu0 %v5907, 120
    %v6115 = vpop.permute.xlu0 %6114
    %v6116 = vsel %vm4086, %v6113, 0.0
    %v6117 = vsel %vm4086, %v6115, 0.0
    %v6118 = vpack.c.bf16 %v6111, %v6110
    %v6119 = vpack.c.bf16 %v6117, %v6116
    %6120 = vmatprep.subr.bf16.mxu0 %v5921
    %6121 = vmatpush1.bf16.msra.mxu0 %v5920
    %6122 = vmatprep.subr.bf16.mxu0 %v5935
    %6123 = vmatpush1.bf16.msra.mxu0 %v5934
    %6124 = vmatprep.subr.bf16.mxu0 %v5949
    %6125 = vmatpush1.bf16.msra.mxu0 %v5948
    %6126 = vmatprep.subr.bf16.mxu0 %v5963
    %6127 = vmatpush1.bf16.msra.mxu0 %v5962
    %6128 = vmatprep.subr.bf16.mxu0 %v5977
    %6129 = vmatpush1.bf16.msra.mxu0 %v5976
    %6130 = vmatprep.subr.bf16.mxu0 %v5991
    %6131 = vmatpush1.bf16.msra.mxu0 %v5990
    %6132 = vmatprep.subr.bf16.mxu0 %v6005
    %6133 = vmatpush1.bf16.msra.mxu0 %v6004
    %6134 = vmatprep.subr.bf16.mxu0 %v6007
    %6135 = vmatpush1.bf16.msra.mxu0 %v6006
    %6136 = vmatprep.subr.bf16.mxu0 0
    %6137 = vmatpush1.bf16.msra.mxu0 0
    %6138 = vmatprep.subr.bf16.mxu0 0
    %6139 = vmatpush1.bf16.msra.mxu0 0
    %6140 = vmatprep.subr.bf16.mxu0 0
    %6141 = vmatpush1.bf16.msra.mxu0 0
    %6142 = vmatprep.subr.bf16.mxu0 0
    %6143 = vmatpush1.bf16.msra.mxu0 0
    %6144 = vmatprep.subr.bf16.mxu0 0
    %6145 = vmatpush1.bf16.msra.mxu0 0
    %6146 = vmatprep.subr.bf16.mxu0 0
    %6147 = vmatpush1.bf16.msra.mxu0 0
    %6148 = vmatprep.subr.bf16.mxu0 0
    %6149 = vmatpush1.bf16.msra.mxu0 0
    %6150 = vmatprep.subr.bf16.mxu0 0
    %6151 = vmatpush1.bf16.msra.mxu0 0
    %6152 = vmatprep.mubr.bf16.mxu0 0
    %6153 = vmatmul.mubr.bf16.gmra.mrb[0].mxu0 %v4101
    %v6154 = vpop.f32.mrb[0].mxu0
    %v6155 = vadd.f32 0.0, %v6154
    %v6156 = vpop.f32.mrb[0].mxu0
    %v6157 = vadd.f32 0.0, %v6156
    %v6158 = vpop.f32.mrb[0].mxu0
    %v6159 = vadd.f32 0.0, %v6158
    %v6160 = vpop.f32.mrb[0].mxu0
    %v6161 = vadd.f32 0.0, %v6160
    %6162 = vdwg.mxu0
    %6163 = vmatprep.subr.bf16.mxu0 %v6021
    %6164 = vmatpush1.bf16.msra.mxu0 %v6020
    %6165 = vmatprep.subr.bf16.mxu0 %v6035
    %6166 = vmatpush1.bf16.msra.mxu0 %v6034
    %6167 = vmatprep.subr.bf16.mxu0 %v6049
    %6168 = vmatpush1.bf16.msra.mxu0 %v6048
    %6169 = vmatprep.subr.bf16.mxu0 %v6063
    %6170 = vmatpush1.bf16.msra.mxu0 %v6062
    %6171 = vmatprep.subr.bf16.mxu0 %v6077
    %6172 = vmatpush1.bf16.msra.mxu0 %v6076
    %6173 = vmatprep.subr.bf16.mxu0 %v6091
    %6174 = vmatpush1.bf16.msra.mxu0 %v6090
    %6175 = vmatprep.subr.bf16.mxu0 %v6105
    %6176 = vmatpush1.bf16.msra.mxu0 %v6104
    %6177 = vmatprep.subr.bf16.mxu0 %v6119
    %6178 = vmatpush1.bf16.msra.mxu0 %v6118
    %6179 = vmatprep.subr.bf16.mxu0 0
    %6180 = vmatpush1.bf16.msra.mxu0 0
    %6181 = vmatprep.subr.bf16.mxu0 0
    %6182 = vmatpush1.bf16.msra.mxu0 0
    %6183 = vmatprep.subr.bf16.mxu0 0
    %6184 = vmatpush1.bf16.msra.mxu0 0
    %6185 = vmatprep.subr.bf16.mxu0 0
    %6186 = vmatpush1.bf16.msra.mxu0 0
    %6187 = vmatprep.subr.bf16.mxu0 0
    %6188 = vmatpush1.bf16.msra.mxu0 0
    %6189 = vmatprep.subr.bf16.mxu0 0
    %6190 = vmatpush1.bf16.msra.mxu0 0
    %6191 = vmatprep.subr.bf16.mxu0 0
    %6192 = vmatpush1.bf16.msra.mxu0 0
    %6193 = vmatprep.subr.bf16.mxu0 0
    %6194 = vmatpush1.bf16.msra.mxu0 0
    %6195 = vmatprep.mubr.bf16.mxu0 0
    %6196 = vmatmul.mubr.bf16.gmra.mrb[0].mxu0 %v4150
    %v6197 = vpop.f32.mrb[0].mxu0
    %v6198 = vadd.f32 0.0, %v6197
    %v6199 = vpop.f32.mrb[0].mxu0
    %v6200 = vadd.f32 0.0, %v6199
    %v6201 = vpop.f32.mrb[0].mxu0
    %v6202 = vadd.f32 0.0, %v6201
    %v6203 = vpop.f32.mrb[0].mxu0
    %v6204 = vadd.f32 0.0, %v6203
    %6205 = vdwg.mxu0
    %v6206 = vadd.f32 %v6155, %v6159
    %v6207 = vadd.f32 %v6157, %v6161
    %v6208 = vadd.f32 %v6206, %v6198
    %v6209 = vadd.f32 %v6207, %v6200
    %v6210 = vadd.f32 %v6208, %v6202
    %v6211 = vadd.f32 %v6209, %v6204
    %v6212 = vadd.f32 %v6210, %v4204
    %v6213 = vadd.f32 %v6211, %v4204
    %v6214 = vmul.f32 %v5817, 0.25
    %v6215 = vmul.f32 %v5818, 0.25
    %v6216 = vmin.f32 %v5823, 1.0
    %v6217 = vmin.f32 %v5824, 1.0
    %v6218 = vsub.f32 1.0, %v6216
    %v6219 = vsub.f32 1.0, %v6217
    %v6220 = vmul.f32 %v6214, %v6218
    %v6221 = vmul.f32 %v6215, %v6219
    %v6222 = vadd.f32 %v6220, %v6212
    %v6223 = vadd.f32 %v6221, %v6213
    %v6224 = vfloor.f32 %v6222
    %v6225 = vfloor.f32 %v6223
    %v6226 = vmax.f32 %v6224, 0.0
    %v6227 = vmax.f32 %v6225, 0.0
    %v6228 = vmin.f32 %v6226, 4.0
    %v6229 = vmin.f32 %v6227, 4.0
    %s6230 = scalar_lea.vmem [#allocation3], 320
    %v6231 = vld [vmem:[%s6230] sm:$0xff]
    %v6232 = vld [vmem:[%s6230 + $0x8] sm:$0xff]
    %v6233 = vld [vmem:[%s6230 + $0x10] sm:$0xff]
    %v6234 = vld [vmem:[%s6230 + $0x18] sm:$0xff]
    %v6235 = vld [vmem:[%s6230 + $0x20] sm:$0xff]
    %v6236 = vld [vmem:[%s6230 + $0x28] sm:$0xff]
    %v6237 = vld [vmem:[%s6230 + $0x30] sm:$0xff]
    %v6238 = vld [vmem:[%s6230 + $0x38] sm:$0xff]
    %v6239 = vmul.f32 %v6231, %v6228
    %v6240 = vmul.f32 %v6232, %v6229
    %v6241 = vmul.f32 %v6233, %v6228
    %v6242 = vmul.f32 %v6234, %v6229
    %v6243 = vmul.f32 %v6235, %v6228
    %v6244 = vmul.f32 %v6236, %v6229
    %v6245 = vmul.f32 %v6237, %v6228
    %v6246 = vmul.f32 %v6238, %v6229
    %v6247 = vadd.f32 %v5842, %v6239
    %v6248 = vadd.f32 %v5843, %v6240
    %v6249 = vadd.f32 %v5844, %v6241
    %v6250 = vadd.f32 %v5845, %v6242
    %v6251 = vadd.f32 %v5846, %v6243
    %v6252 = vadd.f32 %v5847, %v6244
    %v6253 = vadd.f32 %v5848, %v6245
    %v6254 = vadd.f32 %v5849, %v6246
    %v6255 = vld [vmem:[#allocation2 + $0x60] sm:$0xff]
    %v6256 = vld [vmem:[#allocation2 + $0x68] sm:$0xff]
    %v6257 = vmul.f32 %v5860, 0.25
    %v6258 = vmul.f32 %v5861, 0.25
    %v6259 = vmin.f32 %v5866, 1.0
    %v6260 = vmin.f32 %v5867, 1.0
    %v6261 = vsub.f32 1.0, %v6259
    %v6262 = vsub.f32 1.0, %v6260
    %v6263 = vmul.f32 %v6257, %v6261
    %v6264 = vmul.f32 %v6258, %v6262
    %v6265 = vadd.f32 %v6263, %v6255
    %v6266 = vadd.f32 %v6264, %v6256
    %v6267 = vfloor.f32 %v6265
    %v6268 = vfloor.f32 %v6266
    %v6269 = vmax.f32 %v6267, 0.0
    %v6270 = vmax.f32 %v6268, 0.0
    %v6271 = vmin.f32 %v6269, 4.0
    %v6272 = vmin.f32 %v6270, 4.0
    %v6273 = vmul.f32 %v3833, %v6271
    %v6274 = vmul.f32 %v3833, %v6272
    %v6275 = vmul.f32 %v3838, %v6271
    %v6276 = vmul.f32 %v3838, %v6272
    %v6277 = vadd.f32 %v6273, %v3847
    %v6278 = vadd.f32 %v6274, %v3847
    %v6279 = vadd.f32 %v6275, %v3852
    %v6280 = vadd.f32 %v6276, %v3852
    %v6281 = vmul.f32 %v5892, 0.25
    %v6282 = vmul.f32 %v5893, 0.25
    %v6283 = vmul.f32 %v5894, 0.25
    %v6284 = vmul.f32 %v5895, 0.25
    %v6285 = vmin.f32 %v5904, 1.0
    %v6286 = vmin.f32 %v5905, 1.0
    %v6287 = vmin.f32 %v5906, 1.0
    %v6288 = vmin.f32 %v5907, 1.0
    %v6289 = vsub.f32 1.0, %v6285
    %v6290 = vsub.f32 1.0, %v6286
    %v6291 = vsub.f32 1.0, %v6287
    %v6292 = vsub.f32 1.0, %v6288
    %v6293 = vmul.f32 %v6281, %v6289
    %v6294 = vmul.f32 %v6282, %v6290
    %v6295 = vmul.f32 %v6283, %v6291
    %v6296 = vmul.f32 %v6284, %v6292
    %v6297 = vadd.f32 %v6293, %v6277
    %v6298 = vadd.f32 %v6294, %v6278
    %v6299 = vadd.f32 %v6295, %v6279
    %v6300 = vadd.f32 %v6296, %v6280
    %v6301 = vfloor.f32 %v6297
    %v6302 = vfloor.f32 %v6298
    %v6303 = vfloor.f32 %v6299
    %v6304 = vfloor.f32 %v6300
    %v6305 = vmax.f32 %v6301, 0.0
    %v6306 = vmax.f32 %v6302, 0.0
    %v6307 = vmax.f32 %v6303, 0.0
    %v6308 = vmax.f32 %v6304, 0.0
    %v6309 = vmin.f32 %v6305, 4.0
    %v6310 = vmin.f32 %v6306, 4.0
    %v6311 = vmin.f32 %v6307, 4.0
    %v6312 = vmin.f32 %v6308, 4.0
    %6313 = vrot.lane.b32.xlu0 %v6309, 7
    %v6314 = vpop.permute.xlu0 %6313
    %6315 = vrot.lane.b32.xlu0 %v6311, 7
    %v6316 = vpop.permute.xlu0 %6315
    %v6317 = vsel %vm3874, %v6314, 0.0
    %v6318 = vsel %vm3874, %v6316, 0.0
    %6319 = vrot.lane.b32.xlu0 %v6310, 7
    %v6320 = vpop.permute.xlu0 %6319
    %6321 = vrot.lane.b32.xlu0 %v6312, 7
    %v6322 = vpop.permute.xlu0 %6321
    %v6323 = vsel %vm3874, %v6320, 0.0
    %v6324 = vsel %vm3874, %v6322, 0.0
    %v6325 = vpack.c.bf16 %v6318, %v6317
    %v6326 = vpack.c.bf16 %v6324, %v6323
    %6327 = vrot.lane.b32.xlu0 %v6309, 6
    %v6328 = vpop.permute.xlu0 %6327
    %6329 = vrot.lane.b32.xlu0 %v6311, 6
    %v6330 = vpop.permute.xlu0 %6329
    %v6331 = vsel %vm3889, %v6328, 0.0
    %v6332 = vsel %vm3889, %v6330, 0.0
    %6333 = vrot.lane.b32.xlu0 %v6310, 6
    %v6334 = vpop.permute.xlu0 %6333
    %6335 = vrot.lane.b32.xlu0 %v6312, 6
    %v6336 = vpop.permute.xlu0 %6335
    %v6337 = vsel %vm3889, %v6334, 0.0
    %v6338 = vsel %vm3889, %v6336, 0.0
    %v6339 = vpack.c.bf16 %v6332, %v6331
    %v6340 = vpack.c.bf16 %v6338, %v6337
    %6341 = vrot.lane.b32.xlu0 %v6309, 5
    %v6342 = vpop.permute.xlu0 %6341
    %6343 = vrot.lane.b32.xlu0 %v6311, 5
    %v6344 = vpop.permute.xlu0 %6343
    %v6345 = vsel %vm3904, %v6342, 0.0
    %v6346 = vsel %vm3904, %v6344, 0.0
    %6347 = vrot.lane.b32.xlu0 %v6310, 5
    %v6348 = vpop.permute.xlu0 %6347
    %6349 = vrot.lane.b32.xlu0 %v6312, 5
    %v6350 = vpop.permute.xlu0 %6349
    %v6351 = vsel %vm3904, %v6348, 0.0
    %v6352 = vsel %vm3904, %v6350, 0.0
    %v6353 = vpack.c.bf16 %v6346, %v6345
    %v6354 = vpack.c.bf16 %v6352, %v6351
    %6355 = vrot.lane.b32.xlu0 %v6309, 4
    %v6356 = vpop.permute.xlu0 %6355
    %6357 = vrot.lane.b32.xlu0 %v6311, 4
    %v6358 = vpop.permute.xlu0 %6357
    %v6359 = vsel %vm3919, %v6356, 0.0
    %v6360 = vsel %vm3919, %v6358, 0.0
    %6361 = vrot.lane.b32.xlu0 %v6310, 4
    %v6362 = vpop.permute.xlu0 %6361
    %6363 = vrot.lane.b32.xlu0 %v6312, 4
    %v6364 = vpop.permute.xlu0 %6363
    %v6365 = vsel %vm3919, %v6362, 0.0
    %v6366 = vsel %vm3919, %v6364, 0.0
    %v6367 = vpack.c.bf16 %v6360, %v6359
    %v6368 = vpack.c.bf16 %v6366, %v6365
    %6369 = vrot.lane.b32.xlu0 %v6309, 3
    %v6370 = vpop.permute.xlu0 %6369
    %6371 = vrot.lane.b32.xlu0 %v6311, 3
    %v6372 = vpop.permute.xlu0 %6371
    %v6373 = vsel %vm3934, %v6370, 0.0
    %v6374 = vsel %vm3934, %v6372, 0.0
    %6375 = vrot.lane.b32.xlu0 %v6310, 3
    %v6376 = vpop.permute.xlu0 %6375
    %6377 = vrot.lane.b32.xlu0 %v6312, 3
    %v6378 = vpop.permute.xlu0 %6377
    %v6379 = vsel %vm3934, %v6376, 0.0
    %v6380 = vsel %vm3934, %v6378, 0.0
    %v6381 = vpack.c.bf16 %v6374, %v6373
    %v6382 = vpack.c.bf16 %v6380, %v6379
    %6383 = vrot.lane.b32.xlu0 %v6309, 2
    %v6384 = vpop.permute.xlu0 %6383
    %6385 = vrot.lane.b32.xlu0 %v6311, 2
    %v6386 = vpop.permute.xlu0 %6385
    %v6387 = vsel %vm3949, %v6384, 0.0
    %v6388 = vsel %vm3949, %v6386, 0.0
    %6389 = vrot.lane.b32.xlu0 %v6310, 2
    %v6390 = vpop.permute.xlu0 %6389
    %6391 = vrot.lane.b32.xlu0 %v6312, 2
    %v6392 = vpop.permute.xlu0 %6391
    %v6393 = vsel %vm3949, %v6390, 0.0
    %v6394 = vsel %vm3949, %v6392, 0.0
    %v6395 = vpack.c.bf16 %v6388, %v6387
    %v6396 = vpack.c.bf16 %v6394, %v6393
    %6397 = vrot.lane.b32.xlu0 %v6309, 1
    %v6398 = vpop.permute.xlu0 %6397
    %6399 = vrot.lane.b32.xlu0 %v6311, 1
    %v6400 = vpop.permute.xlu0 %6399
    %v6401 = vsel %vm3964, %v6398, 0.0
    %v6402 = vsel %vm3964, %v6400, 0.0
    %6403 = vrot.lane.b32.xlu0 %v6310, 1
    %v6404 = vpop.permute.xlu0 %6403
    %6405 = vrot.lane.b32.xlu0 %v6312, 1
    %v6406 = vpop.permute.xlu0 %6405
    %v6407 = vsel %vm3964, %v6404, 0.0
    %v6408 = vsel %vm3964, %v6406, 0.0
    %v6409 = vpack.c.bf16 %v6402, %v6401
    %v6410 = vpack.c.bf16 %v6408, %v6407
    %v6411 = vpack.c.bf16 %v6311, %v6309
    %v6412 = vpack.c.bf16 %v6312, %v6310
    %6413 = vrot.lane.b32.xlu0 %v6309, 127
    %v6414 = vpop.permute.xlu0 %6413
    %6415 = vrot.lane.b32.xlu0 %v6311, 127
    %v6416 = vpop.permute.xlu0 %6415
    %v6417 = vsel %vm3981, %v6414, 0.0
    %v6418 = vsel %vm3981, %v6416, 0.0
    %6419 = vrot.lane.b32.xlu0 %v6310, 127
    %v6420 = vpop.permute.xlu0 %6419
    %6421 = vrot.lane.b32.xlu0 %v6312, 127
    %v6422 = vpop.permute.xlu0 %6421
    %v6423 = vsel %vm3981, %v6420, 0.0
    %v6424 = vsel %vm3981, %v6422, 0.0
    %v6425 = vpack.c.bf16 %v6418, %v6417
    %v6426 = vpack.c.bf16 %v6424, %v6423
    %6427 = vrot.lane.b32.xlu0 %v6309, 126
    %v6428 = vpop.permute.xlu0 %6427
    %6429 = vrot.lane.b32.xlu0 %v6311, 126
    %v6430 = vpop.permute.xlu0 %6429
    %v6431 = vsel %vm3996, %v6428, 0.0
    %v6432 = vsel %vm3996, %v6430, 0.0
    %6433 = vrot.lane.b32.xlu0 %v6310, 126
    %v6434 = vpop.permute.xlu0 %6433
    %6435 = vrot.lane.b32.xlu0 %v6312, 126
    %v6436 = vpop.permute.xlu0 %6435
    %v6437 = vsel %vm3996, %v6434, 0.0
    %v6438 = vsel %vm3996, %v6436, 0.0
    %v6439 = vpack.c.bf16 %v6432, %v6431
    %v6440 = vpack.c.bf16 %v6438, %v6437
    %6441 = vrot.lane.b32.xlu0 %v6309, 125
    %v6442 = vpop.permute.xlu0 %6441
    %6443 = vrot.lane.b32.xlu0 %v6311, 125
    %v6444 = vpop.permute.xlu0 %6443
    %v6445 = vsel %vm4011, %v6442, 0.0
    %v6446 = vsel %vm4011, %v6444, 0.0
    %6447 = vrot.lane.b32.xlu0 %v6310, 125
    %v6448 = vpop.permute.xlu0 %6447
    %6449 = vrot.lane.b32.xlu0 %v6312, 125
    %v6450 = vpop.permute.xlu0 %6449
    %v6451 = vsel %vm4011, %v6448, 0.0
    %v6452 = vsel %vm4011, %v6450, 0.0
    %v6453 = vpack.c.bf16 %v6446, %v6445
    %v6454 = vpack.c.bf16 %v6452, %v6451
    %6455 = vrot.lane.b32.xlu0 %v6309, 124
    %v6456 = vpop.permute.xlu0 %6455
    %6457 = vrot.lane.b32.xlu0 %v6311, 124
    %v6458 = vpop.permute.xlu0 %6457
    %v6459 = vsel %vm4026, %v6456, 0.0
    %v6460 = vsel %vm4026, %v6458, 0.0
    %6461 = vrot.lane.b32.xlu0 %v6310, 124
    %v6462 = vpop.permute.xlu0 %6461
    %6463 = vrot.lane.b32.xlu0 %v6312, 124
    %v6464 = vpop.permute.xlu0 %6463
    %v6465 = vsel %vm4026, %v6462, 0.0
    %v6466 = vsel %vm4026, %v6464, 0.0
    %v6467 = vpack.c.bf16 %v6460, %v6459
    %v6468 = vpack.c.bf16 %v6466, %v6465
    %6469 = vrot.lane.b32.xlu0 %v6309, 123
    %v6470 = vpop.permute.xlu0 %6469
    %6471 = vrot.lane.b32.xlu0 %v6311, 123
    %v6472 = vpop.permute.xlu0 %6471
    %v6473 = vsel %vm4041, %v6470, 0.0
    %v6474 = vsel %vm4041, %v6472, 0.0
    %6475 = vrot.lane.b32.xlu0 %v6310, 123
    %v6476 = vpop.permute.xlu0 %6475
    %6477 = vrot.lane.b32.xlu0 %v6312, 123
    %v6478 = vpop.permute.xlu0 %6477
    %v6479 = vsel %vm4041, %v6476, 0.0
    %v6480 = vsel %vm4041, %v6478, 0.0
    %v6481 = vpack.c.bf16 %v6474, %v6473
    %v6482 = vpack.c.bf16 %v6480, %v6479
    %6483 = vrot.lane.b32.xlu0 %v6309, 122
    %v6484 = vpop.permute.xlu0 %6483
    %6485 = vrot.lane.b32.xlu0 %v6311, 122
    %v6486 = vpop.permute.xlu0 %6485
    %v6487 = vsel %vm4056, %v6484, 0.0
    %v6488 = vsel %vm4056, %v6486, 0.0
    %6489 = vrot.lane.b32.xlu0 %v6310, 122
    %v6490 = vpop.permute.xlu0 %6489
    %6491 = vrot.lane.b32.xlu0 %v6312, 122
    %v6492 = vpop.permute.xlu0 %6491
    %v6493 = vsel %vm4056, %v6490, 0.0
    %v6494 = vsel %vm4056, %v6492, 0.0
    %v6495 = vpack.c.bf16 %v6488, %v6487
    %v6496 = vpack.c.bf16 %v6494, %v6493
    %6497 = vrot.lane.b32.xlu0 %v6309, 121
    %v6498 = vpop.permute.xlu0 %6497
    %6499 = vrot.lane.b32.xlu0 %v6311, 121
    %v6500 = vpop.permute.xlu0 %6499
    %v6501 = vsel %vm4071, %v6498, 0.0
    %v6502 = vsel %vm4071, %v6500, 0.0
    %6503 = vrot.lane.b32.xlu0 %v6310, 121
    %v6504 = vpop.permute.xlu0 %6503
    %6505 = vrot.lane.b32.xlu0 %v6312, 121
    %v6506 = vpop.permute.xlu0 %6505
    %v6507 = vsel %vm4071, %v6504, 0.0
    %v6508 = vsel %vm4071, %v6506, 0.0
    %v6509 = vpack.c.bf16 %v6502, %v6501
    %v6510 = vpack.c.bf16 %v6508, %v6507
    %6511 = vrot.lane.b32.xlu0 %v6309, 120
    %v6512 = vpop.permute.xlu0 %6511
    %6513 = vrot.lane.b32.xlu0 %v6311, 120
    %v6514 = vpop.permute.xlu0 %6513
    %v6515 = vsel %vm4086, %v6512, 0.0
    %v6516 = vsel %vm4086, %v6514, 0.0
    %6517 = vrot.lane.b32.xlu0 %v6310, 120
    %v6518 = vpop.permute.xlu0 %6517
    %6519 = vrot.lane.b32.xlu0 %v6312, 120
    %v6520 = vpop.permute.xlu0 %6519
    %v6521 = vsel %vm4086, %v6518, 0.0
    %v6522 = vsel %vm4086, %v6520, 0.0
    %v6523 = vpack.c.bf16 %v6516, %v6515
    %v6524 = vpack.c.bf16 %v6522, %v6521
    %6525 = vmatprep.subr.bf16.mxu0 %v6326
    %6526 = vmatpush1.bf16.msra.mxu0 %v6325
    %6527 = vmatprep.subr.bf16.mxu0 %v6340
    %6528 = vmatpush1.bf16.msra.mxu0 %v6339
    %6529 = vmatprep.subr.bf16.mxu0 %v6354
    %6530 = vmatpush1.bf16.msra.mxu0 %v6353
    %6531 = vmatprep.subr.bf16.mxu0 %v6368
    %6532 = vmatpush1.bf16.msra.mxu0 %v6367
    %6533 = vmatprep.subr.bf16.mxu0 %v6382
    %6534 = vmatpush1.bf16.msra.mxu0 %v6381
    %6535 = vmatprep.subr.bf16.mxu0 %v6396
    %6536 = vmatpush1.bf16.msra.mxu0 %v6395
    %6537 = vmatprep.subr.bf16.mxu0 %v6410
    %6538 = vmatpush1.bf16.msra.mxu0 %v6409
    %6539 = vmatprep.subr.bf16.mxu0 %v6412
    %6540 = vmatpush1.bf16.msra.mxu0 %v6411
    %6541 = vmatprep.subr.bf16.mxu0 0
    %6542 = vmatpush1.bf16.msra.mxu0 0
    %6543 = vmatprep.subr.bf16.mxu0 0
    %6544 = vmatpush1.bf16.msra.mxu0 0
    %6545 = vmatprep.subr.bf16.mxu0 0
    %6546 = vmatpush1.bf16.msra.mxu0 0
    %6547 = vmatprep.subr.bf16.mxu0 0
    %6548 = vmatpush1.bf16.msra.mxu0 0
    %6549 = vmatprep.subr.bf16.mxu0 0
    %6550 = vmatpush1.bf16.msra.mxu0 0
    %6551 = vmatprep.subr.bf16.mxu0 0
    %6552 = vmatpush1.bf16.msra.mxu0 0
    %6553 = vmatprep.subr.bf16.mxu0 0
    %6554 = vmatpush1.bf16.msra.mxu0 0
    %6555 = vmatprep.subr.bf16.mxu0 0
    %6556 = vmatpush1.bf16.msra.mxu0 0
    %6557 = vmatprep.mubr.bf16.mxu0 0
    %6558 = vmatmul.mubr.bf16.gmra.mrb[0].mxu0 %v4101
    %v6559 = vpop.f32.mrb[0].mxu0
    %v6560 = vadd.f32 0.0, %v6559
    %v6561 = vpop.f32.mrb[0].mxu0
    %v6562 = vadd.f32 0.0, %v6561
    %v6563 = vpop.f32.mrb[0].mxu0
    %v6564 = vadd.f32 0.0, %v6563
    %v6565 = vpop.f32.mrb[0].mxu0
    %v6566 = vadd.f32 0.0, %v6565
    %6567 = vdwg.mxu0
    %6568 = vmatprep.subr.bf16.mxu0 %v6426
    %6569 = vmatpush1.bf16.msra.mxu0 %v6425
    %6570 = vmatprep.subr.bf16.mxu0 %v6440
    %6571 = vmatpush1.bf16.msra.mxu0 %v6439
    %6572 = vmatprep.subr.bf16.mxu0 %v6454
    %6573 = vmatpush1.bf16.msra.mxu0 %v6453
    %6574 = vmatprep.subr.bf16.mxu0 %v6468
    %6575 = vmatpush1.bf16.msra.mxu0 %v6467
    %6576 = vmatprep.subr.bf16.mxu0 %v6482
    %6577 = vmatpush1.bf16.msra.mxu0 %v6481
    %6578 = vmatprep.subr.bf16.mxu0 %v6496
    %6579 = vmatpush1.bf16.msra.mxu0 %v6495
    %6580 = vmatprep.subr.bf16.mxu0 %v6510
    %6581 = vmatpush1.bf16.msra.mxu0 %v6509
    %6582 = vmatprep.subr.bf16.mxu0 %v6524
    %6583 = vmatpush1.bf16.msra.mxu0 %v6523
    %6584 = vmatprep.subr.bf16.mxu0 0
    %6585 = vmatpush1.bf16.msra.mxu0 0
    %6586 = vmatprep.subr.bf16.mxu0 0
    %6587 = vmatpush1.bf16.msra.mxu0 0
    %6588 = vmatprep.subr.bf16.mxu0 0
    %6589 = vmatpush1.bf16.msra.mxu0 0
    %6590 = vmatprep.subr.bf16.mxu0 0
    %6591 = vmatpush1.bf16.msra.mxu0 0
    %6592 = vmatprep.subr.bf16.mxu0 0
    %6593 = vmatpush1.bf16.msra.mxu0 0
    %6594 = vmatprep.subr.bf16.mxu0 0
    %6595 = vmatpush1.bf16.msra.mxu0 0
    %6596 = vmatprep.subr.bf16.mxu0 0
    %6597 = vmatpush1.bf16.msra.mxu0 0
    %6598 = vmatprep.subr.bf16.mxu0 0
    %6599 = vmatpush1.bf16.msra.mxu0 0
    %6600 = vmatprep.mubr.bf16.mxu0 0
    %6601 = vmatmul.mubr.bf16.gmra.mrb[0].mxu0 %v4150
    %v6602 = vpop.f32.mrb[0].mxu0
    %v6603 = vadd.f32 0.0, %v6602
    %v6604 = vpop.f32.mrb[0].mxu0
    %v6605 = vadd.f32 0.0, %v6604
    %v6606 = vpop.f32.mrb[0].mxu0
    %v6607 = vadd.f32 0.0, %v6606
    %v6608 = vpop.f32.mrb[0].mxu0
    %v6609 = vadd.f32 0.0, %v6608
    %6610 = vdwg.mxu0
    %v6611 = vadd.f32 %v6560, %v6564
    %v6612 = vadd.f32 %v6562, %v6566
    %v6613 = vadd.f32 %v6611, %v6603
    %v6614 = vadd.f32 %v6612, %v6605
    %v6615 = vadd.f32 %v6613, %v6607
    %v6616 = vadd.f32 %v6614, %v6609
    %v6617 = vadd.f32 %v6615, %v4204
    %v6618 = vadd.f32 %v6616, %v4204
    %v6619 = vmul.f32 %v6222, 0.25
    %v6620 = vmul.f32 %v6223, 0.25
    %v6621 = vmin.f32 %v6228, 1.0
    %v6622 = vmin.f32 %v6229, 1.0
    %v6623 = vsub.f32 1.0, %v6621
    %v6624 = vsub.f32 1.0, %v6622
    %v6625 = vmul.f32 %v6619, %v6623
    %v6626 = vmul.f32 %v6620, %v6624
    %v6627 = vadd.f32 %v6625, %v6617
    %v6628 = vadd.f32 %v6626, %v6618
    %v6629 = vfloor.f32 %v6627
    %v6630 = vfloor.f32 %v6628
    %v6631 = vmax.f32 %v6629, 0.0
    %v6632 = vmax.f32 %v6630, 0.0
    %v6633 = vmin.f32 %v6631, 4.0
    %v6634 = vmin.f32 %v6632, 4.0
    %s6635 = scalar_lea.vmem [#allocation3], 384
    %v6636 = vld [vmem:[%s6635] sm:$0xff]
    %v6637 = vld [vmem:[%s6635 + $0x8] sm:$0xff]
    %v6638 = vld [vmem:[%s6635 + $0x10] sm:$0xff]
    %v6639 = vld [vmem:[%s6635 + $0x18] sm:$0xff]
    %v6640 = vld [vmem:[%s6635 + $0x20] sm:$0xff]
    %v6641 = vld [vmem:[%s6635 + $0x28] sm:$0xff]
    %v6642 = vld [vmem:[%s6635 + $0x30] sm:$0xff]
    %v6643 = vld [vmem:[%s6635 + $0x38] sm:$0xff]
    %v6644 = vmul.f32 %v6636, %v6633
    %v6645 = vmul.f32 %v6637, %v6634
    %v6646 = vmul.f32 %v6638, %v6633
    %v6647 = vmul.f32 %v6639, %v6634
    %v6648 = vmul.f32 %v6640, %v6633
    %v6649 = vmul.f32 %v6641, %v6634
    %v6650 = vmul.f32 %v6642, %v6633
    %v6651 = vmul.f32 %v6643, %v6634
    %v6652 = vadd.f32 %v6247, %v6644
    %v6653 = vadd.f32 %v6248, %v6645
    %v6654 = vadd.f32 %v6249, %v6646
    %v6655 = vadd.f32 %v6250, %v6647
    %v6656 = vadd.f32 %v6251, %v6648
    %v6657 = vadd.f32 %v6252, %v6649
    %v6658 = vadd.f32 %v6253, %v6650
    %v6659 = vadd.f32 %v6254, %v6651
    %v6660 = vld [vmem:[#allocation2 + $0x70] sm:$0xff]
    %v6661 = vld [vmem:[#allocation2 + $0x78] sm:$0xff]
    %v6662 = vmul.f32 %v6265, 0.25
    %v6663 = vmul.f32 %v6266, 0.25
    %v6664 = vmin.f32 %v6271, 1.0
    %v6665 = vmin.f32 %v6272, 1.0
    %v6666 = vsub.f32 1.0, %v6664
    %v6667 = vsub.f32 1.0, %v6665
    %v6668 = vmul.f32 %v6662, %v6666
    %v6669 = vmul.f32 %v6663, %v6667
    %v6670 = vadd.f32 %v6668, %v6660
    %v6671 = vadd.f32 %v6669, %v6661
    %v6672 = vfloor.f32 %v6670
    %v6673 = vfloor.f32 %v6671
    %v6674 = vmax.f32 %v6672, 0.0
    %v6675 = vmax.f32 %v6673, 0.0
    %v6676 = vmin.f32 %v6674, 4.0
    %v6677 = vmin.f32 %v6675, 4.0
    %v6678 = vmul.f32 %v3833, %v6676
    %v6679 = vmul.f32 %v3833, %v6677
    %v6680 = vmul.f32 %v3838, %v6676
    %v6681 = vmul.f32 %v3838, %v6677
    %v6682 = vadd.f32 %v6678, %v3847
    %v6683 = vadd.f32 %v6679, %v3847
    %v6684 = vadd.f32 %v6680, %v3852
    %v6685 = vadd.f32 %v6681, %v3852
    %v6686 = vmul.f32 %v6297, 0.25
    %v6687 = vmul.f32 %v6298, 0.25
    %v6688 = vmul.f32 %v6299, 0.25
    %v6689 = vmul.f32 %v6300, 0.25
    %v6690 = vmin.f32 %v6309, 1.0
    %v6691 = vmin.f32 %v6310, 1.0
    %v6692 = vmin.f32 %v6311, 1.0
    %v6693 = vmin.f32 %v6312, 1.0
    %v6694 = vsub.f32 1.0, %v6690
    %v6695 = vsub.f32 1.0, %v6691
    %v6696 = vsub.f32 1.0, %v6692
    %v6697 = vsub.f32 1.0, %v6693
    %v6698 = vmul.f32 %v6686, %v6694
    %v6699 = vmul.f32 %v6687, %v6695
    %v6700 = vmul.f32 %v6688, %v6696
    %v6701 = vmul.f32 %v6689, %v6697
    %v6702 = vadd.f32 %v6698, %v6682
    %v6703 = vadd.f32 %v6699, %v6683
    %v6704 = vadd.f32 %v6700, %v6684
    %v6705 = vadd.f32 %v6701, %v6685
    %v6706 = vfloor.f32 %v6702
    %v6707 = vfloor.f32 %v6703
    %v6708 = vfloor.f32 %v6704
    %v6709 = vfloor.f32 %v6705
    %v6710 = vmax.f32 %v6706, 0.0
    %v6711 = vmax.f32 %v6707, 0.0
    %v6712 = vmax.f32 %v6708, 0.0
    %v6713 = vmax.f32 %v6709, 0.0
    %v6714 = vmin.f32 %v6710, 4.0
    %v6715 = vmin.f32 %v6711, 4.0
    %v6716 = vmin.f32 %v6712, 4.0
    %v6717 = vmin.f32 %v6713, 4.0
    %6718 = vrot.lane.b32.xlu0 %v6714, 7
    %v6719 = vpop.permute.xlu0 %6718
    %6720 = vrot.lane.b32.xlu0 %v6716, 7
    %v6721 = vpop.permute.xlu0 %6720
    %v6722 = vsel %vm3874, %v6719, 0.0
    %v6723 = vsel %vm3874, %v6721, 0.0
    %6724 = vrot.lane.b32.xlu0 %v6715, 7
    %v6725 = vpop.permute.xlu0 %6724
    %6726 = vrot.lane.b32.xlu0 %v6717, 7
    %v6727 = vpop.permute.xlu0 %6726
    %v6728 = vsel %vm3874, %v6725, 0.0
    %v6729 = vsel %vm3874, %v6727, 0.0
    %v6730 = vpack.c.bf16 %v6723, %v6722
    %v6731 = vpack.c.bf16 %v6729, %v6728
    %6732 = vrot.lane.b32.xlu0 %v6714, 6
    %v6733 = vpop.permute.xlu0 %6732
    %6734 = vrot.lane.b32.xlu0 %v6716, 6
    %v6735 = vpop.permute.xlu0 %6734
    %v6736 = vsel %vm3889, %v6733, 0.0
    %v6737 = vsel %vm3889, %v6735, 0.0
    %6738 = vrot.lane.b32.xlu0 %v6715, 6
    %v6739 = vpop.permute.xlu0 %6738
    %6740 = vrot.lane.b32.xlu0 %v6717, 6
    %v6741 = vpop.permute.xlu0 %6740
    %v6742 = vsel %vm3889, %v6739, 0.0
    %v6743 = vsel %vm3889, %v6741, 0.0
    %v6744 = vpack.c.bf16 %v6737, %v6736
    %v6745 = vpack.c.bf16 %v6743, %v6742
    %6746 = vrot.lane.b32.xlu0 %v6714, 5
    %v6747 = vpop.permute.xlu0 %6746
    %6748 = vrot.lane.b32.xlu0 %v6716, 5
    %v6749 = vpop.permute.xlu0 %6748
    %v6750 = vsel %vm3904, %v6747, 0.0
    %v6751 = vsel %vm3904, %v6749, 0.0
    %6752 = vrot.lane.b32.xlu0 %v6715, 5
    %v6753 = vpop.permute.xlu0 %6752
    %6754 = vrot.lane.b32.xlu0 %v6717, 5
    %v6755 = vpop.permute.xlu0 %6754
    %v6756 = vsel %vm3904, %v6753, 0.0
    %v6757 = vsel %vm3904, %v6755, 0.0
    %v6758 = vpack.c.bf16 %v6751, %v6750
    %v6759 = vpack.c.bf16 %v6757, %v6756
    %6760 = vrot.lane.b32.xlu0 %v6714, 4
    %v6761 = vpop.permute.xlu0 %6760
    %6762 = vrot.lane.b32.xlu0 %v6716, 4
    %v6763 = vpop.permute.xlu0 %6762
    %v6764 = vsel %vm3919, %v6761, 0.0
    %v6765 = vsel %vm3919, %v6763, 0.0
    %6766 = vrot.lane.b32.xlu0 %v6715, 4
    %v6767 = vpop.permute.xlu0 %6766
    %6768 = vrot.lane.b32.xlu0 %v6717, 4
    %v6769 = vpop.permute.xlu0 %6768
    %v6770 = vsel %vm3919, %v6767, 0.0
    %v6771 = vsel %vm3919, %v6769, 0.0
    %v6772 = vpack.c.bf16 %v6765, %v6764
    %v6773 = vpack.c.bf16 %v6771, %v6770
    %6774 = vrot.lane.b32.xlu0 %v6714, 3
    %v6775 = vpop.permute.xlu0 %6774
    %6776 = vrot.lane.b32.xlu0 %v6716, 3
    %v6777 = vpop.permute.xlu0 %6776
    %v6778 = vsel %vm3934, %v6775, 0.0
    %v6779 = vsel %vm3934, %v6777, 0.0
    %6780 = vrot.lane.b32.xlu0 %v6715, 3
    %v6781 = vpop.permute.xlu0 %6780
    %6782 = vrot.lane.b32.xlu0 %v6717, 3
    %v6783 = vpop.permute.xlu0 %6782
    %v6784 = vsel %vm3934, %v6781, 0.0
    %v6785 = vsel %vm3934, %v6783, 0.0
    %v6786 = vpack.c.bf16 %v6779, %v6778
    %v6787 = vpack.c.bf16 %v6785, %v6784
    %6788 = vrot.lane.b32.xlu0 %v6714, 2
    %v6789 = vpop.permute.xlu0 %6788
    %6790 = vrot.lane.b32.xlu0 %v6716, 2
    %v6791 = vpop.permute.xlu0 %6790
    %v6792 = vsel %vm3949, %v6789, 0.0
    %v6793 = vsel %vm3949, %v6791, 0.0
    %6794 = vrot.lane.b32.xlu0 %v6715, 2
    %v6795 = vpop.permute.xlu0 %6794
    %6796 = vrot.lane.b32.xlu0 %v6717, 2
    %v6797 = vpop.permute.xlu0 %6796
    %v6798 = vsel %vm3949, %v6795, 0.0
    %v6799 = vsel %vm3949, %v6797, 0.0
    %v6800 = vpack.c.bf16 %v6793, %v6792
    %v6801 = vpack.c.bf16 %v6799, %v6798
    %6802 = vrot.lane.b32.xlu0 %v6714, 1
    %v6803 = vpop.permute.xlu0 %6802
    %6804 = vrot.lane.b32.xlu0 %v6716, 1
    %v6805 = vpop.permute.xlu0 %6804
    %v6806 = vsel %vm3964, %v6803, 0.0
    %v6807 = vsel %vm3964, %v6805, 0.0
    %6808 = vrot.lane.b32.xlu0 %v6715, 1
    %v6809 = vpop.permute.xlu0 %6808
    %6810 = vrot.lane.b32.xlu0 %v6717, 1
    %v6811 = vpop.permute.xlu0 %6810
    %v6812 = vsel %vm3964, %v6809, 0.0
    %v6813 = vsel %vm3964, %v6811, 0.0
    %v6814 = vpack.c.bf16 %v6807, %v6806
    %v6815 = vpack.c.bf16 %v6813, %v6812
    %v6816 = vpack.c.bf16 %v6716, %v6714
    %v6817 = vpack.c.bf16 %v6717, %v6715
    %6818 = vrot.lane.b32.xlu0 %v6714, 127
    %v6819 = vpop.permute.xlu0 %6818
    %6820 = vrot.lane.b32.xlu0 %v6716, 127
    %v6821 = vpop.permute.xlu0 %6820
    %v6822 = vsel %vm3981, %v6819, 0.0
    %v6823 = vsel %vm3981, %v6821, 0.0
    %6824 = vrot.lane.b32.xlu0 %v6715, 127
    %v6825 = vpop.permute.xlu0 %6824
    %6826 = vrot.lane.b32.xlu0 %v6717, 127
    %v6827 = vpop.permute.xlu0 %6826
    %v6828 = vsel %vm3981, %v6825, 0.0
    %v6829 = vsel %vm3981, %v6827, 0.0
    %v6830 = vpack.c.bf16 %v6823, %v6822
    %v6831 = vpack.c.bf16 %v6829, %v6828
    %6832 = vrot.lane.b32.xlu0 %v6714, 126
    %v6833 = vpop.permute.xlu0 %6832
    %6834 = vrot.lane.b32.xlu0 %v6716, 126
    %v6835 = vpop.permute.xlu0 %6834
    %v6836 = vsel %vm3996, %v6833, 0.0
    %v6837 = vsel %vm3996, %v6835, 0.0
    %6838 = vrot.lane.b32.xlu0 %v6715, 126
    %v6839 = vpop.permute.xlu0 %6838
    %6840 = vrot.lane.b32.xlu0 %v6717, 126
    %v6841 = vpop.permute.xlu0 %6840
    %v6842 = vsel %vm3996, %v6839, 0.0
    %v6843 = vsel %vm3996, %v6841, 0.0
    %v6844 = vpack.c.bf16 %v6837, %v6836
    %v6845 = vpack.c.bf16 %v6843, %v6842
    %6846 = vrot.lane.b32.xlu0 %v6714, 125
    %v6847 = vpop.permute.xlu0 %6846
    %6848 = vrot.lane.b32.xlu0 %v6716, 125
    %v6849 = vpop.permute.xlu0 %6848
    %v6850 = vsel %vm4011, %v6847, 0.0
    %v6851 = vsel %vm4011, %v6849, 0.0
    %6852 = vrot.lane.b32.xlu0 %v6715, 125
    %v6853 = vpop.permute.xlu0 %6852
    %6854 = vrot.lane.b32.xlu0 %v6717, 125
    %v6855 = vpop.permute.xlu0 %6854
    %v6856 = vsel %vm4011, %v6853, 0.0
    %v6857 = vsel %vm4011, %v6855, 0.0
    %v6858 = vpack.c.bf16 %v6851, %v6850
    %v6859 = vpack.c.bf16 %v6857, %v6856
    %6860 = vrot.lane.b32.xlu0 %v6714, 124
    %v6861 = vpop.permute.xlu0 %6860
    %6862 = vrot.lane.b32.xlu0 %v6716, 124
    %v6863 = vpop.permute.xlu0 %6862
    %v6864 = vsel %vm4026, %v6861, 0.0
    %v6865 = vsel %vm4026, %v6863, 0.0
    %6866 = vrot.lane.b32.xlu0 %v6715, 124
    %v6867 = vpop.permute.xlu0 %6866
    %6868 = vrot.lane.b32.xlu0 %v6717, 124
    %v6869 = vpop.permute.xlu0 %6868
    %v6870 = vsel %vm4026, %v6867, 0.0
    %v6871 = vsel %vm4026, %v6869, 0.0
    %v6872 = vpack.c.bf16 %v6865, %v6864
    %v6873 = vpack.c.bf16 %v6871, %v6870
    %6874 = vrot.lane.b32.xlu0 %v6714, 123
    %v6875 = vpop.permute.xlu0 %6874
    %6876 = vrot.lane.b32.xlu0 %v6716, 123
    %v6877 = vpop.permute.xlu0 %6876
    %v6878 = vsel %vm4041, %v6875, 0.0
    %v6879 = vsel %vm4041, %v6877, 0.0
    %6880 = vrot.lane.b32.xlu0 %v6715, 123
    %v6881 = vpop.permute.xlu0 %6880
    %6882 = vrot.lane.b32.xlu0 %v6717, 123
    %v6883 = vpop.permute.xlu0 %6882
    %v6884 = vsel %vm4041, %v6881, 0.0
    %v6885 = vsel %vm4041, %v6883, 0.0
    %v6886 = vpack.c.bf16 %v6879, %v6878
    %v6887 = vpack.c.bf16 %v6885, %v6884
    %6888 = vrot.lane.b32.xlu0 %v6714, 122
    %v6889 = vpop.permute.xlu0 %6888
    %6890 = vrot.lane.b32.xlu0 %v6716, 122
    %v6891 = vpop.permute.xlu0 %6890
    %v6892 = vsel %vm4056, %v6889, 0.0
    %v6893 = vsel %vm4056, %v6891, 0.0
    %6894 = vrot.lane.b32.xlu0 %v6715, 122
    %v6895 = vpop.permute.xlu0 %6894
    %6896 = vrot.lane.b32.xlu0 %v6717, 122
    %v6897 = vpop.permute.xlu0 %6896
    %v6898 = vsel %vm4056, %v6895, 0.0
    %v6899 = vsel %vm4056, %v6897, 0.0
    %v6900 = vpack.c.bf16 %v6893, %v6892
    %v6901 = vpack.c.bf16 %v6899, %v6898
    %6902 = vrot.lane.b32.xlu0 %v6714, 121
    %v6903 = vpop.permute.xlu0 %6902
    %6904 = vrot.lane.b32.xlu0 %v6716, 121
    %v6905 = vpop.permute.xlu0 %6904
    %v6906 = vsel %vm4071, %v6903, 0.0
    %v6907 = vsel %vm4071, %v6905, 0.0
    %6908 = vrot.lane.b32.xlu0 %v6715, 121
    %v6909 = vpop.permute.xlu0 %6908
    %6910 = vrot.lane.b32.xlu0 %v6717, 121
    %v6911 = vpop.permute.xlu0 %6910
    %v6912 = vsel %vm4071, %v6909, 0.0
    %v6913 = vsel %vm4071, %v6911, 0.0
    %v6914 = vpack.c.bf16 %v6907, %v6906
    %v6915 = vpack.c.bf16 %v6913, %v6912
    %6916 = vrot.lane.b32.xlu0 %v6714, 120
    %v6917 = vpop.permute.xlu0 %6916
    %6918 = vrot.lane.b32.xlu0 %v6716, 120
    %v6919 = vpop.permute.xlu0 %6918
    %v6920 = vsel %vm4086, %v6917, 0.0
    %v6921 = vsel %vm4086, %v6919, 0.0
    %6922 = vrot.lane.b32.xlu0 %v6715, 120
    %v6923 = vpop.permute.xlu0 %6922
    %6924 = vrot.lane.b32.xlu0 %v6717, 120
    %v6925 = vpop.permute.xlu0 %6924
    %v6926 = vsel %vm4086, %v6923, 0.0
    %v6927 = vsel %vm4086, %v6925, 0.0
    %v6928 = vpack.c.bf16 %v6921, %v6920
    %v6929 = vpack.c.bf16 %v6927, %v6926
    %6930 = vmatprep.subr.bf16.mxu0 %v6731
    %6931 = vmatpush1.bf16.msra.mxu0 %v6730
    %6932 = vmatprep.subr.bf16.mxu0 %v6745
    %6933 = vmatpush1.bf16.msra.mxu0 %v6744
    %6934 = vmatprep.subr.bf16.mxu0 %v6759
    %6935 = vmatpush1.bf16.msra.mxu0 %v6758
    %6936 = vmatprep.subr.bf16.mxu0 %v6773
    %6937 = vmatpush1.bf16.msra.mxu0 %v6772
    %6938 = vmatprep.subr.bf16.mxu0 %v6787
    %6939 = vmatpush1.bf16.msra.mxu0 %v6786
    %6940 = vmatprep.subr.bf16.mxu0 %v6801
    %6941 = vmatpush1.bf16.msra.mxu0 %v6800
    %6942 = vmatprep.subr.bf16.mxu0 %v6815
    %6943 = vmatpush1.bf16.msra.mxu0 %v6814
    %6944 = vmatprep.subr.bf16.mxu0 %v6817
    %6945 = vmatpush1.bf16.msra.mxu0 %v6816
    %6946 = vmatprep.subr.bf16.mxu0 0
    %6947 = vmatpush1.bf16.msra.mxu0 0
    %6948 = vmatprep.subr.bf16.mxu0 0
    %6949 = vmatpush1.bf16.msra.mxu0 0
    %6950 = vmatprep.subr.bf16.mxu0 0
    %6951 = vmatpush1.bf16.msra.mxu0 0
    %6952 = vmatprep.subr.bf16.mxu0 0
    %6953 = vmatpush1.bf16.msra.mxu0 0
    %6954 = vmatprep.subr.bf16.mxu0 0
    %6955 = vmatpush1.bf16.msra.mxu0 0
    %6956 = vmatprep.subr.bf16.mxu0 0
    %6957 = vmatpush1.bf16.msra.mxu0 0
    %6958 = vmatprep.subr.bf16.mxu0 0
    %6959 = vmatpush1.bf16.msra.mxu0 0
    %6960 = vmatprep.subr.bf16.mxu0 0
    %6961 = vmatpush1.bf16.msra.mxu0 0
    %6962 = vmatprep.mubr.bf16.mxu0 0
    %6963 = vmatmul.mubr.bf16.gmra.mrb[0].mxu0 %v4101
    %v6964 = vpop.f32.mrb[0].mxu0
    %v6965 = vadd.f32 0.0, %v6964
    %v6966 = vpop.f32.mrb[0].mxu0
    %v6967 = vadd.f32 0.0, %v6966
    %v6968 = vpop.f32.mrb[0].mxu0
    %v6969 = vadd.f32 0.0, %v6968
    %v6970 = vpop.f32.mrb[0].mxu0
    %v6971 = vadd.f32 0.0, %v6970
    %6972 = vdwg.mxu0
    %6973 = vmatprep.subr.bf16.mxu0 %v6831
    %6974 = vmatpush1.bf16.msra.mxu0 %v6830
    %6975 = vmatprep.subr.bf16.mxu0 %v6845
    %6976 = vmatpush1.bf16.msra.mxu0 %v6844
    %6977 = vmatprep.subr.bf16.mxu0 %v6859
    %6978 = vmatpush1.bf16.msra.mxu0 %v6858
    %6979 = vmatprep.subr.bf16.mxu0 %v6873
    %6980 = vmatpush1.bf16.msra.mxu0 %v6872
    %6981 = vmatprep.subr.bf16.mxu0 %v6887
    %6982 = vmatpush1.bf16.msra.mxu0 %v6886
    %6983 = vmatprep.subr.bf16.mxu0 %v6901
    %6984 = vmatpush1.bf16.msra.mxu0 %v6900
    %6985 = vmatprep.subr.bf16.mxu0 %v6915
    %6986 = vmatpush1.bf16.msra.mxu0 %v6914
    %6987 = vmatprep.subr.bf16.mxu0 %v6929
    %6988 = vmatpush1.bf16.msra.mxu0 %v6928
    %6989 = vmatprep.subr.bf16.mxu0 0
    %6990 = vmatpush1.bf16.msra.mxu0 0
    %6991 = vmatprep.subr.bf16.mxu0 0
    %6992 = vmatpush1.bf16.msra.mxu0 0
    %6993 = vmatprep.subr.bf16.mxu0 0
    %6994 = vmatpush1.bf16.msra.mxu0 0
    %6995 = vmatprep.subr.bf16.mxu0 0
    %6996 = vmatpush1.bf16.msra.mxu0 0
    %6997 = vmatprep.subr.bf16.mxu0 0
    %6998 = vmatpush1.bf16.msra.mxu0 0
    %6999 = vmatprep.subr.bf16.mxu0 0
    %7000 = vmatpush1.bf16.msra.mxu0 0
    %7001 = vmatprep.subr.bf16.mxu0 0
    %7002 = vmatpush1.bf16.msra.mxu0 0
    %7003 = vmatprep.subr.bf16.mxu0 0
    %7004 = vmatpush1.bf16.msra.mxu0 0
    %7005 = vmatprep.mubr.bf16.mxu0 0
    %7006 = vmatmul.mubr.bf16.gmra.mrb[0].mxu0 %v4150
    %v7007 = vpop.f32.mrb[0].mxu0
    %v7008 = vadd.f32 0.0, %v7007
    %v7009 = vpop.f32.mrb[0].mxu0
    %v7010 = vadd.f32 0.0, %v7009
    %v7011 = vpop.f32.mrb[0].mxu0
    %v7012 = vadd.f32 0.0, %v7011
    %v7013 = vpop.f32.mrb[0].mxu0
    %v7014 = vadd.f32 0.0, %v7013
    %7015 = vdwg.mxu0
    %v7016 = vadd.f32 %v6965, %v6969
    %v7017 = vadd.f32 %v6967, %v6971
    %v7018 = vadd.f32 %v7016, %v7008
    %v7019 = vadd.f32 %v7017, %v7010
    %v7020 = vadd.f32 %v7018, %v7012
    %v7021 = vadd.f32 %v7019, %v7014
    %v7022 = vadd.f32 %v7020, %v4204
    %v7023 = vadd.f32 %v7021, %v4204
    %v7024 = vmul.f32 %v6627, 0.25
    %v7025 = vmul.f32 %v6628, 0.25
    %v7026 = vmin.f32 %v6633, 1.0
    %v7027 = vmin.f32 %v6634, 1.0
    %v7028 = vsub.f32 1.0, %v7026
    %v7029 = vsub.f32 1.0, %v7027
    %v7030 = vmul.f32 %v7024, %v7028
    %v7031 = vmul.f32 %v7025, %v7029
    %v7032 = vadd.f32 %v7030, %v7022
    %v7033 = vadd.f32 %v7031, %v7023
    %v7034 = vfloor.f32 %v7032
    %v7035 = vfloor.f32 %v7033
    %v7036 = vmax.f32 %v7034, 0.0
    %v7037 = vmax.f32 %v7035, 0.0
    %v7038 = vmin.f32 %v7036, 4.0
    %v7039 = vmin.f32 %v7037, 4.0
    %s7040 = scalar_lea.vmem [#allocation3], 448
    %v7041 = vld [vmem:[%s7040] sm:$0xff]
    %v7042 = vld [vmem:[%s7040 + $0x8] sm:$0xff]
    %v7043 = vld [vmem:[%s7040 + $0x10] sm:$0xff]
    %v7044 = vld [vmem:[%s7040 + $0x18] sm:$0xff]
    %v7045 = vld [vmem:[%s7040 + $0x20] sm:$0xff]
    %v7046 = vld [vmem:[%s7040 + $0x28] sm:$0xff]
    %v7047 = vld [vmem:[%s7040 + $0x30] sm:$0xff]
    %v7048 = vld [vmem:[%s7040 + $0x38] sm:$0xff]
    %v7049 = vmul.f32 %v7041, %v7038
    %v7050 = vmul.f32 %v7042, %v7039
    %v7051 = vmul.f32 %v7043, %v7038
    %v7052 = vmul.f32 %v7044, %v7039
    %v7053 = vmul.f32 %v7045, %v7038
    %v7054 = vmul.f32 %v7046, %v7039
    %v7055 = vmul.f32 %v7047, %v7038
    %v7056 = vmul.f32 %v7048, %v7039
    %v7057 = vadd.f32 %v6652, %v7049
    %v7058 = vadd.f32 %v6653, %v7050
    %v7059 = vadd.f32 %v6654, %v7051
    %v7060 = vadd.f32 %v6655, %v7052
    %v7061 = vadd.f32 %v6656, %v7053
    %v7062 = vadd.f32 %v6657, %v7054
    %v7063 = vadd.f32 %v6658, %v7055
    %v7064 = vadd.f32 %v6659, %v7056
    %v7065 = vrot.slane %v7057, 4
    %v7066 = vadd.f32 %v7057, %v7065
    %v7067 = vrot.slane %v7066, 2
    %v7068 = vadd.f32 %v7066, %v7067
    %v7069 = vrot.slane %v7068, 1
    %v7070 = vadd.f32 %v7068, %v7069
    %v7071 = vrot.slane %v7058, 4
    %v7072 = vadd.f32 %v7058, %v7071
    %v7073 = vrot.slane %v7072, 2
    %v7074 = vadd.f32 %v7072, %v7073
    %v7075 = vrot.slane %v7074, 1
    %v7076 = vadd.f32 %v7074, %v7075
    %v7077 = vrot.slane %v7059, 4
    %v7078 = vadd.f32 %v7059, %v7077
    %v7079 = vrot.slane %v7078, 2
    %v7080 = vadd.f32 %v7078, %v7079
    %v7081 = vrot.slane %v7080, 1
    %v7082 = vadd.f32 %v7080, %v7081
    %v7083 = vrot.slane %v7060, 4
    %v7084 = vadd.f32 %v7060, %v7083
    %v7085 = vrot.slane %v7084, 2
    %v7086 = vadd.f32 %v7084, %v7085
    %v7087 = vrot.slane %v7086, 1
    %v7088 = vadd.f32 %v7086, %v7087
    %v7089 = vrot.slane %v7061, 4
    %v7090 = vadd.f32 %v7061, %v7089
    %v7091 = vrot.slane %v7090, 2
    %v7092 = vadd.f32 %v7090, %v7091
    %v7093 = vrot.slane %v7092, 1
    %v7094 = vadd.f32 %v7092, %v7093
    %v7095 = vrot.slane %v7062, 4
    %v7096 = vadd.f32 %v7062, %v7095
    %v7097 = vrot.slane %v7096, 2
    %v7098 = vadd.f32 %v7096, %v7097
    %v7099 = vrot.slane %v7098, 1
    %v7100 = vadd.f32 %v7098, %v7099
    %v7101 = vrot.slane %v7063, 4
    %v7102 = vadd.f32 %v7063, %v7101
    %v7103 = vrot.slane %v7102, 2
    %v7104 = vadd.f32 %v7102, %v7103
    %v7105 = vrot.slane %v7104, 1
    %v7106 = vadd.f32 %v7104, %v7105
    %v7107 = vrot.slane %v7064, 4
    %v7108 = vadd.f32 %v7064, %v7107
    %v7109 = vrot.slane %v7108, 2
    %v7110 = vadd.f32 %v7108, %v7109
    %v7111 = vrot.slane %v7110, 1
    %v7112 = vadd.f32 %v7110, %v7111
    %vm7113 = vcmask 1040384
    %v7114 = vsel %vm7113, %v7070, %v7082
    %v7115 = vsel %vm7113, %v7076, %v7088
    %vm7116 = vcmask 1041408
    %v7117 = vsel %vm7116, %v7114, %v7094
    %v7118 = vsel %vm7116, %v7115, %v7100
    %vm7119 = vcmask 1042432
    %v7120 = vsel %vm7119, %v7117, %v7106
    %v7121 = vsel %vm7119, %v7118, %v7112
    %vm7122 = vcmask 1043456
    %v7123 = vsel %vm7122, %v7120, 0.0
    %7124 = vadd.xlane.f32.xlu0 %v7123
    %v7125 = vpop.xlane.xlu0 %7124
    %v7126 = vsel %vm7122, %v7121, 0.0
    %7127 = vadd.xlane.f32.xlu0 %v7126
    %v7128 = vpop.xlane.xlu0 %7127
    %vm7129 = vcmask 7168
    %v7130 = vsel %vm7129, %v7125, %v7128
    %7132 = vset.pattern.permute.xlu0 0
    %7133 = vperm.xlu0 %7132, %v3815
    %v7134 = vpop.permute.xlu0 %7133
    %v7136 = vadd.f32 %v7130, %v7134
    %vm7137 = vcmask 11264
    %7138 = vst.msk [vmem:[%s9] sm:$0xf] %vm7137, %v7136
    // Predicated region
    $region42: #{spike_eegnet_forward.1} parent=1 // pred_check
      _
    $region43: #{spike_eegnet_forward.1} parent=1 // pred_check_branch
      %7140 = sbr.rel (0) target = $region45
    $region44: #{spike_eegnet_forward.1} parent=1 // pred_region
      _
    $region45: #{spike_eegnet_forward.1} parent=1 // pred_fallthru
      _
    // Predicated region
    $region46: #{spike_eegnet_forward.1} parent=1 // pred_check
      _
    $region47: #{spike_eegnet_forward.1} parent=1 // pred_check_branch
      %7142 = sbr.rel (0) target = $region49
    $region48: #{spike_eegnet_forward.1} parent=1 // pred_region
      _
    $region49: #{spike_eegnet_forward.1} parent=1 // pred_fallthru
      _
    %7143 = vsyncpa [#allocation4], 1

</llo_original>
